<compile_context>
chip_gen: v7x
topology: tpu7x:2x2x1
jax: 0.10.0
libtpu: 0.0.40
codegen_flags: <defaults>
</compile_context>

<pallas_src>
import functools

import jax
import jax.numpy as jnp
from jax import lax
from jax.experimental import pallas as pl
from jax.experimental.pallas import tpu as pltpu


# ----------------------------------------------------------------------------
# Fully fused forward kernel (both LSTM stacks + inter-stack projection).
# ----------------------------------------------------------------------------
def _make_fused_forward_kernel(L, T_h, T_f, B, H):
    G = 4 * H
    f32, bf16 = jnp.float32, jnp.bfloat16

    def kernel(*refs):
        pos = [0]

        def take(n):
            out = refs[pos[0]:pos[0] + n]
            pos[0] += n
            return out

        (hist_x,) = take(1)                   # (B, T_h, D_h) f32
        h_wih0, h_b0 = take(2)                # (D_h, 4H) f32, (1, 4H) f32
        h_wrec = list(take(L))                # (H, 8H)/(H, 4H) bf16 per layer
        h_bias = list(take(L - 1))            # (1, 4H) f32 for layers >= 1
        (fcst_x,) = take(1)                   # (B, T_f, D_f) f32
        f_wx0, f_wenc, f_b0 = take(3)         # (D_f,4H), (L*H,4H), (1,4H) f32
        f_wrec = list(take(L))
        f_bias = list(take(L - 1))
        y_ref, hn_ref, cn_ref = take(3)

        def lstm_cell(gates, c_prev):
            # gates: (B, 4H) f32, PyTorch gate order [i, f, g, o].
            sg = jax.nn.sigmoid(gates)                 # one full-tile EUP pass
            i_g = sg[:, 0:H]
            f_g = sg[:, H:2 * H]
            o_g = sg[:, 3 * H:4 * H]
            g_g = jnp.tanh(gates[:, 2 * H:3 * H])      # tanh only on g lanes
            c_new = f_g * c_prev + i_g * g_g
            h_new = o_g * jnp.tanh(c_new)
            return h_new, c_new

        def run_wavefront(T, wrec_refs, bias_refs, gates0_fn, store_y):
            # Hoist weight loads / bias broadcasts out of the recurrence.
            wrec = [wrec_refs[l][...] for l in range(L)]                 # bf16
            bias = [jnp.broadcast_to(bias_refs[l][...], (B, G))
                    for l in range(L - 1)]
            h = [jnp.zeros((B, H), f32) for _ in range(L)]
            c = [jnp.zeros((B, H), f32) for _ in range(L)]

            def active(l, it):
                return l <= it <= l + T - 1

            # Wavefront: at iteration `it`, layer l computes time step it - l.
            # All layers read iteration-start carries, so the serial chain per
            # iteration is one bf16 MXU push -> EUP -> VPU cell update.
            for it in range(T + L - 1):
                rec = [None] * L
                for l in range(L):
                    if active(l, it) or (l + 1 < L and active(l + 1, it)):
                        # One wide push per carry: [W_hh_l | W_ih_{l+1}] gives
                        # this layer's recurrence AND the next layer's input
                        # projection in a single matmul.
                        rec[l] = jnp.dot(h[l].astype(bf16), wrec[l],
                                         preferred_element_type=f32)
                h_nxt, c_nxt = list(h), list(c)
                for l in range(L):
                    if not active(l, it):
                        continue
                    t = it - l
                    if l == 0:
                        gates = gates0_fn(t) + rec[0][:, :G]
                    else:
                        gates = (bias[l - 1] + rec[l - 1][:, G:2 * G]
                                 + rec[l][:, :G])
                    h_nxt[l], c_nxt[l] = lstm_cell(gates, c[l])
                    if l == L - 1 and store_y is not None:
                        store_y(t, h_nxt[l])
                h, c = h_nxt, c_nxt
            return h, c

        # ---------------- history encoder stack ----------------
        h_wih0_v = h_wih0[...]
        h_b0_b = jnp.broadcast_to(h_b0[...], (B, G))

        def hist_gates0(t):
            # Off the recurrence chain: layer-0 input gates x_t @ W_ih0 + b0.
            return jnp.dot(hist_x[:, t, :], h_wih0_v,
                           preferred_element_type=f32) + h_b0_b

        h_fin, _ = run_wavefront(T_h, h_wrec, h_bias, hist_gates0, None)

        # ---- inter-stack projection enc @ W_enc + b0_f, computed ONCE ----
        # TODO(synk): original `hh[..., -1]` indexing is shape-inconsistent
        # unless rnn_size == 1; evident intent (full final h per layer) used.
        f_wenc_v = f_wenc[...]                                   # (L*H, 4H)
        base0_f = jnp.broadcast_to(f_b0[...], (B, G))
        for l in range(L):
            base0_f = base0_f + jnp.dot(h_fin[l],
                                        f_wenc_v[l * H:(l + 1) * H, :],
                                        preferred_element_type=f32)

        # ---------------- forecast RNN stack ----------------
        f_wx0_v = f_wx0[...]

        def fcst_gates0(t):
            return jnp.dot(fcst_x[:, t, :], f_wx0_v,
                           preferred_element_type=f32) + base0_f

        def store_y(t, h_val):
            y_ref[:, t, :] = h_val.astype(y_ref.dtype)   # batch-major (B,T,H)

        f_h, f_c = run_wavefront(T_f, f_wrec, f_bias, fcst_gates0, store_y)

        # Final states written once per layer (not every step).
        for l in range(L):
            hn_ref[l] = f_h[l].astype(hn_ref.dtype)
            cn_ref[l] = f_c[l].astype(cn_ref.dtype)

    return kernel


def _full_block_spec(shape):
    nd = len(shape)
    return pl.BlockSpec(tuple(shape), lambda *args, _nd=nd: (0,) * _nd)


def fused_forward_pallas(hist_x, fcst_x, packed, *, rnn_size, rnn_layers):
    """Single-launch fused forward. hist_x/fcst_x are (B, T, D) f32, B % 8 == 0."""
    B, T_h, _ = hist_x.shape
    _, T_f, _ = fcst_x.shape
    H, L = rnn_size, rnn_layers

    inputs = [hist_x, packed["h_wih0"], packed["h_b0"],
              *packed["h_wrec"], *packed["h_bias"],
              fcst_x, packed["f_wx0"], packed["f_wenc"], packed["f_b0"],
              *packed["f_wrec"], *packed["f_bias"]]
    in_specs = [_full_block_spec(a.shape) for a in inputs]

    out_shape = (jax.ShapeDtypeStruct((B, T_f, H), jnp.float32),
                 jax.ShapeDtypeStruct((L, B, H), jnp.float32),
                 jax.ShapeDtypeStruct((L, B, H), jnp.float32))
    out_specs = (_full_block_spec((B, T_f, H)),
                 _full_block_spec((L, B, H)),
                 _full_block_spec((L, B, H)))

    kernel = _make_fused_forward_kernel(L, T_h, T_f, B, H)

    return pl.pallas_call(
        kernel,
        out_shape=out_shape,
        grid_spec=pltpu.PrefetchScalarGridSpec(
            num_scalar_prefetch=0,
            grid=(1,),                    # single launch; all loops in-kernel
            in_specs=in_specs,
            out_specs=out_specs,
            scratch_shapes=[]),
        compiler_params=pltpu.CompilerParams(
            dimension_semantics=("arbitrary",)),
    )(*inputs)


# ----------------------------------------------------------------------------
# Parameter construction (PyTorch-shaped, pre-transposed) and kernel packing.
# ----------------------------------------------------------------------------
def init_lstm_params(key, input_size, hidden_size, num_layers):
    k = 1.0 / jnp.sqrt(jnp.float32(hidden_size))
    params = []
    for layer in range(num_layers):
        d_in = input_size if layer == 0 else hidden_size
        key, k1, k2, k3, k4 = jax.random.split(key, 5)
        # PyTorch shapes: weight_ih (4H, d_in), weight_hh (4H, H), biases (4H,)
        w_ih = jax.random.uniform(k1, (4 * hidden_size, d_in), jnp.float32, -k, k)
        w_hh = jax.random.uniform(k2, (4 * hidden_size, hidden_size), jnp.float32, -k, k)
        b_ih = jax.random.uniform(k3, (4 * hidden_size,), jnp.float32, -k, k)
        b_hh = jax.random.uniform(k4, (4 * hidden_size,), jnp.float32, -k, k)
        # Store transposed for x @ W, and fuse the two biases.
        params.append((w_ih.T, w_hh.T, (b_ih + b_hh)[None, :]))
    return params, key


def init_model_params(key, *, num_sites, input_size, rnn_size, rnn_layers, embedding_dim):
    key, ek = jax.random.split(key)
    embedding = jax.random.normal(ek, (num_sites, embedding_dim), jnp.float32)
    hist_params, key = init_lstm_params(key, input_size, rnn_size, rnn_layers)
    fcst_params, key = init_lstm_params(key, input_size + rnn_size * rnn_layers,
                                        rnn_size, rnn_layers)
    return {"embedding": embedding,
            "history_encoder": hist_params,
            "forecast_rnn": fcst_params}


def _pack_lstm_stack(layer_params):
    """Pack per-layer weights for the wavefront kernel.

    w_rec[l] = [W_hh_l | W_ih_{l+1}]  (H, 8H) bf16   for l < L-1
             =  W_hh_{L-1}            (H, 4H) bf16   for l = L-1
    biases    = fused (b_ih + b_hh)   (1, 4H) f32    for layers l >= 1
    """
    L = len(layer_params)
    w_rec, biases = [], []
    for l in range(L):
        w = layer_params[l][1]
        if l + 1 < L:
            w = jnp.concatenate([w, layer_params[l + 1][0]], axis=1)
        w_rec.append(w.astype(jnp.bfloat16))
        if l >= 1:
            biases.append(layer_params[l][2])
    return w_rec, biases


def pack_model_params(params, *, rnn_size, rnn_layers):
    """Done once at init time so the jitted forward contains no weight-prep ops."""
    H, L = rnn_size, rnn_layers
    hist = params["history_encoder"]
    fcst = params["forecast_rnn"]
    h_wrec, h_bias = _pack_lstm_stack(hist)
    f_wrec, f_bias = _pack_lstm_stack(fcst)
    f_wih0 = fcst[0][0]                       # (L*H + D, 4H)
    return {
        "h_wih0": hist[0][0],                 # (D, 4H) f32
        "h_b0": hist[0][2],                   # (1, 4H) f32
        "h_wrec": h_wrec, "h_bias": h_bias,
        "f_wenc": f_wih0[:L * H, :],          # (L*H, 4H) f32 (history-encoding rows)
        "f_wx0": f_wih0[L * H:, :],           # (D, 4H) f32   (raw forecast rows)
        "f_b0": fcst[0][2],
        "f_wrec": f_wrec, "f_bias": f_bias,
    }


# ----------------------------------------------------------------------------
# Model forward: pad batch, single fused Pallas launch, slice back.
# ----------------------------------------------------------------------------
def lstm_site_embedding_forward(packed_params, sites, history, forecast, target,
                                *, rnn_size, rnn_layers):
    # `target` is unused in the original forward; the `site_embeddings[sites]`
    # lookup there is dead (and invalid) code, so it is omitted here.
    del sites, target
    B = forecast.shape[0]
    # Pad batch to a multiple of 8 so f32 sublanes / MXU rows are filled.
    # Batch rows are independent, padded rows are sliced off below.
    B_pad = max(8, ((B + 7) // 8) * 8)
    if B_pad != B:
        bpad = ((0, B_pad - B), (0, 0), (0, 0))
        history = jnp.pad(history, bpad)
        forecast = jnp.pad(forecast, bpad)
    y, hn, cn = fused_forward_pallas(history.astype(jnp.float32),
                                     forecast.astype(jnp.float32),
                                     packed_params,
                                     rnn_size=rnn_size, rnn_layers=rnn_layers)
    return y[:B], (hn[:, :B], cn[:, :B])


# ----------------------------------------------------------------------------
# Pure-JAX reference (lax.scan, highest-precision matmuls) for correctness.
# ----------------------------------------------------------------------------
def _lstm_layer_ref(x_tm, w_ih, w_hh, b):
    T, B, _ = x_tm.shape
    H = w_hh.shape[0]
    hi = jax.lax.Precision.HIGHEST

    def step(carry, x_t):
        h, c = carry
        gates = (jnp.dot(x_t, w_ih, precision=hi)
                 + jnp.dot(h, w_hh, precision=hi) + b)
        i = jax.nn.sigmoid(gates[:, :H])
        f = jax.nn.sigmoid(gates[:, H:2 * H])
        g = jnp.tanh(gates[:, 2 * H:3 * H])
        o = jax.nn.sigmoid(gates[:, 3 * H:])
        c = f * c + i * g
        h = o * jnp.tanh(c)
        return (h, c), h

    (h, c), ys = lax.scan(step, (jnp.zeros((B, H), jnp.float32),
                                 jnp.zeros((B, H), jnp.float32)), x_tm)
    return ys, h, c


def _multi_layer_lstm_ref(x_tm, layer_params):
    y = x_tm
    hs, cs = [], []
    for (w_ih, w_hh, b) in layer_params:
        y, h, c = _lstm_layer_ref(y, w_ih, w_hh, b)
        hs.append(h)
        cs.append(c)
    return y, jnp.stack(hs, 0), jnp.stack(cs, 0)


def _forward_ref(params, sites, history, forecast, target, *, rnn_size, rnn_layers):
    del sites, target
    B, T_f = forecast.shape[0], forecast.shape[1]
    hist_tm = jnp.transpose(history, (1, 0, 2))
    _, hh, _ = _multi_layer_lstm_ref(hist_tm, params["history_encoder"])
    enc = jnp.transpose(hh, (1, 0, 2)).reshape(B, 1, rnn_layers * rnn_size)
    enc = jnp.broadcast_to(enc, (B, T_f, rnn_layers * rnn_size))
    fc_in = jnp.concatenate([enc, forecast], axis=-1)
    y, hn, cn = _multi_layer_lstm_ref(jnp.transpose(fc_in, (1, 0, 2)),
                                      params["forecast_rnn"])
    return jnp.transpose(y, (1, 0, 2)), (hn, cn)


# ----------------------------------------------------------------------------
if __name__ == "__main__":
    SITE_IDS = ["s0", "s1", "s2", "s3", "s4"]
    INPUT_SIZE = 8
    RNN_SIZE = 32
    RNN_LAYERS = 2
    EMBEDDING_DIM = 16
    BATCH = 2
    T_HIST = 10
    T_FCST = 8

    key = jax.random.PRNGKey(0)
    key, pkey = jax.random.split(key)
    params = init_model_params(pkey,
                               num_sites=len(SITE_IDS),
                               input_size=INPUT_SIZE,
                               rnn_size=RNN_SIZE,
                               rnn_layers=RNN_LAYERS,
                               embedding_dim=EMBEDDING_DIM)
    packed = pack_model_params(params, rnn_size=RNN_SIZE, rnn_layers=RNN_LAYERS)

    k1, k2, k3 = jax.random.split(key, 3)
    sites = jnp.array([1, 3], dtype=jnp.int32)
    history = jax.random.normal(k1, (BATCH, T_HIST, INPUT_SIZE), jnp.float32)
    forecast = jax.random.normal(k2, (BATCH, T_FCST, INPUT_SIZE), jnp.float32)
    target = jax.random.normal(k3, (BATCH, T_FCST, 1), jnp.float32)

    fwd = functools.partial(lstm_site_embedding_forward,
                            rnn_size=RNN_SIZE, rnn_layers=RNN_LAYERS)
    output, (hn, cn) = jax.block_until_ready(
        jax.jit(fwd)(packed, sites, history, forecast, target))

    assert output.shape == (BATCH, T_FCST, RNN_SIZE)
    assert hn.shape == (RNN_LAYERS, BATCH, RNN_SIZE)
    assert cn.shape == (RNN_LAYERS, BATCH, RNN_SIZE)

    # Correctness vs. a highest-precision f32 lax.scan reference.  The kernel's
    # recurrent matmuls use bf16 operands (f32 accumulation / carries), so
    # allow a few-1e-3 tolerance; logic errors would be orders of magnitude larger.
    ref_out, (ref_hn, ref_cn) = _forward_ref(params, sites, history, forecast, target,
                                             rnn_size=RNN_SIZE, rnn_layers=RNN_LAYERS)
    assert jnp.allclose(output, ref_out, atol=5e-3, rtol=5e-3)
    assert jnp.allclose(hn, ref_hn, atol=5e-3, rtol=5e-3)
    assert jnp.allclose(cn, ref_cn, atol=5e-3, rtol=5e-3)

    print("KERNEL_OK")
</pallas_src>

<mosaic_0001>
module attributes {stable_mosaic.version = 11 : i64} {
  func.func @kernel(%arg0: i32, %arg1: memref<8x10x8xf32, #tpu.memory_space<vmem>>, %arg2: memref<8x128xf32, #tpu.memory_space<vmem>>, %arg3: memref<1x128xf32, #tpu.memory_space<vmem>>, %arg4: memref<32x256xbf16, #tpu.memory_space<vmem>>, %arg5: memref<32x128xbf16, #tpu.memory_space<vmem>>, %arg6: memref<1x128xf32, #tpu.memory_space<vmem>>, %arg7: memref<8x8x8xf32, #tpu.memory_space<vmem>>, %arg8: memref<8x128xf32, #tpu.memory_space<vmem>>, %arg9: memref<64x128xf32, #tpu.memory_space<vmem>>, %arg10: memref<1x128xf32, #tpu.memory_space<vmem>>, %arg11: memref<32x256xbf16, #tpu.memory_space<vmem>>, %arg12: memref<32x128xbf16, #tpu.memory_space<vmem>>, %arg13: memref<1x128xf32, #tpu.memory_space<vmem>>, %arg14: memref<8x8x32xf32, #tpu.memory_space<vmem>>, %arg15: memref<2x8x32xf32, #tpu.memory_space<vmem>>, %arg16: memref<2x8x32xf32, #tpu.memory_space<vmem>>) attributes {dimension_semantics = [#tpu.dimension_semantics<arbitrary>], iteration_bounds = array<i64: 1>, scalar_prefetch = 0 : i64, scratch_operands = 0 : i64, tpu.core_type = #tpu.core_type<tc>, window_params = [{pipeline_mode = #tpu.pipeline_mode<synchronous>, transform_indices = @transform_0, window_bounds = array<i64: 8, 10, 8>}, {pipeline_mode = #tpu.pipeline_mode<synchronous>, transform_indices = @transform_1, window_bounds = array<i64: 8, 128>}, {pipeline_mode = #tpu.pipeline_mode<synchronous>, transform_indices = @transform_2, window_bounds = array<i64: 1, 128>}, {pipeline_mode = #tpu.pipeline_mode<synchronous>, transform_indices = @transform_3, window_bounds = array<i64: 32, 256>}, {pipeline_mode = #tpu.pipeline_mode<synchronous>, transform_indices = @transform_4, window_bounds = array<i64: 32, 128>}, {pipeline_mode = #tpu.pipeline_mode<synchronous>, transform_indices = @transform_5, window_bounds = array<i64: 1, 128>}, {pipeline_mode = #tpu.pipeline_mode<synchronous>, transform_indices = @transform_6, window_bounds = array<i64: 8, 8, 8>}, {pipeline_mode = #tpu.pipeline_mode<synchronous>, transform_indices = @transform_7, window_bounds = array<i64: 8, 128>}, {pipeline_mode = #tpu.pipeline_mode<synchronous>, transform_indices = @transform_8, window_bounds = array<i64: 64, 128>}, {pipeline_mode = #tpu.pipeline_mode<synchronous>, transform_indices = @transform_9, window_bounds = array<i64: 1, 128>}, {pipeline_mode = #tpu.pipeline_mode<synchronous>, transform_indices = @transform_10, window_bounds = array<i64: 32, 256>}, {pipeline_mode = #tpu.pipeline_mode<synchronous>, transform_indices = @transform_11, window_bounds = array<i64: 32, 128>}, {pipeline_mode = #tpu.pipeline_mode<synchronous>, transform_indices = @transform_12, window_bounds = array<i64: 1, 128>}, {pipeline_mode = #tpu.pipeline_mode<synchronous>, transform_indices = @transform_13, window_bounds = array<i64: 8, 8, 32>}, {pipeline_mode = #tpu.pipeline_mode<synchronous>, transform_indices = @transform_14, window_bounds = array<i64: 2, 8, 32>}, {pipeline_mode = #tpu.pipeline_mode<synchronous>, transform_indices = @transform_15, window_bounds = array<i64: 2, 8, 32>}]} {
    %c0 = arith.constant 0 : index
    %c0_0 = arith.constant 0 : index
    %0 = vector.load %arg2[%c0, %c0_0] : memref<8x128xf32, #tpu.memory_space<vmem>>, vector<8x128xf32>
    %c0_1 = arith.constant 0 : index
    %c0_2 = arith.constant 0 : index
    %1 = vector.load %arg3[%c0_1, %c0_2] : memref<1x128xf32, #tpu.memory_space<vmem>>, vector<1x128xf32>
    %2 = vector.shape_cast %1 : vector<1x128xf32> to vector<1x128xf32>
    %3 = vector.broadcast %2 : vector<1x128xf32> to vector<8x128xf32>
    %c0_3 = arith.constant 0 : index
    %c0_4 = arith.constant 0 : index
    %4 = vector.load %arg4[%c0_3, %c0_4] : memref<32x256xbf16, #tpu.memory_space<vmem>>, vector<32x256xbf16>
    %c0_5 = arith.constant 0 : index
    %c0_6 = arith.constant 0 : index
    %5 = vector.load %arg5[%c0_5, %c0_6] : memref<32x128xbf16, #tpu.memory_space<vmem>>, vector<32x128xbf16>
    %c0_7 = arith.constant 0 : index
    %c0_8 = arith.constant 0 : index
    %6 = vector.load %arg6[%c0_7, %c0_8] : memref<1x128xf32, #tpu.memory_space<vmem>>, vector<1x128xf32>
    %7 = vector.shape_cast %6 : vector<1x128xf32> to vector<1x128xf32>
    %8 = vector.broadcast %7 : vector<1x128xf32> to vector<8x128xf32>
    %cst = arith.constant 0.000000e+00 : f32
    %9 = vector.broadcast %cst : f32 to vector<8x32xf32>
    %cst_9 = arith.constant 0.000000e+00 : f32
    %10 = vector.broadcast %cst_9 : f32 to vector<8x32xf32>
    %cst_10 = arith.constant 0.000000e+00 : f32
    %11 = vector.broadcast %cst_10 : f32 to vector<8x32xf32>
    %cst_11 = arith.constant 0.000000e+00 : f32
    %12 = vector.broadcast %cst_11 : f32 to vector<8x32xf32>
    %13 = arith.truncf %9 : vector<8x32xf32> to vector<8x32xbf16>
    %cst_12 = arith.constant dense<0.000000e+00> : vector<8x256xf32>
    %14 = tpu.matmul %13, %4, %cst_12 {dimension_numbers = #tpu.dot_dimension_numbers<[1], [0], [0], [1], [0, 0, 1, 1], [], []>} : vector<8x32xbf16>, vector<32x256xbf16>, vector<8x256xf32> -> vector<8x256xf32>
    %c0_13 = arith.constant 0 : index
    %c0_14 = arith.constant 0 : index
    %c0_15 = arith.constant 0 : index
    %15 = vector.load %arg1[%c0_13, %c0_14, %c0_15] : memref<8x10x8xf32, #tpu.memory_space<vmem>>, vector<8x1x8xf32>
    %16 = vector.shape_cast %15 : vector<8x1x8xf32> to vector<8x8xf32>
    %cst_16 = arith.constant dense<0.000000e+00> : vector<8x128xf32>
    %17 = tpu.matmul %16, %0, %cst_16 {dimension_numbers = #tpu.dot_dimension_numbers<[1], [0], [0], [1], [0, 0, 1, 1], [], []>} : vector<8x8xf32>, vector<8x128xf32>, vector<8x128xf32> -> vector<8x128xf32>
    %18 = arith.addf %17, %3 : vector<8x128xf32>
    %19 = vector.extract_strided_slice %14 {offsets = [0, 0], sizes = [8, 128], strides = [1, 1]} : vector<8x256xf32> to vector<8x128xf32>
    %20 = arith.addf %18, %19 : vector<8x128xf32>
    %21 = arith.negf %20 : vector<8x128xf32>
    %22 = math.exp %21 : vector<8x128xf32>
    %cst_17 = arith.constant 1.000000e+00 : f32
    %23 = vector.broadcast %cst_17 : f32 to vector<8x128xf32>
    %24 = arith.addf %23, %22 : vector<8x128xf32>
    %25 = arith.divf %23, %24 : vector<8x128xf32>
    %26 = vector.extract_strided_slice %25 {offsets = [0, 0], sizes = [8, 32], strides = [1, 1]} : vector<8x128xf32> to vector<8x32xf32>
    %27 = vector.extract_strided_slice %25 {offsets = [0, 32], sizes = [8, 32], strides = [1, 1]} : vector<8x128xf32> to vector<8x32xf32>
    %28 = vector.extract_strided_slice %25 {offsets = [0, 96], sizes = [8, 32], strides = [1, 1]} : vector<8x128xf32> to vector<8x32xf32>
    %29 = vector.extract_strided_slice %20 {offsets = [0, 64], sizes = [8, 32], strides = [1, 1]} : vector<8x128xf32> to vector<8x32xf32>
    %30 = math.tanh %29 : vector<8x32xf32>
    %31 = arith.mulf %27, %11 : vector<8x32xf32>
    %32 = arith.mulf %26, %30 : vector<8x32xf32>
    %33 = arith.addf %31, %32 : vector<8x32xf32>
    %34 = math.tanh %33 : vector<8x32xf32>
    %35 = arith.mulf %28, %34 : vector<8x32xf32>
    %36 = arith.truncf %35 : vector<8x32xf32> to vector<8x32xbf16>
    %cst_18 = arith.constant dense<0.000000e+00> : vector<8x256xf32>
    %37 = tpu.matmul %36, %4, %cst_18 {dimension_numbers = #tpu.dot_dimension_numbers<[1], [0], [0], [1], [0, 0, 1, 1], [], []>} : vector<8x32xbf16>, vector<32x256xbf16>, vector<8x256xf32> -> vector<8x256xf32>
    %38 = arith.truncf %10 : vector<8x32xf32> to vector<8x32xbf16>
    %cst_19 = arith.constant dense<0.000000e+00> : vector<8x128xf32>
    %39 = tpu.matmul %38, %5, %cst_19 {dimension_numbers = #tpu.dot_dimension_numbers<[1], [0], [0], [1], [0, 0, 1, 1], [], []>} : vector<8x32xbf16>, vector<32x128xbf16>, vector<8x128xf32> -> vector<8x128xf32>
    %c0_20 = arith.constant 0 : index
    %c1 = arith.constant 1 : index
    %c0_21 = arith.constant 0 : index
    %40 = vector.load %arg1[%c0_20, %c1, %c0_21] : memref<8x10x8xf32, #tpu.memory_space<vmem>>, vector<8x1x8xf32>
    %41 = vector.shape_cast %40 : vector<8x1x8xf32> to vector<8x8xf32>
    %cst_22 = arith.constant dense<0.000000e+00> : vector<8x128xf32>
    %42 = tpu.matmul %41, %0, %cst_22 {dimension_numbers = #tpu.dot_dimension_numbers<[1], [0], [0], [1], [0, 0, 1, 1], [], []>} : vector<8x8xf32>, vector<8x128xf32>, vector<8x128xf32> -> vector<8x128xf32>
    %43 = arith.addf %42, %3 : vector<8x128xf32>
    %44 = vector.extract_strided_slice %37 {offsets = [0, 0], sizes = [8, 128], strides = [1, 1]} : vector<8x256xf32> to vector<8x128xf32>
    %45 = arith.addf %43, %44 : vector<8x128xf32>
    %46 = arith.negf %45 : vector<8x128xf32>
    %47 = math.exp %46 : vector<8x128xf32>
    %cst_23 = arith.constant 1.000000e+00 : f32
    %48 = vector.broadcast %cst_23 : f32 to vector<8x128xf32>
    %49 = arith.addf %48, %47 : vector<8x128xf32>
    %50 = arith.divf %48, %49 : vector<8x128xf32>
    %51 = vector.extract_strided_slice %50 {offsets = [0, 0], sizes = [8, 32], strides = [1, 1]} : vector<8x128xf32> to vector<8x32xf32>
    %52 = vector.extract_strided_slice %50 {offsets = [0, 32], sizes = [8, 32], strides = [1, 1]} : vector<8x128xf32> to vector<8x32xf32>
    %53 = vector.extract_strided_slice %50 {offsets = [0, 96], sizes = [8, 32], strides = [1, 1]} : vector<8x128xf32> to vector<8x32xf32>
    %54 = vector.extract_strided_slice %45 {offsets = [0, 64], sizes = [8, 32], strides = [1, 1]} : vector<8x128xf32> to vector<8x32xf32>
    %55 = math.tanh %54 : vector<8x32xf32>
    %56 = arith.mulf %52, %33 : vector<8x32xf32>
    %57 = arith.mulf %51, %55 : vector<8x32xf32>
    %58 = arith.addf %56, %57 : vector<8x32xf32>
    %59 = math.tanh %58 : vector<8x32xf32>
    %60 = arith.mulf %53, %59 : vector<8x32xf32>
    %61 = vector.extract_strided_slice %37 {offsets = [0, 128], sizes = [8, 128], strides = [1, 1]} : vector<8x256xf32> to vector<8x128xf32>
    %62 = arith.addf %8, %61 : vector<8x128xf32>
    %63 = arith.addf %62, %39 : vector<8x128xf32>
    %64 = arith.negf %63 : vector<8x128xf32>
    %65 = math.exp %64 : vector<8x128xf32>
    %cst_24 = arith.constant 1.000000e+00 : f32
    %66 = vector.broadcast %cst_24 : f32 to vector<8x128xf32>
    %67 = arith.addf %66, %65 : vector<8x128xf32>
    %68 = arith.divf %66, %67 : vector<8x128xf32>
    %69 = vector.extract_strided_slice %68 {offsets = [0, 0], sizes = [8, 32], strides = [1, 1]} : vector<8x128xf32> to vector<8x32xf32>
    %70 = vector.extract_strided_slice %68 {offsets = [0, 32], sizes = [8, 32], strides = [1, 1]} : vector<8x128xf32> to vector<8x32xf32>
    %71 = vector.extract_strided_slice %68 {offsets = [0, 96], sizes = [8, 32], strides = [1, 1]} : vector<8x128xf32> to vector<8x32xf32>
    %72 = vector.extract_strided_slice %63 {offsets = [0, 64], sizes = [8, 32], strides = [1, 1]} : vector<8x128xf32> to vector<8x32xf32>
    %73 = math.tanh %72 : vector<8x32xf32>
    %74 = arith.mulf %70, %12 : vector<8x32xf32>
    %75 = arith.mulf %69, %73 : vector<8x32xf32>
    %76 = arith.addf %74, %75 : vector<8x32xf32>
    %77 = math.tanh %76 : vector<8x32xf32>
    %78 = arith.mulf %71, %77 : vector<8x32xf32>
    %79 = arith.truncf %60 : vector<8x32xf32> to vector<8x32xbf16>
    %cst_25 = arith.constant dense<0.000000e+00> : vector<8x256xf32>
    %80 = tpu.matmul %79, %4, %cst_25 {dimension_numbers = #tpu.dot_dimension_numbers<[1], [0], [0], [1], [0, 0, 1, 1], [], []>} : vector<8x32xbf16>, vector<32x256xbf16>, vector<8x256xf32> -> vector<8x256xf32>
    %81 = arith.truncf %78 : vector<8x32xf32> to vector<8x32xbf16>
    %cst_26 = arith.constant dense<0.000000e+00> : vector<8x128xf32>
    %82 = tpu.matmul %81, %5, %cst_26 {dimension_numbers = #tpu.dot_dimension_numbers<[1], [0], [0], [1], [0, 0, 1, 1], [], []>} : vector<8x32xbf16>, vector<32x128xbf16>, vector<8x128xf32> -> vector<8x128xf32>
    %c0_27 = arith.constant 0 : index
    %c2 = arith.constant 2 : index
    %c0_28 = arith.constant 0 : index
    %83 = vector.load %arg1[%c0_27, %c2, %c0_28] : memref<8x10x8xf32, #tpu.memory_space<vmem>>, vector<8x1x8xf32>
    %84 = vector.shape_cast %83 : vector<8x1x8xf32> to vector<8x8xf32>
    %cst_29 = arith.constant dense<0.000000e+00> : vector<8x128xf32>
    %85 = tpu.matmul %84, %0, %cst_29 {dimension_numbers = #tpu.dot_dimension_numbers<[1], [0], [0], [1], [0, 0, 1, 1], [], []>} : vector<8x8xf32>, vector<8x128xf32>, vector<8x128xf32> -> vector<8x128xf32>
    %86 = arith.addf %85, %3 : vector<8x128xf32>
    %87 = vector.extract_strided_slice %80 {offsets = [0, 0], sizes = [8, 128], strides = [1, 1]} : vector<8x256xf32> to vector<8x128xf32>
    %88 = arith.addf %86, %87 : vector<8x128xf32>
    %89 = arith.negf %88 : vector<8x128xf32>
    %90 = math.exp %89 : vector<8x128xf32>
    %cst_30 = arith.constant 1.000000e+00 : f32
    %91 = vector.broadcast %cst_30 : f32 to vector<8x128xf32>
    %92 = arith.addf %91, %90 : vector<8x128xf32>
    %93 = arith.divf %91, %92 : vector<8x128xf32>
    %94 = vector.extract_strided_slice %93 {offsets = [0, 0], sizes = [8, 32], strides = [1, 1]} : vector<8x128xf32> to vector<8x32xf32>
    %95 = vector.extract_strided_slice %93 {offsets = [0, 32], sizes = [8, 32], strides = [1, 1]} : vector<8x128xf32> to vector<8x32xf32>
    %96 = vector.extract_strided_slice %93 {offsets = [0, 96], sizes = [8, 32], strides = [1, 1]} : vector<8x128xf32> to vector<8x32xf32>
    %97 = vector.extract_strided_slice %88 {offsets = [0, 64], sizes = [8, 32], strides = [1, 1]} : vector<8x128xf32> to vector<8x32xf32>
    %98 = math.tanh %97 : vector<8x32xf32>
    %99 = arith.mulf %95, %58 : vector<8x32xf32>
    %100 = arith.mulf %94, %98 : vector<8x32xf32>
    %101 = arith.addf %99, %100 : vector<8x32xf32>
    %102 = math.tanh %101 : vector<8x32xf32>
    %103 = arith.mulf %96, %102 : vector<8x32xf32>
    %104 = vector.extract_strided_slice %80 {offsets = [0, 128], sizes = [8, 128], strides = [1, 1]} : vector<8x256xf32> to vector<8x128xf32>
    %105 = arith.addf %8, %104 : vector<8x128xf32>
    %106 = arith.addf %105, %82 : vector<8x128xf32>
    %107 = arith.negf %106 : vector<8x128xf32>
    %108 = math.exp %107 : vector<8x128xf32>
    %cst_31 = arith.constant 1.000000e+00 : f32
    %109 = vector.broadcast %cst_31 : f32 to vector<8x128xf32>
    %110 = arith.addf %109, %108 : vector<8x128xf32>
    %111 = arith.divf %109, %110 : vector<8x128xf32>
    %112 = vector.extract_strided_slice %111 {offsets = [0, 0], sizes = [8, 32], strides = [1, 1]} : vector<8x128xf32> to vector<8x32xf32>
    %113 = vector.extract_strided_slice %111 {offsets = [0, 32], sizes = [8, 32], strides = [1, 1]} : vector<8x128xf32> to vector<8x32xf32>
    %114 = vector.extract_strided_slice %111 {offsets = [0, 96], sizes = [8, 32], strides = [1, 1]} : vector<8x128xf32> to vector<8x32xf32>
    %115 = vector.extract_strided_slice %106 {offsets = [0, 64], sizes = [8, 32], strides = [1, 1]} : vector<8x128xf32> to vector<8x32xf32>
    %116 = math.tanh %115 : vector<8x32xf32>
    %117 = arith.mulf %113, %76 : vector<8x32xf32>
    %118 = arith.mulf %112, %116 : vector<8x32xf32>
    %119 = arith.addf %117, %118 : vector<8x32xf32>
    %120 = math.tanh %119 : vector<8x32xf32>
    %121 = arith.mulf %114, %120 : vector<8x32xf32>
    %122 = arith.truncf %103 : vector<8x32xf32> to vector<8x32xbf16>
    %cst_32 = arith.constant dense<0.000000e+00> : vector<8x256xf32>
    %123 = tpu.matmul %122, %4, %cst_32 {dimension_numbers = #tpu.dot_dimension_numbers<[1], [0], [0], [1], [0, 0, 1, 1], [], []>} : vector<8x32xbf16>, vector<32x256xbf16>, vector<8x256xf32> -> vector<8x256xf32>
    %124 = arith.truncf %121 : vector<8x32xf32> to vector<8x32xbf16>
    %cst_33 = arith.constant dense<0.000000e+00> : vector<8x128xf32>
    %125 = tpu.matmul %124, %5, %cst_33 {dimension_numbers = #tpu.dot_dimension_numbers<[1], [0], [0], [1], [0, 0, 1, 1], [], []>} : vector<8x32xbf16>, vector<32x128xbf16>, vector<8x128xf32> -> vector<8x128xf32>
    %c0_34 = arith.constant 0 : index
    %c3 = arith.constant 3 : index
    %c0_35 = arith.constant 0 : index
    %126 = vector.load %arg1[%c0_34, %c3, %c0_35] : memref<8x10x8xf32, #tpu.memory_space<vmem>>, vector<8x1x8xf32>
    %127 = vector.shape_cast %126 : vector<8x1x8xf32> to vector<8x8xf32>
    %cst_36 = arith.constant dense<0.000000e+00> : vector<8x128xf32>
    %128 = tpu.matmul %127, %0, %cst_36 {dimension_numbers = #tpu.dot_dimension_numbers<[1], [0], [0], [1], [0, 0, 1, 1], [], []>} : vector<8x8xf32>, vector<8x128xf32>, vector<8x128xf32> -> vector<8x128xf32>
    %129 = arith.addf %128, %3 : vector<8x128xf32>
    %130 = vector.extract_strided_slice %123 {offsets = [0, 0], sizes = [8, 128], strides = [1, 1]} : vector<8x256xf32> to vector<8x128xf32>
    %131 = arith.addf %129, %130 : vector<8x128xf32>
    %132 = arith.negf %131 : vector<8x128xf32>
    %133 = math.exp %132 : vector<8x128xf32>
    %cst_37 = arith.constant 1.000000e+00 : f32
    %134 = vector.broadcast %cst_37 : f32 to vector<8x128xf32>
    %135 = arith.addf %134, %133 : vector<8x128xf32>
    %136 = arith.divf %134, %135 : vector<8x128xf32>
    %137 = vector.extract_strided_slice %136 {offsets = [0, 0], sizes = [8, 32], strides = [1, 1]} : vector<8x128xf32> to vector<8x32xf32>
    %138 = vector.extract_strided_slice %136 {offsets = [0, 32], sizes = [8, 32], strides = [1, 1]} : vector<8x128xf32> to vector<8x32xf32>
    %139 = vector.extract_strided_slice %136 {offsets = [0, 96], sizes = [8, 32], strides = [1, 1]} : vector<8x128xf32> to vector<8x32xf32>
    %140 = vector.extract_strided_slice %131 {offsets = [0, 64], sizes = [8, 32], strides = [1, 1]} : vector<8x128xf32> to vector<8x32xf32>
    %141 = math.tanh %140 : vector<8x32xf32>
    %142 = arith.mulf %138, %101 : vector<8x32xf32>
    %143 = arith.mulf %137, %141 : vector<8x32xf32>
    %144 = arith.addf %142, %143 : vector<8x32xf32>
    %145 = math.tanh %144 : vector<8x32xf32>
    %146 = arith.mulf %139, %145 : vector<8x32xf32>
    %147 = vector.extract_strided_slice %123 {offsets = [0, 128], sizes = [8, 128], strides = [1, 1]} : vector<8x256xf32> to vector<8x128xf32>
    %148 = arith.addf %8, %147 : vector<8x128xf32>
    %149 = arith.addf %148, %125 : vector<8x128xf32>
    %150 = arith.negf %149 : vector<8x128xf32>
    %151 = math.exp %150 : vector<8x128xf32>
    %cst_38 = arith.constant 1.000000e+00 : f32
    %152 = vector.broadcast %cst_38 : f32 to vector<8x128xf32>
    %153 = arith.addf %152, %151 : vector<8x128xf32>
    %154 = arith.divf %152, %153 : vector<8x128xf32>
    %155 = vector.extract_strided_slice %154 {offsets = [0, 0], sizes = [8, 32], strides = [1, 1]} : vector<8x128xf32> to vector<8x32xf32>
    %156 = vector.extract_strided_slice %154 {offsets = [0, 32], sizes = [8, 32], strides = [1, 1]} : vector<8x128xf32> to vector<8x32xf32>
    %157 = vector.extract_strided_slice %154 {offsets = [0, 96], sizes = [8, 32], strides = [1, 1]} : vector<8x128xf32> to vector<8x32xf32>
    %158 = vector.extract_strided_slice %149 {offsets = [0, 64], sizes = [8, 32], strides = [1, 1]} : vector<8x128xf32> to vector<8x32xf32>
    %159 = math.tanh %158 : vector<8x32xf32>
    %160 = arith.mulf %156, %119 : vector<8x32xf32>
    %161 = arith.mulf %155, %159 : vector<8x32xf32>
    %162 = arith.addf %160, %161 : vector<8x32xf32>
    %163 = math.tanh %162 : vector<8x32xf32>
    %164 = arith.mulf %157, %163 : vector<8x32xf32>
    %165 = arith.truncf %146 : vector<8x32xf32> to vector<8x32xbf16>
    %cst_39 = arith.constant dense<0.000000e+00> : vector<8x256xf32>
    %166 = tpu.matmul %165, %4, %cst_39 {dimension_numbers = #tpu.dot_dimension_numbers<[1], [0], [0], [1], [0, 0, 1, 1], [], []>} : vector<8x32xbf16>, vector<32x256xbf16>, vector<8x256xf32> -> vector<8x256xf32>
    %167 = arith.truncf %164 : vector<8x32xf32> to vector<8x32xbf16>
    %cst_40 = arith.constant dense<0.000000e+00> : vector<8x128xf32>
    %168 = tpu.matmul %167, %5, %cst_40 {dimension_numbers = #tpu.dot_dimension_numbers<[1], [0], [0], [1], [0, 0, 1, 1], [], []>} : vector<8x32xbf16>, vector<32x128xbf16>, vector<8x128xf32> -> vector<8x128xf32>
    %c0_41 = arith.constant 0 : index
    %c4 = arith.constant 4 : index
    %c0_42 = arith.constant 0 : index
    %169 = vector.load %arg1[%c0_41, %c4, %c0_42] : memref<8x10x8xf32, #tpu.memory_space<vmem>>, vector<8x1x8xf32>
    %170 = vector.shape_cast %169 : vector<8x1x8xf32> to vector<8x8xf32>
    %cst_43 = arith.constant dense<0.000000e+00> : vector<8x128xf32>
    %171 = tpu.matmul %170, %0, %cst_43 {dimension_numbers = #tpu.dot_dimension_numbers<[1], [0], [0], [1], [0, 0, 1, 1], [], []>} : vector<8x8xf32>, vector<8x128xf32>, vector<8x128xf32> -> vector<8x128xf32>
    %172 = arith.addf %171, %3 : vector<8x128xf32>
    %173 = vector.extract_strided_slice %166 {offsets = [0, 0], sizes = [8, 128], strides = [1, 1]} : vector<8x256xf32> to vector<8x128xf32>
    %174 = arith.addf %172, %173 : vector<8x128xf32>
    %175 = arith.negf %174 : vector<8x128xf32>
    %176 = math.exp %175 : vector<8x128xf32>
    %cst_44 = arith.constant 1.000000e+00 : f32
    %177 = vector.broadcast %cst_44 : f32 to vector<8x128xf32>
    %178 = arith.addf %177, %176 : vector<8x128xf32>
    %179 = arith.divf %177, %178 : vector<8x128xf32>
    %180 = vector.extract_strided_slice %179 {offsets = [0, 0], sizes = [8, 32], strides = [1, 1]} : vector<8x128xf32> to vector<8x32xf32>
    %181 = vector.extract_strided_slice %179 {offsets = [0, 32], sizes = [8, 32], strides = [1, 1]} : vector<8x128xf32> to vector<8x32xf32>
    %182 = vector.extract_strided_slice %179 {offsets = [0, 96], sizes = [8, 32], strides = [1, 1]} : vector<8x128xf32> to vector<8x32xf32>
    %183 = vector.extract_strided_slice %174 {offsets = [0, 64], sizes = [8, 32], strides = [1, 1]} : vector<8x128xf32> to vector<8x32xf32>
    %184 = math.tanh %183 : vector<8x32xf32>
    %185 = arith.mulf %181, %144 : vector<8x32xf32>
    %186 = arith.mulf %180, %184 : vector<8x32xf32>
    %187 = arith.addf %185, %186 : vector<8x32xf32>
    %188 = math.tanh %187 : vector<8x32xf32>
    %189 = arith.mulf %182, %188 : vector<8x32xf32>
    %190 = vector.extract_strided_slice %166 {offsets = [0, 128], sizes = [8, 128], strides = [1, 1]} : vector<8x256xf32> to vector<8x128xf32>
    %191 = arith.addf %8, %190 : vector<8x128xf32>
    %192 = arith.addf %191, %168 : vector<8x128xf32>
    %193 = arith.negf %192 : vector<8x128xf32>
    %194 = math.exp %193 : vector<8x128xf32>
    %cst_45 = arith.constant 1.000000e+00 : f32
    %195 = vector.broadcast %cst_45 : f32 to vector<8x128xf32>
    %196 = arith.addf %195, %194 : vector<8x128xf32>
    %197 = arith.divf %195, %196 : vector<8x128xf32>
    %198 = vector.extract_strided_slice %197 {offsets = [0, 0], sizes = [8, 32], strides = [1, 1]} : vector<8x128xf32> to vector<8x32xf32>
    %199 = vector.extract_strided_slice %197 {offsets = [0, 32], sizes = [8, 32], strides = [1, 1]} : vector<8x128xf32> to vector<8x32xf32>
    %200 = vector.extract_strided_slice %197 {offsets = [0, 96], sizes = [8, 32], strides = [1, 1]} : vector<8x128xf32> to vector<8x32xf32>
    %201 = vector.extract_strided_slice %192 {offsets = [0, 64], sizes = [8, 32], strides = [1, 1]} : vector<8x128xf32> to vector<8x32xf32>
    %202 = math.tanh %201 : vector<8x32xf32>
    %203 = arith.mulf %199, %162 : vector<8x32xf32>
    %204 = arith.mulf %198, %202 : vector<8x32xf32>
    %205 = arith.addf %203, %204 : vector<8x32xf32>
    %206 = math.tanh %205 : vector<8x32xf32>
    %207 = arith.mulf %200, %206 : vector<8x32xf32>
    %208 = arith.truncf %189 : vector<8x32xf32> to vector<8x32xbf16>
    %cst_46 = arith.constant dense<0.000000e+00> : vector<8x256xf32>
    %209 = tpu.matmul %208, %4, %cst_46 {dimension_numbers = #tpu.dot_dimension_numbers<[1], [0], [0], [1], [0, 0, 1, 1], [], []>} : vector<8x32xbf16>, vector<32x256xbf16>, vector<8x256xf32> -> vector<8x256xf32>
    %210 = arith.truncf %207 : vector<8x32xf32> to vector<8x32xbf16>
    %cst_47 = arith.constant dense<0.000000e+00> : vector<8x128xf32>
    %211 = tpu.matmul %210, %5, %cst_47 {dimension_numbers = #tpu.dot_dimension_numbers<[1], [0], [0], [1], [0, 0, 1, 1], [], []>} : vector<8x32xbf16>, vector<32x128xbf16>, vector<8x128xf32> -> vector<8x128xf32>
    %c0_48 = arith.constant 0 : index
    %c5 = arith.constant 5 : index
    %c0_49 = arith.constant 0 : index
    %212 = vector.load %arg1[%c0_48, %c5, %c0_49] : memref<8x10x8xf32, #tpu.memory_space<vmem>>, vector<8x1x8xf32>
    %213 = vector.shape_cast %212 : vector<8x1x8xf32> to vector<8x8xf32>
    %cst_50 = arith.constant dense<0.000000e+00> : vector<8x128xf32>
    %214 = tpu.matmul %213, %0, %cst_50 {dimension_numbers = #tpu.dot_dimension_numbers<[1], [0], [0], [1], [0, 0, 1, 1], [], []>} : vector<8x8xf32>, vector<8x128xf32>, vector<8x128xf32> -> vector<8x128xf32>
    %215 = arith.addf %214, %3 : vector<8x128xf32>
    %216 = vector.extract_strided_slice %209 {offsets = [0, 0], sizes = [8, 128], strides = [1, 1]} : vector<8x256xf32> to vector<8x128xf32>
    %217 = arith.addf %215, %216 : vector<8x128xf32>
    %218 = arith.negf %217 : vector<8x128xf32>
    %219 = math.exp %218 : vector<8x128xf32>
    %cst_51 = arith.constant 1.000000e+00 : f32
    %220 = vector.broadcast %cst_51 : f32 to vector<8x128xf32>
    %221 = arith.addf %220, %219 : vector<8x128xf32>
    %222 = arith.divf %220, %221 : vector<8x128xf32>
    %223 = vector.extract_strided_slice %222 {offsets = [0, 0], sizes = [8, 32], strides = [1, 1]} : vector<8x128xf32> to vector<8x32xf32>
    %224 = vector.extract_strided_slice %222 {offsets = [0, 32], sizes = [8, 32], strides = [1, 1]} : vector<8x128xf32> to vector<8x32xf32>
    %225 = vector.extract_strided_slice %222 {offsets = [0, 96], sizes = [8, 32], strides = [1, 1]} : vector<8x128xf32> to vector<8x32xf32>
    %226 = vector.extract_strided_slice %217 {offsets = [0, 64], sizes = [8, 32], strides = [1, 1]} : vector<8x128xf32> to vector<8x32xf32>
    %227 = math.tanh %226 : vector<8x32xf32>
    %228 = arith.mulf %224, %187 : vector<8x32xf32>
    %229 = arith.mulf %223, %227 : vector<8x32xf32>
    %230 = arith.addf %228, %229 : vector<8x32xf32>
    %231 = math.tanh %230 : vector<8x32xf32>
    %232 = arith.mulf %225, %231 : vector<8x32xf32>
    %233 = vector.extract_strided_slice %209 {offsets = [0, 128], sizes = [8, 128], strides = [1, 1]} : vector<8x256xf32> to vector<8x128xf32>
    %234 = arith.addf %8, %233 : vector<8x128xf32>
    %235 = arith.addf %234, %211 : vector<8x128xf32>
    %236 = arith.negf %235 : vector<8x128xf32>
    %237 = math.exp %236 : vector<8x128xf32>
    %cst_52 = arith.constant 1.000000e+00 : f32
    %238 = vector.broadcast %cst_52 : f32 to vector<8x128xf32>
    %239 = arith.addf %238, %237 : vector<8x128xf32>
    %240 = arith.divf %238, %239 : vector<8x128xf32>
    %241 = vector.extract_strided_slice %240 {offsets = [0, 0], sizes = [8, 32], strides = [1, 1]} : vector<8x128xf32> to vector<8x32xf32>
    %242 = vector.extract_strided_slice %240 {offsets = [0, 32], sizes = [8, 32], strides = [1, 1]} : vector<8x128xf32> to vector<8x32xf32>
    %243 = vector.extract_strided_slice %240 {offsets = [0, 96], sizes = [8, 32], strides = [1, 1]} : vector<8x128xf32> to vector<8x32xf32>
    %244 = vector.extract_strided_slice %235 {offsets = [0, 64], sizes = [8, 32], strides = [1, 1]} : vector<8x128xf32> to vector<8x32xf32>
    %245 = math.tanh %244 : vector<8x32xf32>
    %246 = arith.mulf %242, %205 : vector<8x32xf32>
    %247 = arith.mulf %241, %245 : vector<8x32xf32>
    %248 = arith.addf %246, %247 : vector<8x32xf32>
    %249 = math.tanh %248 : vector<8x32xf32>
    %250 = arith.mulf %243, %249 : vector<8x32xf32>
    %251 = arith.truncf %232 : vector<8x32xf32> to vector<8x32xbf16>
    %cst_53 = arith.constant dense<0.000000e+00> : vector<8x256xf32>
    %252 = tpu.matmul %251, %4, %cst_53 {dimension_numbers = #tpu.dot_dimension_numbers<[1], [0], [0], [1], [0, 0, 1, 1], [], []>} : vector<8x32xbf16>, vector<32x256xbf16>, vector<8x256xf32> -> vector<8x256xf32>
    %253 = arith.truncf %250 : vector<8x32xf32> to vector<8x32xbf16>
    %cst_54 = arith.constant dense<0.000000e+00> : vector<8x128xf32>
    %254 = tpu.matmul %253, %5, %cst_54 {dimension_numbers = #tpu.dot_dimension_numbers<[1], [0], [0], [1], [0, 0, 1, 1], [], []>} : vector<8x32xbf16>, vector<32x128xbf16>, vector<8x128xf32> -> vector<8x128xf32>
    %c0_55 = arith.constant 0 : index
    %c6 = arith.constant 6 : index
    %c0_56 = arith.constant 0 : index
    %255 = vector.load %arg1[%c0_55, %c6, %c0_56] : memref<8x10x8xf32, #tpu.memory_space<vmem>>, vector<8x1x8xf32>
    %256 = vector.shape_cast %255 : vector<8x1x8xf32> to vector<8x8xf32>
    %cst_57 = arith.constant dense<0.000000e+00> : vector<8x128xf32>
    %257 = tpu.matmul %256, %0, %cst_57 {dimension_numbers = #tpu.dot_dimension_numbers<[1], [0], [0], [1], [0, 0, 1, 1], [], []>} : vector<8x8xf32>, vector<8x128xf32>, vector<8x128xf32> -> vector<8x128xf32>
    %258 = arith.addf %257, %3 : vector<8x128xf32>
    %259 = vector.extract_strided_slice %252 {offsets = [0, 0], sizes = [8, 128], strides = [1, 1]} : vector<8x256xf32> to vector<8x128xf32>
    %260 = arith.addf %258, %259 : vector<8x128xf32>
    %261 = arith.negf %260 : vector<8x128xf32>
    %262 = math.exp %261 : vector<8x128xf32>
    %cst_58 = arith.constant 1.000000e+00 : f32
    %263 = vector.broadcast %cst_58 : f32 to vector<8x128xf32>
    %264 = arith.addf %263, %262 : vector<8x128xf32>
    %265 = arith.divf %263, %264 : vector<8x128xf32>
    %266 = vector.extract_strided_slice %265 {offsets = [0, 0], sizes = [8, 32], strides = [1, 1]} : vector<8x128xf32> to vector<8x32xf32>
    %267 = vector.extract_strided_slice %265 {offsets = [0, 32], sizes = [8, 32], strides = [1, 1]} : vector<8x128xf32> to vector<8x32xf32>
    %268 = vector.extract_strided_slice %265 {offsets = [0, 96], sizes = [8, 32], strides = [1, 1]} : vector<8x128xf32> to vector<8x32xf32>
    %269 = vector.extract_strided_slice %260 {offsets = [0, 64], sizes = [8, 32], strides = [1, 1]} : vector<8x128xf32> to vector<8x32xf32>
    %270 = math.tanh %269 : vector<8x32xf32>
    %271 = arith.mulf %267, %230 : vector<8x32xf32>
    %272 = arith.mulf %266, %270 : vector<8x32xf32>
    %273 = arith.addf %271, %272 : vector<8x32xf32>
    %274 = math.tanh %273 : vector<8x32xf32>
    %275 = arith.mulf %268, %274 : vector<8x32xf32>
    %276 = vector.extract_strided_slice %252 {offsets = [0, 128], sizes = [8, 128], strides = [1, 1]} : vector<8x256xf32> to vector<8x128xf32>
    %277 = arith.addf %8, %276 : vector<8x128xf32>
    %278 = arith.addf %277, %254 : vector<8x128xf32>
    %279 = arith.negf %278 : vector<8x128xf32>
    %280 = math.exp %279 : vector<8x128xf32>
    %cst_59 = arith.constant 1.000000e+00 : f32
    %281 = vector.broadcast %cst_59 : f32 to vector<8x128xf32>
    %282 = arith.addf %281, %280 : vector<8x128xf32>
    %283 = arith.divf %281, %282 : vector<8x128xf32>
    %284 = vector.extract_strided_slice %283 {offsets = [0, 0], sizes = [8, 32], strides = [1, 1]} : vector<8x128xf32> to vector<8x32xf32>
    %285 = vector.extract_strided_slice %283 {offsets = [0, 32], sizes = [8, 32], strides = [1, 1]} : vector<8x128xf32> to vector<8x32xf32>
    %286 = vector.extract_strided_slice %283 {offsets = [0, 96], sizes = [8, 32], strides = [1, 1]} : vector<8x128xf32> to vector<8x32xf32>
    %287 = vector.extract_strided_slice %278 {offsets = [0, 64], sizes = [8, 32], strides = [1, 1]} : vector<8x128xf32> to vector<8x32xf32>
    %288 = math.tanh %287 : vector<8x32xf32>
    %289 = arith.mulf %285, %248 : vector<8x32xf32>
    %290 = arith.mulf %284, %288 : vector<8x32xf32>
    %291 = arith.addf %289, %290 : vector<8x32xf32>
    %292 = math.tanh %291 : vector<8x32xf32>
    %293 = arith.mulf %286, %292 : vector<8x32xf32>
    %294 = arith.truncf %275 : vector<8x32xf32> to vector<8x32xbf16>
    %cst_60 = arith.constant dense<0.000000e+00> : vector<8x256xf32>
    %295 = tpu.matmul %294, %4, %cst_60 {dimension_numbers = #tpu.dot_dimension_numbers<[1], [0], [0], [1], [0, 0, 1, 1], [], []>} : vector<8x32xbf16>, vector<32x256xbf16>, vector<8x256xf32> -> vector<8x256xf32>
    %296 = arith.truncf %293 : vector<8x32xf32> to vector<8x32xbf16>
    %cst_61 = arith.constant dense<0.000000e+00> : vector<8x128xf32>
    %297 = tpu.matmul %296, %5, %cst_61 {dimension_numbers = #tpu.dot_dimension_numbers<[1], [0], [0], [1], [0, 0, 1, 1], [], []>} : vector<8x32xbf16>, vector<32x128xbf16>, vector<8x128xf32> -> vector<8x128xf32>
    %c0_62 = arith.constant 0 : index
    %c7 = arith.constant 7 : index
    %c0_63 = arith.constant 0 : index
    %298 = vector.load %arg1[%c0_62, %c7, %c0_63] : memref<8x10x8xf32, #tpu.memory_space<vmem>>, vector<8x1x8xf32>
    %299 = vector.shape_cast %298 : vector<8x1x8xf32> to vector<8x8xf32>
    %cst_64 = arith.constant dense<0.000000e+00> : vector<8x128xf32>
    %300 = tpu.matmul %299, %0, %cst_64 {dimension_numbers = #tpu.dot_dimension_numbers<[1], [0], [0], [1], [0, 0, 1, 1], [], []>} : vector<8x8xf32>, vector<8x128xf32>, vector<8x128xf32> -> vector<8x128xf32>
    %301 = arith.addf %300, %3 : vector<8x128xf32>
    %302 = vector.extract_strided_slice %295 {offsets = [0, 0], sizes = [8, 128], strides = [1, 1]} : vector<8x256xf32> to vector<8x128xf32>
    %303 = arith.addf %301, %302 : vector<8x128xf32>
    %304 = arith.negf %303 : vector<8x128xf32>
    %305 = math.exp %304 : vector<8x128xf32>
    %cst_65 = arith.constant 1.000000e+00 : f32
    %306 = vector.broadcast %cst_65 : f32 to vector<8x128xf32>
    %307 = arith.addf %306, %305 : vector<8x128xf32>
    %308 = arith.divf %306, %307 : vector<8x128xf32>
    %309 = vector.extract_strided_slice %308 {offsets = [0, 0], sizes = [8, 32], strides = [1, 1]} : vector<8x128xf32> to vector<8x32xf32>
    %310 = vector.extract_strided_slice %308 {offsets = [0, 32], sizes = [8, 32], strides = [1, 1]} : vector<8x128xf32> to vector<8x32xf32>
    %311 = vector.extract_strided_slice %308 {offsets = [0, 96], sizes = [8, 32], strides = [1, 1]} : vector<8x128xf32> to vector<8x32xf32>
    %312 = vector.extract_strided_slice %303 {offsets = [0, 64], sizes = [8, 32], strides = [1, 1]} : vector<8x128xf32> to vector<8x32xf32>
    %313 = math.tanh %312 : vector<8x32xf32>
    %314 = arith.mulf %310, %273 : vector<8x32xf32>
    %315 = arith.mulf %309, %313 : vector<8x32xf32>
    %316 = arith.addf %314, %315 : vector<8x32xf32>
    %317 = math.tanh %316 : vector<8x32xf32>
    %318 = arith.mulf %311, %317 : vector<8x32xf32>
    %319 = vector.extract_strided_slice %295 {offsets = [0, 128], sizes = [8, 128], strides = [1, 1]} : vector<8x256xf32> to vector<8x128xf32>
    %320 = arith.addf %8, %319 : vector<8x128xf32>
    %321 = arith.addf %320, %297 : vector<8x128xf32>
    %322 = arith.negf %321 : vector<8x128xf32>
    %323 = math.exp %322 : vector<8x128xf32>
    %cst_66 = arith.constant 1.000000e+00 : f32
    %324 = vector.broadcast %cst_66 : f32 to vector<8x128xf32>
    %325 = arith.addf %324, %323 : vector<8x128xf32>
    %326 = arith.divf %324, %325 : vector<8x128xf32>
    %327 = vector.extract_strided_slice %326 {offsets = [0, 0], sizes = [8, 32], strides = [1, 1]} : vector<8x128xf32> to vector<8x32xf32>
    %328 = vector.extract_strided_slice %326 {offsets = [0, 32], sizes = [8, 32], strides = [1, 1]} : vector<8x128xf32> to vector<8x32xf32>
    %329 = vector.extract_strided_slice %326 {offsets = [0, 96], sizes = [8, 32], strides = [1, 1]} : vector<8x128xf32> to vector<8x32xf32>
    %330 = vector.extract_strided_slice %321 {offsets = [0, 64], sizes = [8, 32], strides = [1, 1]} : vector<8x128xf32> to vector<8x32xf32>
    %331 = math.tanh %330 : vector<8x32xf32>
    %332 = arith.mulf %328, %291 : vector<8x32xf32>
    %333 = arith.mulf %327, %331 : vector<8x32xf32>
    %334 = arith.addf %332, %333 : vector<8x32xf32>
    %335 = math.tanh %334 : vector<8x32xf32>
    %336 = arith.mulf %329, %335 : vector<8x32xf32>
    %337 = arith.truncf %318 : vector<8x32xf32> to vector<8x32xbf16>
    %cst_67 = arith.constant dense<0.000000e+00> : vector<8x256xf32>
    %338 = tpu.matmul %337, %4, %cst_67 {dimension_numbers = #tpu.dot_dimension_numbers<[1], [0], [0], [1], [0, 0, 1, 1], [], []>} : vector<8x32xbf16>, vector<32x256xbf16>, vector<8x256xf32> -> vector<8x256xf32>
    %339 = arith.truncf %336 : vector<8x32xf32> to vector<8x32xbf16>
    %cst_68 = arith.constant dense<0.000000e+00> : vector<8x128xf32>
    %340 = tpu.matmul %339, %5, %cst_68 {dimension_numbers = #tpu.dot_dimension_numbers<[1], [0], [0], [1], [0, 0, 1, 1], [], []>} : vector<8x32xbf16>, vector<32x128xbf16>, vector<8x128xf32> -> vector<8x128xf32>
    %c0_69 = arith.constant 0 : index
    %c8 = arith.constant 8 : index
    %c0_70 = arith.constant 0 : index
    %341 = vector.load %arg1[%c0_69, %c8, %c0_70] : memref<8x10x8xf32, #tpu.memory_space<vmem>>, vector<8x1x8xf32>
    %342 = vector.shape_cast %341 : vector<8x1x8xf32> to vector<8x8xf32>
    %cst_71 = arith.constant dense<0.000000e+00> : vector<8x128xf32>
    %343 = tpu.matmul %342, %0, %cst_71 {dimension_numbers = #tpu.dot_dimension_numbers<[1], [0], [0], [1], [0, 0, 1, 1], [], []>} : vector<8x8xf32>, vector<8x128xf32>, vector<8x128xf32> -> vector<8x128xf32>
    %344 = arith.addf %343, %3 : vector<8x128xf32>
    %345 = vector.extract_strided_slice %338 {offsets = [0, 0], sizes = [8, 128], strides = [1, 1]} : vector<8x256xf32> to vector<8x128xf32>
    %346 = arith.addf %344, %345 : vector<8x128xf32>
    %347 = arith.negf %346 : vector<8x128xf32>
    %348 = math.exp %347 : vector<8x128xf32>
    %cst_72 = arith.constant 1.000000e+00 : f32
    %349 = vector.broadcast %cst_72 : f32 to vector<8x128xf32>
    %350 = arith.addf %349, %348 : vector<8x128xf32>
    %351 = arith.divf %349, %350 : vector<8x128xf32>
    %352 = vector.extract_strided_slice %351 {offsets = [0, 0], sizes = [8, 32], strides = [1, 1]} : vector<8x128xf32> to vector<8x32xf32>
    %353 = vector.extract_strided_slice %351 {offsets = [0, 32], sizes = [8, 32], strides = [1, 1]} : vector<8x128xf32> to vector<8x32xf32>
    %354 = vector.extract_strided_slice %351 {offsets = [0, 96], sizes = [8, 32], strides = [1, 1]} : vector<8x128xf32> to vector<8x32xf32>
    %355 = vector.extract_strided_slice %346 {offsets = [0, 64], sizes = [8, 32], strides = [1, 1]} : vector<8x128xf32> to vector<8x32xf32>
    %356 = math.tanh %355 : vector<8x32xf32>
    %357 = arith.mulf %353, %316 : vector<8x32xf32>
    %358 = arith.mulf %352, %356 : vector<8x32xf32>
    %359 = arith.addf %357, %358 : vector<8x32xf32>
    %360 = math.tanh %359 : vector<8x32xf32>
    %361 = arith.mulf %354, %360 : vector<8x32xf32>
    %362 = vector.extract_strided_slice %338 {offsets = [0, 128], sizes = [8, 128], strides = [1, 1]} : vector<8x256xf32> to vector<8x128xf32>
    %363 = arith.addf %8, %362 : vector<8x128xf32>
    %364 = arith.addf %363, %340 : vector<8x128xf32>
    %365 = arith.negf %364 : vector<8x128xf32>
    %366 = math.exp %365 : vector<8x128xf32>
    %cst_73 = arith.constant 1.000000e+00 : f32
    %367 = vector.broadcast %cst_73 : f32 to vector<8x128xf32>
    %368 = arith.addf %367, %366 : vector<8x128xf32>
    %369 = arith.divf %367, %368 : vector<8x128xf32>
    %370 = vector.extract_strided_slice %369 {offsets = [0, 0], sizes = [8, 32], strides = [1, 1]} : vector<8x128xf32> to vector<8x32xf32>
    %371 = vector.extract_strided_slice %369 {offsets = [0, 32], sizes = [8, 32], strides = [1, 1]} : vector<8x128xf32> to vector<8x32xf32>
    %372 = vector.extract_strided_slice %369 {offsets = [0, 96], sizes = [8, 32], strides = [1, 1]} : vector<8x128xf32> to vector<8x32xf32>
    %373 = vector.extract_strided_slice %364 {offsets = [0, 64], sizes = [8, 32], strides = [1, 1]} : vector<8x128xf32> to vector<8x32xf32>
    %374 = math.tanh %373 : vector<8x32xf32>
    %375 = arith.mulf %371, %334 : vector<8x32xf32>
    %376 = arith.mulf %370, %374 : vector<8x32xf32>
    %377 = arith.addf %375, %376 : vector<8x32xf32>
    %378 = math.tanh %377 : vector<8x32xf32>
    %379 = arith.mulf %372, %378 : vector<8x32xf32>
    %380 = arith.truncf %361 : vector<8x32xf32> to vector<8x32xbf16>
    %cst_74 = arith.constant dense<0.000000e+00> : vector<8x256xf32>
    %381 = tpu.matmul %380, %4, %cst_74 {dimension_numbers = #tpu.dot_dimension_numbers<[1], [0], [0], [1], [0, 0, 1, 1], [], []>} : vector<8x32xbf16>, vector<32x256xbf16>, vector<8x256xf32> -> vector<8x256xf32>
    %382 = arith.truncf %379 : vector<8x32xf32> to vector<8x32xbf16>
    %cst_75 = arith.constant dense<0.000000e+00> : vector<8x128xf32>
    %383 = tpu.matmul %382, %5, %cst_75 {dimension_numbers = #tpu.dot_dimension_numbers<[1], [0], [0], [1], [0, 0, 1, 1], [], []>} : vector<8x32xbf16>, vector<32x128xbf16>, vector<8x128xf32> -> vector<8x128xf32>
    %c0_76 = arith.constant 0 : index
    %c9 = arith.constant 9 : index
    %c0_77 = arith.constant 0 : index
    %384 = vector.load %arg1[%c0_76, %c9, %c0_77] : memref<8x10x8xf32, #tpu.memory_space<vmem>>, vector<8x1x8xf32>
    %385 = vector.shape_cast %384 : vector<8x1x8xf32> to vector<8x8xf32>
    %cst_78 = arith.constant dense<0.000000e+00> : vector<8x128xf32>
    %386 = tpu.matmul %385, %0, %cst_78 {dimension_numbers = #tpu.dot_dimension_numbers<[1], [0], [0], [1], [0, 0, 1, 1], [], []>} : vector<8x8xf32>, vector<8x128xf32>, vector<8x128xf32> -> vector<8x128xf32>
    %387 = arith.addf %386, %3 : vector<8x128xf32>
    %388 = vector.extract_strided_slice %381 {offsets = [0, 0], sizes = [8, 128], strides = [1, 1]} : vector<8x256xf32> to vector<8x128xf32>
    %389 = arith.addf %387, %388 : vector<8x128xf32>
    %390 = arith.negf %389 : vector<8x128xf32>
    %391 = math.exp %390 : vector<8x128xf32>
    %cst_79 = arith.constant 1.000000e+00 : f32
    %392 = vector.broadcast %cst_79 : f32 to vector<8x128xf32>
    %393 = arith.addf %392, %391 : vector<8x128xf32>
    %394 = arith.divf %392, %393 : vector<8x128xf32>
    %395 = vector.extract_strided_slice %394 {offsets = [0, 0], sizes = [8, 32], strides = [1, 1]} : vector<8x128xf32> to vector<8x32xf32>
    %396 = vector.extract_strided_slice %394 {offsets = [0, 32], sizes = [8, 32], strides = [1, 1]} : vector<8x128xf32> to vector<8x32xf32>
    %397 = vector.extract_strided_slice %394 {offsets = [0, 96], sizes = [8, 32], strides = [1, 1]} : vector<8x128xf32> to vector<8x32xf32>
    %398 = vector.extract_strided_slice %389 {offsets = [0, 64], sizes = [8, 32], strides = [1, 1]} : vector<8x128xf32> to vector<8x32xf32>
    %399 = math.tanh %398 : vector<8x32xf32>
    %400 = arith.mulf %396, %359 : vector<8x32xf32>
    %401 = arith.mulf %395, %399 : vector<8x32xf32>
    %402 = arith.addf %400, %401 : vector<8x32xf32>
    %403 = math.tanh %402 : vector<8x32xf32>
    %404 = arith.mulf %397, %403 : vector<8x32xf32>
    %405 = vector.extract_strided_slice %381 {offsets = [0, 128], sizes = [8, 128], strides = [1, 1]} : vector<8x256xf32> to vector<8x128xf32>
    %406 = arith.addf %8, %405 : vector<8x128xf32>
    %407 = arith.addf %406, %383 : vector<8x128xf32>
    %408 = arith.negf %407 : vector<8x128xf32>
    %409 = math.exp %408 : vector<8x128xf32>
    %cst_80 = arith.constant 1.000000e+00 : f32
    %410 = vector.broadcast %cst_80 : f32 to vector<8x128xf32>
    %411 = arith.addf %410, %409 : vector<8x128xf32>
    %412 = arith.divf %410, %411 : vector<8x128xf32>
    %413 = vector.extract_strided_slice %412 {offsets = [0, 0], sizes = [8, 32], strides = [1, 1]} : vector<8x128xf32> to vector<8x32xf32>
    %414 = vector.extract_strided_slice %412 {offsets = [0, 32], sizes = [8, 32], strides = [1, 1]} : vector<8x128xf32> to vector<8x32xf32>
    %415 = vector.extract_strided_slice %412 {offsets = [0, 96], sizes = [8, 32], strides = [1, 1]} : vector<8x128xf32> to vector<8x32xf32>
    %416 = vector.extract_strided_slice %407 {offsets = [0, 64], sizes = [8, 32], strides = [1, 1]} : vector<8x128xf32> to vector<8x32xf32>
    %417 = math.tanh %416 : vector<8x32xf32>
    %418 = arith.mulf %414, %377 : vector<8x32xf32>
    %419 = arith.mulf %413, %417 : vector<8x32xf32>
    %420 = arith.addf %418, %419 : vector<8x32xf32>
    %421 = math.tanh %420 : vector<8x32xf32>
    %422 = arith.mulf %415, %421 : vector<8x32xf32>
    %423 = arith.truncf %404 : vector<8x32xf32> to vector<8x32xbf16>
    %cst_81 = arith.constant dense<0.000000e+00> : vector<8x256xf32>
    %424 = tpu.matmul %423, %4, %cst_81 {dimension_numbers = #tpu.dot_dimension_numbers<[1], [0], [0], [1], [0, 0, 1, 1], [], []>} : vector<8x32xbf16>, vector<32x256xbf16>, vector<8x256xf32> -> vector<8x256xf32>
    %425 = arith.truncf %422 : vector<8x32xf32> to vector<8x32xbf16>
    %cst_82 = arith.constant dense<0.000000e+00> : vector<8x128xf32>
    %426 = tpu.matmul %425, %5, %cst_82 {dimension_numbers = #tpu.dot_dimension_numbers<[1], [0], [0], [1], [0, 0, 1, 1], [], []>} : vector<8x32xbf16>, vector<32x128xbf16>, vector<8x128xf32> -> vector<8x128xf32>
    %427 = vector.extract_strided_slice %424 {offsets = [0, 128], sizes = [8, 128], strides = [1, 1]} : vector<8x256xf32> to vector<8x128xf32>
    %428 = arith.addf %8, %427 : vector<8x128xf32>
    %429 = arith.addf %428, %426 : vector<8x128xf32>
    %430 = arith.negf %429 : vector<8x128xf32>
    %431 = math.exp %430 : vector<8x128xf32>
    %cst_83 = arith.constant 1.000000e+00 : f32
    %432 = vector.broadcast %cst_83 : f32 to vector<8x128xf32>
    %433 = arith.addf %432, %431 : vector<8x128xf32>
    %434 = arith.divf %432, %433 : vector<8x128xf32>
    %435 = vector.extract_strided_slice %434 {offsets = [0, 0], sizes = [8, 32], strides = [1, 1]} : vector<8x128xf32> to vector<8x32xf32>
    %436 = vector.extract_strided_slice %434 {offsets = [0, 32], sizes = [8, 32], strides = [1, 1]} : vector<8x128xf32> to vector<8x32xf32>
    %437 = vector.extract_strided_slice %434 {offsets = [0, 96], sizes = [8, 32], strides = [1, 1]} : vector<8x128xf32> to vector<8x32xf32>
    %438 = vector.extract_strided_slice %429 {offsets = [0, 64], sizes = [8, 32], strides = [1, 1]} : vector<8x128xf32> to vector<8x32xf32>
    %439 = math.tanh %438 : vector<8x32xf32>
    %440 = arith.mulf %436, %420 : vector<8x32xf32>
    %441 = arith.mulf %435, %439 : vector<8x32xf32>
    %442 = arith.addf %440, %441 : vector<8x32xf32>
    %443 = math.tanh %442 : vector<8x32xf32>
    %444 = arith.mulf %437, %443 : vector<8x32xf32>
    %c0_84 = arith.constant 0 : index
    %c0_85 = arith.constant 0 : index
    %445 = vector.load %arg9[%c0_84, %c0_85] : memref<64x128xf32, #tpu.memory_space<vmem>>, vector<64x128xf32>
    %c0_86 = arith.constant 0 : index
    %c0_87 = arith.constant 0 : index
    %446 = vector.load %arg10[%c0_86, %c0_87] : memref<1x128xf32, #tpu.memory_space<vmem>>, vector<1x128xf32>
    %447 = vector.shape_cast %446 : vector<1x128xf32> to vector<1x128xf32>
    %448 = vector.broadcast %447 : vector<1x128xf32> to vector<8x128xf32>
    %449 = vector.extract_strided_slice %445 {offsets = [0, 0], sizes = [32, 128], strides = [1, 1]} : vector<64x128xf32> to vector<32x128xf32>
    %cst_88 = arith.constant dense<0.000000e+00> : vector<8x128xf32>
    %450 = tpu.matmul %404, %449, %cst_88 {dimension_numbers = #tpu.dot_dimension_numbers<[1], [0], [0], [1], [0, 0, 1, 1], [], []>} : vector<8x32xf32>, vector<32x128xf32>, vector<8x128xf32> -> vector<8x128xf32>
    %451 = arith.addf %448, %450 : vector<8x128xf32>
    %452 = vector.extract_strided_slice %445 {offsets = [32, 0], sizes = [32, 128], strides = [1, 1]} : vector<64x128xf32> to vector<32x128xf32>
    %cst_89 = arith.constant dense<0.000000e+00> : vector<8x128xf32>
    %453 = tpu.matmul %444, %452, %cst_89 {dimension_numbers = #tpu.dot_dimension_numbers<[1], [0], [0], [1], [0, 0, 1, 1], [], []>} : vector<8x32xf32>, vector<32x128xf32>, vector<8x128xf32> -> vector<8x128xf32>
    %454 = arith.addf %451, %453 : vector<8x128xf32>
    %c0_90 = arith.constant 0 : index
    %c0_91 = arith.constant 0 : index
    %455 = vector.load %arg8[%c0_90, %c0_91] : memref<8x128xf32, #tpu.memory_space<vmem>>, vector<8x128xf32>
    %c0_92 = arith.constant 0 : index
    %c0_93 = arith.constant 0 : index
    %456 = vector.load %arg11[%c0_92, %c0_93] : memref<32x256xbf16, #tpu.memory_space<vmem>>, vector<32x256xbf16>
    %c0_94 = arith.constant 0 : index
    %c0_95 = arith.constant 0 : index
    %457 = vector.load %arg12[%c0_94, %c0_95] : memref<32x128xbf16, #tpu.memory_space<vmem>>, vector<32x128xbf16>
    %c0_96 = arith.constant 0 : index
    %c0_97 = arith.constant 0 : index
    %458 = vector.load %arg13[%c0_96, %c0_97] : memref<1x128xf32, #tpu.memory_space<vmem>>, vector<1x128xf32>
    %459 = vector.shape_cast %458 : vector<1x128xf32> to vector<1x128xf32>
    %460 = vector.broadcast %459 : vector<1x128xf32> to vector<8x128xf32>
    %cst_98 = arith.constant 0.000000e+00 : f32
    %461 = vector.broadcast %cst_98 : f32 to vector<8x32xf32>
    %cst_99 = arith.constant 0.000000e+00 : f32
    %462 = vector.broadcast %cst_99 : f32 to vector<8x32xf32>
    %cst_100 = arith.constant 0.000000e+00 : f32
    %463 = vector.broadcast %cst_100 : f32 to vector<8x32xf32>
    %cst_101 = arith.constant 0.000000e+00 : f32
    %464 = vector.broadcast %cst_101 : f32 to vector<8x32xf32>
    %465 = arith.truncf %461 : vector<8x32xf32> to vector<8x32xbf16>
    %cst_102 = arith.constant dense<0.000000e+00> : vector<8x256xf32>
    %466 = tpu.matmul %465, %456, %cst_102 {dimension_numbers = #tpu.dot_dimension_numbers<[1], [0], [0], [1], [0, 0, 1, 1], [], []>} : vector<8x32xbf16>, vector<32x256xbf16>, vector<8x256xf32> -> vector<8x256xf32>
    %c0_103 = arith.constant 0 : index
    %c0_104 = arith.constant 0 : index
    %c0_105 = arith.constant 0 : index
    %467 = vector.load %arg7[%c0_103, %c0_104, %c0_105] : memref<8x8x8xf32, #tpu.memory_space<vmem>>, vector<8x1x8xf32>
    %468 = vector.shape_cast %467 : vector<8x1x8xf32> to vector<8x8xf32>
    %cst_106 = arith.constant dense<0.000000e+00> : vector<8x128xf32>
    %469 = tpu.matmul %468, %455, %cst_106 {dimension_numbers = #tpu.dot_dimension_numbers<[1], [0], [0], [1], [0, 0, 1, 1], [], []>} : vector<8x8xf32>, vector<8x128xf32>, vector<8x128xf32> -> vector<8x128xf32>
    %470 = arith.addf %469, %454 : vector<8x128xf32>
    %471 = vector.extract_strided_slice %466 {offsets = [0, 0], sizes = [8, 128], strides = [1, 1]} : vector<8x256xf32> to vector<8x128xf32>
    %472 = arith.addf %470, %471 : vector<8x128xf32>
    %473 = arith.negf %472 : vector<8x128xf32>
    %474 = math.exp %473 : vector<8x128xf32>
    %cst_107 = arith.constant 1.000000e+00 : f32
    %475 = vector.broadcast %cst_107 : f32 to vector<8x128xf32>
    %476 = arith.addf %475, %474 : vector<8x128xf32>
    %477 = arith.divf %475, %476 : vector<8x128xf32>
    %478 = vector.extract_strided_slice %477 {offsets = [0, 0], sizes = [8, 32], strides = [1, 1]} : vector<8x128xf32> to vector<8x32xf32>
    %479 = vector.extract_strided_slice %477 {offsets = [0, 32], sizes = [8, 32], strides = [1, 1]} : vector<8x128xf32> to vector<8x32xf32>
    %480 = vector.extract_strided_slice %477 {offsets = [0, 96], sizes = [8, 32], strides = [1, 1]} : vector<8x128xf32> to vector<8x32xf32>
    %481 = vector.extract_strided_slice %472 {offsets = [0, 64], sizes = [8, 32], strides = [1, 1]} : vector<8x128xf32> to vector<8x32xf32>
    %482 = math.tanh %481 : vector<8x32xf32>
    %483 = arith.mulf %479, %463 : vector<8x32xf32>
    %484 = arith.mulf %478, %482 : vector<8x32xf32>
    %485 = arith.addf %483, %484 : vector<8x32xf32>
    %486 = math.tanh %485 : vector<8x32xf32>
    %487 = arith.mulf %480, %486 : vector<8x32xf32>
    %488 = arith.truncf %487 : vector<8x32xf32> to vector<8x32xbf16>
    %cst_108 = arith.constant dense<0.000000e+00> : vector<8x256xf32>
    %489 = tpu.matmul %488, %456, %cst_108 {dimension_numbers = #tpu.dot_dimension_numbers<[1], [0], [0], [1], [0, 0, 1, 1], [], []>} : vector<8x32xbf16>, vector<32x256xbf16>, vector<8x256xf32> -> vector<8x256xf32>
    %490 = arith.truncf %462 : vector<8x32xf32> to vector<8x32xbf16>
    %cst_109 = arith.constant dense<0.000000e+00> : vector<8x128xf32>
    %491 = tpu.matmul %490, %457, %cst_109 {dimension_numbers = #tpu.dot_dimension_numbers<[1], [0], [0], [1], [0, 0, 1, 1], [], []>} : vector<8x32xbf16>, vector<32x128xbf16>, vector<8x128xf32> -> vector<8x128xf32>
    %c0_110 = arith.constant 0 : index
    %c1_111 = arith.constant 1 : index
    %c0_112 = arith.constant 0 : index
    %492 = vector.load %arg7[%c0_110, %c1_111, %c0_112] : memref<8x8x8xf32, #tpu.memory_space<vmem>>, vector<8x1x8xf32>
    %493 = vector.shape_cast %492 : vector<8x1x8xf32> to vector<8x8xf32>
    %cst_113 = arith.constant dense<0.000000e+00> : vector<8x128xf32>
    %494 = tpu.matmul %493, %455, %cst_113 {dimension_numbers = #tpu.dot_dimension_numbers<[1], [0], [0], [1], [0, 0, 1, 1], [], []>} : vector<8x8xf32>, vector<8x128xf32>, vector<8x128xf32> -> vector<8x128xf32>
    %495 = arith.addf %494, %454 : vector<8x128xf32>
    %496 = vector.extract_strided_slice %489 {offsets = [0, 0], sizes = [8, 128], strides = [1, 1]} : vector<8x256xf32> to vector<8x128xf32>
    %497 = arith.addf %495, %496 : vector<8x128xf32>
    %498 = arith.negf %497 : vector<8x128xf32>
    %499 = math.exp %498 : vector<8x128xf32>
    %cst_114 = arith.constant 1.000000e+00 : f32
    %500 = vector.broadcast %cst_114 : f32 to vector<8x128xf32>
    %501 = arith.addf %500, %499 : vector<8x128xf32>
    %502 = arith.divf %500, %501 : vector<8x128xf32>
    %503 = vector.extract_strided_slice %502 {offsets = [0, 0], sizes = [8, 32], strides = [1, 1]} : vector<8x128xf32> to vector<8x32xf32>
    %504 = vector.extract_strided_slice %502 {offsets = [0, 32], sizes = [8, 32], strides = [1, 1]} : vector<8x128xf32> to vector<8x32xf32>
    %505 = vector.extract_strided_slice %502 {offsets = [0, 96], sizes = [8, 32], strides = [1, 1]} : vector<8x128xf32> to vector<8x32xf32>
    %506 = vector.extract_strided_slice %497 {offsets = [0, 64], sizes = [8, 32], strides = [1, 1]} : vector<8x128xf32> to vector<8x32xf32>
    %507 = math.tanh %506 : vector<8x32xf32>
    %508 = arith.mulf %504, %485 : vector<8x32xf32>
    %509 = arith.mulf %503, %507 : vector<8x32xf32>
    %510 = arith.addf %508, %509 : vector<8x32xf32>
    %511 = math.tanh %510 : vector<8x32xf32>
    %512 = arith.mulf %505, %511 : vector<8x32xf32>
    %513 = vector.extract_strided_slice %489 {offsets = [0, 128], sizes = [8, 128], strides = [1, 1]} : vector<8x256xf32> to vector<8x128xf32>
    %514 = arith.addf %460, %513 : vector<8x128xf32>
    %515 = arith.addf %514, %491 : vector<8x128xf32>
    %516 = arith.negf %515 : vector<8x128xf32>
    %517 = math.exp %516 : vector<8x128xf32>
    %cst_115 = arith.constant 1.000000e+00 : f32
    %518 = vector.broadcast %cst_115 : f32 to vector<8x128xf32>
    %519 = arith.addf %518, %517 : vector<8x128xf32>
    %520 = arith.divf %518, %519 : vector<8x128xf32>
    %521 = vector.extract_strided_slice %520 {offsets = [0, 0], sizes = [8, 32], strides = [1, 1]} : vector<8x128xf32> to vector<8x32xf32>
    %522 = vector.extract_strided_slice %520 {offsets = [0, 32], sizes = [8, 32], strides = [1, 1]} : vector<8x128xf32> to vector<8x32xf32>
    %523 = vector.extract_strided_slice %520 {offsets = [0, 96], sizes = [8, 32], strides = [1, 1]} : vector<8x128xf32> to vector<8x32xf32>
    %524 = vector.extract_strided_slice %515 {offsets = [0, 64], sizes = [8, 32], strides = [1, 1]} : vector<8x128xf32> to vector<8x32xf32>
    %525 = math.tanh %524 : vector<8x32xf32>
    %526 = arith.mulf %522, %464 : vector<8x32xf32>
    %527 = arith.mulf %521, %525 : vector<8x32xf32>
    %528 = arith.addf %526, %527 : vector<8x32xf32>
    %529 = math.tanh %528 : vector<8x32xf32>
    %530 = arith.mulf %523, %529 : vector<8x32xf32>
    %c0_116 = arith.constant 0 : index
    %c0_117 = arith.constant 0 : index
    %c0_118 = arith.constant 0 : index
    %531 = vector.load %arg14[%c0_116, %c0_117, %c0_118] : memref<8x8x32xf32, #tpu.memory_space<vmem>>, vector<8x1x32xf32>
    %532 = vector.shape_cast %531 : vector<8x1x32xf32> to vector<8x32xf32>
    %533 = vector.shape_cast %530 : vector<8x32xf32> to vector<8x1x32xf32>
    tpu.vector_store %arg14[%c0_116, %c0_117, %c0_118], %533 {strides = array<i32>} : memref<8x8x32xf32, #tpu.memory_space<vmem>>, vector<8x1x32xf32>,
    %534 = arith.truncf %512 : vector<8x32xf32> to vector<8x32xbf16>
    %cst_119 = arith.constant dense<0.000000e+00> : vector<8x256xf32>
    %535 = tpu.matmul %534, %456, %cst_119 {dimension_numbers = #tpu.dot_dimension_numbers<[1], [0], [0], [1], [0, 0, 1, 1], [], []>} : vector<8x32xbf16>, vector<32x256xbf16>, vector<8x256xf32> -> vector<8x256xf32>
    %536 = arith.truncf %530 : vector<8x32xf32> to vector<8x32xbf16>
    %cst_120 = arith.constant dense<0.000000e+00> : vector<8x128xf32>
    %537 = tpu.matmul %536, %457, %cst_120 {dimension_numbers = #tpu.dot_dimension_numbers<[1], [0], [0], [1], [0, 0, 1, 1], [], []>} : vector<8x32xbf16>, vector<32x128xbf16>, vector<8x128xf32> -> vector<8x128xf32>
    %c0_121 = arith.constant 0 : index
    %c2_122 = arith.constant 2 : index
    %c0_123 = arith.constant 0 : index
    %538 = vector.load %arg7[%c0_121, %c2_122, %c0_123] : memref<8x8x8xf32, #tpu.memory_space<vmem>>, vector<8x1x8xf32>
    %539 = vector.shape_cast %538 : vector<8x1x8xf32> to vector<8x8xf32>
    %cst_124 = arith.constant dense<0.000000e+00> : vector<8x128xf32>
    %540 = tpu.matmul %539, %455, %cst_124 {dimension_numbers = #tpu.dot_dimension_numbers<[1], [0], [0], [1], [0, 0, 1, 1], [], []>} : vector<8x8xf32>, vector<8x128xf32>, vector<8x128xf32> -> vector<8x128xf32>
    %541 = arith.addf %540, %454 : vector<8x128xf32>
    %542 = vector.extract_strided_slice %535 {offsets = [0, 0], sizes = [8, 128], strides = [1, 1]} : vector<8x256xf32> to vector<8x128xf32>
    %543 = arith.addf %541, %542 : vector<8x128xf32>
    %544 = arith.negf %543 : vector<8x128xf32>
    %545 = math.exp %544 : vector<8x128xf32>
    %cst_125 = arith.constant 1.000000e+00 : f32
    %546 = vector.broadcast %cst_125 : f32 to vector<8x128xf32>
    %547 = arith.addf %546, %545 : vector<8x128xf32>
    %548 = arith.divf %546, %547 : vector<8x128xf32>
    %549 = vector.extract_strided_slice %548 {offsets = [0, 0], sizes = [8, 32], strides = [1, 1]} : vector<8x128xf32> to vector<8x32xf32>
    %550 = vector.extract_strided_slice %548 {offsets = [0, 32], sizes = [8, 32], strides = [1, 1]} : vector<8x128xf32> to vector<8x32xf32>
    %551 = vector.extract_strided_slice %548 {offsets = [0, 96], sizes = [8, 32], strides = [1, 1]} : vector<8x128xf32> to vector<8x32xf32>
    %552 = vector.extract_strided_slice %543 {offsets = [0, 64], sizes = [8, 32], strides = [1, 1]} : vector<8x128xf32> to vector<8x32xf32>
    %553 = math.tanh %552 : vector<8x32xf32>
    %554 = arith.mulf %550, %510 : vector<8x32xf32>
    %555 = arith.mulf %549, %553 : vector<8x32xf32>
    %556 = arith.addf %554, %555 : vector<8x32xf32>
    %557 = math.tanh %556 : vector<8x32xf32>
    %558 = arith.mulf %551, %557 : vector<8x32xf32>
    %559 = vector.extract_strided_slice %535 {offsets = [0, 128], sizes = [8, 128], strides = [1, 1]} : vector<8x256xf32> to vector<8x128xf32>
    %560 = arith.addf %460, %559 : vector<8x128xf32>
    %561 = arith.addf %560, %537 : vector<8x128xf32>
    %562 = arith.negf %561 : vector<8x128xf32>
    %563 = math.exp %562 : vector<8x128xf32>
    %cst_126 = arith.constant 1.000000e+00 : f32
    %564 = vector.broadcast %cst_126 : f32 to vector<8x128xf32>
    %565 = arith.addf %564, %563 : vector<8x128xf32>
    %566 = arith.divf %564, %565 : vector<8x128xf32>
    %567 = vector.extract_strided_slice %566 {offsets = [0, 0], sizes = [8, 32], strides = [1, 1]} : vector<8x128xf32> to vector<8x32xf32>
    %568 = vector.extract_strided_slice %566 {offsets = [0, 32], sizes = [8, 32], strides = [1, 1]} : vector<8x128xf32> to vector<8x32xf32>
    %569 = vector.extract_strided_slice %566 {offsets = [0, 96], sizes = [8, 32], strides = [1, 1]} : vector<8x128xf32> to vector<8x32xf32>
    %570 = vector.extract_strided_slice %561 {offsets = [0, 64], sizes = [8, 32], strides = [1, 1]} : vector<8x128xf32> to vector<8x32xf32>
    %571 = math.tanh %570 : vector<8x32xf32>
    %572 = arith.mulf %568, %528 : vector<8x32xf32>
    %573 = arith.mulf %567, %571 : vector<8x32xf32>
    %574 = arith.addf %572, %573 : vector<8x32xf32>
    %575 = math.tanh %574 : vector<8x32xf32>
    %576 = arith.mulf %569, %575 : vector<8x32xf32>
    %c0_127 = arith.constant 0 : index
    %c1_128 = arith.constant 1 : index
    %c0_129 = arith.constant 0 : index
    %577 = vector.load %arg14[%c0_127, %c1_128, %c0_129] : memref<8x8x32xf32, #tpu.memory_space<vmem>>, vector<8x1x32xf32>
    %578 = vector.shape_cast %577 : vector<8x1x32xf32> to vector<8x32xf32>
    %579 = vector.shape_cast %576 : vector<8x32xf32> to vector<8x1x32xf32>
    tpu.vector_store %arg14[%c0_127, %c1_128, %c0_129], %579 {strides = array<i32>} : memref<8x8x32xf32, #tpu.memory_space<vmem>>, vector<8x1x32xf32>,
    %580 = arith.truncf %558 : vector<8x32xf32> to vector<8x32xbf16>
    %cst_130 = arith.constant dense<0.000000e+00> : vector<8x256xf32>
    %581 = tpu.matmul %580, %456, %cst_130 {dimension_numbers = #tpu.dot_dimension_numbers<[1], [0], [0], [1], [0, 0, 1, 1], [], []>} : vector<8x32xbf16>, vector<32x256xbf16>, vector<8x256xf32> -> vector<8x256xf32>
    %582 = arith.truncf %576 : vector<8x32xf32> to vector<8x32xbf16>
    %cst_131 = arith.constant dense<0.000000e+00> : vector<8x128xf32>
    %583 = tpu.matmul %582, %457, %cst_131 {dimension_numbers = #tpu.dot_dimension_numbers<[1], [0], [0], [1], [0, 0, 1, 1], [], []>} : vector<8x32xbf16>, vector<32x128xbf16>, vector<8x128xf32> -> vector<8x128xf32>
    %c0_132 = arith.constant 0 : index
    %c3_133 = arith.constant 3 : index
    %c0_134 = arith.constant 0 : index
    %584 = vector.load %arg7[%c0_132, %c3_133, %c0_134] : memref<8x8x8xf32, #tpu.memory_space<vmem>>, vector<8x1x8xf32>
    %585 = vector.shape_cast %584 : vector<8x1x8xf32> to vector<8x8xf32>
    %cst_135 = arith.constant dense<0.000000e+00> : vector<8x128xf32>
    %586 = tpu.matmul %585, %455, %cst_135 {dimension_numbers = #tpu.dot_dimension_numbers<[1], [0], [0], [1], [0, 0, 1, 1], [], []>} : vector<8x8xf32>, vector<8x128xf32>, vector<8x128xf32> -> vector<8x128xf32>
    %587 = arith.addf %586, %454 : vector<8x128xf32>
    %588 = vector.extract_strided_slice %581 {offsets = [0, 0], sizes = [8, 128], strides = [1, 1]} : vector<8x256xf32> to vector<8x128xf32>
    %589 = arith.addf %587, %588 : vector<8x128xf32>
    %590 = arith.negf %589 : vector<8x128xf32>
    %591 = math.exp %590 : vector<8x128xf32>
    %cst_136 = arith.constant 1.000000e+00 : f32
    %592 = vector.broadcast %cst_136 : f32 to vector<8x128xf32>
    %593 = arith.addf %592, %591 : vector<8x128xf32>
    %594 = arith.divf %592, %593 : vector<8x128xf32>
    %595 = vector.extract_strided_slice %594 {offsets = [0, 0], sizes = [8, 32], strides = [1, 1]} : vector<8x128xf32> to vector<8x32xf32>
    %596 = vector.extract_strided_slice %594 {offsets = [0, 32], sizes = [8, 32], strides = [1, 1]} : vector<8x128xf32> to vector<8x32xf32>
    %597 = vector.extract_strided_slice %594 {offsets = [0, 96], sizes = [8, 32], strides = [1, 1]} : vector<8x128xf32> to vector<8x32xf32>
    %598 = vector.extract_strided_slice %589 {offsets = [0, 64], sizes = [8, 32], strides = [1, 1]} : vector<8x128xf32> to vector<8x32xf32>
    %599 = math.tanh %598 : vector<8x32xf32>
    %600 = arith.mulf %596, %556 : vector<8x32xf32>
    %601 = arith.mulf %595, %599 : vector<8x32xf32>
    %602 = arith.addf %600, %601 : vector<8x32xf32>
    %603 = math.tanh %602 : vector<8x32xf32>
    %604 = arith.mulf %597, %603 : vector<8x32xf32>
    %605 = vector.extract_strided_slice %581 {offsets = [0, 128], sizes = [8, 128], strides = [1, 1]} : vector<8x256xf32> to vector<8x128xf32>
    %606 = arith.addf %460, %605 : vector<8x128xf32>
    %607 = arith.addf %606, %583 : vector<8x128xf32>
    %608 = arith.negf %607 : vector<8x128xf32>
    %609 = math.exp %608 : vector<8x128xf32>
    %cst_137 = arith.constant 1.000000e+00 : f32
    %610 = vector.broadcast %cst_137 : f32 to vector<8x128xf32>
    %611 = arith.addf %610, %609 : vector<8x128xf32>
    %612 = arith.divf %610, %611 : vector<8x128xf32>
    %613 = vector.extract_strided_slice %612 {offsets = [0, 0], sizes = [8, 32], strides = [1, 1]} : vector<8x128xf32> to vector<8x32xf32>
    %614 = vector.extract_strided_slice %612 {offsets = [0, 32], sizes = [8, 32], strides = [1, 1]} : vector<8x128xf32> to vector<8x32xf32>
    %615 = vector.extract_strided_slice %612 {offsets = [0, 96], sizes = [8, 32], strides = [1, 1]} : vector<8x128xf32> to vector<8x32xf32>
    %616 = vector.extract_strided_slice %607 {offsets = [0, 64], sizes = [8, 32], strides = [1, 1]} : vector<8x128xf32> to vector<8x32xf32>
    %617 = math.tanh %616 : vector<8x32xf32>
    %618 = arith.mulf %614, %574 : vector<8x32xf32>
    %619 = arith.mulf %613, %617 : vector<8x32xf32>
    %620 = arith.addf %618, %619 : vector<8x32xf32>
    %621 = math.tanh %620 : vector<8x32xf32>
    %622 = arith.mulf %615, %621 : vector<8x32xf32>
    %c0_138 = arith.constant 0 : index
    %c2_139 = arith.constant 2 : index
    %c0_140 = arith.constant 0 : index
    %623 = vector.load %arg14[%c0_138, %c2_139, %c0_140] : memref<8x8x32xf32, #tpu.memory_space<vmem>>, vector<8x1x32xf32>
    %624 = vector.shape_cast %623 : vector<8x1x32xf32> to vector<8x32xf32>
    %625 = vector.shape_cast %622 : vector<8x32xf32> to vector<8x1x32xf32>
    tpu.vector_store %arg14[%c0_138, %c2_139, %c0_140], %625 {strides = array<i32>} : memref<8x8x32xf32, #tpu.memory_space<vmem>>, vector<8x1x32xf32>,
    %626 = arith.truncf %604 : vector<8x32xf32> to vector<8x32xbf16>
    %cst_141 = arith.constant dense<0.000000e+00> : vector<8x256xf32>
    %627 = tpu.matmul %626, %456, %cst_141 {dimension_numbers = #tpu.dot_dimension_numbers<[1], [0], [0], [1], [0, 0, 1, 1], [], []>} : vector<8x32xbf16>, vector<32x256xbf16>, vector<8x256xf32> -> vector<8x256xf32>
    %628 = arith.truncf %622 : vector<8x32xf32> to vector<8x32xbf16>
    %cst_142 = arith.constant dense<0.000000e+00> : vector<8x128xf32>
    %629 = tpu.matmul %628, %457, %cst_142 {dimension_numbers = #tpu.dot_dimension_numbers<[1], [0], [0], [1], [0, 0, 1, 1], [], []>} : vector<8x32xbf16>, vector<32x128xbf16>, vector<8x128xf32> -> vector<8x128xf32>
    %c0_143 = arith.constant 0 : index
    %c4_144 = arith.constant 4 : index
    %c0_145 = arith.constant 0 : index
    %630 = vector.load %arg7[%c0_143, %c4_144, %c0_145] : memref<8x8x8xf32, #tpu.memory_space<vmem>>, vector<8x1x8xf32>
    %631 = vector.shape_cast %630 : vector<8x1x8xf32> to vector<8x8xf32>
    %cst_146 = arith.constant dense<0.000000e+00> : vector<8x128xf32>
    %632 = tpu.matmul %631, %455, %cst_146 {dimension_numbers = #tpu.dot_dimension_numbers<[1], [0], [0], [1], [0, 0, 1, 1], [], []>} : vector<8x8xf32>, vector<8x128xf32>, vector<8x128xf32> -> vector<8x128xf32>
    %633 = arith.addf %632, %454 : vector<8x128xf32>
    %634 = vector.extract_strided_slice %627 {offsets = [0, 0], sizes = [8, 128], strides = [1, 1]} : vector<8x256xf32> to vector<8x128xf32>
    %635 = arith.addf %633, %634 : vector<8x128xf32>
    %636 = arith.negf %635 : vector<8x128xf32>
    %637 = math.exp %636 : vector<8x128xf32>
    %cst_147 = arith.constant 1.000000e+00 : f32
    %638 = vector.broadcast %cst_147 : f32 to vector<8x128xf32>
    %639 = arith.addf %638, %637 : vector<8x128xf32>
    %640 = arith.divf %638, %639 : vector<8x128xf32>
    %641 = vector.extract_strided_slice %640 {offsets = [0, 0], sizes = [8, 32], strides = [1, 1]} : vector<8x128xf32> to vector<8x32xf32>
    %642 = vector.extract_strided_slice %640 {offsets = [0, 32], sizes = [8, 32], strides = [1, 1]} : vector<8x128xf32> to vector<8x32xf32>
    %643 = vector.extract_strided_slice %640 {offsets = [0, 96], sizes = [8, 32], strides = [1, 1]} : vector<8x128xf32> to vector<8x32xf32>
    %644 = vector.extract_strided_slice %635 {offsets = [0, 64], sizes = [8, 32], strides = [1, 1]} : vector<8x128xf32> to vector<8x32xf32>
    %645 = math.tanh %644 : vector<8x32xf32>
    %646 = arith.mulf %642, %602 : vector<8x32xf32>
    %647 = arith.mulf %641, %645 : vector<8x32xf32>
    %648 = arith.addf %646, %647 : vector<8x32xf32>
    %649 = math.tanh %648 : vector<8x32xf32>
    %650 = arith.mulf %643, %649 : vector<8x32xf32>
    %651 = vector.extract_strided_slice %627 {offsets = [0, 128], sizes = [8, 128], strides = [1, 1]} : vector<8x256xf32> to vector<8x128xf32>
    %652 = arith.addf %460, %651 : vector<8x128xf32>
    %653 = arith.addf %652, %629 : vector<8x128xf32>
    %654 = arith.negf %653 : vector<8x128xf32>
    %655 = math.exp %654 : vector<8x128xf32>
    %cst_148 = arith.constant 1.000000e+00 : f32
    %656 = vector.broadcast %cst_148 : f32 to vector<8x128xf32>
    %657 = arith.addf %656, %655 : vector<8x128xf32>
    %658 = arith.divf %656, %657 : vector<8x128xf32>
    %659 = vector.extract_strided_slice %658 {offsets = [0, 0], sizes = [8, 32], strides = [1, 1]} : vector<8x128xf32> to vector<8x32xf32>
    %660 = vector.extract_strided_slice %658 {offsets = [0, 32], sizes = [8, 32], strides = [1, 1]} : vector<8x128xf32> to vector<8x32xf32>
    %661 = vector.extract_strided_slice %658 {offsets = [0, 96], sizes = [8, 32], strides = [1, 1]} : vector<8x128xf32> to vector<8x32xf32>
    %662 = vector.extract_strided_slice %653 {offsets = [0, 64], sizes = [8, 32], strides = [1, 1]} : vector<8x128xf32> to vector<8x32xf32>
    %663 = math.tanh %662 : vector<8x32xf32>
    %664 = arith.mulf %660, %620 : vector<8x32xf32>
    %665 = arith.mulf %659, %663 : vector<8x32xf32>
    %666 = arith.addf %664, %665 : vector<8x32xf32>
    %667 = math.tanh %666 : vector<8x32xf32>
    %668 = arith.mulf %661, %667 : vector<8x32xf32>
    %c0_149 = arith.constant 0 : index
    %c3_150 = arith.constant 3 : index
    %c0_151 = arith.constant 0 : index
    %669 = vector.load %arg14[%c0_149, %c3_150, %c0_151] : memref<8x8x32xf32, #tpu.memory_space<vmem>>, vector<8x1x32xf32>
    %670 = vector.shape_cast %669 : vector<8x1x32xf32> to vector<8x32xf32>
    %671 = vector.shape_cast %668 : vector<8x32xf32> to vector<8x1x32xf32>
    tpu.vector_store %arg14[%c0_149, %c3_150, %c0_151], %671 {strides = array<i32>} : memref<8x8x32xf32, #tpu.memory_space<vmem>>, vector<8x1x32xf32>,
    %672 = arith.truncf %650 : vector<8x32xf32> to vector<8x32xbf16>
    %cst_152 = arith.constant dense<0.000000e+00> : vector<8x256xf32>
    %673 = tpu.matmul %672, %456, %cst_152 {dimension_numbers = #tpu.dot_dimension_numbers<[1], [0], [0], [1], [0, 0, 1, 1], [], []>} : vector<8x32xbf16>, vector<32x256xbf16>, vector<8x256xf32> -> vector<8x256xf32>
    %674 = arith.truncf %668 : vector<8x32xf32> to vector<8x32xbf16>
    %cst_153 = arith.constant dense<0.000000e+00> : vector<8x128xf32>
    %675 = tpu.matmul %674, %457, %cst_153 {dimension_numbers = #tpu.dot_dimension_numbers<[1], [0], [0], [1], [0, 0, 1, 1], [], []>} : vector<8x32xbf16>, vector<32x128xbf16>, vector<8x128xf32> -> vector<8x128xf32>
    %c0_154 = arith.constant 0 : index
    %c5_155 = arith.constant 5 : index
    %c0_156 = arith.constant 0 : index
    %676 = vector.load %arg7[%c0_154, %c5_155, %c0_156] : memref<8x8x8xf32, #tpu.memory_space<vmem>>, vector<8x1x8xf32>
    %677 = vector.shape_cast %676 : vector<8x1x8xf32> to vector<8x8xf32>
    %cst_157 = arith.constant dense<0.000000e+00> : vector<8x128xf32>
    %678 = tpu.matmul %677, %455, %cst_157 {dimension_numbers = #tpu.dot_dimension_numbers<[1], [0], [0], [1], [0, 0, 1, 1], [], []>} : vector<8x8xf32>, vector<8x128xf32>, vector<8x128xf32> -> vector<8x128xf32>
    %679 = arith.addf %678, %454 : vector<8x128xf32>
    %680 = vector.extract_strided_slice %673 {offsets = [0, 0], sizes = [8, 128], strides = [1, 1]} : vector<8x256xf32> to vector<8x128xf32>
    %681 = arith.addf %679, %680 : vector<8x128xf32>
    %682 = arith.negf %681 : vector<8x128xf32>
    %683 = math.exp %682 : vector<8x128xf32>
    %cst_158 = arith.constant 1.000000e+00 : f32
    %684 = vector.broadcast %cst_158 : f32 to vector<8x128xf32>
    %685 = arith.addf %684, %683 : vector<8x128xf32>
    %686 = arith.divf %684, %685 : vector<8x128xf32>
    %687 = vector.extract_strided_slice %686 {offsets = [0, 0], sizes = [8, 32], strides = [1, 1]} : vector<8x128xf32> to vector<8x32xf32>
    %688 = vector.extract_strided_slice %686 {offsets = [0, 32], sizes = [8, 32], strides = [1, 1]} : vector<8x128xf32> to vector<8x32xf32>
    %689 = vector.extract_strided_slice %686 {offsets = [0, 96], sizes = [8, 32], strides = [1, 1]} : vector<8x128xf32> to vector<8x32xf32>
    %690 = vector.extract_strided_slice %681 {offsets = [0, 64], sizes = [8, 32], strides = [1, 1]} : vector<8x128xf32> to vector<8x32xf32>
    %691 = math.tanh %690 : vector<8x32xf32>
    %692 = arith.mulf %688, %648 : vector<8x32xf32>
    %693 = arith.mulf %687, %691 : vector<8x32xf32>
    %694 = arith.addf %692, %693 : vector<8x32xf32>
    %695 = math.tanh %694 : vector<8x32xf32>
    %696 = arith.mulf %689, %695 : vector<8x32xf32>
    %697 = vector.extract_strided_slice %673 {offsets = [0, 128], sizes = [8, 128], strides = [1, 1]} : vector<8x256xf32> to vector<8x128xf32>
    %698 = arith.addf %460, %697 : vector<8x128xf32>
    %699 = arith.addf %698, %675 : vector<8x128xf32>
    %700 = arith.negf %699 : vector<8x128xf32>
    %701 = math.exp %700 : vector<8x128xf32>
    %cst_159 = arith.constant 1.000000e+00 : f32
    %702 = vector.broadcast %cst_159 : f32 to vector<8x128xf32>
    %703 = arith.addf %702, %701 : vector<8x128xf32>
    %704 = arith.divf %702, %703 : vector<8x128xf32>
    %705 = vector.extract_strided_slice %704 {offsets = [0, 0], sizes = [8, 32], strides = [1, 1]} : vector<8x128xf32> to vector<8x32xf32>
    %706 = vector.extract_strided_slice %704 {offsets = [0, 32], sizes = [8, 32], strides = [1, 1]} : vector<8x128xf32> to vector<8x32xf32>
    %707 = vector.extract_strided_slice %704 {offsets = [0, 96], sizes = [8, 32], strides = [1, 1]} : vector<8x128xf32> to vector<8x32xf32>
    %708 = vector.extract_strided_slice %699 {offsets = [0, 64], sizes = [8, 32], strides = [1, 1]} : vector<8x128xf32> to vector<8x32xf32>
    %709 = math.tanh %708 : vector<8x32xf32>
    %710 = arith.mulf %706, %666 : vector<8x32xf32>
    %711 = arith.mulf %705, %709 : vector<8x32xf32>
    %712 = arith.addf %710, %711 : vector<8x32xf32>
    %713 = math.tanh %712 : vector<8x32xf32>
    %714 = arith.mulf %707, %713 : vector<8x32xf32>
    %c0_160 = arith.constant 0 : index
    %c4_161 = arith.constant 4 : index
    %c0_162 = arith.constant 0 : index
    %715 = vector.load %arg14[%c0_160, %c4_161, %c0_162] : memref<8x8x32xf32, #tpu.memory_space<vmem>>, vector<8x1x32xf32>
    %716 = vector.shape_cast %715 : vector<8x1x32xf32> to vector<8x32xf32>
    %717 = vector.shape_cast %714 : vector<8x32xf32> to vector<8x1x32xf32>
    tpu.vector_store %arg14[%c0_160, %c4_161, %c0_162], %717 {strides = array<i32>} : memref<8x8x32xf32, #tpu.memory_space<vmem>>, vector<8x1x32xf32>,
    %718 = arith.truncf %696 : vector<8x32xf32> to vector<8x32xbf16>
    %cst_163 = arith.constant dense<0.000000e+00> : vector<8x256xf32>
    %719 = tpu.matmul %718, %456, %cst_163 {dimension_numbers = #tpu.dot_dimension_numbers<[1], [0], [0], [1], [0, 0, 1, 1], [], []>} : vector<8x32xbf16>, vector<32x256xbf16>, vector<8x256xf32> -> vector<8x256xf32>
    %720 = arith.truncf %714 : vector<8x32xf32> to vector<8x32xbf16>
    %cst_164 = arith.constant dense<0.000000e+00> : vector<8x128xf32>
    %721 = tpu.matmul %720, %457, %cst_164 {dimension_numbers = #tpu.dot_dimension_numbers<[1], [0], [0], [1], [0, 0, 1, 1], [], []>} : vector<8x32xbf16>, vector<32x128xbf16>, vector<8x128xf32> -> vector<8x128xf32>
    %c0_165 = arith.constant 0 : index
    %c6_166 = arith.constant 6 : index
    %c0_167 = arith.constant 0 : index
    %722 = vector.load %arg7[%c0_165, %c6_166, %c0_167] : memref<8x8x8xf32, #tpu.memory_space<vmem>>, vector<8x1x8xf32>
    %723 = vector.shape_cast %722 : vector<8x1x8xf32> to vector<8x8xf32>
    %cst_168 = arith.constant dense<0.000000e+00> : vector<8x128xf32>
    %724 = tpu.matmul %723, %455, %cst_168 {dimension_numbers = #tpu.dot_dimension_numbers<[1], [0], [0], [1], [0, 0, 1, 1], [], []>} : vector<8x8xf32>, vector<8x128xf32>, vector<8x128xf32> -> vector<8x128xf32>
    %725 = arith.addf %724, %454 : vector<8x128xf32>
    %726 = vector.extract_strided_slice %719 {offsets = [0, 0], sizes = [8, 128], strides = [1, 1]} : vector<8x256xf32> to vector<8x128xf32>
    %727 = arith.addf %725, %726 : vector<8x128xf32>
    %728 = arith.negf %727 : vector<8x128xf32>
    %729 = math.exp %728 : vector<8x128xf32>
    %cst_169 = arith.constant 1.000000e+00 : f32
    %730 = vector.broadcast %cst_169 : f32 to vector<8x128xf32>
    %731 = arith.addf %730, %729 : vector<8x128xf32>
    %732 = arith.divf %730, %731 : vector<8x128xf32>
    %733 = vector.extract_strided_slice %732 {offsets = [0, 0], sizes = [8, 32], strides = [1, 1]} : vector<8x128xf32> to vector<8x32xf32>
    %734 = vector.extract_strided_slice %732 {offsets = [0, 32], sizes = [8, 32], strides = [1, 1]} : vector<8x128xf32> to vector<8x32xf32>
    %735 = vector.extract_strided_slice %732 {offsets = [0, 96], sizes = [8, 32], strides = [1, 1]} : vector<8x128xf32> to vector<8x32xf32>
    %736 = vector.extract_strided_slice %727 {offsets = [0, 64], sizes = [8, 32], strides = [1, 1]} : vector<8x128xf32> to vector<8x32xf32>
    %737 = math.tanh %736 : vector<8x32xf32>
    %738 = arith.mulf %734, %694 : vector<8x32xf32>
    %739 = arith.mulf %733, %737 : vector<8x32xf32>
    %740 = arith.addf %738, %739 : vector<8x32xf32>
    %741 = math.tanh %740 : vector<8x32xf32>
    %742 = arith.mulf %735, %741 : vector<8x32xf32>
    %743 = vector.extract_strided_slice %719 {offsets = [0, 128], sizes = [8, 128], strides = [1, 1]} : vector<8x256xf32> to vector<8x128xf32>
    %744 = arith.addf %460, %743 : vector<8x128xf32>
    %745 = arith.addf %744, %721 : vector<8x128xf32>
    %746 = arith.negf %745 : vector<8x128xf32>
    %747 = math.exp %746 : vector<8x128xf32>
    %cst_170 = arith.constant 1.000000e+00 : f32
    %748 = vector.broadcast %cst_170 : f32 to vector<8x128xf32>
    %749 = arith.addf %748, %747 : vector<8x128xf32>
    %750 = arith.divf %748, %749 : vector<8x128xf32>
    %751 = vector.extract_strided_slice %750 {offsets = [0, 0], sizes = [8, 32], strides = [1, 1]} : vector<8x128xf32> to vector<8x32xf32>
    %752 = vector.extract_strided_slice %750 {offsets = [0, 32], sizes = [8, 32], strides = [1, 1]} : vector<8x128xf32> to vector<8x32xf32>
    %753 = vector.extract_strided_slice %750 {offsets = [0, 96], sizes = [8, 32], strides = [1, 1]} : vector<8x128xf32> to vector<8x32xf32>
    %754 = vector.extract_strided_slice %745 {offsets = [0, 64], sizes = [8, 32], strides = [1, 1]} : vector<8x128xf32> to vector<8x32xf32>
    %755 = math.tanh %754 : vector<8x32xf32>
    %756 = arith.mulf %752, %712 : vector<8x32xf32>
    %757 = arith.mulf %751, %755 : vector<8x32xf32>
    %758 = arith.addf %756, %757 : vector<8x32xf32>
    %759 = math.tanh %758 : vector<8x32xf32>
    %760 = arith.mulf %753, %759 : vector<8x32xf32>
    %c0_171 = arith.constant 0 : index
    %c5_172 = arith.constant 5 : index
    %c0_173 = arith.constant 0 : index
    %761 = vector.load %arg14[%c0_171, %c5_172, %c0_173] : memref<8x8x32xf32, #tpu.memory_space<vmem>>, vector<8x1x32xf32>
    %762 = vector.shape_cast %761 : vector<8x1x32xf32> to vector<8x32xf32>
    %763 = vector.shape_cast %760 : vector<8x32xf32> to vector<8x1x32xf32>
    tpu.vector_store %arg14[%c0_171, %c5_172, %c0_173], %763 {strides = array<i32>} : memref<8x8x32xf32, #tpu.memory_space<vmem>>, vector<8x1x32xf32>,
    %764 = arith.truncf %742 : vector<8x32xf32> to vector<8x32xbf16>
    %cst_174 = arith.constant dense<0.000000e+00> : vector<8x256xf32>
    %765 = tpu.matmul %764, %456, %cst_174 {dimension_numbers = #tpu.dot_dimension_numbers<[1], [0], [0], [1], [0, 0, 1, 1], [], []>} : vector<8x32xbf16>, vector<32x256xbf16>, vector<8x256xf32> -> vector<8x256xf32>
    %766 = arith.truncf %760 : vector<8x32xf32> to vector<8x32xbf16>
    %cst_175 = arith.constant dense<0.000000e+00> : vector<8x128xf32>
    %767 = tpu.matmul %766, %457, %cst_175 {dimension_numbers = #tpu.dot_dimension_numbers<[1], [0], [0], [1], [0, 0, 1, 1], [], []>} : vector<8x32xbf16>, vector<32x128xbf16>, vector<8x128xf32> -> vector<8x128xf32>
    %c0_176 = arith.constant 0 : index
    %c7_177 = arith.constant 7 : index
    %c0_178 = arith.constant 0 : index
    %768 = vector.load %arg7[%c0_176, %c7_177, %c0_178] : memref<8x8x8xf32, #tpu.memory_space<vmem>>, vector<8x1x8xf32>
    %769 = vector.shape_cast %768 : vector<8x1x8xf32> to vector<8x8xf32>
    %cst_179 = arith.constant dense<0.000000e+00> : vector<8x128xf32>
    %770 = tpu.matmul %769, %455, %cst_179 {dimension_numbers = #tpu.dot_dimension_numbers<[1], [0], [0], [1], [0, 0, 1, 1], [], []>} : vector<8x8xf32>, vector<8x128xf32>, vector<8x128xf32> -> vector<8x128xf32>
    %771 = arith.addf %770, %454 : vector<8x128xf32>
    %772 = vector.extract_strided_slice %765 {offsets = [0, 0], sizes = [8, 128], strides = [1, 1]} : vector<8x256xf32> to vector<8x128xf32>
    %773 = arith.addf %771, %772 : vector<8x128xf32>
    %774 = arith.negf %773 : vector<8x128xf32>
    %775 = math.exp %774 : vector<8x128xf32>
    %cst_180 = arith.constant 1.000000e+00 : f32
    %776 = vector.broadcast %cst_180 : f32 to vector<8x128xf32>
    %777 = arith.addf %776, %775 : vector<8x128xf32>
    %778 = arith.divf %776, %777 : vector<8x128xf32>
    %779 = vector.extract_strided_slice %778 {offsets = [0, 0], sizes = [8, 32], strides = [1, 1]} : vector<8x128xf32> to vector<8x32xf32>
    %780 = vector.extract_strided_slice %778 {offsets = [0, 32], sizes = [8, 32], strides = [1, 1]} : vector<8x128xf32> to vector<8x32xf32>
    %781 = vector.extract_strided_slice %778 {offsets = [0, 96], sizes = [8, 32], strides = [1, 1]} : vector<8x128xf32> to vector<8x32xf32>
    %782 = vector.extract_strided_slice %773 {offsets = [0, 64], sizes = [8, 32], strides = [1, 1]} : vector<8x128xf32> to vector<8x32xf32>
    %783 = math.tanh %782 : vector<8x32xf32>
    %784 = arith.mulf %780, %740 : vector<8x32xf32>
    %785 = arith.mulf %779, %783 : vector<8x32xf32>
    %786 = arith.addf %784, %785 : vector<8x32xf32>
    %787 = math.tanh %786 : vector<8x32xf32>
    %788 = arith.mulf %781, %787 : vector<8x32xf32>
    %789 = vector.extract_strided_slice %765 {offsets = [0, 128], sizes = [8, 128], strides = [1, 1]} : vector<8x256xf32> to vector<8x128xf32>
    %790 = arith.addf %460, %789 : vector<8x128xf32>
    %791 = arith.addf %790, %767 : vector<8x128xf32>
    %792 = arith.negf %791 : vector<8x128xf32>
    %793 = math.exp %792 : vector<8x128xf32>
    %cst_181 = arith.constant 1.000000e+00 : f32
    %794 = vector.broadcast %cst_181 : f32 to vector<8x128xf32>
    %795 = arith.addf %794, %793 : vector<8x128xf32>
    %796 = arith.divf %794, %795 : vector<8x128xf32>
    %797 = vector.extract_strided_slice %796 {offsets = [0, 0], sizes = [8, 32], strides = [1, 1]} : vector<8x128xf32> to vector<8x32xf32>
    %798 = vector.extract_strided_slice %796 {offsets = [0, 32], sizes = [8, 32], strides = [1, 1]} : vector<8x128xf32> to vector<8x32xf32>
    %799 = vector.extract_strided_slice %796 {offsets = [0, 96], sizes = [8, 32], strides = [1, 1]} : vector<8x128xf32> to vector<8x32xf32>
    %800 = vector.extract_strided_slice %791 {offsets = [0, 64], sizes = [8, 32], strides = [1, 1]} : vector<8x128xf32> to vector<8x32xf32>
    %801 = math.tanh %800 : vector<8x32xf32>
    %802 = arith.mulf %798, %758 : vector<8x32xf32>
    %803 = arith.mulf %797, %801 : vector<8x32xf32>
    %804 = arith.addf %802, %803 : vector<8x32xf32>
    %805 = math.tanh %804 : vector<8x32xf32>
    %806 = arith.mulf %799, %805 : vector<8x32xf32>
    %c0_182 = arith.constant 0 : index
    %c6_183 = arith.constant 6 : index
    %c0_184 = arith.constant 0 : index
    %807 = vector.load %arg14[%c0_182, %c6_183, %c0_184] : memref<8x8x32xf32, #tpu.memory_space<vmem>>, vector<8x1x32xf32>
    %808 = vector.shape_cast %807 : vector<8x1x32xf32> to vector<8x32xf32>
    %809 = vector.shape_cast %806 : vector<8x32xf32> to vector<8x1x32xf32>
    tpu.vector_store %arg14[%c0_182, %c6_183, %c0_184], %809 {strides = array<i32>} : memref<8x8x32xf32, #tpu.memory_space<vmem>>, vector<8x1x32xf32>,
    %810 = arith.truncf %788 : vector<8x32xf32> to vector<8x32xbf16>
    %cst_185 = arith.constant dense<0.000000e+00> : vector<8x256xf32>
    %811 = tpu.matmul %810, %456, %cst_185 {dimension_numbers = #tpu.dot_dimension_numbers<[1], [0], [0], [1], [0, 0, 1, 1], [], []>} : vector<8x32xbf16>, vector<32x256xbf16>, vector<8x256xf32> -> vector<8x256xf32>
    %812 = arith.truncf %806 : vector<8x32xf32> to vector<8x32xbf16>
    %cst_186 = arith.constant dense<0.000000e+00> : vector<8x128xf32>
    %813 = tpu.matmul %812, %457, %cst_186 {dimension_numbers = #tpu.dot_dimension_numbers<[1], [0], [0], [1], [0, 0, 1, 1], [], []>} : vector<8x32xbf16>, vector<32x128xbf16>, vector<8x128xf32> -> vector<8x128xf32>
    %814 = vector.extract_strided_slice %811 {offsets = [0, 128], sizes = [8, 128], strides = [1, 1]} : vector<8x256xf32> to vector<8x128xf32>
    %815 = arith.addf %460, %814 : vector<8x128xf32>
    %816 = arith.addf %815, %813 : vector<8x128xf32>
    %817 = arith.negf %816 : vector<8x128xf32>
    %818 = math.exp %817 : vector<8x128xf32>
    %cst_187 = arith.constant 1.000000e+00 : f32
    %819 = vector.broadcast %cst_187 : f32 to vector<8x128xf32>
    %820 = arith.addf %819, %818 : vector<8x128xf32>
    %821 = arith.divf %819, %820 : vector<8x128xf32>
    %822 = vector.extract_strided_slice %821 {offsets = [0, 0], sizes = [8, 32], strides = [1, 1]} : vector<8x128xf32> to vector<8x32xf32>
    %823 = vector.extract_strided_slice %821 {offsets = [0, 32], sizes = [8, 32], strides = [1, 1]} : vector<8x128xf32> to vector<8x32xf32>
    %824 = vector.extract_strided_slice %821 {offsets = [0, 96], sizes = [8, 32], strides = [1, 1]} : vector<8x128xf32> to vector<8x32xf32>
    %825 = vector.extract_strided_slice %816 {offsets = [0, 64], sizes = [8, 32], strides = [1, 1]} : vector<8x128xf32> to vector<8x32xf32>
    %826 = math.tanh %825 : vector<8x32xf32>
    %827 = arith.mulf %823, %804 : vector<8x32xf32>
    %828 = arith.mulf %822, %826 : vector<8x32xf32>
    %829 = arith.addf %827, %828 : vector<8x32xf32>
    %830 = math.tanh %829 : vector<8x32xf32>
    %831 = arith.mulf %824, %830 : vector<8x32xf32>
    %c0_188 = arith.constant 0 : index
    %c7_189 = arith.constant 7 : index
    %c0_190 = arith.constant 0 : index
    %832 = vector.load %arg14[%c0_188, %c7_189, %c0_190] : memref<8x8x32xf32, #tpu.memory_space<vmem>>, vector<8x1x32xf32>
    %833 = vector.shape_cast %832 : vector<8x1x32xf32> to vector<8x32xf32>
    %834 = vector.shape_cast %831 : vector<8x32xf32> to vector<8x1x32xf32>
    tpu.vector_store %arg14[%c0_188, %c7_189, %c0_190], %834 {strides = array<i32>} : memref<8x8x32xf32, #tpu.memory_space<vmem>>, vector<8x1x32xf32>,
    %c0_191 = arith.constant 0 : index
    %c0_192 = arith.constant 0 : index
    %c0_193 = arith.constant 0 : index
    %835 = vector.load %arg15[%c0_191, %c0_192, %c0_193] : memref<2x8x32xf32, #tpu.memory_space<vmem>>, vector<1x8x32xf32>
    %836 = vector.shape_cast %835 : vector<1x8x32xf32> to vector<8x32xf32>
    %837 = vector.shape_cast %788 : vector<8x32xf32> to vector<1x8x32xf32>
    tpu.vector_store %arg15[%c0_191, %c0_192, %c0_193], %837 {strides = array<i32>} : memref<2x8x32xf32, #tpu.memory_space<vmem>>, vector<1x8x32xf32>,
    %c0_194 = arith.constant 0 : index
    %c0_195 = arith.constant 0 : index
    %c0_196 = arith.constant 0 : index
    %838 = vector.load %arg16[%c0_194, %c0_195, %c0_196] : memref<2x8x32xf32, #tpu.memory_space<vmem>>, vector<1x8x32xf32>
    %839 = vector.shape_cast %838 : vector<1x8x32xf32> to vector<8x32xf32>
    %840 = vector.shape_cast %786 : vector<8x32xf32> to vector<1x8x32xf32>
    tpu.vector_store %arg16[%c0_194, %c0_195, %c0_196], %840 {strides = array<i32>} : memref<2x8x32xf32, #tpu.memory_space<vmem>>, vector<1x8x32xf32>,
    %c1_197 = arith.constant 1 : index
    %c0_198 = arith.constant 0 : index
    %c0_199 = arith.constant 0 : index
    %841 = vector.load %arg15[%c1_197, %c0_198, %c0_199] : memref<2x8x32xf32, #tpu.memory_space<vmem>>, vector<1x8x32xf32>
    %842 = vector.shape_cast %841 : vector<1x8x32xf32> to vector<8x32xf32>
    %843 = vector.shape_cast %831 : vector<8x32xf32> to vector<1x8x32xf32>
    tpu.vector_store %arg15[%c1_197, %c0_198, %c0_199], %843 {strides = array<i32>} : memref<2x8x32xf32, #tpu.memory_space<vmem>>, vector<1x8x32xf32>,
    %c1_200 = arith.constant 1 : index
    %c0_201 = arith.constant 0 : index
    %c0_202 = arith.constant 0 : index
    %844 = vector.load %arg16[%c1_200, %c0_201, %c0_202] : memref<2x8x32xf32, #tpu.memory_space<vmem>>, vector<1x8x32xf32>
    %845 = vector.shape_cast %844 : vector<1x8x32xf32> to vector<8x32xf32>
    %846 = vector.shape_cast %829 : vector<8x32xf32> to vector<1x8x32xf32>
    tpu.vector_store %arg16[%c1_200, %c0_201, %c0_202], %846 {strides = array<i32>} : memref<2x8x32xf32, #tpu.memory_space<vmem>>, vector<1x8x32xf32>,
    return
  }
  func.func @transform_0(%arg0: i32) -> (i32, i32, i32) {
    %c0_i32 = arith.constant 0 : i32
    %c0_i32_0 = arith.constant 0 : i32
    %c0_i32_1 = arith.constant 0 : i32
    %c0_i32_2 = arith.constant 0 : i32
    return %c0_i32, %c0_i32_0, %c0_i32_1 : i32, i32, i32
  }
  func.func @transform_1(%arg0: i32) -> (i32, i32) {
    %c0_i32 = arith.constant 0 : i32
    %c0_i32_0 = arith.constant 0 : i32
    %c0_i32_1 = arith.constant 0 : i32
    return %c0_i32, %c0_i32_0 : i32, i32
  }
  func.func @transform_2(%arg0: i32) -> (i32, i32) {
    %c0_i32 = arith.constant 0 : i32
    %c0_i32_0 = arith.constant 0 : i32
    %c0_i32_1 = arith.constant 0 : i32
    return %c0_i32, %c0_i32_0 : i32, i32
  }
  func.func @transform_3(%arg0: i32) -> (i32, i32) {
    %c0_i32 = arith.constant 0 : i32
    %c0_i32_0 = arith.constant 0 : i32
    %c0_i32_1 = arith.constant 0 : i32
    return %c0_i32, %c0_i32_0 : i32, i32
  }
  func.func @transform_4(%arg0: i32) -> (i32, i32) {
    %c0_i32 = arith.constant 0 : i32
    %c0_i32_0 = arith.constant 0 : i32
    %c0_i32_1 = arith.constant 0 : i32
    return %c0_i32, %c0_i32_0 : i32, i32
  }
  func.func @transform_5(%arg0: i32) -> (i32, i32) {
    %c0_i32 = arith.constant 0 : i32
    %c0_i32_0 = arith.constant 0 : i32
    %c0_i32_1 = arith.constant 0 : i32
    return %c0_i32, %c0_i32_0 : i32, i32
  }
  func.func @transform_6(%arg0: i32) -> (i32, i32, i32) {
    %c0_i32 = arith.constant 0 : i32
    %c0_i32_0 = arith.constant 0 : i32
    %c0_i32_1 = arith.constant 0 : i32
    %c0_i32_2 = arith.constant 0 : i32
    return %c0_i32, %c0_i32_0, %c0_i32_1 : i32, i32, i32
  }
  func.func @transform_7(%arg0: i32) -> (i32, i32) {
    %c0_i32 = arith.constant 0 : i32
    %c0_i32_0 = arith.constant 0 : i32
    %c0_i32_1 = arith.constant 0 : i32
    return %c0_i32, %c0_i32_0 : i32, i32
  }
  func.func @transform_8(%arg0: i32) -> (i32, i32) {
    %c0_i32 = arith.constant 0 : i32
    %c0_i32_0 = arith.constant 0 : i32
    %c0_i32_1 = arith.constant 0 : i32
    return %c0_i32, %c0_i32_0 : i32, i32
  }
  func.func @transform_9(%arg0: i32) -> (i32, i32) {
    %c0_i32 = arith.constant 0 : i32
    %c0_i32_0 = arith.constant 0 : i32
    %c0_i32_1 = arith.constant 0 : i32
    return %c0_i32, %c0_i32_0 : i32, i32
  }
  func.func @transform_10(%arg0: i32) -> (i32, i32) {
    %c0_i32 = arith.constant 0 : i32
    %c0_i32_0 = arith.constant 0 : i32
    %c0_i32_1 = arith.constant 0 : i32
    return %c0_i32, %c0_i32_0 : i32, i32
  }
  func.func @transform_11(%arg0: i32) -> (i32, i32) {
    %c0_i32 = arith.constant 0 : i32
    %c0_i32_0 = arith.constant 0 : i32
    %c0_i32_1 = arith.constant 0 : i32
    return %c0_i32, %c0_i32_0 : i32, i32
  }
  func.func @transform_12(%arg0: i32) -> (i32, i32) {
    %c0_i32 = arith.constant 0 : i32
    %c0_i32_0 = arith.constant 0 : i32
    %c0_i32_1 = arith.constant 0 : i32
    return %c0_i32, %c0_i32_0 : i32, i32
  }
  func.func @transform_13(%arg0: i32) -> (i32, i32, i32) {
    %c0_i32 = arith.constant 0 : i32
    %c0_i32_0 = arith.constant 0 : i32
    %c0_i32_1 = arith.constant 0 : i32
    %c0_i32_2 = arith.constant 0 : i32
    return %c0_i32, %c0_i32_0, %c0_i32_1 : i32, i32, i32
  }
  func.func @transform_14(%arg0: i32) -> (i32, i32, i32) {
    %c0_i32 = arith.constant 0 : i32
    %c0_i32_0 = arith.constant 0 : i32
    %c0_i32_1 = arith.constant 0 : i32
    %c0_i32_2 = arith.constant 0 : i32
    return %c0_i32, %c0_i32_0, %c0_i32_1 : i32, i32, i32
  }
  func.func @transform_15(%arg0: i32) -> (i32, i32, i32) {
    %c0_i32 = arith.constant 0 : i32
    %c0_i32_0 = arith.constant 0 : i32
    %c0_i32_1 = arith.constant 0 : i32
    %c0_i32_2 = arith.constant 0 : i32
    return %c0_i32, %c0_i32_0, %c0_i32_1 : i32, i32, i32
  }
}

</mosaic_0001>

<llo_original>
// kernel: lstm_site_embedding_forward.1
$region0: #{lstm_site_embedding_forward.1}
  #allocation0 [shape = 'u32[]', space=smem, size = 0x4, offset = 0x4, fixed_abs, tag = 'smem constant byte address 0x4 - core index']
  #allocation1 [shape = 'u32[144,128]{1,0:T(1,128)}', space=vmem, size = 0x12000, scoped, tag = 'internal scratch']
  %s0 = inlined_call_operand.vmem [shape: f32[8,10,8], index: 0, kind: input, shape index: {}]
  %s1 = inlined_call_operand.vmem [shape: f32[8,128], index: 1, kind: input, shape index: {}]
  %s2 = inlined_call_operand.vmem [shape: f32[1,128], index: 2, kind: input, shape index: {}]
  %s3 = inlined_call_operand.vmem [shape: bf16[32,256], index: 3, kind: input, shape index: {}]
  %s4 = inlined_call_operand.vmem [shape: bf16[32,128], index: 4, kind: input, shape index: {}]
  %s5 = inlined_call_operand.vmem [shape: f32[1,128], index: 5, kind: input, shape index: {}]
  %s6 = inlined_call_operand.vmem [shape: f32[8,8,8], index: 6, kind: input, shape index: {}]
  %s7 = inlined_call_operand.vmem [shape: f32[8,128], index: 7, kind: input, shape index: {}]
  %s8 = inlined_call_operand.vmem [shape: f32[64,128], index: 8, kind: input, shape index: {}]
  %s9 = inlined_call_operand.vmem [shape: f32[1,128], index: 9, kind: input, shape index: {}]
  %s10 = inlined_call_operand.vmem [shape: bf16[32,256], index: 10, kind: input, shape index: {}]
  %s11 = inlined_call_operand.vmem [shape: bf16[32,128], index: 11, kind: input, shape index: {}]
  %s12 = inlined_call_operand.vmem [shape: f32[1,128], index: 12, kind: input, shape index: {}]
  %s13 = inlined_call_operand.vmem [shape: f32[8,8,32], index: 13, kind: output, shape index: {0}]
  %s14 = inlined_call_operand.vmem [shape: f32[2,8,32], index: 14, kind: output, shape index: {1}]
  %s15 = inlined_call_operand.vmem [shape: f32[2,8,32], index: 15, kind: output, shape index: {2}]
  %16 = xla_tuple %s13, %s14, %s15
  %s17 = sld [smem:[#allocation0]]
  $region78: #{lstm_site_embedding_forward.1} parent=0
    _
  %s19 = ssub.s32 1, %s17
  %s20 = scalar_select 0, %s19, %s17
  // Predicated region
  $region2: #{lstm_site_embedding_forward.1} parent=0 // pred_check
    _
  $region3: #{lstm_site_embedding_forward.1} parent=0 // pred_check_branch
    %22 = sbr.rel (0) target = $region5
  $region4: #{lstm_site_embedding_forward.1} parent=0 // pred_region
    _
  $region5: #{lstm_site_embedding_forward.1} parent=0 // pred_fallthru
    _
  // Predicated region
  $region6: #{lstm_site_embedding_forward.1} parent=0 // pred_check
    _
  $region7: #{lstm_site_embedding_forward.1} parent=0 // pred_check_branch
    %24 = sbr.rel (0) target = $region9
  $region8: #{lstm_site_embedding_forward.1} parent=0 // pred_region
    _
  $region9: #{lstm_site_embedding_forward.1} parent=0 // pred_fallthru
    _
  // Predicated region
  $region10: #{lstm_site_embedding_forward.1} parent=0 // pred_check
    _
  $region11: #{lstm_site_embedding_forward.1} parent=0 // pred_check_branch
    %26 = sbr.rel (0) target = $region13
  $region12: #{lstm_site_embedding_forward.1} parent=0 // pred_region
    _
  $region13: #{lstm_site_embedding_forward.1} parent=0 // pred_fallthru
    _
  // Predicated region
  $region14: #{lstm_site_embedding_forward.1} parent=0 // pred_check
    _
  $region15: #{lstm_site_embedding_forward.1} parent=0 // pred_check_branch
    %28 = sbr.rel (0) target = $region17
  $region16: #{lstm_site_embedding_forward.1} parent=0 // pred_region
    _
  $region17: #{lstm_site_embedding_forward.1} parent=0 // pred_fallthru
    _
  // Predicated region
  $region18: #{lstm_site_embedding_forward.1} parent=0 // pred_check
    _
  $region19: #{lstm_site_embedding_forward.1} parent=0 // pred_check_branch
    %30 = sbr.rel (0) target = $region21
  $region20: #{lstm_site_embedding_forward.1} parent=0 // pred_region
    _
  $region21: #{lstm_site_embedding_forward.1} parent=0 // pred_fallthru
    _
  // Predicated region
  $region22: #{lstm_site_embedding_forward.1} parent=0 // pred_check
    _
  $region23: #{lstm_site_embedding_forward.1} parent=0 // pred_check_branch
    %32 = sbr.rel (0) target = $region25
  $region24: #{lstm_site_embedding_forward.1} parent=0 // pred_region
    _
  $region25: #{lstm_site_embedding_forward.1} parent=0 // pred_fallthru
    _
  // Predicated region
  $region26: #{lstm_site_embedding_forward.1} parent=0 // pred_check
    _
  $region27: #{lstm_site_embedding_forward.1} parent=0 // pred_check_branch
    %34 = sbr.rel (0) target = $region29
  $region28: #{lstm_site_embedding_forward.1} parent=0 // pred_region
    _
  $region29: #{lstm_site_embedding_forward.1} parent=0 // pred_fallthru
    _
  // Predicated region
  $region30: #{lstm_site_embedding_forward.1} parent=0 // pred_check
    _
  $region31: #{lstm_site_embedding_forward.1} parent=0 // pred_check_branch
    %36 = sbr.rel (0) target = $region33
  $region32: #{lstm_site_embedding_forward.1} parent=0 // pred_region
    _
  $region33: #{lstm_site_embedding_forward.1} parent=0 // pred_fallthru
    _
  // Predicated region
  $region34: #{lstm_site_embedding_forward.1} parent=0 // pred_check
    _
  $region35: #{lstm_site_embedding_forward.1} parent=0 // pred_check_branch
    %38 = sbr.rel (0) target = $region37
  $region36: #{lstm_site_embedding_forward.1} parent=0 // pred_region
    _
  $region37: #{lstm_site_embedding_forward.1} parent=0 // pred_fallthru
    _
  // Predicated region
  $region38: #{lstm_site_embedding_forward.1} parent=0 // pred_check
    _
  $region39: #{lstm_site_embedding_forward.1} parent=0 // pred_check_branch
    %40 = sbr.rel (0) target = $region41
  $region40: #{lstm_site_embedding_forward.1} parent=0 // pred_region
    _
  $region41: #{lstm_site_embedding_forward.1} parent=0 // pred_fallthru
    _
  // Predicated region
  $region42: #{lstm_site_embedding_forward.1} parent=0 // pred_check
    _
  $region43: #{lstm_site_embedding_forward.1} parent=0 // pred_check_branch
    %42 = sbr.rel (0) target = $region45
  $region44: #{lstm_site_embedding_forward.1} parent=0 // pred_region
    _
  $region45: #{lstm_site_embedding_forward.1} parent=0 // pred_fallthru
    _
  // Predicated region
  $region46: #{lstm_site_embedding_forward.1} parent=0 // pred_check
    _
  $region47: #{lstm_site_embedding_forward.1} parent=0 // pred_check_branch
    %44 = sbr.rel (0) target = $region49
  $region48: #{lstm_site_embedding_forward.1} parent=0 // pred_region
    _
  $region49: #{lstm_site_embedding_forward.1} parent=0 // pred_fallthru
    _
  // Predicated region
  $region50: #{lstm_site_embedding_forward.1} parent=0 // pred_check
    _
  $region51: #{lstm_site_embedding_forward.1} parent=0 // pred_check_branch
    %46 = sbr.rel (0) target = $region53
  $region52: #{lstm_site_embedding_forward.1} parent=0 // pred_region
    _
  $region53: #{lstm_site_embedding_forward.1} parent=0 // pred_fallthru
    _
  %v48 = vld [vmem:[%s1] sm:$0xff]
  %v49 = vld [vmem:[%s2] sm:$0x1]
  %v51 = vlaneseq
  %v52 = vshrl.u32 %v51, 7
  %v53 = vsub.s32 0, %v52
  %v54 = vrot.slane %v49, %v53
  %v56 = vld [vmem:[%s3] sm:$0xff]
  %v57 = vld [vmem:[%s3 + $0x8] sm:$0xff]
  %v58 = vld [vmem:[%s3 + $0x10] sm:$0xff]
  %v59 = vld [vmem:[%s3 + $0x18] sm:$0xff]
  %v60 = vld [vmem:[%s4] sm:$0xf]
  %v61 = vld [vmem:[%s4 + $0x4] sm:$0xf]
  %v62 = vld [vmem:[%s4 + $0x8] sm:$0xf]
  %v63 = vld [vmem:[%s4 + $0xc] sm:$0xf]
  %v64 = vld [vmem:[%s5] sm:$0x1]
  %v66 = vlaneseq
  %v67 = vshrl.u32 %v66, 7
  %v68 = vsub.s32 0, %v67
  %v69 = vrot.slane %v64, %v68
  %v75 = vunpack.c.l.b16 %v56
  %v76 = vunpack.c.h.b16 %v56
  %v77 = vunpack.c.l.b16 %v57
  %v78 = vunpack.c.h.b16 %v57
  %v79 = vunpack.c.l.b16 %v58
  %v80 = vunpack.c.h.b16 %v58
  %v81 = vunpack.c.l.b16 %v59
  %v82 = vunpack.c.h.b16 %v59
  %v83 = vpack.c.b16 %v77, %v75
  %v84 = vpack.c.b16 %v78, %v76
  %v85 = vpack.c.b16 %v81, %v79
  %v86 = vpack.c.b16 %v82, %v80
  %vm91 = vcmask 261120
  %v93 = vsel %vm91, 0, 0
  %95 = vmatprep.subr.bf16.mxu0 %v84
  %96 = vmatpush1.bf16.msra.mxu0 %v83
  %97 = vmatprep.subr.bf16.mxu0 %v86
  %98 = vmatpush1.bf16.msra.mxu0 %v85
  %99 = vmatprep.subr.bf16.mxu0 0
  %100 = vmatpush1.bf16.msra.mxu0 0
  %101 = vmatprep.subr.bf16.mxu0 0
  %102 = vmatpush1.bf16.msra.mxu0 0
  %103 = vmatprep.subr.bf16.mxu0 0
  %104 = vmatpush1.bf16.msra.mxu0 0
  %105 = vmatprep.subr.bf16.mxu0 0
  %106 = vmatpush1.bf16.msra.mxu0 0
  %107 = vmatprep.subr.bf16.mxu0 0
  %108 = vmatpush1.bf16.msra.mxu0 0
  %109 = vmatprep.subr.bf16.mxu0 0
  %110 = vmatpush1.bf16.msra.mxu0 0
  %111 = vmatprep.subr.bf16.mxu0 0
  %112 = vmatpush1.bf16.msra.mxu0 0
  %113 = vmatprep.subr.bf16.mxu0 0
  %114 = vmatpush1.bf16.msra.mxu0 0
  %115 = vmatprep.subr.bf16.mxu0 0
  %116 = vmatpush1.bf16.msra.mxu0 0
  %117 = vmatprep.subr.bf16.mxu0 0
  %118 = vmatpush1.bf16.msra.mxu0 0
  %119 = vmatprep.subr.bf16.mxu0 0
  %120 = vmatpush1.bf16.msra.mxu0 0
  %121 = vmatprep.subr.bf16.mxu0 0
  %122 = vmatpush1.bf16.msra.mxu0 0
  %123 = vmatprep.subr.bf16.mxu0 0
  %124 = vmatpush1.bf16.msra.mxu0 0
  %125 = vmatprep.subr.bf16.mxu0 0
  %126 = vmatpush1.bf16.msra.mxu0 0
  %127 = vmatprep.mubr.bf16.mxu0 0
  %128 = vmatmul.mubr.bf16.gmra.mrb[0].mxu0 %v93
  %v129 = vpop.f32.mrb[0].mxu0
  %v130 = vadd.f32 0.0, %v129
  %v131 = vpop.f32.mrb[0].mxu0
  %v132 = vpop.f32.mrb[0].mxu0
  %v133 = vpop.f32.mrb[0].mxu0
  %134 = vdwg.mxu0
  %v135 = vld [vmem:[%s0] sm:$0x1]
  %v136 = vld [vmem:[%s0 + $0x10] sm:$0x1]
  %v137 = vld [vmem:[%s0 + $0x20] sm:$0x1]
  %v138 = vld [vmem:[%s0 + $0x30] sm:$0x1]
  %v139 = vld [vmem:[%s0 + $0x40] sm:$0x1]
  %v140 = vld [vmem:[%s0 + $0x50] sm:$0x1]
  %v141 = vld [vmem:[%s0 + $0x60] sm:$0x1]
  %v142 = vld [vmem:[%s0 + $0x70] sm:$0x1]
  %v151 = vrot.slane %v136, 7
  %vm152 = vcmask 1041409
  %v153 = vsel %vm152, %v151, %v135
  %v154 = vrot.slane %v137, 6
  %vm155 = vcmask 1042434
  %v156 = vsel %vm155, %v154, %v153
  %v157 = vrot.slane %v138, 5
  %vm158 = vcmask 1043459
  %v159 = vsel %vm158, %v157, %v156
  %v160 = vrot.slane %v139, 4
  %vm161 = vcmask 1044484
  %v162 = vsel %vm161, %v160, %v159
  %v163 = vrot.slane %v140, 3
  %vm164 = vcmask 1045509
  %v165 = vsel %vm164, %v163, %v162
  %v166 = vrot.slane %v141, 2
  %vm167 = vcmask 1046534
  %v168 = vsel %vm167, %v166, %v165
  %v169 = vrot.slane %v142, 1
  %vm170 = vcmask 1047559
  %v171 = vsel %vm170, %v169, %v168
  %vm172 = vcmask 64512
  %v173 = vsel %vm172, %v171, 0
  %175 = vmatprep.subr.mxu0 0.0
  %176 = vmatpush1.msra.mxu0 %v48
  %177 = vmatprep.subr.mxu0 0.0
  %178 = vmatpush1.msra.mxu0 0.0
  %179 = vmatprep.subr.mxu0 0.0
  %180 = vmatpush1.msra.mxu0 0.0
  %181 = vmatprep.subr.mxu0 0.0
  %182 = vmatpush1.msra.mxu0 0.0
  %183 = vmatprep.subr.mxu0 0.0
  %184 = vmatpush1.msra.mxu0 0.0
  %185 = vmatprep.subr.mxu0 0.0
  %186 = vmatpush1.msra.mxu0 0.0
  %187 = vmatprep.subr.mxu0 0.0
  %188 = vmatpush1.msra.mxu0 0.0
  %189 = vmatprep.subr.mxu0 0.0
  %190 = vmatpush1.msra.mxu0 0.0
  %191 = vmatprep.subr.mxu0 0.0
  %192 = vmatpush1.msra.mxu0 0.0
  %193 = vmatprep.subr.mxu0 0.0
  %194 = vmatpush1.msra.mxu0 0.0
  %195 = vmatprep.subr.mxu0 0.0
  %196 = vmatpush1.msra.mxu0 0.0
  %197 = vmatprep.subr.mxu0 0.0
  %198 = vmatpush1.msra.mxu0 0.0
  %199 = vmatprep.subr.mxu0 0.0
  %200 = vmatpush1.msra.mxu0 0.0
  %201 = vmatprep.subr.mxu0 0.0
  %202 = vmatpush1.msra.mxu0 0.0
  %203 = vmatprep.subr.mxu0 0.0
  %204 = vmatpush1.msra.mxu0 0.0
  %205 = vmatprep.subr.mxu0 0.0
  %206 = vmatpush1.msra.mxu0 0.0
  %207 = vmatprep.subr.mxu0 0.0
  %208 = vmatpush1.msra.mxu0 0.0
  %209 = vmatprep.subr.mxu0 0.0
  %210 = vmatpush1.msra.mxu0 0.0
  %211 = vmatprep.subr.mxu0 0.0
  %212 = vmatpush1.msra.mxu0 0.0
  %213 = vmatprep.subr.mxu0 0.0
  %214 = vmatpush1.msra.mxu0 0.0
  %215 = vmatprep.subr.mxu0 0.0
  %216 = vmatpush1.msra.mxu0 0.0
  %217 = vmatprep.subr.mxu0 0.0
  %218 = vmatpush1.msra.mxu0 0.0
  %219 = vmatprep.subr.mxu0 0.0
  %220 = vmatpush1.msra.mxu0 0.0
  %221 = vmatprep.subr.mxu0 0.0
  %222 = vmatpush1.msra.mxu0 0.0
  %223 = vmatprep.subr.mxu0 0.0
  %224 = vmatpush1.msra.mxu0 0.0
  %225 = vmatprep.subr.mxu0 0.0
  %226 = vmatpush1.msra.mxu0 0.0
  %227 = vmatprep.subr.mxu0 0.0
  %228 = vmatpush1.msra.mxu0 0.0
  %229 = vmatprep.subr.mxu0 0.0
  %230 = vmatpush1.msra.mxu0 0.0
  %231 = vmatprep.subr.mxu0 0.0
  %232 = vmatpush1.msra.mxu0 0.0
  %233 = vmatprep.subr.mxu0 0.0
  %234 = vmatpush1.msra.mxu0 0.0
  %235 = vmatprep.subr.mxu0 0.0
  %236 = vmatpush1.msra.mxu0 0.0
  %237 = vmatprep.subr.mxu0 0.0
  %238 = vmatpush1.msra.mxu0 0.0
  %239 = vmatprep.mubr.f32.mxu0 0.0
  %240 = vmatmul.mubr.f32.gmra.mrb[0].mxu0 %v173
  %v241 = vpop.f32.mrb[0].mxu0
  %v242 = vadd.f32 %v54, %v241
  %v243 = vpop.f32.mrb[0].mxu0
  %244 = vdwg.mxu0
  %v245 = vadd.f32 %v242, %v130
  %v246 = vxor.u32 %v245, 2147483648
  %v247 = vmul.f32 %v246, 1.442695
  %v248 = vpow.pop %v247
  %v249 = vadd.f32 %v248, 1.0
  %v250 = vrcp.pop %v249
  %v251 = vmul.f32 1.0, %v250
  %v252 = vtanh.pop %v245
  %v253 = vmul.f32 %v251, 0.0
  %255 = vrot.lane.b32.xlu0 %v252, 64
  %v256 = vpop.permute.xlu0 %255
  %v258 = vmul.f32 %v251, %v256
  %260 = vrot.lane.b32.xlu0 %v258, 32
  %v261 = vpop.permute.xlu0 %260
  %v263 = vadd.f32 %v253, %v261
  %v264 = vtanh.pop %v263
  %266 = vrot.lane.b32.xlu0 %v264, 64
  %v267 = vpop.permute.xlu0 %266
  %v269 = vmul.f32 %v251, %v267
  %v270 = vpack.c.bf16 %v269, %v269
  %272 = vrot.lane.b32.xlu0 %v270, 32
  %v273 = vpop.permute.xlu0 %272
  %v275 = vsel %vm91, %v273, 0
  %277 = vmatprep.subr.bf16.mxu0 %v84
  %278 = vmatpush1.bf16.msra.mxu0 %v83
  %279 = vmatprep.subr.bf16.mxu0 %v86
  %280 = vmatpush1.bf16.msra.mxu0 %v85
  %281 = vmatprep.subr.bf16.mxu0 0
  %282 = vmatpush1.bf16.msra.mxu0 0
  %283 = vmatprep.subr.bf16.mxu0 0
  %284 = vmatpush1.bf16.msra.mxu0 0
  %285 = vmatprep.subr.bf16.mxu0 0
  %286 = vmatpush1.bf16.msra.mxu0 0
  %287 = vmatprep.subr.bf16.mxu0 0
  %288 = vmatpush1.bf16.msra.mxu0 0
  %289 = vmatprep.subr.bf16.mxu0 0
  %290 = vmatpush1.bf16.msra.mxu0 0
  %291 = vmatprep.subr.bf16.mxu0 0
  %292 = vmatpush1.bf16.msra.mxu0 0
  %293 = vmatprep.subr.bf16.mxu0 0
  %294 = vmatpush1.bf16.msra.mxu0 0
  %295 = vmatprep.subr.bf16.mxu0 0
  %296 = vmatpush1.bf16.msra.mxu0 0
  %297 = vmatprep.subr.bf16.mxu0 0
  %298 = vmatpush1.bf16.msra.mxu0 0
  %299 = vmatprep.subr.bf16.mxu0 0
  %300 = vmatpush1.bf16.msra.mxu0 0
  %301 = vmatprep.subr.bf16.mxu0 0
  %302 = vmatpush1.bf16.msra.mxu0 0
  %303 = vmatprep.subr.bf16.mxu0 0
  %304 = vmatpush1.bf16.msra.mxu0 0
  %305 = vmatprep.subr.bf16.mxu0 0
  %306 = vmatpush1.bf16.msra.mxu0 0
  %307 = vmatprep.subr.bf16.mxu0 0
  %308 = vmatpush1.bf16.msra.mxu0 0
  %309 = vmatprep.mubr.bf16.mxu0 0
  %310 = vmatmul.mubr.bf16.gmra.mrb[0].mxu0 %v275
  %v311 = vpop.f32.mrb[0].mxu0
  %v312 = vadd.f32 0.0, %v311
  %v313 = vpop.f32.mrb[0].mxu0
  %v314 = vadd.f32 0.0, %v313
  %v315 = vpop.f32.mrb[0].mxu0
  %v316 = vpop.f32.mrb[0].mxu0
  %317 = vdwg.mxu0
  %v322 = vunpack.c.l.b16 %v60
  %v323 = vunpack.c.l.b16 %v61
  %v324 = vunpack.c.l.b16 %v62
  %v325 = vunpack.c.l.b16 %v63
  %v326 = vpack.c.b16 %v323, %v322
  %v327 = vpack.c.b16 %v325, %v324
  %330 = vmatprep.subr.bf16.mxu0 0
  %331 = vmatpush1.bf16.msra.mxu0 %v326
  %332 = vmatprep.subr.bf16.mxu0 0
  %333 = vmatpush1.bf16.msra.mxu0 %v327
  %334 = vmatprep.subr.bf16.mxu0 0
  %335 = vmatpush1.bf16.msra.mxu0 0
  %336 = vmatprep.subr.bf16.mxu0 0
  %337 = vmatpush1.bf16.msra.mxu0 0
  %338 = vmatprep.subr.bf16.mxu0 0
  %339 = vmatpush1.bf16.msra.mxu0 0
  %340 = vmatprep.subr.bf16.mxu0 0
  %341 = vmatpush1.bf16.msra.mxu0 0
  %342 = vmatprep.subr.bf16.mxu0 0
  %343 = vmatpush1.bf16.msra.mxu0 0
  %344 = vmatprep.subr.bf16.mxu0 0
  %345 = vmatpush1.bf16.msra.mxu0 0
  %346 = vmatprep.subr.bf16.mxu0 0
  %347 = vmatpush1.bf16.msra.mxu0 0
  %348 = vmatprep.subr.bf16.mxu0 0
  %349 = vmatpush1.bf16.msra.mxu0 0
  %350 = vmatprep.subr.bf16.mxu0 0
  %351 = vmatpush1.bf16.msra.mxu0 0
  %352 = vmatprep.subr.bf16.mxu0 0
  %353 = vmatpush1.bf16.msra.mxu0 0
  %354 = vmatprep.subr.bf16.mxu0 0
  %355 = vmatpush1.bf16.msra.mxu0 0
  %356 = vmatprep.subr.bf16.mxu0 0
  %357 = vmatpush1.bf16.msra.mxu0 0
  %358 = vmatprep.subr.bf16.mxu0 0
  %359 = vmatpush1.bf16.msra.mxu0 0
  %360 = vmatprep.subr.bf16.mxu0 0
  %361 = vmatpush1.bf16.msra.mxu0 0
  %362 = vmatprep.mubr.bf16.mxu0 0
  %363 = vmatmul.mubr.bf16.gmra.mrb[0].mxu0 %v93
  %v364 = vpop.f32.mrb[0].mxu0
  %v365 = vadd.f32 0.0, %v364
  %v366 = vpop.f32.mrb[0].mxu0
  %v367 = vpop.f32.mrb[0].mxu0
  %v368 = vpop.f32.mrb[0].mxu0
  %369 = vdwg.mxu0
  %v370 = vld [vmem:[%s0 + $0x1] sm:$0x1]
  %v371 = vld [vmem:[%s0 + $0x11] sm:$0x1]
  %v372 = vld [vmem:[%s0 + $0x21] sm:$0x1]
  %v373 = vld [vmem:[%s0 + $0x31] sm:$0x1]
  %v374 = vld [vmem:[%s0 + $0x41] sm:$0x1]
  %v375 = vld [vmem:[%s0 + $0x51] sm:$0x1]
  %v376 = vld [vmem:[%s0 + $0x61] sm:$0x1]
  %v377 = vld [vmem:[%s0 + $0x71] sm:$0x1]
  %v386 = vrot.slane %v371, 7
  %v387 = vsel %vm152, %v386, %v370
  %v388 = vrot.slane %v372, 6
  %v389 = vsel %vm155, %v388, %v387
  %v390 = vrot.slane %v373, 5
  %v391 = vsel %vm158, %v390, %v389
  %v392 = vrot.slane %v374, 4
  %v393 = vsel %vm161, %v392, %v391
  %v394 = vrot.slane %v375, 3
  %v395 = vsel %vm164, %v394, %v393
  %v396 = vrot.slane %v376, 2
  %v397 = vsel %vm167, %v396, %v395
  %v398 = vrot.slane %v377, 1
  %v399 = vsel %vm170, %v398, %v397
  %v400 = vsel %vm172, %v399, 0
  %402 = vmatprep.subr.mxu0 0.0
  %403 = vmatpush1.msra.mxu0 %v48
  %404 = vmatprep.subr.mxu0 0.0
  %405 = vmatpush1.msra.mxu0 0.0
  %406 = vmatprep.subr.mxu0 0.0
  %407 = vmatpush1.msra.mxu0 0.0
  %408 = vmatprep.subr.mxu0 0.0
  %409 = vmatpush1.msra.mxu0 0.0
  %410 = vmatprep.subr.mxu0 0.0
  %411 = vmatpush1.msra.mxu0 0.0
  %412 = vmatprep.subr.mxu0 0.0
  %413 = vmatpush1.msra.mxu0 0.0
  %414 = vmatprep.subr.mxu0 0.0
  %415 = vmatpush1.msra.mxu0 0.0
  %416 = vmatprep.subr.mxu0 0.0
  %417 = vmatpush1.msra.mxu0 0.0
  %418 = vmatprep.subr.mxu0 0.0
  %419 = vmatpush1.msra.mxu0 0.0
  %420 = vmatprep.subr.mxu0 0.0
  %421 = vmatpush1.msra.mxu0 0.0
  %422 = vmatprep.subr.mxu0 0.0
  %423 = vmatpush1.msra.mxu0 0.0
  %424 = vmatprep.subr.mxu0 0.0
  %425 = vmatpush1.msra.mxu0 0.0
  %426 = vmatprep.subr.mxu0 0.0
  %427 = vmatpush1.msra.mxu0 0.0
  %428 = vmatprep.subr.mxu0 0.0
  %429 = vmatpush1.msra.mxu0 0.0
  %430 = vmatprep.subr.mxu0 0.0
  %431 = vmatpush1.msra.mxu0 0.0
  %432 = vmatprep.subr.mxu0 0.0
  %433 = vmatpush1.msra.mxu0 0.0
  %434 = vmatprep.subr.mxu0 0.0
  %435 = vmatpush1.msra.mxu0 0.0
  %436 = vmatprep.subr.mxu0 0.0
  %437 = vmatpush1.msra.mxu0 0.0
  %438 = vmatprep.subr.mxu0 0.0
  %439 = vmatpush1.msra.mxu0 0.0
  %440 = vmatprep.subr.mxu0 0.0
  %441 = vmatpush1.msra.mxu0 0.0
  %442 = vmatprep.subr.mxu0 0.0
  %443 = vmatpush1.msra.mxu0 0.0
  %444 = vmatprep.subr.mxu0 0.0
  %445 = vmatpush1.msra.mxu0 0.0
  %446 = vmatprep.subr.mxu0 0.0
  %447 = vmatpush1.msra.mxu0 0.0
  %448 = vmatprep.subr.mxu0 0.0
  %449 = vmatpush1.msra.mxu0 0.0
  %450 = vmatprep.subr.mxu0 0.0
  %451 = vmatpush1.msra.mxu0 0.0
  %452 = vmatprep.subr.mxu0 0.0
  %453 = vmatpush1.msra.mxu0 0.0
  %454 = vmatprep.subr.mxu0 0.0
  %455 = vmatpush1.msra.mxu0 0.0
  %456 = vmatprep.subr.mxu0 0.0
  %457 = vmatpush1.msra.mxu0 0.0
  %458 = vmatprep.subr.mxu0 0.0
  %459 = vmatpush1.msra.mxu0 0.0
  %460 = vmatprep.subr.mxu0 0.0
  %461 = vmatpush1.msra.mxu0 0.0
  %462 = vmatprep.subr.mxu0 0.0
  %463 = vmatpush1.msra.mxu0 0.0
  %464 = vmatprep.subr.mxu0 0.0
  %465 = vmatpush1.msra.mxu0 0.0
  %466 = vmatprep.mubr.f32.mxu0 0.0
  %467 = vmatmul.mubr.f32.gmra.mrb[0].mxu0 %v400
  %v468 = vpop.f32.mrb[0].mxu0
  %v469 = vadd.f32 %v54, %v468
  %v470 = vpop.f32.mrb[0].mxu0
  %471 = vdwg.mxu0
  %v472 = vadd.f32 %v469, %v312
  %v473 = vxor.u32 %v472, 2147483648
  %v474 = vmul.f32 %v473, 1.442695
  %v475 = vpow.pop %v474
  %v476 = vadd.f32 %v475, 1.0
  %v477 = vrcp.pop %v476
  %v478 = vmul.f32 1.0, %v477
  %v479 = vtanh.pop %v472
  %v480 = vmul.f32 %v478, %v263
  %482 = vrot.lane.b32.xlu0 %v479, 64
  %v483 = vpop.permute.xlu0 %482
  %v485 = vmul.f32 %v478, %v483
  %487 = vrot.lane.b32.xlu0 %v485, 32
  %v488 = vpop.permute.xlu0 %487
  %v490 = vadd.f32 %v480, %v488
  %v491 = vtanh.pop %v490
  %493 = vrot.lane.b32.xlu0 %v491, 64
  %v494 = vpop.permute.xlu0 %493
  %v496 = vmul.f32 %v478, %v494
  %v497 = vadd.f32 %v69, %v314
  %v498 = vadd.f32 %v497, %v365
  %v499 = vxor.u32 %v498, 2147483648
  %v500 = vmul.f32 %v499, 1.442695
  %v501 = vpow.pop %v500
  %v502 = vadd.f32 %v501, 1.0
  %v503 = vrcp.pop %v502
  %v504 = vmul.f32 1.0, %v503
  %v505 = vtanh.pop %v498
  %v506 = vmul.f32 %v504, 0.0
  %508 = vrot.lane.b32.xlu0 %v505, 64
  %v509 = vpop.permute.xlu0 %508
  %v511 = vmul.f32 %v504, %v509
  %513 = vrot.lane.b32.xlu0 %v511, 32
  %v514 = vpop.permute.xlu0 %513
  %v516 = vadd.f32 %v506, %v514
  %v517 = vtanh.pop %v516
  %519 = vrot.lane.b32.xlu0 %v517, 64
  %v520 = vpop.permute.xlu0 %519
  %v522 = vmul.f32 %v504, %v520
  %v523 = vpack.c.bf16 %v496, %v496
  %525 = vrot.lane.b32.xlu0 %v523, 32
  %v526 = vpop.permute.xlu0 %525
  %v528 = vsel %vm91, %v526, 0
  %530 = vmatprep.subr.bf16.mxu0 %v84
  %531 = vmatpush1.bf16.msra.mxu0 %v83
  %532 = vmatprep.subr.bf16.mxu0 %v86
  %533 = vmatpush1.bf16.msra.mxu0 %v85
  %534 = vmatprep.subr.bf16.mxu0 0
  %535 = vmatpush1.bf16.msra.mxu0 0
  %536 = vmatprep.subr.bf16.mxu0 0
  %537 = vmatpush1.bf16.msra.mxu0 0
  %538 = vmatprep.subr.bf16.mxu0 0
  %539 = vmatpush1.bf16.msra.mxu0 0
  %540 = vmatprep.subr.bf16.mxu0 0
  %541 = vmatpush1.bf16.msra.mxu0 0
  %542 = vmatprep.subr.bf16.mxu0 0
  %543 = vmatpush1.bf16.msra.mxu0 0
  %544 = vmatprep.subr.bf16.mxu0 0
  %545 = vmatpush1.bf16.msra.mxu0 0
  %546 = vmatprep.subr.bf16.mxu0 0
  %547 = vmatpush1.bf16.msra.mxu0 0
  %548 = vmatprep.subr.bf16.mxu0 0
  %549 = vmatpush1.bf16.msra.mxu0 0
  %550 = vmatprep.subr.bf16.mxu0 0
  %551 = vmatpush1.bf16.msra.mxu0 0
  %552 = vmatprep.subr.bf16.mxu0 0
  %553 = vmatpush1.bf16.msra.mxu0 0
  %554 = vmatprep.subr.bf16.mxu0 0
  %555 = vmatpush1.bf16.msra.mxu0 0
  %556 = vmatprep.subr.bf16.mxu0 0
  %557 = vmatpush1.bf16.msra.mxu0 0
  %558 = vmatprep.subr.bf16.mxu0 0
  %559 = vmatpush1.bf16.msra.mxu0 0
  %560 = vmatprep.subr.bf16.mxu0 0
  %561 = vmatpush1.bf16.msra.mxu0 0
  %562 = vmatprep.mubr.bf16.mxu0 0
  %563 = vmatmul.mubr.bf16.gmra.mrb[0].mxu0 %v528
  %v564 = vpop.f32.mrb[0].mxu0
  %v565 = vadd.f32 0.0, %v564
  %v566 = vpop.f32.mrb[0].mxu0
  %v567 = vadd.f32 0.0, %v566
  %v568 = vpop.f32.mrb[0].mxu0
  %v569 = vpop.f32.mrb[0].mxu0
  %570 = vdwg.mxu0
  %v571 = vpack.c.bf16 %v522, %v522
  %573 = vrot.lane.b32.xlu0 %v571, 32
  %v574 = vpop.permute.xlu0 %573
  %v576 = vsel %vm91, %v574, 0
  %578 = vmatprep.subr.bf16.mxu0 0
  %579 = vmatpush1.bf16.msra.mxu0 %v326
  %580 = vmatprep.subr.bf16.mxu0 0
  %581 = vmatpush1.bf16.msra.mxu0 %v327
  %582 = vmatprep.subr.bf16.mxu0 0
  %583 = vmatpush1.bf16.msra.mxu0 0
  %584 = vmatprep.subr.bf16.mxu0 0
  %585 = vmatpush1.bf16.msra.mxu0 0
  %586 = vmatprep.subr.bf16.mxu0 0
  %587 = vmatpush1.bf16.msra.mxu0 0
  %588 = vmatprep.subr.bf16.mxu0 0
  %589 = vmatpush1.bf16.msra.mxu0 0
  %590 = vmatprep.subr.bf16.mxu0 0
  %591 = vmatpush1.bf16.msra.mxu0 0
  %592 = vmatprep.subr.bf16.mxu0 0
  %593 = vmatpush1.bf16.msra.mxu0 0
  %594 = vmatprep.subr.bf16.mxu0 0
  %595 = vmatpush1.bf16.msra.mxu0 0
  %596 = vmatprep.subr.bf16.mxu0 0
  %597 = vmatpush1.bf16.msra.mxu0 0
  %598 = vmatprep.subr.bf16.mxu0 0
  %599 = vmatpush1.bf16.msra.mxu0 0
  %600 = vmatprep.subr.bf16.mxu0 0
  %601 = vmatpush1.bf16.msra.mxu0 0
  %602 = vmatprep.subr.bf16.mxu0 0
  %603 = vmatpush1.bf16.msra.mxu0 0
  %604 = vmatprep.subr.bf16.mxu0 0
  %605 = vmatpush1.bf16.msra.mxu0 0
  %606 = vmatprep.subr.bf16.mxu0 0
  %607 = vmatpush1.bf16.msra.mxu0 0
  %608 = vmatprep.subr.bf16.mxu0 0
  %609 = vmatpush1.bf16.msra.mxu0 0
  %610 = vmatprep.mubr.bf16.mxu0 0
  %611 = vmatmul.mubr.bf16.gmra.mrb[0].mxu0 %v576
  %v612 = vpop.f32.mrb[0].mxu0
  %v613 = vadd.f32 0.0, %v612
  %v614 = vpop.f32.mrb[0].mxu0
  %v615 = vpop.f32.mrb[0].mxu0
  %v616 = vpop.f32.mrb[0].mxu0
  %617 = vdwg.mxu0
  %v618 = vld [vmem:[%s0 + $0x2] sm:$0x1]
  %v619 = vld [vmem:[%s0 + $0x12] sm:$0x1]
  %v620 = vld [vmem:[%s0 + $0x22] sm:$0x1]
  %v621 = vld [vmem:[%s0 + $0x32] sm:$0x1]
  %v622 = vld [vmem:[%s0 + $0x42] sm:$0x1]
  %v623 = vld [vmem:[%s0 + $0x52] sm:$0x1]
  %v624 = vld [vmem:[%s0 + $0x62] sm:$0x1]
  %v625 = vld [vmem:[%s0 + $0x72] sm:$0x1]
  %v634 = vrot.slane %v619, 7
  %v635 = vsel %vm152, %v634, %v618
  %v636 = vrot.slane %v620, 6
  %v637 = vsel %vm155, %v636, %v635
  %v638 = vrot.slane %v621, 5
  %v639 = vsel %vm158, %v638, %v637
  %v640 = vrot.slane %v622, 4
  %v641 = vsel %vm161, %v640, %v639
  %v642 = vrot.slane %v623, 3
  %v643 = vsel %vm164, %v642, %v641
  %v644 = vrot.slane %v624, 2
  %v645 = vsel %vm167, %v644, %v643
  %v646 = vrot.slane %v625, 1
  %v647 = vsel %vm170, %v646, %v645
  %v648 = vsel %vm172, %v647, 0
  %650 = vmatprep.subr.mxu0 0.0
  %651 = vmatpush1.msra.mxu0 %v48
  %652 = vmatprep.subr.mxu0 0.0
  %653 = vmatpush1.msra.mxu0 0.0
  %654 = vmatprep.subr.mxu0 0.0
  %655 = vmatpush1.msra.mxu0 0.0
  %656 = vmatprep.subr.mxu0 0.0
  %657 = vmatpush1.msra.mxu0 0.0
  %658 = vmatprep.subr.mxu0 0.0
  %659 = vmatpush1.msra.mxu0 0.0
  %660 = vmatprep.subr.mxu0 0.0
  %661 = vmatpush1.msra.mxu0 0.0
  %662 = vmatprep.subr.mxu0 0.0
  %663 = vmatpush1.msra.mxu0 0.0
  %664 = vmatprep.subr.mxu0 0.0
  %665 = vmatpush1.msra.mxu0 0.0
  %666 = vmatprep.subr.mxu0 0.0
  %667 = vmatpush1.msra.mxu0 0.0
  %668 = vmatprep.subr.mxu0 0.0
  %669 = vmatpush1.msra.mxu0 0.0
  %670 = vmatprep.subr.mxu0 0.0
  %671 = vmatpush1.msra.mxu0 0.0
  %672 = vmatprep.subr.mxu0 0.0
  %673 = vmatpush1.msra.mxu0 0.0
  %674 = vmatprep.subr.mxu0 0.0
  %675 = vmatpush1.msra.mxu0 0.0
  %676 = vmatprep.subr.mxu0 0.0
  %677 = vmatpush1.msra.mxu0 0.0
  %678 = vmatprep.subr.mxu0 0.0
  %679 = vmatpush1.msra.mxu0 0.0
  %680 = vmatprep.subr.mxu0 0.0
  %681 = vmatpush1.msra.mxu0 0.0
  %682 = vmatprep.subr.mxu0 0.0
  %683 = vmatpush1.msra.mxu0 0.0
  %684 = vmatprep.subr.mxu0 0.0
  %685 = vmatpush1.msra.mxu0 0.0
  %686 = vmatprep.subr.mxu0 0.0
  %687 = vmatpush1.msra.mxu0 0.0
  %688 = vmatprep.subr.mxu0 0.0
  %689 = vmatpush1.msra.mxu0 0.0
  %690 = vmatprep.subr.mxu0 0.0
  %691 = vmatpush1.msra.mxu0 0.0
  %692 = vmatprep.subr.mxu0 0.0
  %693 = vmatpush1.msra.mxu0 0.0
  %694 = vmatprep.subr.mxu0 0.0
  %695 = vmatpush1.msra.mxu0 0.0
  %696 = vmatprep.subr.mxu0 0.0
  %697 = vmatpush1.msra.mxu0 0.0
  %698 = vmatprep.subr.mxu0 0.0
  %699 = vmatpush1.msra.mxu0 0.0
  %700 = vmatprep.subr.mxu0 0.0
  %701 = vmatpush1.msra.mxu0 0.0
  %702 = vmatprep.subr.mxu0 0.0
  %703 = vmatpush1.msra.mxu0 0.0
  %704 = vmatprep.subr.mxu0 0.0
  %705 = vmatpush1.msra.mxu0 0.0
  %706 = vmatprep.subr.mxu0 0.0
  %707 = vmatpush1.msra.mxu0 0.0
  %708 = vmatprep.subr.mxu0 0.0
  %709 = vmatpush1.msra.mxu0 0.0
  %710 = vmatprep.subr.mxu0 0.0
  %711 = vmatpush1.msra.mxu0 0.0
  %712 = vmatprep.subr.mxu0 0.0
  %713 = vmatpush1.msra.mxu0 0.0
  %714 = vmatprep.mubr.f32.mxu0 0.0
  %715 = vmatmul.mubr.f32.gmra.mrb[0].mxu0 %v648
  %v716 = vpop.f32.mrb[0].mxu0
  %v717 = vadd.f32 %v54, %v716
  %v718 = vpop.f32.mrb[0].mxu0
  %719 = vdwg.mxu0
  %v720 = vadd.f32 %v717, %v565
  %v721 = vxor.u32 %v720, 2147483648
  %v722 = vmul.f32 %v721, 1.442695
  %v723 = vpow.pop %v722
  %v724 = vadd.f32 %v723, 1.0
  %v725 = vrcp.pop %v724
  %v726 = vmul.f32 1.0, %v725
  %v727 = vtanh.pop %v720
  %v728 = vmul.f32 %v726, %v490
  %730 = vrot.lane.b32.xlu0 %v727, 64
  %v731 = vpop.permute.xlu0 %730
  %v733 = vmul.f32 %v726, %v731
  %735 = vrot.lane.b32.xlu0 %v733, 32
  %v736 = vpop.permute.xlu0 %735
  %v738 = vadd.f32 %v728, %v736
  %v739 = vtanh.pop %v738
  %741 = vrot.lane.b32.xlu0 %v739, 64
  %v742 = vpop.permute.xlu0 %741
  %v744 = vmul.f32 %v726, %v742
  %v745 = vadd.f32 %v69, %v567
  %v746 = vadd.f32 %v745, %v613
  %v747 = vxor.u32 %v746, 2147483648
  %v748 = vmul.f32 %v747, 1.442695
  %v749 = vpow.pop %v748
  %v750 = vadd.f32 %v749, 1.0
  %v751 = vrcp.pop %v750
  %v752 = vmul.f32 1.0, %v751
  %v753 = vtanh.pop %v746
  %v754 = vmul.f32 %v752, %v516
  %756 = vrot.lane.b32.xlu0 %v753, 64
  %v757 = vpop.permute.xlu0 %756
  %v759 = vmul.f32 %v752, %v757
  %761 = vrot.lane.b32.xlu0 %v759, 32
  %v762 = vpop.permute.xlu0 %761
  %v764 = vadd.f32 %v754, %v762
  %v765 = vtanh.pop %v764
  %767 = vrot.lane.b32.xlu0 %v765, 64
  %v768 = vpop.permute.xlu0 %767
  %v770 = vmul.f32 %v752, %v768
  %v771 = vpack.c.bf16 %v744, %v744
  %773 = vrot.lane.b32.xlu0 %v771, 32
  %v774 = vpop.permute.xlu0 %773
  %v776 = vsel %vm91, %v774, 0
  %778 = vmatprep.subr.bf16.mxu0 %v84
  %779 = vmatpush1.bf16.msra.mxu0 %v83
  %780 = vmatprep.subr.bf16.mxu0 %v86
  %781 = vmatpush1.bf16.msra.mxu0 %v85
  %782 = vmatprep.subr.bf16.mxu0 0
  %783 = vmatpush1.bf16.msra.mxu0 0
  %784 = vmatprep.subr.bf16.mxu0 0
  %785 = vmatpush1.bf16.msra.mxu0 0
  %786 = vmatprep.subr.bf16.mxu0 0
  %787 = vmatpush1.bf16.msra.mxu0 0
  %788 = vmatprep.subr.bf16.mxu0 0
  %789 = vmatpush1.bf16.msra.mxu0 0
  %790 = vmatprep.subr.bf16.mxu0 0
  %791 = vmatpush1.bf16.msra.mxu0 0
  %792 = vmatprep.subr.bf16.mxu0 0
  %793 = vmatpush1.bf16.msra.mxu0 0
  %794 = vmatprep.subr.bf16.mxu0 0
  %795 = vmatpush1.bf16.msra.mxu0 0
  %796 = vmatprep.subr.bf16.mxu0 0
  %797 = vmatpush1.bf16.msra.mxu0 0
  %798 = vmatprep.subr.bf16.mxu0 0
  %799 = vmatpush1.bf16.msra.mxu0 0
  %800 = vmatprep.subr.bf16.mxu0 0
  %801 = vmatpush1.bf16.msra.mxu0 0
  %802 = vmatprep.subr.bf16.mxu0 0
  %803 = vmatpush1.bf16.msra.mxu0 0
  %804 = vmatprep.subr.bf16.mxu0 0
  %805 = vmatpush1.bf16.msra.mxu0 0
  %806 = vmatprep.subr.bf16.mxu0 0
  %807 = vmatpush1.bf16.msra.mxu0 0
  %808 = vmatprep.subr.bf16.mxu0 0
  %809 = vmatpush1.bf16.msra.mxu0 0
  %810 = vmatprep.mubr.bf16.mxu0 0
  %811 = vmatmul.mubr.bf16.gmra.mrb[0].mxu0 %v776
  %v812 = vpop.f32.mrb[0].mxu0
  %v813 = vadd.f32 0.0, %v812
  %v814 = vpop.f32.mrb[0].mxu0
  %v815 = vadd.f32 0.0, %v814
  %v816 = vpop.f32.mrb[0].mxu0
  %v817 = vpop.f32.mrb[0].mxu0
  %818 = vdwg.mxu0
  %v819 = vpack.c.bf16 %v770, %v770
  %821 = vrot.lane.b32.xlu0 %v819, 32
  %v822 = vpop.permute.xlu0 %821
  %v824 = vsel %vm91, %v822, 0
  %826 = vmatprep.subr.bf16.mxu0 0
  %827 = vmatpush1.bf16.msra.mxu0 %v326
  %828 = vmatprep.subr.bf16.mxu0 0
  %829 = vmatpush1.bf16.msra.mxu0 %v327
  %830 = vmatprep.subr.bf16.mxu0 0
  %831 = vmatpush1.bf16.msra.mxu0 0
  %832 = vmatprep.subr.bf16.mxu0 0
  %833 = vmatpush1.bf16.msra.mxu0 0
  %834 = vmatprep.subr.bf16.mxu0 0
  %835 = vmatpush1.bf16.msra.mxu0 0
  %836 = vmatprep.subr.bf16.mxu0 0
  %837 = vmatpush1.bf16.msra.mxu0 0
  %838 = vmatprep.subr.bf16.mxu0 0
  %839 = vmatpush1.bf16.msra.mxu0 0
  %840 = vmatprep.subr.bf16.mxu0 0
  %841 = vmatpush1.bf16.msra.mxu0 0
  %842 = vmatprep.subr.bf16.mxu0 0
  %843 = vmatpush1.bf16.msra.mxu0 0
  %844 = vmatprep.subr.bf16.mxu0 0
  %845 = vmatpush1.bf16.msra.mxu0 0
  %846 = vmatprep.subr.bf16.mxu0 0
  %847 = vmatpush1.bf16.msra.mxu0 0
  %848 = vmatprep.subr.bf16.mxu0 0
  %849 = vmatpush1.bf16.msra.mxu0 0
  %850 = vmatprep.subr.bf16.mxu0 0
  %851 = vmatpush1.bf16.msra.mxu0 0
  %852 = vmatprep.subr.bf16.mxu0 0
  %853 = vmatpush1.bf16.msra.mxu0 0
  %854 = vmatprep.subr.bf16.mxu0 0
  %855 = vmatpush1.bf16.msra.mxu0 0
  %856 = vmatprep.subr.bf16.mxu0 0
  %857 = vmatpush1.bf16.msra.mxu0 0
  %858 = vmatprep.mubr.bf16.mxu0 0
  %859 = vmatmul.mubr.bf16.gmra.mrb[0].mxu0 %v824
  %v860 = vpop.f32.mrb[0].mxu0
  %v861 = vadd.f32 0.0, %v860
  %v862 = vpop.f32.mrb[0].mxu0
  %v863 = vpop.f32.mrb[0].mxu0
  %v864 = vpop.f32.mrb[0].mxu0
  %865 = vdwg.mxu0
  %v866 = vld [vmem:[%s0 + $0x3] sm:$0x1]
  %v867 = vld [vmem:[%s0 + $0x13] sm:$0x1]
  %v868 = vld [vmem:[%s0 + $0x23] sm:$0x1]
  %v869 = vld [vmem:[%s0 + $0x33] sm:$0x1]
  %v870 = vld [vmem:[%s0 + $0x43] sm:$0x1]
  %v871 = vld [vmem:[%s0 + $0x53] sm:$0x1]
  %v872 = vld [vmem:[%s0 + $0x63] sm:$0x1]
  %v873 = vld [vmem:[%s0 + $0x73] sm:$0x1]
  %v882 = vrot.slane %v867, 7
  %v883 = vsel %vm152, %v882, %v866
  %v884 = vrot.slane %v868, 6
  %v885 = vsel %vm155, %v884, %v883
  %v886 = vrot.slane %v869, 5
  %v887 = vsel %vm158, %v886, %v885
  %v888 = vrot.slane %v870, 4
  %v889 = vsel %vm161, %v888, %v887
  %v890 = vrot.slane %v871, 3
  %v891 = vsel %vm164, %v890, %v889
  %v892 = vrot.slane %v872, 2
  %v893 = vsel %vm167, %v892, %v891
  %v894 = vrot.slane %v873, 1
  %v895 = vsel %vm170, %v894, %v893
  %v896 = vsel %vm172, %v895, 0
  %898 = vmatprep.subr.mxu0 0.0
  %899 = vmatpush1.msra.mxu0 %v48
  %900 = vmatprep.subr.mxu0 0.0
  %901 = vmatpush1.msra.mxu0 0.0
  %902 = vmatprep.subr.mxu0 0.0
  %903 = vmatpush1.msra.mxu0 0.0
  %904 = vmatprep.subr.mxu0 0.0
  %905 = vmatpush1.msra.mxu0 0.0
  %906 = vmatprep.subr.mxu0 0.0
  %907 = vmatpush1.msra.mxu0 0.0
  %908 = vmatprep.subr.mxu0 0.0
  %909 = vmatpush1.msra.mxu0 0.0
  %910 = vmatprep.subr.mxu0 0.0
  %911 = vmatpush1.msra.mxu0 0.0
  %912 = vmatprep.subr.mxu0 0.0
  %913 = vmatpush1.msra.mxu0 0.0
  %914 = vmatprep.subr.mxu0 0.0
  %915 = vmatpush1.msra.mxu0 0.0
  %916 = vmatprep.subr.mxu0 0.0
  %917 = vmatpush1.msra.mxu0 0.0
  %918 = vmatprep.subr.mxu0 0.0
  %919 = vmatpush1.msra.mxu0 0.0
  %920 = vmatprep.subr.mxu0 0.0
  %921 = vmatpush1.msra.mxu0 0.0
  %922 = vmatprep.subr.mxu0 0.0
  %923 = vmatpush1.msra.mxu0 0.0
  %924 = vmatprep.subr.mxu0 0.0
  %925 = vmatpush1.msra.mxu0 0.0
  %926 = vmatprep.subr.mxu0 0.0
  %927 = vmatpush1.msra.mxu0 0.0
  %928 = vmatprep.subr.mxu0 0.0
  %929 = vmatpush1.msra.mxu0 0.0
  %930 = vmatprep.subr.mxu0 0.0
  %931 = vmatpush1.msra.mxu0 0.0
  %932 = vmatprep.subr.mxu0 0.0
  %933 = vmatpush1.msra.mxu0 0.0
  %934 = vmatprep.subr.mxu0 0.0
  %935 = vmatpush1.msra.mxu0 0.0
  %936 = vmatprep.subr.mxu0 0.0
  %937 = vmatpush1.msra.mxu0 0.0
  %938 = vmatprep.subr.mxu0 0.0
  %939 = vmatpush1.msra.mxu0 0.0
  %940 = vmatprep.subr.mxu0 0.0
  %941 = vmatpush1.msra.mxu0 0.0
  %942 = vmatprep.subr.mxu0 0.0
  %943 = vmatpush1.msra.mxu0 0.0
  %944 = vmatprep.subr.mxu0 0.0
  %945 = vmatpush1.msra.mxu0 0.0
  %946 = vmatprep.subr.mxu0 0.0
  %947 = vmatpush1.msra.mxu0 0.0
  %948 = vmatprep.subr.mxu0 0.0
  %949 = vmatpush1.msra.mxu0 0.0
  %950 = vmatprep.subr.mxu0 0.0
  %951 = vmatpush1.msra.mxu0 0.0
  %952 = vmatprep.subr.mxu0 0.0
  %953 = vmatpush1.msra.mxu0 0.0
  %954 = vmatprep.subr.mxu0 0.0
  %955 = vmatpush1.msra.mxu0 0.0
  %956 = vmatprep.subr.mxu0 0.0
  %957 = vmatpush1.msra.mxu0 0.0
  %958 = vmatprep.subr.mxu0 0.0
  %959 = vmatpush1.msra.mxu0 0.0
  %960 = vmatprep.subr.mxu0 0.0
  %961 = vmatpush1.msra.mxu0 0.0
  %962 = vmatprep.mubr.f32.mxu0 0.0
  %963 = vmatmul.mubr.f32.gmra.mrb[0].mxu0 %v896
  %v964 = vpop.f32.mrb[0].mxu0
  %v965 = vadd.f32 %v54, %v964
  %v966 = vpop.f32.mrb[0].mxu0
  %967 = vdwg.mxu0
  %v968 = vadd.f32 %v965, %v813
  %v969 = vxor.u32 %v968, 2147483648
  %v970 = vmul.f32 %v969, 1.442695
  %v971 = vpow.pop %v970
  %v972 = vadd.f32 %v971, 1.0
  %v973 = vrcp.pop %v972
  %v974 = vmul.f32 1.0, %v973
  %v975 = vtanh.pop %v968
  %v976 = vmul.f32 %v974, %v738
  %978 = vrot.lane.b32.xlu0 %v975, 64
  %v979 = vpop.permute.xlu0 %978
  %v981 = vmul.f32 %v974, %v979
  %983 = vrot.lane.b32.xlu0 %v981, 32
  %v984 = vpop.permute.xlu0 %983
  %v986 = vadd.f32 %v976, %v984
  %v987 = vtanh.pop %v986
  %989 = vrot.lane.b32.xlu0 %v987, 64
  %v990 = vpop.permute.xlu0 %989
  %v992 = vmul.f32 %v974, %v990
  %v993 = vadd.f32 %v69, %v815
  %v994 = vadd.f32 %v993, %v861
  %v995 = vxor.u32 %v994, 2147483648
  %v996 = vmul.f32 %v995, 1.442695
  %v997 = vpow.pop %v996
  %v998 = vadd.f32 %v997, 1.0
  %v999 = vrcp.pop %v998
  %v1000 = vmul.f32 1.0, %v999
  %v1001 = vtanh.pop %v994
  %v1002 = vmul.f32 %v1000, %v764
  %1004 = vrot.lane.b32.xlu0 %v1001, 64
  %v1005 = vpop.permute.xlu0 %1004
  %v1007 = vmul.f32 %v1000, %v1005
  %1009 = vrot.lane.b32.xlu0 %v1007, 32
  %v1010 = vpop.permute.xlu0 %1009
  %v1012 = vadd.f32 %v1002, %v1010
  %v1013 = vtanh.pop %v1012
  %1015 = vrot.lane.b32.xlu0 %v1013, 64
  %v1016 = vpop.permute.xlu0 %1015
  %v1018 = vmul.f32 %v1000, %v1016
  %v1019 = vpack.c.bf16 %v992, %v992
  %1021 = vrot.lane.b32.xlu0 %v1019, 32
  %v1022 = vpop.permute.xlu0 %1021
  %v1024 = vsel %vm91, %v1022, 0
  %1026 = vmatprep.subr.bf16.mxu0 %v84
  %1027 = vmatpush1.bf16.msra.mxu0 %v83
  %1028 = vmatprep.subr.bf16.mxu0 %v86
  %1029 = vmatpush1.bf16.msra.mxu0 %v85
  %1030 = vmatprep.subr.bf16.mxu0 0
  %1031 = vmatpush1.bf16.msra.mxu0 0
  %1032 = vmatprep.subr.bf16.mxu0 0
  %1033 = vmatpush1.bf16.msra.mxu0 0
  %1034 = vmatprep.subr.bf16.mxu0 0
  %1035 = vmatpush1.bf16.msra.mxu0 0
  %1036 = vmatprep.subr.bf16.mxu0 0
  %1037 = vmatpush1.bf16.msra.mxu0 0
  %1038 = vmatprep.subr.bf16.mxu0 0
  %1039 = vmatpush1.bf16.msra.mxu0 0
  %1040 = vmatprep.subr.bf16.mxu0 0
  %1041 = vmatpush1.bf16.msra.mxu0 0
  %1042 = vmatprep.subr.bf16.mxu0 0
  %1043 = vmatpush1.bf16.msra.mxu0 0
  %1044 = vmatprep.subr.bf16.mxu0 0
  %1045 = vmatpush1.bf16.msra.mxu0 0
  %1046 = vmatprep.subr.bf16.mxu0 0
  %1047 = vmatpush1.bf16.msra.mxu0 0
  %1048 = vmatprep.subr.bf16.mxu0 0
  %1049 = vmatpush1.bf16.msra.mxu0 0
  %1050 = vmatprep.subr.bf16.mxu0 0
  %1051 = vmatpush1.bf16.msra.mxu0 0
  %1052 = vmatprep.subr.bf16.mxu0 0
  %1053 = vmatpush1.bf16.msra.mxu0 0
  %1054 = vmatprep.subr.bf16.mxu0 0
  %1055 = vmatpush1.bf16.msra.mxu0 0
  %1056 = vmatprep.subr.bf16.mxu0 0
  %1057 = vmatpush1.bf16.msra.mxu0 0
  %1058 = vmatprep.mubr.bf16.mxu0 0
  %1059 = vmatmul.mubr.bf16.gmra.mrb[0].mxu0 %v1024
  %v1060 = vpop.f32.mrb[0].mxu0
  %v1061 = vadd.f32 0.0, %v1060
  %v1062 = vpop.f32.mrb[0].mxu0
  %v1063 = vadd.f32 0.0, %v1062
  %v1064 = vpop.f32.mrb[0].mxu0
  %v1065 = vpop.f32.mrb[0].mxu0
  %1066 = vdwg.mxu0
  %v1067 = vpack.c.bf16 %v1018, %v1018
  %1069 = vrot.lane.b32.xlu0 %v1067, 32
  %v1070 = vpop.permute.xlu0 %1069
  %v1072 = vsel %vm91, %v1070, 0
  %1074 = vmatprep.subr.bf16.mxu0 0
  %1075 = vmatpush1.bf16.msra.mxu0 %v326
  %1076 = vmatprep.subr.bf16.mxu0 0
  %1077 = vmatpush1.bf16.msra.mxu0 %v327
  %1078 = vmatprep.subr.bf16.mxu0 0
  %1079 = vmatpush1.bf16.msra.mxu0 0
  %1080 = vmatprep.subr.bf16.mxu0 0
  %1081 = vmatpush1.bf16.msra.mxu0 0
  %1082 = vmatprep.subr.bf16.mxu0 0
  %1083 = vmatpush1.bf16.msra.mxu0 0
  %1084 = vmatprep.subr.bf16.mxu0 0
  %1085 = vmatpush1.bf16.msra.mxu0 0
  %1086 = vmatprep.subr.bf16.mxu0 0
  %1087 = vmatpush1.bf16.msra.mxu0 0
  %1088 = vmatprep.subr.bf16.mxu0 0
  %1089 = vmatpush1.bf16.msra.mxu0 0
  %1090 = vmatprep.subr.bf16.mxu0 0
  %1091 = vmatpush1.bf16.msra.mxu0 0
  %1092 = vmatprep.subr.bf16.mxu0 0
  %1093 = vmatpush1.bf16.msra.mxu0 0
  %1094 = vmatprep.subr.bf16.mxu0 0
  %1095 = vmatpush1.bf16.msra.mxu0 0
  %1096 = vmatprep.subr.bf16.mxu0 0
  %1097 = vmatpush1.bf16.msra.mxu0 0
  %1098 = vmatprep.subr.bf16.mxu0 0
  %1099 = vmatpush1.bf16.msra.mxu0 0
  %1100 = vmatprep.subr.bf16.mxu0 0
  %1101 = vmatpush1.bf16.msra.mxu0 0
  %1102 = vmatprep.subr.bf16.mxu0 0
  %1103 = vmatpush1.bf16.msra.mxu0 0
  %1104 = vmatprep.subr.bf16.mxu0 0
  %1105 = vmatpush1.bf16.msra.mxu0 0
  %1106 = vmatprep.mubr.bf16.mxu0 0
  %1107 = vmatmul.mubr.bf16.gmra.mrb[0].mxu0 %v1072
  %v1108 = vpop.f32.mrb[0].mxu0
  %v1109 = vadd.f32 0.0, %v1108
  %v1110 = vpop.f32.mrb[0].mxu0
  %v1111 = vpop.f32.mrb[0].mxu0
  %v1112 = vpop.f32.mrb[0].mxu0
  %1113 = vdwg.mxu0
  %v1114 = vld [vmem:[%s0 + $0x4] sm:$0x1]
  %v1115 = vld [vmem:[%s0 + $0x14] sm:$0x1]
  %v1116 = vld [vmem:[%s0 + $0x24] sm:$0x1]
  %v1117 = vld [vmem:[%s0 + $0x34] sm:$0x1]
  %v1118 = vld [vmem:[%s0 + $0x44] sm:$0x1]
  %v1119 = vld [vmem:[%s0 + $0x54] sm:$0x1]
  %v1120 = vld [vmem:[%s0 + $0x64] sm:$0x1]
  %v1121 = vld [vmem:[%s0 + $0x74] sm:$0x1]
  %v1130 = vrot.slane %v1115, 7
  %v1131 = vsel %vm152, %v1130, %v1114
  %v1132 = vrot.slane %v1116, 6
  %v1133 = vsel %vm155, %v1132, %v1131
  %v1134 = vrot.slane %v1117, 5
  %v1135 = vsel %vm158, %v1134, %v1133
  %v1136 = vrot.slane %v1118, 4
  %v1137 = vsel %vm161, %v1136, %v1135
  %v1138 = vrot.slane %v1119, 3
  %v1139 = vsel %vm164, %v1138, %v1137
  %v1140 = vrot.slane %v1120, 2
  %v1141 = vsel %vm167, %v1140, %v1139
  %v1142 = vrot.slane %v1121, 1
  %v1143 = vsel %vm170, %v1142, %v1141
  %v1144 = vsel %vm172, %v1143, 0
  %1146 = vmatprep.subr.mxu0 0.0
  %1147 = vmatpush1.msra.mxu0 %v48
  %1148 = vmatprep.subr.mxu0 0.0
  %1149 = vmatpush1.msra.mxu0 0.0
  %1150 = vmatprep.subr.mxu0 0.0
  %1151 = vmatpush1.msra.mxu0 0.0
  %1152 = vmatprep.subr.mxu0 0.0
  %1153 = vmatpush1.msra.mxu0 0.0
  %1154 = vmatprep.subr.mxu0 0.0
  %1155 = vmatpush1.msra.mxu0 0.0
  %1156 = vmatprep.subr.mxu0 0.0
  %1157 = vmatpush1.msra.mxu0 0.0
  %1158 = vmatprep.subr.mxu0 0.0
  %1159 = vmatpush1.msra.mxu0 0.0
  %1160 = vmatprep.subr.mxu0 0.0
  %1161 = vmatpush1.msra.mxu0 0.0
  %1162 = vmatprep.subr.mxu0 0.0
  %1163 = vmatpush1.msra.mxu0 0.0
  %1164 = vmatprep.subr.mxu0 0.0
  %1165 = vmatpush1.msra.mxu0 0.0
  %1166 = vmatprep.subr.mxu0 0.0
  %1167 = vmatpush1.msra.mxu0 0.0
  %1168 = vmatprep.subr.mxu0 0.0
  %1169 = vmatpush1.msra.mxu0 0.0
  %1170 = vmatprep.subr.mxu0 0.0
  %1171 = vmatpush1.msra.mxu0 0.0
  %1172 = vmatprep.subr.mxu0 0.0
  %1173 = vmatpush1.msra.mxu0 0.0
  %1174 = vmatprep.subr.mxu0 0.0
  %1175 = vmatpush1.msra.mxu0 0.0
  %1176 = vmatprep.subr.mxu0 0.0
  %1177 = vmatpush1.msra.mxu0 0.0
  %1178 = vmatprep.subr.mxu0 0.0
  %1179 = vmatpush1.msra.mxu0 0.0
  %1180 = vmatprep.subr.mxu0 0.0
  %1181 = vmatpush1.msra.mxu0 0.0
  %1182 = vmatprep.subr.mxu0 0.0
  %1183 = vmatpush1.msra.mxu0 0.0
  %1184 = vmatprep.subr.mxu0 0.0
  %1185 = vmatpush1.msra.mxu0 0.0
  %1186 = vmatprep.subr.mxu0 0.0
  %1187 = vmatpush1.msra.mxu0 0.0
  %1188 = vmatprep.subr.mxu0 0.0
  %1189 = vmatpush1.msra.mxu0 0.0
  %1190 = vmatprep.subr.mxu0 0.0
  %1191 = vmatpush1.msra.mxu0 0.0
  %1192 = vmatprep.subr.mxu0 0.0
  %1193 = vmatpush1.msra.mxu0 0.0
  %1194 = vmatprep.subr.mxu0 0.0
  %1195 = vmatpush1.msra.mxu0 0.0
  %1196 = vmatprep.subr.mxu0 0.0
  %1197 = vmatpush1.msra.mxu0 0.0
  %1198 = vmatprep.subr.mxu0 0.0
  %1199 = vmatpush1.msra.mxu0 0.0
  %1200 = vmatprep.subr.mxu0 0.0
  %1201 = vmatpush1.msra.mxu0 0.0
  %1202 = vmatprep.subr.mxu0 0.0
  %1203 = vmatpush1.msra.mxu0 0.0
  %1204 = vmatprep.subr.mxu0 0.0
  %1205 = vmatpush1.msra.mxu0 0.0
  %1206 = vmatprep.subr.mxu0 0.0
  %1207 = vmatpush1.msra.mxu0 0.0
  %1208 = vmatprep.subr.mxu0 0.0
  %1209 = vmatpush1.msra.mxu0 0.0
  %1210 = vmatprep.mubr.f32.mxu0 0.0
  %1211 = vmatmul.mubr.f32.gmra.mrb[0].mxu0 %v1144
  %v1212 = vpop.f32.mrb[0].mxu0
  %v1213 = vadd.f32 %v54, %v1212
  %v1214 = vpop.f32.mrb[0].mxu0
  %1215 = vdwg.mxu0
  %v1216 = vadd.f32 %v1213, %v1061
  %v1217 = vxor.u32 %v1216, 2147483648
  %v1218 = vmul.f32 %v1217, 1.442695
  %v1219 = vpow.pop %v1218
  %v1220 = vadd.f32 %v1219, 1.0
  %v1221 = vrcp.pop %v1220
  %v1222 = vmul.f32 1.0, %v1221
  %v1223 = vtanh.pop %v1216
  %v1224 = vmul.f32 %v1222, %v986
  %1226 = vrot.lane.b32.xlu0 %v1223, 64
  %v1227 = vpop.permute.xlu0 %1226
  %v1229 = vmul.f32 %v1222, %v1227
  %1231 = vrot.lane.b32.xlu0 %v1229, 32
  %v1232 = vpop.permute.xlu0 %1231
  %v1234 = vadd.f32 %v1224, %v1232
  %v1235 = vtanh.pop %v1234
  %1237 = vrot.lane.b32.xlu0 %v1235, 64
  %v1238 = vpop.permute.xlu0 %1237
  %v1240 = vmul.f32 %v1222, %v1238
  %v1241 = vadd.f32 %v69, %v1063
  %v1242 = vadd.f32 %v1241, %v1109
  %v1243 = vxor.u32 %v1242, 2147483648
  %v1244 = vmul.f32 %v1243, 1.442695
  %v1245 = vpow.pop %v1244
  %v1246 = vadd.f32 %v1245, 1.0
  %v1247 = vrcp.pop %v1246
  %v1248 = vmul.f32 1.0, %v1247
  %v1249 = vtanh.pop %v1242
  %v1250 = vmul.f32 %v1248, %v1012
  %1252 = vrot.lane.b32.xlu0 %v1249, 64
  %v1253 = vpop.permute.xlu0 %1252
  %v1255 = vmul.f32 %v1248, %v1253
  %1257 = vrot.lane.b32.xlu0 %v1255, 32
  %v1258 = vpop.permute.xlu0 %1257
  %v1260 = vadd.f32 %v1250, %v1258
  %v1261 = vtanh.pop %v1260
  %1263 = vrot.lane.b32.xlu0 %v1261, 64
  %v1264 = vpop.permute.xlu0 %1263
  %v1266 = vmul.f32 %v1248, %v1264
  %v1267 = vpack.c.bf16 %v1240, %v1240
  %1269 = vrot.lane.b32.xlu0 %v1267, 32
  %v1270 = vpop.permute.xlu0 %1269
  %v1272 = vsel %vm91, %v1270, 0
  %1274 = vmatprep.subr.bf16.mxu0 %v84
  %1275 = vmatpush1.bf16.msra.mxu0 %v83
  %1276 = vmatprep.subr.bf16.mxu0 %v86
  %1277 = vmatpush1.bf16.msra.mxu0 %v85
  %1278 = vmatprep.subr.bf16.mxu0 0
  %1279 = vmatpush1.bf16.msra.mxu0 0
  %1280 = vmatprep.subr.bf16.mxu0 0
  %1281 = vmatpush1.bf16.msra.mxu0 0
  %1282 = vmatprep.subr.bf16.mxu0 0
  %1283 = vmatpush1.bf16.msra.mxu0 0
  %1284 = vmatprep.subr.bf16.mxu0 0
  %1285 = vmatpush1.bf16.msra.mxu0 0
  %1286 = vmatprep.subr.bf16.mxu0 0
  %1287 = vmatpush1.bf16.msra.mxu0 0
  %1288 = vmatprep.subr.bf16.mxu0 0
  %1289 = vmatpush1.bf16.msra.mxu0 0
  %1290 = vmatprep.subr.bf16.mxu0 0
  %1291 = vmatpush1.bf16.msra.mxu0 0
  %1292 = vmatprep.subr.bf16.mxu0 0
  %1293 = vmatpush1.bf16.msra.mxu0 0
  %1294 = vmatprep.subr.bf16.mxu0 0
  %1295 = vmatpush1.bf16.msra.mxu0 0
  %1296 = vmatprep.subr.bf16.mxu0 0
  %1297 = vmatpush1.bf16.msra.mxu0 0
  %1298 = vmatprep.subr.bf16.mxu0 0
  %1299 = vmatpush1.bf16.msra.mxu0 0
  %1300 = vmatprep.subr.bf16.mxu0 0
  %1301 = vmatpush1.bf16.msra.mxu0 0
  %1302 = vmatprep.subr.bf16.mxu0 0
  %1303 = vmatpush1.bf16.msra.mxu0 0
  %1304 = vmatprep.subr.bf16.mxu0 0
  %1305 = vmatpush1.bf16.msra.mxu0 0
  %1306 = vmatprep.mubr.bf16.mxu0 0
  %1307 = vmatmul.mubr.bf16.gmra.mrb[0].mxu0 %v1272
  %v1308 = vpop.f32.mrb[0].mxu0
  %v1309 = vadd.f32 0.0, %v1308
  %v1310 = vpop.f32.mrb[0].mxu0
  %v1311 = vadd.f32 0.0, %v1310
  %v1312 = vpop.f32.mrb[0].mxu0
  %v1313 = vpop.f32.mrb[0].mxu0
  %1314 = vdwg.mxu0
  %v1315 = vpack.c.bf16 %v1266, %v1266
  %1317 = vrot.lane.b32.xlu0 %v1315, 32
  %v1318 = vpop.permute.xlu0 %1317
  %v1320 = vsel %vm91, %v1318, 0
  %1322 = vmatprep.subr.bf16.mxu0 0
  %1323 = vmatpush1.bf16.msra.mxu0 %v326
  %1324 = vmatprep.subr.bf16.mxu0 0
  %1325 = vmatpush1.bf16.msra.mxu0 %v327
  %1326 = vmatprep.subr.bf16.mxu0 0
  %1327 = vmatpush1.bf16.msra.mxu0 0
  %1328 = vmatprep.subr.bf16.mxu0 0
  %1329 = vmatpush1.bf16.msra.mxu0 0
  %1330 = vmatprep.subr.bf16.mxu0 0
  %1331 = vmatpush1.bf16.msra.mxu0 0
  %1332 = vmatprep.subr.bf16.mxu0 0
  %1333 = vmatpush1.bf16.msra.mxu0 0
  %1334 = vmatprep.subr.bf16.mxu0 0
  %1335 = vmatpush1.bf16.msra.mxu0 0
  %1336 = vmatprep.subr.bf16.mxu0 0
  %1337 = vmatpush1.bf16.msra.mxu0 0
  %1338 = vmatprep.subr.bf16.mxu0 0
  %1339 = vmatpush1.bf16.msra.mxu0 0
  %1340 = vmatprep.subr.bf16.mxu0 0
  %1341 = vmatpush1.bf16.msra.mxu0 0
  %1342 = vmatprep.subr.bf16.mxu0 0
  %1343 = vmatpush1.bf16.msra.mxu0 0
  %1344 = vmatprep.subr.bf16.mxu0 0
  %1345 = vmatpush1.bf16.msra.mxu0 0
  %1346 = vmatprep.subr.bf16.mxu0 0
  %1347 = vmatpush1.bf16.msra.mxu0 0
  %1348 = vmatprep.subr.bf16.mxu0 0
  %1349 = vmatpush1.bf16.msra.mxu0 0
  %1350 = vmatprep.subr.bf16.mxu0 0
  %1351 = vmatpush1.bf16.msra.mxu0 0
  %1352 = vmatprep.subr.bf16.mxu0 0
  %1353 = vmatpush1.bf16.msra.mxu0 0
  %1354 = vmatprep.mubr.bf16.mxu0 0
  %1355 = vmatmul.mubr.bf16.gmra.mrb[0].mxu0 %v1320
  %v1356 = vpop.f32.mrb[0].mxu0
  %v1357 = vadd.f32 0.0, %v1356
  %v1358 = vpop.f32.mrb[0].mxu0
  %v1359 = vpop.f32.mrb[0].mxu0
  %v1360 = vpop.f32.mrb[0].mxu0
  %1361 = vdwg.mxu0
  %v1362 = vld [vmem:[%s0 + $0x5] sm:$0x1]
  %v1363 = vld [vmem:[%s0 + $0x15] sm:$0x1]
  %v1364 = vld [vmem:[%s0 + $0x25] sm:$0x1]
  %v1365 = vld [vmem:[%s0 + $0x35] sm:$0x1]
  %v1366 = vld [vmem:[%s0 + $0x45] sm:$0x1]
  %v1367 = vld [vmem:[%s0 + $0x55] sm:$0x1]
  %v1368 = vld [vmem:[%s0 + $0x65] sm:$0x1]
  %v1369 = vld [vmem:[%s0 + $0x75] sm:$0x1]
  %v1378 = vrot.slane %v1363, 7
  %v1379 = vsel %vm152, %v1378, %v1362
  %v1380 = vrot.slane %v1364, 6
  %v1381 = vsel %vm155, %v1380, %v1379
  %v1382 = vrot.slane %v1365, 5
  %v1383 = vsel %vm158, %v1382, %v1381
  %v1384 = vrot.slane %v1366, 4
  %v1385 = vsel %vm161, %v1384, %v1383
  %v1386 = vrot.slane %v1367, 3
  %v1387 = vsel %vm164, %v1386, %v1385
  %v1388 = vrot.slane %v1368, 2
  %v1389 = vsel %vm167, %v1388, %v1387
  %v1390 = vrot.slane %v1369, 1
  %v1391 = vsel %vm170, %v1390, %v1389
  %v1392 = vsel %vm172, %v1391, 0
  %1394 = vmatprep.subr.mxu0 0.0
  %1395 = vmatpush1.msra.mxu0 %v48
  %1396 = vmatprep.subr.mxu0 0.0
  %1397 = vmatpush1.msra.mxu0 0.0
  %1398 = vmatprep.subr.mxu0 0.0
  %1399 = vmatpush1.msra.mxu0 0.0
  %1400 = vmatprep.subr.mxu0 0.0
  %1401 = vmatpush1.msra.mxu0 0.0
  %1402 = vmatprep.subr.mxu0 0.0
  %1403 = vmatpush1.msra.mxu0 0.0
  %1404 = vmatprep.subr.mxu0 0.0
  %1405 = vmatpush1.msra.mxu0 0.0
  %1406 = vmatprep.subr.mxu0 0.0
  %1407 = vmatpush1.msra.mxu0 0.0
  %1408 = vmatprep.subr.mxu0 0.0
  %1409 = vmatpush1.msra.mxu0 0.0
  %1410 = vmatprep.subr.mxu0 0.0
  %1411 = vmatpush1.msra.mxu0 0.0
  %1412 = vmatprep.subr.mxu0 0.0
  %1413 = vmatpush1.msra.mxu0 0.0
  %1414 = vmatprep.subr.mxu0 0.0
  %1415 = vmatpush1.msra.mxu0 0.0
  %1416 = vmatprep.subr.mxu0 0.0
  %1417 = vmatpush1.msra.mxu0 0.0
  %1418 = vmatprep.subr.mxu0 0.0
  %1419 = vmatpush1.msra.mxu0 0.0
  %1420 = vmatprep.subr.mxu0 0.0
  %1421 = vmatpush1.msra.mxu0 0.0
  %1422 = vmatprep.subr.mxu0 0.0
  %1423 = vmatpush1.msra.mxu0 0.0
  %1424 = vmatprep.subr.mxu0 0.0
  %1425 = vmatpush1.msra.mxu0 0.0
  %1426 = vmatprep.subr.mxu0 0.0
  %1427 = vmatpush1.msra.mxu0 0.0
  %1428 = vmatprep.subr.mxu0 0.0
  %1429 = vmatpush1.msra.mxu0 0.0
  %1430 = vmatprep.subr.mxu0 0.0
  %1431 = vmatpush1.msra.mxu0 0.0
  %1432 = vmatprep.subr.mxu0 0.0
  %1433 = vmatpush1.msra.mxu0 0.0
  %1434 = vmatprep.subr.mxu0 0.0
  %1435 = vmatpush1.msra.mxu0 0.0
  %1436 = vmatprep.subr.mxu0 0.0
  %1437 = vmatpush1.msra.mxu0 0.0
  %1438 = vmatprep.subr.mxu0 0.0
  %1439 = vmatpush1.msra.mxu0 0.0
  %1440 = vmatprep.subr.mxu0 0.0
  %1441 = vmatpush1.msra.mxu0 0.0
  %1442 = vmatprep.subr.mxu0 0.0
  %1443 = vmatpush1.msra.mxu0 0.0
  %1444 = vmatprep.subr.mxu0 0.0
  %1445 = vmatpush1.msra.mxu0 0.0
  %1446 = vmatprep.subr.mxu0 0.0
  %1447 = vmatpush1.msra.mxu0 0.0
  %1448 = vmatprep.subr.mxu0 0.0
  %1449 = vmatpush1.msra.mxu0 0.0
  %1450 = vmatprep.subr.mxu0 0.0
  %1451 = vmatpush1.msra.mxu0 0.0
  %1452 = vmatprep.subr.mxu0 0.0
  %1453 = vmatpush1.msra.mxu0 0.0
  %1454 = vmatprep.subr.mxu0 0.0
  %1455 = vmatpush1.msra.mxu0 0.0
  %1456 = vmatprep.subr.mxu0 0.0
  %1457 = vmatpush1.msra.mxu0 0.0
  %1458 = vmatprep.mubr.f32.mxu0 0.0
  %1459 = vmatmul.mubr.f32.gmra.mrb[0].mxu0 %v1392
  %v1460 = vpop.f32.mrb[0].mxu0
  %v1461 = vadd.f32 %v54, %v1460
  %v1462 = vpop.f32.mrb[0].mxu0
  %1463 = vdwg.mxu0
  %v1464 = vadd.f32 %v1461, %v1309
  %v1465 = vxor.u32 %v1464, 2147483648
  %v1466 = vmul.f32 %v1465, 1.442695
  %v1467 = vpow.pop %v1466
  %v1468 = vadd.f32 %v1467, 1.0
  %v1469 = vrcp.pop %v1468
  %v1470 = vmul.f32 1.0, %v1469
  %v1471 = vtanh.pop %v1464
  %v1472 = vmul.f32 %v1470, %v1234
  %1474 = vrot.lane.b32.xlu0 %v1471, 64
  %v1475 = vpop.permute.xlu0 %1474
  %v1477 = vmul.f32 %v1470, %v1475
  %1479 = vrot.lane.b32.xlu0 %v1477, 32
  %v1480 = vpop.permute.xlu0 %1479
  %v1482 = vadd.f32 %v1472, %v1480
  %v1483 = vtanh.pop %v1482
  %1485 = vrot.lane.b32.xlu0 %v1483, 64
  %v1486 = vpop.permute.xlu0 %1485
  %v1488 = vmul.f32 %v1470, %v1486
  %v1489 = vadd.f32 %v69, %v1311
  %v1490 = vadd.f32 %v1489, %v1357
  %v1491 = vxor.u32 %v1490, 2147483648
  %v1492 = vmul.f32 %v1491, 1.442695
  %v1493 = vpow.pop %v1492
  %v1494 = vadd.f32 %v1493, 1.0
  %v1495 = vrcp.pop %v1494
  %v1496 = vmul.f32 1.0, %v1495
  %v1497 = vtanh.pop %v1490
  %v1498 = vmul.f32 %v1496, %v1260
  %1500 = vrot.lane.b32.xlu0 %v1497, 64
  %v1501 = vpop.permute.xlu0 %1500
  %v1503 = vmul.f32 %v1496, %v1501
  %1505 = vrot.lane.b32.xlu0 %v1503, 32
  %v1506 = vpop.permute.xlu0 %1505
  %v1508 = vadd.f32 %v1498, %v1506
  %v1509 = vtanh.pop %v1508
  %1511 = vrot.lane.b32.xlu0 %v1509, 64
  %v1512 = vpop.permute.xlu0 %1511
  %v1514 = vmul.f32 %v1496, %v1512
  %v1515 = vpack.c.bf16 %v1488, %v1488
  %1517 = vrot.lane.b32.xlu0 %v1515, 32
  %v1518 = vpop.permute.xlu0 %1517
  %v1520 = vsel %vm91, %v1518, 0
  %1522 = vmatprep.subr.bf16.mxu0 %v84
  %1523 = vmatpush1.bf16.msra.mxu0 %v83
  %1524 = vmatprep.subr.bf16.mxu0 %v86
  %1525 = vmatpush1.bf16.msra.mxu0 %v85
  %1526 = vmatprep.subr.bf16.mxu0 0
  %1527 = vmatpush1.bf16.msra.mxu0 0
  %1528 = vmatprep.subr.bf16.mxu0 0
  %1529 = vmatpush1.bf16.msra.mxu0 0
  %1530 = vmatprep.subr.bf16.mxu0 0
  %1531 = vmatpush1.bf16.msra.mxu0 0
  %1532 = vmatprep.subr.bf16.mxu0 0
  %1533 = vmatpush1.bf16.msra.mxu0 0
  %1534 = vmatprep.subr.bf16.mxu0 0
  %1535 = vmatpush1.bf16.msra.mxu0 0
  %1536 = vmatprep.subr.bf16.mxu0 0
  %1537 = vmatpush1.bf16.msra.mxu0 0
  %1538 = vmatprep.subr.bf16.mxu0 0
  %1539 = vmatpush1.bf16.msra.mxu0 0
  %1540 = vmatprep.subr.bf16.mxu0 0
  %1541 = vmatpush1.bf16.msra.mxu0 0
  %1542 = vmatprep.subr.bf16.mxu0 0
  %1543 = vmatpush1.bf16.msra.mxu0 0
  %1544 = vmatprep.subr.bf16.mxu0 0
  %1545 = vmatpush1.bf16.msra.mxu0 0
  %1546 = vmatprep.subr.bf16.mxu0 0
  %1547 = vmatpush1.bf16.msra.mxu0 0
  %1548 = vmatprep.subr.bf16.mxu0 0
  %1549 = vmatpush1.bf16.msra.mxu0 0
  %1550 = vmatprep.subr.bf16.mxu0 0
  %1551 = vmatpush1.bf16.msra.mxu0 0
  %1552 = vmatprep.subr.bf16.mxu0 0
  %1553 = vmatpush1.bf16.msra.mxu0 0
  %1554 = vmatprep.mubr.bf16.mxu0 0
  %1555 = vmatmul.mubr.bf16.gmra.mrb[0].mxu0 %v1520
  %v1556 = vpop.f32.mrb[0].mxu0
  %v1557 = vadd.f32 0.0, %v1556
  %v1558 = vpop.f32.mrb[0].mxu0
  %v1559 = vadd.f32 0.0, %v1558
  %v1560 = vpop.f32.mrb[0].mxu0
  %v1561 = vpop.f32.mrb[0].mxu0
  %1562 = vdwg.mxu0
  %v1563 = vpack.c.bf16 %v1514, %v1514
  %1565 = vrot.lane.b32.xlu0 %v1563, 32
  %v1566 = vpop.permute.xlu0 %1565
  %v1568 = vsel %vm91, %v1566, 0
  %1570 = vmatprep.subr.bf16.mxu0 0
  %1571 = vmatpush1.bf16.msra.mxu0 %v326
  %1572 = vmatprep.subr.bf16.mxu0 0
  %1573 = vmatpush1.bf16.msra.mxu0 %v327
  %1574 = vmatprep.subr.bf16.mxu0 0
  %1575 = vmatpush1.bf16.msra.mxu0 0
  %1576 = vmatprep.subr.bf16.mxu0 0
  %1577 = vmatpush1.bf16.msra.mxu0 0
  %1578 = vmatprep.subr.bf16.mxu0 0
  %1579 = vmatpush1.bf16.msra.mxu0 0
  %1580 = vmatprep.subr.bf16.mxu0 0
  %1581 = vmatpush1.bf16.msra.mxu0 0
  %1582 = vmatprep.subr.bf16.mxu0 0
  %1583 = vmatpush1.bf16.msra.mxu0 0
  %1584 = vmatprep.subr.bf16.mxu0 0
  %1585 = vmatpush1.bf16.msra.mxu0 0
  %1586 = vmatprep.subr.bf16.mxu0 0
  %1587 = vmatpush1.bf16.msra.mxu0 0
  %1588 = vmatprep.subr.bf16.mxu0 0
  %1589 = vmatpush1.bf16.msra.mxu0 0
  %1590 = vmatprep.subr.bf16.mxu0 0
  %1591 = vmatpush1.bf16.msra.mxu0 0
  %1592 = vmatprep.subr.bf16.mxu0 0
  %1593 = vmatpush1.bf16.msra.mxu0 0
  %1594 = vmatprep.subr.bf16.mxu0 0
  %1595 = vmatpush1.bf16.msra.mxu0 0
  %1596 = vmatprep.subr.bf16.mxu0 0
  %1597 = vmatpush1.bf16.msra.mxu0 0
  %1598 = vmatprep.subr.bf16.mxu0 0
  %1599 = vmatpush1.bf16.msra.mxu0 0
  %1600 = vmatprep.subr.bf16.mxu0 0
  %1601 = vmatpush1.bf16.msra.mxu0 0
  %1602 = vmatprep.mubr.bf16.mxu0 0
  %1603 = vmatmul.mubr.bf16.gmra.mrb[0].mxu0 %v1568
  %v1604 = vpop.f32.mrb[0].mxu0
  %v1605 = vadd.f32 0.0, %v1604
  %v1606 = vpop.f32.mrb[0].mxu0
  %v1607 = vpop.f32.mrb[0].mxu0
  %v1608 = vpop.f32.mrb[0].mxu0
  %1609 = vdwg.mxu0
  %v1610 = vld [vmem:[%s0 + $0x6] sm:$0x1]
  %v1611 = vld [vmem:[%s0 + $0x16] sm:$0x1]
  %v1612 = vld [vmem:[%s0 + $0x26] sm:$0x1]
  %v1613 = vld [vmem:[%s0 + $0x36] sm:$0x1]
  %v1614 = vld [vmem:[%s0 + $0x46] sm:$0x1]
  %v1615 = vld [vmem:[%s0 + $0x56] sm:$0x1]
  %v1616 = vld [vmem:[%s0 + $0x66] sm:$0x1]
  %v1617 = vld [vmem:[%s0 + $0x76] sm:$0x1]
  %v1626 = vrot.slane %v1611, 7
  %v1627 = vsel %vm152, %v1626, %v1610
  %v1628 = vrot.slane %v1612, 6
  %v1629 = vsel %vm155, %v1628, %v1627
  %v1630 = vrot.slane %v1613, 5
  %v1631 = vsel %vm158, %v1630, %v1629
  %v1632 = vrot.slane %v1614, 4
  %v1633 = vsel %vm161, %v1632, %v1631
  %v1634 = vrot.slane %v1615, 3
  %v1635 = vsel %vm164, %v1634, %v1633
  %v1636 = vrot.slane %v1616, 2
  %v1637 = vsel %vm167, %v1636, %v1635
  %v1638 = vrot.slane %v1617, 1
  %v1639 = vsel %vm170, %v1638, %v1637
  %v1640 = vsel %vm172, %v1639, 0
  %1642 = vmatprep.subr.mxu0 0.0
  %1643 = vmatpush1.msra.mxu0 %v48
  %1644 = vmatprep.subr.mxu0 0.0
  %1645 = vmatpush1.msra.mxu0 0.0
  %1646 = vmatprep.subr.mxu0 0.0
  %1647 = vmatpush1.msra.mxu0 0.0
  %1648 = vmatprep.subr.mxu0 0.0
  %1649 = vmatpush1.msra.mxu0 0.0
  %1650 = vmatprep.subr.mxu0 0.0
  %1651 = vmatpush1.msra.mxu0 0.0
  %1652 = vmatprep.subr.mxu0 0.0
  %1653 = vmatpush1.msra.mxu0 0.0
  %1654 = vmatprep.subr.mxu0 0.0
  %1655 = vmatpush1.msra.mxu0 0.0
  %1656 = vmatprep.subr.mxu0 0.0
  %1657 = vmatpush1.msra.mxu0 0.0
  %1658 = vmatprep.subr.mxu0 0.0
  %1659 = vmatpush1.msra.mxu0 0.0
  %1660 = vmatprep.subr.mxu0 0.0
  %1661 = vmatpush1.msra.mxu0 0.0
  %1662 = vmatprep.subr.mxu0 0.0
  %1663 = vmatpush1.msra.mxu0 0.0
  %1664 = vmatprep.subr.mxu0 0.0
  %1665 = vmatpush1.msra.mxu0 0.0
  %1666 = vmatprep.subr.mxu0 0.0
  %1667 = vmatpush1.msra.mxu0 0.0
  %1668 = vmatprep.subr.mxu0 0.0
  %1669 = vmatpush1.msra.mxu0 0.0
  %1670 = vmatprep.subr.mxu0 0.0
  %1671 = vmatpush1.msra.mxu0 0.0
  %1672 = vmatprep.subr.mxu0 0.0
  %1673 = vmatpush1.msra.mxu0 0.0
  %1674 = vmatprep.subr.mxu0 0.0
  %1675 = vmatpush1.msra.mxu0 0.0
  %1676 = vmatprep.subr.mxu0 0.0
  %1677 = vmatpush1.msra.mxu0 0.0
  %1678 = vmatprep.subr.mxu0 0.0
  %1679 = vmatpush1.msra.mxu0 0.0
  %1680 = vmatprep.subr.mxu0 0.0
  %1681 = vmatpush1.msra.mxu0 0.0
  %1682 = vmatprep.subr.mxu0 0.0
  %1683 = vmatpush1.msra.mxu0 0.0
  %1684 = vmatprep.subr.mxu0 0.0
  %1685 = vmatpush1.msra.mxu0 0.0
  %1686 = vmatprep.subr.mxu0 0.0
  %1687 = vmatpush1.msra.mxu0 0.0
  %1688 = vmatprep.subr.mxu0 0.0
  %1689 = vmatpush1.msra.mxu0 0.0
  %1690 = vmatprep.subr.mxu0 0.0
  %1691 = vmatpush1.msra.mxu0 0.0
  %1692 = vmatprep.subr.mxu0 0.0
  %1693 = vmatpush1.msra.mxu0 0.0
  %1694 = vmatprep.subr.mxu0 0.0
  %1695 = vmatpush1.msra.mxu0 0.0
  %1696 = vmatprep.subr.mxu0 0.0
  %1697 = vmatpush1.msra.mxu0 0.0
  %1698 = vmatprep.subr.mxu0 0.0
  %1699 = vmatpush1.msra.mxu0 0.0
  %1700 = vmatprep.subr.mxu0 0.0
  %1701 = vmatpush1.msra.mxu0 0.0
  %1702 = vmatprep.subr.mxu0 0.0
  %1703 = vmatpush1.msra.mxu0 0.0
  %1704 = vmatprep.subr.mxu0 0.0
  %1705 = vmatpush1.msra.mxu0 0.0
  %1706 = vmatprep.mubr.f32.mxu0 0.0
  %1707 = vmatmul.mubr.f32.gmra.mrb[0].mxu0 %v1640
  %v1708 = vpop.f32.mrb[0].mxu0
  %v1709 = vadd.f32 %v54, %v1708
  %v1710 = vpop.f32.mrb[0].mxu0
  %1711 = vdwg.mxu0
  %v1712 = vadd.f32 %v1709, %v1557
  %v1713 = vxor.u32 %v1712, 2147483648
  %v1714 = vmul.f32 %v1713, 1.442695
  %v1715 = vpow.pop %v1714
  %v1716 = vadd.f32 %v1715, 1.0
  %v1717 = vrcp.pop %v1716
  %v1718 = vmul.f32 1.0, %v1717
  %v1719 = vtanh.pop %v1712
  %v1720 = vmul.f32 %v1718, %v1482
  %1722 = vrot.lane.b32.xlu0 %v1719, 64
  %v1723 = vpop.permute.xlu0 %1722
  %v1725 = vmul.f32 %v1718, %v1723
  %1727 = vrot.lane.b32.xlu0 %v1725, 32
  %v1728 = vpop.permute.xlu0 %1727
  %v1730 = vadd.f32 %v1720, %v1728
  %v1731 = vtanh.pop %v1730
  %1733 = vrot.lane.b32.xlu0 %v1731, 64
  %v1734 = vpop.permute.xlu0 %1733
  %v1736 = vmul.f32 %v1718, %v1734
  %v1737 = vadd.f32 %v69, %v1559
  %v1738 = vadd.f32 %v1737, %v1605
  %v1739 = vxor.u32 %v1738, 2147483648
  %v1740 = vmul.f32 %v1739, 1.442695
  %v1741 = vpow.pop %v1740
  %v1742 = vadd.f32 %v1741, 1.0
  %v1743 = vrcp.pop %v1742
  %v1744 = vmul.f32 1.0, %v1743
  %v1745 = vtanh.pop %v1738
  %v1746 = vmul.f32 %v1744, %v1508
  %1748 = vrot.lane.b32.xlu0 %v1745, 64
  %v1749 = vpop.permute.xlu0 %1748
  %v1751 = vmul.f32 %v1744, %v1749
  %1753 = vrot.lane.b32.xlu0 %v1751, 32
  %v1754 = vpop.permute.xlu0 %1753
  %v1756 = vadd.f32 %v1746, %v1754
  %v1757 = vtanh.pop %v1756
  %1759 = vrot.lane.b32.xlu0 %v1757, 64
  %v1760 = vpop.permute.xlu0 %1759
  %v1762 = vmul.f32 %v1744, %v1760
  %v1763 = vpack.c.bf16 %v1736, %v1736
  %1765 = vrot.lane.b32.xlu0 %v1763, 32
  %v1766 = vpop.permute.xlu0 %1765
  %v1768 = vsel %vm91, %v1766, 0
  %1770 = vmatprep.subr.bf16.mxu0 %v84
  %1771 = vmatpush1.bf16.msra.mxu0 %v83
  %1772 = vmatprep.subr.bf16.mxu0 %v86
  %1773 = vmatpush1.bf16.msra.mxu0 %v85
  %1774 = vmatprep.subr.bf16.mxu0 0
  %1775 = vmatpush1.bf16.msra.mxu0 0
  %1776 = vmatprep.subr.bf16.mxu0 0
  %1777 = vmatpush1.bf16.msra.mxu0 0
  %1778 = vmatprep.subr.bf16.mxu0 0
  %1779 = vmatpush1.bf16.msra.mxu0 0
  %1780 = vmatprep.subr.bf16.mxu0 0
  %1781 = vmatpush1.bf16.msra.mxu0 0
  %1782 = vmatprep.subr.bf16.mxu0 0
  %1783 = vmatpush1.bf16.msra.mxu0 0
  %1784 = vmatprep.subr.bf16.mxu0 0
  %1785 = vmatpush1.bf16.msra.mxu0 0
  %1786 = vmatprep.subr.bf16.mxu0 0
  %1787 = vmatpush1.bf16.msra.mxu0 0
  %1788 = vmatprep.subr.bf16.mxu0 0
  %1789 = vmatpush1.bf16.msra.mxu0 0
  %1790 = vmatprep.subr.bf16.mxu0 0
  %1791 = vmatpush1.bf16.msra.mxu0 0
  %1792 = vmatprep.subr.bf16.mxu0 0
  %1793 = vmatpush1.bf16.msra.mxu0 0
  %1794 = vmatprep.subr.bf16.mxu0 0
  %1795 = vmatpush1.bf16.msra.mxu0 0
  %1796 = vmatprep.subr.bf16.mxu0 0
  %1797 = vmatpush1.bf16.msra.mxu0 0
  %1798 = vmatprep.subr.bf16.mxu0 0
  %1799 = vmatpush1.bf16.msra.mxu0 0
  %1800 = vmatprep.subr.bf16.mxu0 0
  %1801 = vmatpush1.bf16.msra.mxu0 0
  %1802 = vmatprep.mubr.bf16.mxu0 0
  %1803 = vmatmul.mubr.bf16.gmra.mrb[0].mxu0 %v1768
  %v1804 = vpop.f32.mrb[0].mxu0
  %v1805 = vadd.f32 0.0, %v1804
  %v1806 = vpop.f32.mrb[0].mxu0
  %v1807 = vadd.f32 0.0, %v1806
  %v1808 = vpop.f32.mrb[0].mxu0
  %v1809 = vpop.f32.mrb[0].mxu0
  %1810 = vdwg.mxu0
  %v1811 = vpack.c.bf16 %v1762, %v1762
  %1813 = vrot.lane.b32.xlu0 %v1811, 32
  %v1814 = vpop.permute.xlu0 %1813
  %v1816 = vsel %vm91, %v1814, 0
  %1818 = vmatprep.subr.bf16.mxu0 0
  %1819 = vmatpush1.bf16.msra.mxu0 %v326
  %1820 = vmatprep.subr.bf16.mxu0 0
  %1821 = vmatpush1.bf16.msra.mxu0 %v327
  %1822 = vmatprep.subr.bf16.mxu0 0
  %1823 = vmatpush1.bf16.msra.mxu0 0
  %1824 = vmatprep.subr.bf16.mxu0 0
  %1825 = vmatpush1.bf16.msra.mxu0 0
  %1826 = vmatprep.subr.bf16.mxu0 0
  %1827 = vmatpush1.bf16.msra.mxu0 0
  %1828 = vmatprep.subr.bf16.mxu0 0
  %1829 = vmatpush1.bf16.msra.mxu0 0
  %1830 = vmatprep.subr.bf16.mxu0 0
  %1831 = vmatpush1.bf16.msra.mxu0 0
  %1832 = vmatprep.subr.bf16.mxu0 0
  %1833 = vmatpush1.bf16.msra.mxu0 0
  %1834 = vmatprep.subr.bf16.mxu0 0
  %1835 = vmatpush1.bf16.msra.mxu0 0
  %1836 = vmatprep.subr.bf16.mxu0 0
  %1837 = vmatpush1.bf16.msra.mxu0 0
  %1838 = vmatprep.subr.bf16.mxu0 0
  %1839 = vmatpush1.bf16.msra.mxu0 0
  %1840 = vmatprep.subr.bf16.mxu0 0
  %1841 = vmatpush1.bf16.msra.mxu0 0
  %1842 = vmatprep.subr.bf16.mxu0 0
  %1843 = vmatpush1.bf16.msra.mxu0 0
  %1844 = vmatprep.subr.bf16.mxu0 0
  %1845 = vmatpush1.bf16.msra.mxu0 0
  %1846 = vmatprep.subr.bf16.mxu0 0
  %1847 = vmatpush1.bf16.msra.mxu0 0
  %1848 = vmatprep.subr.bf16.mxu0 0
  %1849 = vmatpush1.bf16.msra.mxu0 0
  %1850 = vmatprep.mubr.bf16.mxu0 0
  %1851 = vmatmul.mubr.bf16.gmra.mrb[0].mxu0 %v1816
  %v1852 = vpop.f32.mrb[0].mxu0
  %v1853 = vadd.f32 0.0, %v1852
  %v1854 = vpop.f32.mrb[0].mxu0
  %v1855 = vpop.f32.mrb[0].mxu0
  %v1856 = vpop.f32.mrb[0].mxu0
  %1857 = vdwg.mxu0
  %v1858 = vld [vmem:[%s0 + $0x7] sm:$0x1]
  %v1859 = vld [vmem:[%s0 + $0x17] sm:$0x1]
  %v1860 = vld [vmem:[%s0 + $0x27] sm:$0x1]
  %v1861 = vld [vmem:[%s0 + $0x37] sm:$0x1]
  %v1862 = vld [vmem:[%s0 + $0x47] sm:$0x1]
  %v1863 = vld [vmem:[%s0 + $0x57] sm:$0x1]
  %v1864 = vld [vmem:[%s0 + $0x67] sm:$0x1]
  %v1865 = vld [vmem:[%s0 + $0x77] sm:$0x1]
  %v1874 = vrot.slane %v1859, 7
  %v1875 = vsel %vm152, %v1874, %v1858
  %v1876 = vrot.slane %v1860, 6
  %v1877 = vsel %vm155, %v1876, %v1875
  %v1878 = vrot.slane %v1861, 5
  %v1879 = vsel %vm158, %v1878, %v1877
  %v1880 = vrot.slane %v1862, 4
  %v1881 = vsel %vm161, %v1880, %v1879
  %v1882 = vrot.slane %v1863, 3
  %v1883 = vsel %vm164, %v1882, %v1881
  %v1884 = vrot.slane %v1864, 2
  %v1885 = vsel %vm167, %v1884, %v1883
  %v1886 = vrot.slane %v1865, 1
  %v1887 = vsel %vm170, %v1886, %v1885
  %v1888 = vsel %vm172, %v1887, 0
  %1890 = vmatprep.subr.mxu0 0.0
  %1891 = vmatpush1.msra.mxu0 %v48
  %1892 = vmatprep.subr.mxu0 0.0
  %1893 = vmatpush1.msra.mxu0 0.0
  %1894 = vmatprep.subr.mxu0 0.0
  %1895 = vmatpush1.msra.mxu0 0.0
  %1896 = vmatprep.subr.mxu0 0.0
  %1897 = vmatpush1.msra.mxu0 0.0
  %1898 = vmatprep.subr.mxu0 0.0
  %1899 = vmatpush1.msra.mxu0 0.0
  %1900 = vmatprep.subr.mxu0 0.0
  %1901 = vmatpush1.msra.mxu0 0.0
  %1902 = vmatprep.subr.mxu0 0.0
  %1903 = vmatpush1.msra.mxu0 0.0
  %1904 = vmatprep.subr.mxu0 0.0
  %1905 = vmatpush1.msra.mxu0 0.0
  %1906 = vmatprep.subr.mxu0 0.0
  %1907 = vmatpush1.msra.mxu0 0.0
  %1908 = vmatprep.subr.mxu0 0.0
  %1909 = vmatpush1.msra.mxu0 0.0
  %1910 = vmatprep.subr.mxu0 0.0
  %1911 = vmatpush1.msra.mxu0 0.0
  %1912 = vmatprep.subr.mxu0 0.0
  %1913 = vmatpush1.msra.mxu0 0.0
  %1914 = vmatprep.subr.mxu0 0.0
  %1915 = vmatpush1.msra.mxu0 0.0
  %1916 = vmatprep.subr.mxu0 0.0
  %1917 = vmatpush1.msra.mxu0 0.0
  %1918 = vmatprep.subr.mxu0 0.0
  %1919 = vmatpush1.msra.mxu0 0.0
  %1920 = vmatprep.subr.mxu0 0.0
  %1921 = vmatpush1.msra.mxu0 0.0
  %1922 = vmatprep.subr.mxu0 0.0
  %1923 = vmatpush1.msra.mxu0 0.0
  %1924 = vmatprep.subr.mxu0 0.0
  %1925 = vmatpush1.msra.mxu0 0.0
  %1926 = vmatprep.subr.mxu0 0.0
  %1927 = vmatpush1.msra.mxu0 0.0
  %1928 = vmatprep.subr.mxu0 0.0
  %1929 = vmatpush1.msra.mxu0 0.0
  %1930 = vmatprep.subr.mxu0 0.0
  %1931 = vmatpush1.msra.mxu0 0.0
  %1932 = vmatprep.subr.mxu0 0.0
  %1933 = vmatpush1.msra.mxu0 0.0
  %1934 = vmatprep.subr.mxu0 0.0
  %1935 = vmatpush1.msra.mxu0 0.0
  %1936 = vmatprep.subr.mxu0 0.0
  %1937 = vmatpush1.msra.mxu0 0.0
  %1938 = vmatprep.subr.mxu0 0.0
  %1939 = vmatpush1.msra.mxu0 0.0
  %1940 = vmatprep.subr.mxu0 0.0
  %1941 = vmatpush1.msra.mxu0 0.0
  %1942 = vmatprep.subr.mxu0 0.0
  %1943 = vmatpush1.msra.mxu0 0.0
  %1944 = vmatprep.subr.mxu0 0.0
  %1945 = vmatpush1.msra.mxu0 0.0
  %1946 = vmatprep.subr.mxu0 0.0
  %1947 = vmatpush1.msra.mxu0 0.0
  %1948 = vmatprep.subr.mxu0 0.0
  %1949 = vmatpush1.msra.mxu0 0.0
  %1950 = vmatprep.subr.mxu0 0.0
  %1951 = vmatpush1.msra.mxu0 0.0
  %1952 = vmatprep.subr.mxu0 0.0
  %1953 = vmatpush1.msra.mxu0 0.0
  %1954 = vmatprep.mubr.f32.mxu0 0.0
  %1955 = vmatmul.mubr.f32.gmra.mrb[0].mxu0 %v1888
  %v1956 = vpop.f32.mrb[0].mxu0
  %v1957 = vadd.f32 %v54, %v1956
  %v1958 = vpop.f32.mrb[0].mxu0
  %1959 = vdwg.mxu0
  %v1960 = vadd.f32 %v1957, %v1805
  %v1961 = vxor.u32 %v1960, 2147483648
  %v1962 = vmul.f32 %v1961, 1.442695
  %v1963 = vpow.pop %v1962
  %v1964 = vadd.f32 %v1963, 1.0
  %v1965 = vrcp.pop %v1964
  %v1966 = vmul.f32 1.0, %v1965
  %v1967 = vtanh.pop %v1960
  %v1968 = vmul.f32 %v1966, %v1730
  %1970 = vrot.lane.b32.xlu0 %v1967, 64
  %v1971 = vpop.permute.xlu0 %1970
  %v1973 = vmul.f32 %v1966, %v1971
  %1975 = vrot.lane.b32.xlu0 %v1973, 32
  %v1976 = vpop.permute.xlu0 %1975
  %v1978 = vadd.f32 %v1968, %v1976
  %v1979 = vtanh.pop %v1978
  %1981 = vrot.lane.b32.xlu0 %v1979, 64
  %v1982 = vpop.permute.xlu0 %1981
  %v1984 = vmul.f32 %v1966, %v1982
  %v1985 = vadd.f32 %v69, %v1807
  %v1986 = vadd.f32 %v1985, %v1853
  %v1987 = vxor.u32 %v1986, 2147483648
  %v1988 = vmul.f32 %v1987, 1.442695
  %v1989 = vpow.pop %v1988
  %v1990 = vadd.f32 %v1989, 1.0
  %v1991 = vrcp.pop %v1990
  %v1992 = vmul.f32 1.0, %v1991
  %v1993 = vtanh.pop %v1986
  %v1994 = vmul.f32 %v1992, %v1756
  %1996 = vrot.lane.b32.xlu0 %v1993, 64
  %v1997 = vpop.permute.xlu0 %1996
  %v1999 = vmul.f32 %v1992, %v1997
  %2001 = vrot.lane.b32.xlu0 %v1999, 32
  %v2002 = vpop.permute.xlu0 %2001
  %v2004 = vadd.f32 %v1994, %v2002
  %v2005 = vtanh.pop %v2004
  %2007 = vrot.lane.b32.xlu0 %v2005, 64
  %v2008 = vpop.permute.xlu0 %2007
  %v2010 = vmul.f32 %v1992, %v2008
  %v2011 = vpack.c.bf16 %v1984, %v1984
  %2013 = vrot.lane.b32.xlu0 %v2011, 32
  %v2014 = vpop.permute.xlu0 %2013
  %v2016 = vsel %vm91, %v2014, 0
  %2018 = vmatprep.subr.bf16.mxu0 %v84
  %2019 = vmatpush1.bf16.msra.mxu0 %v83
  %2020 = vmatprep.subr.bf16.mxu0 %v86
  %2021 = vmatpush1.bf16.msra.mxu0 %v85
  %2022 = vmatprep.subr.bf16.mxu0 0
  %2023 = vmatpush1.bf16.msra.mxu0 0
  %2024 = vmatprep.subr.bf16.mxu0 0
  %2025 = vmatpush1.bf16.msra.mxu0 0
  %2026 = vmatprep.subr.bf16.mxu0 0
  %2027 = vmatpush1.bf16.msra.mxu0 0
  %2028 = vmatprep.subr.bf16.mxu0 0
  %2029 = vmatpush1.bf16.msra.mxu0 0
  %2030 = vmatprep.subr.bf16.mxu0 0
  %2031 = vmatpush1.bf16.msra.mxu0 0
  %2032 = vmatprep.subr.bf16.mxu0 0
  %2033 = vmatpush1.bf16.msra.mxu0 0
  %2034 = vmatprep.subr.bf16.mxu0 0
  %2035 = vmatpush1.bf16.msra.mxu0 0
  %2036 = vmatprep.subr.bf16.mxu0 0
  %2037 = vmatpush1.bf16.msra.mxu0 0
  %2038 = vmatprep.subr.bf16.mxu0 0
  %2039 = vmatpush1.bf16.msra.mxu0 0
  %2040 = vmatprep.subr.bf16.mxu0 0
  %2041 = vmatpush1.bf16.msra.mxu0 0
  %2042 = vmatprep.subr.bf16.mxu0 0
  %2043 = vmatpush1.bf16.msra.mxu0 0
  %2044 = vmatprep.subr.bf16.mxu0 0
  %2045 = vmatpush1.bf16.msra.mxu0 0
  %2046 = vmatprep.subr.bf16.mxu0 0
  %2047 = vmatpush1.bf16.msra.mxu0 0
  %2048 = vmatprep.subr.bf16.mxu0 0
  %2049 = vmatpush1.bf16.msra.mxu0 0
  %2050 = vmatprep.mubr.bf16.mxu0 0
  %2051 = vmatmul.mubr.bf16.gmra.mrb[0].mxu0 %v2016
  %v2052 = vpop.f32.mrb[0].mxu0
  %v2053 = vadd.f32 0.0, %v2052
  %v2054 = vpop.f32.mrb[0].mxu0
  %v2055 = vadd.f32 0.0, %v2054
  %v2056 = vpop.f32.mrb[0].mxu0
  %v2057 = vpop.f32.mrb[0].mxu0
  %2058 = vdwg.mxu0
  %v2059 = vpack.c.bf16 %v2010, %v2010
  %2061 = vrot.lane.b32.xlu0 %v2059, 32
  %v2062 = vpop.permute.xlu0 %2061
  %v2064 = vsel %vm91, %v2062, 0
  %2066 = vmatprep.subr.bf16.mxu0 0
  %2067 = vmatpush1.bf16.msra.mxu0 %v326
  %2068 = vmatprep.subr.bf16.mxu0 0
  %2069 = vmatpush1.bf16.msra.mxu0 %v327
  %2070 = vmatprep.subr.bf16.mxu0 0
  %2071 = vmatpush1.bf16.msra.mxu0 0
  %2072 = vmatprep.subr.bf16.mxu0 0
  %2073 = vmatpush1.bf16.msra.mxu0 0
  %2074 = vmatprep.subr.bf16.mxu0 0
  %2075 = vmatpush1.bf16.msra.mxu0 0
  %2076 = vmatprep.subr.bf16.mxu0 0
  %2077 = vmatpush1.bf16.msra.mxu0 0
  %2078 = vmatprep.subr.bf16.mxu0 0
  %2079 = vmatpush1.bf16.msra.mxu0 0
  %2080 = vmatprep.subr.bf16.mxu0 0
  %2081 = vmatpush1.bf16.msra.mxu0 0
  %2082 = vmatprep.subr.bf16.mxu0 0
  %2083 = vmatpush1.bf16.msra.mxu0 0
  %2084 = vmatprep.subr.bf16.mxu0 0
  %2085 = vmatpush1.bf16.msra.mxu0 0
  %2086 = vmatprep.subr.bf16.mxu0 0
  %2087 = vmatpush1.bf16.msra.mxu0 0
  %2088 = vmatprep.subr.bf16.mxu0 0
  %2089 = vmatpush1.bf16.msra.mxu0 0
  %2090 = vmatprep.subr.bf16.mxu0 0
  %2091 = vmatpush1.bf16.msra.mxu0 0
  %2092 = vmatprep.subr.bf16.mxu0 0
  %2093 = vmatpush1.bf16.msra.mxu0 0
  %2094 = vmatprep.subr.bf16.mxu0 0
  %2095 = vmatpush1.bf16.msra.mxu0 0
  %2096 = vmatprep.subr.bf16.mxu0 0
  %2097 = vmatpush1.bf16.msra.mxu0 0
  %2098 = vmatprep.mubr.bf16.mxu0 0
  %2099 = vmatmul.mubr.bf16.gmra.mrb[0].mxu0 %v2064
  %v2100 = vpop.f32.mrb[0].mxu0
  %v2101 = vadd.f32 0.0, %v2100
  %v2102 = vpop.f32.mrb[0].mxu0
  %v2103 = vpop.f32.mrb[0].mxu0
  %v2104 = vpop.f32.mrb[0].mxu0
  %2105 = vdwg.mxu0
  %v2106 = vld [vmem:[%s0 + $0x8] sm:$0x1]
  %v2107 = vld [vmem:[%s0 + $0x18] sm:$0x1]
  %v2108 = vld [vmem:[%s0 + $0x28] sm:$0x1]
  %v2109 = vld [vmem:[%s0 + $0x38] sm:$0x1]
  %v2110 = vld [vmem:[%s0 + $0x48] sm:$0x1]
  %v2111 = vld [vmem:[%s0 + $0x58] sm:$0x1]
  %v2112 = vld [vmem:[%s0 + $0x68] sm:$0x1]
  %v2113 = vld [vmem:[%s0 + $0x78] sm:$0x1]
  %v2122 = vrot.slane %v2107, 7
  %v2123 = vsel %vm152, %v2122, %v2106
  %v2124 = vrot.slane %v2108, 6
  %v2125 = vsel %vm155, %v2124, %v2123
  %v2126 = vrot.slane %v2109, 5
  %v2127 = vsel %vm158, %v2126, %v2125
  %v2128 = vrot.slane %v2110, 4
  %v2129 = vsel %vm161, %v2128, %v2127
  %v2130 = vrot.slane %v2111, 3
  %v2131 = vsel %vm164, %v2130, %v2129
  %v2132 = vrot.slane %v2112, 2
  %v2133 = vsel %vm167, %v2132, %v2131
  %v2134 = vrot.slane %v2113, 1
  %v2135 = vsel %vm170, %v2134, %v2133
  %v2136 = vsel %vm172, %v2135, 0
  %2138 = vmatprep.subr.mxu0 0.0
  %2139 = vmatpush1.msra.mxu0 %v48
  %2140 = vmatprep.subr.mxu0 0.0
  %2141 = vmatpush1.msra.mxu0 0.0
  %2142 = vmatprep.subr.mxu0 0.0
  %2143 = vmatpush1.msra.mxu0 0.0
  %2144 = vmatprep.subr.mxu0 0.0
  %2145 = vmatpush1.msra.mxu0 0.0
  %2146 = vmatprep.subr.mxu0 0.0
  %2147 = vmatpush1.msra.mxu0 0.0
  %2148 = vmatprep.subr.mxu0 0.0
  %2149 = vmatpush1.msra.mxu0 0.0
  %2150 = vmatprep.subr.mxu0 0.0
  %2151 = vmatpush1.msra.mxu0 0.0
  %2152 = vmatprep.subr.mxu0 0.0
  %2153 = vmatpush1.msra.mxu0 0.0
  %2154 = vmatprep.subr.mxu0 0.0
  %2155 = vmatpush1.msra.mxu0 0.0
  %2156 = vmatprep.subr.mxu0 0.0
  %2157 = vmatpush1.msra.mxu0 0.0
  %2158 = vmatprep.subr.mxu0 0.0
  %2159 = vmatpush1.msra.mxu0 0.0
  %2160 = vmatprep.subr.mxu0 0.0
  %2161 = vmatpush1.msra.mxu0 0.0
  %2162 = vmatprep.subr.mxu0 0.0
  %2163 = vmatpush1.msra.mxu0 0.0
  %2164 = vmatprep.subr.mxu0 0.0
  %2165 = vmatpush1.msra.mxu0 0.0
  %2166 = vmatprep.subr.mxu0 0.0
  %2167 = vmatpush1.msra.mxu0 0.0
  %2168 = vmatprep.subr.mxu0 0.0
  %2169 = vmatpush1.msra.mxu0 0.0
  %2170 = vmatprep.subr.mxu0 0.0
  %2171 = vmatpush1.msra.mxu0 0.0
  %2172 = vmatprep.subr.mxu0 0.0
  %2173 = vmatpush1.msra.mxu0 0.0
  %2174 = vmatprep.subr.mxu0 0.0
  %2175 = vmatpush1.msra.mxu0 0.0
  %2176 = vmatprep.subr.mxu0 0.0
  %2177 = vmatpush1.msra.mxu0 0.0
  %2178 = vmatprep.subr.mxu0 0.0
  %2179 = vmatpush1.msra.mxu0 0.0
  %2180 = vmatprep.subr.mxu0 0.0
  %2181 = vmatpush1.msra.mxu0 0.0
  %2182 = vmatprep.subr.mxu0 0.0
  %2183 = vmatpush1.msra.mxu0 0.0
  %2184 = vmatprep.subr.mxu0 0.0
  %2185 = vmatpush1.msra.mxu0 0.0
  %2186 = vmatprep.subr.mxu0 0.0
  %2187 = vmatpush1.msra.mxu0 0.0
  %2188 = vmatprep.subr.mxu0 0.0
  %2189 = vmatpush1.msra.mxu0 0.0
  %2190 = vmatprep.subr.mxu0 0.0
  %2191 = vmatpush1.msra.mxu0 0.0
  %2192 = vmatprep.subr.mxu0 0.0
  %2193 = vmatpush1.msra.mxu0 0.0
  %2194 = vmatprep.subr.mxu0 0.0
  %2195 = vmatpush1.msra.mxu0 0.0
  %2196 = vmatprep.subr.mxu0 0.0
  %2197 = vmatpush1.msra.mxu0 0.0
  %2198 = vmatprep.subr.mxu0 0.0
  %2199 = vmatpush1.msra.mxu0 0.0
  %2200 = vmatprep.subr.mxu0 0.0
  %2201 = vmatpush1.msra.mxu0 0.0
  %2202 = vmatprep.mubr.f32.mxu0 0.0
  %2203 = vmatmul.mubr.f32.gmra.mrb[0].mxu0 %v2136
  %v2204 = vpop.f32.mrb[0].mxu0
  %v2205 = vadd.f32 %v54, %v2204
  %v2206 = vpop.f32.mrb[0].mxu0
  %2207 = vdwg.mxu0
  %v2208 = vadd.f32 %v2205, %v2053
  %v2209 = vxor.u32 %v2208, 2147483648
  %v2210 = vmul.f32 %v2209, 1.442695
  %v2211 = vpow.pop %v2210
  %v2212 = vadd.f32 %v2211, 1.0
  %v2213 = vrcp.pop %v2212
  %v2214 = vmul.f32 1.0, %v2213
  %v2215 = vtanh.pop %v2208
  %v2216 = vmul.f32 %v2214, %v1978
  %2218 = vrot.lane.b32.xlu0 %v2215, 64
  %v2219 = vpop.permute.xlu0 %2218
  %v2221 = vmul.f32 %v2214, %v2219
  %2223 = vrot.lane.b32.xlu0 %v2221, 32
  %v2224 = vpop.permute.xlu0 %2223
  %v2226 = vadd.f32 %v2216, %v2224
  %v2227 = vtanh.pop %v2226
  %2229 = vrot.lane.b32.xlu0 %v2227, 64
  %v2230 = vpop.permute.xlu0 %2229
  %v2232 = vmul.f32 %v2214, %v2230
  %v2233 = vadd.f32 %v69, %v2055
  %v2234 = vadd.f32 %v2233, %v2101
  %v2235 = vxor.u32 %v2234, 2147483648
  %v2236 = vmul.f32 %v2235, 1.442695
  %v2237 = vpow.pop %v2236
  %v2238 = vadd.f32 %v2237, 1.0
  %v2239 = vrcp.pop %v2238
  %v2240 = vmul.f32 1.0, %v2239
  %v2241 = vtanh.pop %v2234
  %v2242 = vmul.f32 %v2240, %v2004
  %2244 = vrot.lane.b32.xlu0 %v2241, 64
  %v2245 = vpop.permute.xlu0 %2244
  %v2247 = vmul.f32 %v2240, %v2245
  %2249 = vrot.lane.b32.xlu0 %v2247, 32
  %v2250 = vpop.permute.xlu0 %2249
  %v2252 = vadd.f32 %v2242, %v2250
  %v2253 = vtanh.pop %v2252
  %2255 = vrot.lane.b32.xlu0 %v2253, 64
  %v2256 = vpop.permute.xlu0 %2255
  %v2258 = vmul.f32 %v2240, %v2256
  %v2259 = vpack.c.bf16 %v2232, %v2232
  %2261 = vrot.lane.b32.xlu0 %v2259, 32
  %v2262 = vpop.permute.xlu0 %2261
  %v2264 = vsel %vm91, %v2262, 0
  %2266 = vmatprep.subr.bf16.mxu0 %v84
  %2267 = vmatpush1.bf16.msra.mxu0 %v83
  %2268 = vmatprep.subr.bf16.mxu0 %v86
  %2269 = vmatpush1.bf16.msra.mxu0 %v85
  %2270 = vmatprep.subr.bf16.mxu0 0
  %2271 = vmatpush1.bf16.msra.mxu0 0
  %2272 = vmatprep.subr.bf16.mxu0 0
  %2273 = vmatpush1.bf16.msra.mxu0 0
  %2274 = vmatprep.subr.bf16.mxu0 0
  %2275 = vmatpush1.bf16.msra.mxu0 0
  %2276 = vmatprep.subr.bf16.mxu0 0
  %2277 = vmatpush1.bf16.msra.mxu0 0
  %2278 = vmatprep.subr.bf16.mxu0 0
  %2279 = vmatpush1.bf16.msra.mxu0 0
  %2280 = vmatprep.subr.bf16.mxu0 0
  %2281 = vmatpush1.bf16.msra.mxu0 0
  %2282 = vmatprep.subr.bf16.mxu0 0
  %2283 = vmatpush1.bf16.msra.mxu0 0
  %2284 = vmatprep.subr.bf16.mxu0 0
  %2285 = vmatpush1.bf16.msra.mxu0 0
  %2286 = vmatprep.subr.bf16.mxu0 0
  %2287 = vmatpush1.bf16.msra.mxu0 0
  %2288 = vmatprep.subr.bf16.mxu0 0
  %2289 = vmatpush1.bf16.msra.mxu0 0
  %2290 = vmatprep.subr.bf16.mxu0 0
  %2291 = vmatpush1.bf16.msra.mxu0 0
  %2292 = vmatprep.subr.bf16.mxu0 0
  %2293 = vmatpush1.bf16.msra.mxu0 0
  %2294 = vmatprep.subr.bf16.mxu0 0
  %2295 = vmatpush1.bf16.msra.mxu0 0
  %2296 = vmatprep.subr.bf16.mxu0 0
  %2297 = vmatpush1.bf16.msra.mxu0 0
  %2298 = vmatprep.mubr.bf16.mxu0 0
  %2299 = vmatmul.mubr.bf16.gmra.mrb[0].mxu0 %v2264
  %v2300 = vpop.f32.mrb[0].mxu0
  %v2301 = vadd.f32 0.0, %v2300
  %v2302 = vpop.f32.mrb[0].mxu0
  %v2303 = vadd.f32 0.0, %v2302
  %v2304 = vpop.f32.mrb[0].mxu0
  %v2305 = vpop.f32.mrb[0].mxu0
  %2306 = vdwg.mxu0
  %v2307 = vpack.c.bf16 %v2258, %v2258
  %2309 = vrot.lane.b32.xlu0 %v2307, 32
  %v2310 = vpop.permute.xlu0 %2309
  %v2312 = vsel %vm91, %v2310, 0
  %2314 = vmatprep.subr.bf16.mxu0 0
  %2315 = vmatpush1.bf16.msra.mxu0 %v326
  %2316 = vmatprep.subr.bf16.mxu0 0
  %2317 = vmatpush1.bf16.msra.mxu0 %v327
  %2318 = vmatprep.subr.bf16.mxu0 0
  %2319 = vmatpush1.bf16.msra.mxu0 0
  %2320 = vmatprep.subr.bf16.mxu0 0
  %2321 = vmatpush1.bf16.msra.mxu0 0
  %2322 = vmatprep.subr.bf16.mxu0 0
  %2323 = vmatpush1.bf16.msra.mxu0 0
  %2324 = vmatprep.subr.bf16.mxu0 0
  %2325 = vmatpush1.bf16.msra.mxu0 0
  %2326 = vmatprep.subr.bf16.mxu0 0
  %2327 = vmatpush1.bf16.msra.mxu0 0
  %2328 = vmatprep.subr.bf16.mxu0 0
  %2329 = vmatpush1.bf16.msra.mxu0 0
  %2330 = vmatprep.subr.bf16.mxu0 0
  %2331 = vmatpush1.bf16.msra.mxu0 0
  %2332 = vmatprep.subr.bf16.mxu0 0
  %2333 = vmatpush1.bf16.msra.mxu0 0
  %2334 = vmatprep.subr.bf16.mxu0 0
  %2335 = vmatpush1.bf16.msra.mxu0 0
  %2336 = vmatprep.subr.bf16.mxu0 0
  %2337 = vmatpush1.bf16.msra.mxu0 0
  %2338 = vmatprep.subr.bf16.mxu0 0
  %2339 = vmatpush1.bf16.msra.mxu0 0
  %2340 = vmatprep.subr.bf16.mxu0 0
  %2341 = vmatpush1.bf16.msra.mxu0 0
  %2342 = vmatprep.subr.bf16.mxu0 0
  %2343 = vmatpush1.bf16.msra.mxu0 0
  %2344 = vmatprep.subr.bf16.mxu0 0
  %2345 = vmatpush1.bf16.msra.mxu0 0
  %2346 = vmatprep.mubr.bf16.mxu0 0
  %2347 = vmatmul.mubr.bf16.gmra.mrb[0].mxu0 %v2312
  %v2348 = vpop.f32.mrb[0].mxu0
  %v2349 = vadd.f32 0.0, %v2348
  %v2350 = vpop.f32.mrb[0].mxu0
  %v2351 = vpop.f32.mrb[0].mxu0
  %v2352 = vpop.f32.mrb[0].mxu0
  %2353 = vdwg.mxu0
  %v2354 = vld [vmem:[%s0 + $0x9] sm:$0x1]
  %v2355 = vld [vmem:[%s0 + $0x19] sm:$0x1]
  %v2356 = vld [vmem:[%s0 + $0x29] sm:$0x1]
  %v2357 = vld [vmem:[%s0 + $0x39] sm:$0x1]
  %v2358 = vld [vmem:[%s0 + $0x49] sm:$0x1]
  %v2359 = vld [vmem:[%s0 + $0x59] sm:$0x1]
  %v2360 = vld [vmem:[%s0 + $0x69] sm:$0x1]
  %v2361 = vld [vmem:[%s0 + $0x79] sm:$0x1]
  %v2370 = vrot.slane %v2355, 7
  %v2371 = vsel %vm152, %v2370, %v2354
  %v2372 = vrot.slane %v2356, 6
  %v2373 = vsel %vm155, %v2372, %v2371
  %v2374 = vrot.slane %v2357, 5
  %v2375 = vsel %vm158, %v2374, %v2373
  %v2376 = vrot.slane %v2358, 4
  %v2377 = vsel %vm161, %v2376, %v2375
  %v2378 = vrot.slane %v2359, 3
  %v2379 = vsel %vm164, %v2378, %v2377
  %v2380 = vrot.slane %v2360, 2
  %v2381 = vsel %vm167, %v2380, %v2379
  %v2382 = vrot.slane %v2361, 1
  %v2383 = vsel %vm170, %v2382, %v2381
  %v2384 = vsel %vm172, %v2383, 0
  %2386 = vmatprep.subr.mxu0 0.0
  %2387 = vmatpush1.msra.mxu0 %v48
  %2388 = vmatprep.subr.mxu0 0.0
  %2389 = vmatpush1.msra.mxu0 0.0
  %2390 = vmatprep.subr.mxu0 0.0
  %2391 = vmatpush1.msra.mxu0 0.0
  %2392 = vmatprep.subr.mxu0 0.0
  %2393 = vmatpush1.msra.mxu0 0.0
  %2394 = vmatprep.subr.mxu0 0.0
  %2395 = vmatpush1.msra.mxu0 0.0
  %2396 = vmatprep.subr.mxu0 0.0
  %2397 = vmatpush1.msra.mxu0 0.0
  %2398 = vmatprep.subr.mxu0 0.0
  %2399 = vmatpush1.msra.mxu0 0.0
  %2400 = vmatprep.subr.mxu0 0.0
  %2401 = vmatpush1.msra.mxu0 0.0
  %2402 = vmatprep.subr.mxu0 0.0
  %2403 = vmatpush1.msra.mxu0 0.0
  %2404 = vmatprep.subr.mxu0 0.0
  %2405 = vmatpush1.msra.mxu0 0.0
  %2406 = vmatprep.subr.mxu0 0.0
  %2407 = vmatpush1.msra.mxu0 0.0
  %2408 = vmatprep.subr.mxu0 0.0
  %2409 = vmatpush1.msra.mxu0 0.0
  %2410 = vmatprep.subr.mxu0 0.0
  %2411 = vmatpush1.msra.mxu0 0.0
  %2412 = vmatprep.subr.mxu0 0.0
  %2413 = vmatpush1.msra.mxu0 0.0
  %2414 = vmatprep.subr.mxu0 0.0
  %2415 = vmatpush1.msra.mxu0 0.0
  %2416 = vmatprep.subr.mxu0 0.0
  %2417 = vmatpush1.msra.mxu0 0.0
  %2418 = vmatprep.subr.mxu0 0.0
  %2419 = vmatpush1.msra.mxu0 0.0
  %2420 = vmatprep.subr.mxu0 0.0
  %2421 = vmatpush1.msra.mxu0 0.0
  %2422 = vmatprep.subr.mxu0 0.0
  %2423 = vmatpush1.msra.mxu0 0.0
  %2424 = vmatprep.subr.mxu0 0.0
  %2425 = vmatpush1.msra.mxu0 0.0
  %2426 = vmatprep.subr.mxu0 0.0
  %2427 = vmatpush1.msra.mxu0 0.0
  %2428 = vmatprep.subr.mxu0 0.0
  %2429 = vmatpush1.msra.mxu0 0.0
  %2430 = vmatprep.subr.mxu0 0.0
  %2431 = vmatpush1.msra.mxu0 0.0
  %2432 = vmatprep.subr.mxu0 0.0
  %2433 = vmatpush1.msra.mxu0 0.0
  %2434 = vmatprep.subr.mxu0 0.0
  %2435 = vmatpush1.msra.mxu0 0.0
  %2436 = vmatprep.subr.mxu0 0.0
  %2437 = vmatpush1.msra.mxu0 0.0
  %2438 = vmatprep.subr.mxu0 0.0
  %2439 = vmatpush1.msra.mxu0 0.0
  %2440 = vmatprep.subr.mxu0 0.0
  %2441 = vmatpush1.msra.mxu0 0.0
  %2442 = vmatprep.subr.mxu0 0.0
  %2443 = vmatpush1.msra.mxu0 0.0
  %2444 = vmatprep.subr.mxu0 0.0
  %2445 = vmatpush1.msra.mxu0 0.0
  %2446 = vmatprep.subr.mxu0 0.0
  %2447 = vmatpush1.msra.mxu0 0.0
  %2448 = vmatprep.subr.mxu0 0.0
  %2449 = vmatpush1.msra.mxu0 0.0
  %2450 = vmatprep.mubr.f32.mxu0 0.0
  %2451 = vmatmul.mubr.f32.gmra.mrb[0].mxu0 %v2384
  %v2452 = vpop.f32.mrb[0].mxu0
  %v2453 = vadd.f32 %v54, %v2452
  %v2454 = vpop.f32.mrb[0].mxu0
  %2455 = vdwg.mxu0
  %v2456 = vadd.f32 %v2453, %v2301
  %v2457 = vxor.u32 %v2456, 2147483648
  %v2458 = vmul.f32 %v2457, 1.442695
  %v2459 = vpow.pop %v2458
  %v2460 = vadd.f32 %v2459, 1.0
  %v2461 = vrcp.pop %v2460
  %v2462 = vmul.f32 1.0, %v2461
  %v2463 = vtanh.pop %v2456
  %v2464 = vmul.f32 %v2462, %v2226
  %2466 = vrot.lane.b32.xlu0 %v2463, 64
  %v2467 = vpop.permute.xlu0 %2466
  %v2469 = vmul.f32 %v2462, %v2467
  %2471 = vrot.lane.b32.xlu0 %v2469, 32
  %v2472 = vpop.permute.xlu0 %2471
  %v2474 = vadd.f32 %v2464, %v2472
  %v2475 = vtanh.pop %v2474
  %2477 = vrot.lane.b32.xlu0 %v2475, 64
  %v2478 = vpop.permute.xlu0 %2477
  %v2480 = vmul.f32 %v2462, %v2478
  %v2481 = vadd.f32 %v69, %v2303
  %v2482 = vadd.f32 %v2481, %v2349
  %v2483 = vxor.u32 %v2482, 2147483648
  %v2484 = vmul.f32 %v2483, 1.442695
  %v2485 = vpow.pop %v2484
  %v2486 = vadd.f32 %v2485, 1.0
  %v2487 = vrcp.pop %v2486
  %v2488 = vmul.f32 1.0, %v2487
  %v2489 = vtanh.pop %v2482
  %v2490 = vmul.f32 %v2488, %v2252
  %2492 = vrot.lane.b32.xlu0 %v2489, 64
  %v2493 = vpop.permute.xlu0 %2492
  %v2495 = vmul.f32 %v2488, %v2493
  %2497 = vrot.lane.b32.xlu0 %v2495, 32
  %v2498 = vpop.permute.xlu0 %2497
  %v2500 = vadd.f32 %v2490, %v2498
  %v2501 = vtanh.pop %v2500
  %2503 = vrot.lane.b32.xlu0 %v2501, 64
  %v2504 = vpop.permute.xlu0 %2503
  %v2506 = vmul.f32 %v2488, %v2504
  %v2507 = vpack.c.bf16 %v2480, %v2480
  %2509 = vrot.lane.b32.xlu0 %v2507, 32
  %v2510 = vpop.permute.xlu0 %2509
  %v2512 = vsel %vm91, %v2510, 0
  %2514 = vmatprep.subr.bf16.mxu0 %v84
  %2515 = vmatpush1.bf16.msra.mxu0 %v83
  %2516 = vmatprep.subr.bf16.mxu0 %v86
  %2517 = vmatpush1.bf16.msra.mxu0 %v85
  %2518 = vmatprep.subr.bf16.mxu0 0
  %2519 = vmatpush1.bf16.msra.mxu0 0
  %2520 = vmatprep.subr.bf16.mxu0 0
  %2521 = vmatpush1.bf16.msra.mxu0 0
  %2522 = vmatprep.subr.bf16.mxu0 0
  %2523 = vmatpush1.bf16.msra.mxu0 0
  %2524 = vmatprep.subr.bf16.mxu0 0
  %2525 = vmatpush1.bf16.msra.mxu0 0
  %2526 = vmatprep.subr.bf16.mxu0 0
  %2527 = vmatpush1.bf16.msra.mxu0 0
  %2528 = vmatprep.subr.bf16.mxu0 0
  %2529 = vmatpush1.bf16.msra.mxu0 0
  %2530 = vmatprep.subr.bf16.mxu0 0
  %2531 = vmatpush1.bf16.msra.mxu0 0
  %2532 = vmatprep.subr.bf16.mxu0 0
  %2533 = vmatpush1.bf16.msra.mxu0 0
  %2534 = vmatprep.subr.bf16.mxu0 0
  %2535 = vmatpush1.bf16.msra.mxu0 0
  %2536 = vmatprep.subr.bf16.mxu0 0
  %2537 = vmatpush1.bf16.msra.mxu0 0
  %2538 = vmatprep.subr.bf16.mxu0 0
  %2539 = vmatpush1.bf16.msra.mxu0 0
  %2540 = vmatprep.subr.bf16.mxu0 0
  %2541 = vmatpush1.bf16.msra.mxu0 0
  %2542 = vmatprep.subr.bf16.mxu0 0
  %2543 = vmatpush1.bf16.msra.mxu0 0
  %2544 = vmatprep.subr.bf16.mxu0 0
  %2545 = vmatpush1.bf16.msra.mxu0 0
  %2546 = vmatprep.mubr.bf16.mxu0 0
  %2547 = vmatmul.mubr.bf16.gmra.mrb[0].mxu0 %v2512
  %v2548 = vpop.f32.mrb[0].mxu0
  %v2549 = vpop.f32.mrb[0].mxu0
  %v2550 = vadd.f32 0.0, %v2549
  %v2551 = vpop.f32.mrb[0].mxu0
  %v2552 = vpop.f32.mrb[0].mxu0
  %2553 = vdwg.mxu0
  %v2554 = vpack.c.bf16 %v2506, %v2506
  %2556 = vrot.lane.b32.xlu0 %v2554, 32
  %v2557 = vpop.permute.xlu0 %2556
  %v2559 = vsel %vm91, %v2557, 0
  %2561 = vmatprep.subr.bf16.mxu0 0
  %2562 = vmatpush1.bf16.msra.mxu0 %v326
  %2563 = vmatprep.subr.bf16.mxu0 0
  %2564 = vmatpush1.bf16.msra.mxu0 %v327
  %2565 = vmatprep.subr.bf16.mxu0 0
  %2566 = vmatpush1.bf16.msra.mxu0 0
  %2567 = vmatprep.subr.bf16.mxu0 0
  %2568 = vmatpush1.bf16.msra.mxu0 0
  %2569 = vmatprep.subr.bf16.mxu0 0
  %2570 = vmatpush1.bf16.msra.mxu0 0
  %2571 = vmatprep.subr.bf16.mxu0 0
  %2572 = vmatpush1.bf16.msra.mxu0 0
  %2573 = vmatprep.subr.bf16.mxu0 0
  %2574 = vmatpush1.bf16.msra.mxu0 0
  %2575 = vmatprep.subr.bf16.mxu0 0
  %2576 = vmatpush1.bf16.msra.mxu0 0
  %2577 = vmatprep.subr.bf16.mxu0 0
  %2578 = vmatpush1.bf16.msra.mxu0 0
  %2579 = vmatprep.subr.bf16.mxu0 0
  %2580 = vmatpush1.bf16.msra.mxu0 0
  %2581 = vmatprep.subr.bf16.mxu0 0
  %2582 = vmatpush1.bf16.msra.mxu0 0
  %2583 = vmatprep.subr.bf16.mxu0 0
  %2584 = vmatpush1.bf16.msra.mxu0 0
  %2585 = vmatprep.subr.bf16.mxu0 0
  %2586 = vmatpush1.bf16.msra.mxu0 0
  %2587 = vmatprep.subr.bf16.mxu0 0
  %2588 = vmatpush1.bf16.msra.mxu0 0
  %2589 = vmatprep.subr.bf16.mxu0 0
  %2590 = vmatpush1.bf16.msra.mxu0 0
  %2591 = vmatprep.subr.bf16.mxu0 0
  %2592 = vmatpush1.bf16.msra.mxu0 0
  %2593 = vmatprep.mubr.bf16.mxu0 0
  %2594 = vmatmul.mubr.bf16.gmra.mrb[0].mxu0 %v2559
  %v2595 = vpop.f32.mrb[0].mxu0
  %v2596 = vadd.f32 0.0, %v2595
  %v2597 = vpop.f32.mrb[0].mxu0
  %v2598 = vpop.f32.mrb[0].mxu0
  %v2599 = vpop.f32.mrb[0].mxu0
  %2600 = vdwg.mxu0
  %v2601 = vadd.f32 %v69, %v2550
  %v2602 = vadd.f32 %v2601, %v2596
  %v2603 = vxor.u32 %v2602, 2147483648
  %v2604 = vmul.f32 %v2603, 1.442695
  %v2605 = vpow.pop %v2604
  %v2606 = vadd.f32 %v2605, 1.0
  %v2607 = vrcp.pop %v2606
  %v2608 = vmul.f32 1.0, %v2607
  %v2609 = vtanh.pop %v2602
  %v2610 = vmul.f32 %v2608, %v2500
  %2612 = vrot.lane.b32.xlu0 %v2609, 64
  %v2613 = vpop.permute.xlu0 %2612
  %v2615 = vmul.f32 %v2608, %v2613
  %2617 = vrot.lane.b32.xlu0 %v2615, 32
  %v2618 = vpop.permute.xlu0 %2617
  %v2620 = vadd.f32 %v2610, %v2618
  %v2621 = vtanh.pop %v2620
  %2623 = vrot.lane.b32.xlu0 %v2621, 64
  %v2624 = vpop.permute.xlu0 %2623
  %v2626 = vmul.f32 %v2608, %v2624
  %v2627 = vld [vmem:[%s8] sm:$0xff]
  %v2628 = vld [vmem:[%s8 + $0x8] sm:$0xff]
  %v2629 = vld [vmem:[%s8 + $0x10] sm:$0xff]
  %v2630 = vld [vmem:[%s8 + $0x18] sm:$0xff]
  %v2631 = vld [vmem:[%s8 + $0x20] sm:$0xff]
  %v2632 = vld [vmem:[%s8 + $0x28] sm:$0xff]
  %v2633 = vld [vmem:[%s8 + $0x30] sm:$0xff]
  %v2634 = vld [vmem:[%s8 + $0x38] sm:$0xff]
  %v2635 = vld [vmem:[%s9] sm:$0x1]
  %v2637 = vlaneseq
  %v2638 = vshrl.u32 %v2637, 7
  %v2639 = vsub.s32 0, %v2638
  %v2640 = vrot.slane %v2635, %v2639
  %2643 = vrot.lane.b32.xlu0 %v2480, 32
  %v2644 = vpop.permute.xlu0 %2643
  %v2645 = vsel %vm91, %v2644, 0
  %2647 = vmatprep.subr.mxu0 0.0
  %2648 = vmatpush1.msra.mxu0 %v2627
  %2649 = vmatprep.subr.mxu0 0.0
  %2650 = vmatpush1.msra.mxu0 %v2628
  %2651 = vmatprep.subr.mxu0 0.0
  %2652 = vmatpush1.msra.mxu0 %v2629
  %2653 = vmatprep.subr.mxu0 0.0
  %2654 = vmatpush1.msra.mxu0 %v2630
  %2655 = vmatprep.subr.mxu0 0.0
  %2656 = vmatpush1.msra.mxu0 0.0
  %2657 = vmatprep.subr.mxu0 0.0
  %2658 = vmatpush1.msra.mxu0 0.0
  %2659 = vmatprep.subr.mxu0 0.0
  %2660 = vmatpush1.msra.mxu0 0.0
  %2661 = vmatprep.subr.mxu0 0.0
  %2662 = vmatpush1.msra.mxu0 0.0
  %2663 = vmatprep.subr.mxu0 0.0
  %2664 = vmatpush1.msra.mxu0 0.0
  %2665 = vmatprep.subr.mxu0 0.0
  %2666 = vmatpush1.msra.mxu0 0.0
  %2667 = vmatprep.subr.mxu0 0.0
  %2668 = vmatpush1.msra.mxu0 0.0
  %2669 = vmatprep.subr.mxu0 0.0
  %2670 = vmatpush1.msra.mxu0 0.0
  %2671 = vmatprep.subr.mxu0 0.0
  %2672 = vmatpush1.msra.mxu0 0.0
  %2673 = vmatprep.subr.mxu0 0.0
  %2674 = vmatpush1.msra.mxu0 0.0
  %2675 = vmatprep.subr.mxu0 0.0
  %2676 = vmatpush1.msra.mxu0 0.0
  %2677 = vmatprep.subr.mxu0 0.0
  %2678 = vmatpush1.msra.mxu0 0.0
  %2679 = vmatprep.subr.mxu0 0.0
  %2680 = vmatpush1.msra.mxu0 0.0
  %2681 = vmatprep.subr.mxu0 0.0
  %2682 = vmatpush1.msra.mxu0 0.0
  %2683 = vmatprep.subr.mxu0 0.0
  %2684 = vmatpush1.msra.mxu0 0.0
  %2685 = vmatprep.subr.mxu0 0.0
  %2686 = vmatpush1.msra.mxu0 0.0
  %2687 = vmatprep.subr.mxu0 0.0
  %2688 = vmatpush1.msra.mxu0 0.0
  %2689 = vmatprep.subr.mxu0 0.0
  %2690 = vmatpush1.msra.mxu0 0.0
  %2691 = vmatprep.subr.mxu0 0.0
  %2692 = vmatpush1.msra.mxu0 0.0
  %2693 = vmatprep.subr.mxu0 0.0
  %2694 = vmatpush1.msra.mxu0 0.0
  %2695 = vmatprep.subr.mxu0 0.0
  %2696 = vmatpush1.msra.mxu0 0.0
  %2697 = vmatprep.subr.mxu0 0.0
  %2698 = vmatpush1.msra.mxu0 0.0
  %2699 = vmatprep.subr.mxu0 0.0
  %2700 = vmatpush1.msra.mxu0 0.0
  %2701 = vmatprep.subr.mxu0 0.0
  %2702 = vmatpush1.msra.mxu0 0.0
  %2703 = vmatprep.subr.mxu0 0.0
  %2704 = vmatpush1.msra.mxu0 0.0
  %2705 = vmatprep.subr.mxu0 0.0
  %2706 = vmatpush1.msra.mxu0 0.0
  %2707 = vmatprep.subr.mxu0 0.0
  %2708 = vmatpush1.msra.mxu0 0.0
  %2709 = vmatprep.subr.mxu0 0.0
  %2710 = vmatpush1.msra.mxu0 0.0
  %2711 = vmatprep.mubr.f32.mxu0 0.0
  %2712 = vmatmul.mubr.f32.gmra.mrb[0].mxu0 %v2645
  %v2713 = vpop.f32.mrb[0].mxu0
  %v2714 = vadd.f32 0.0, %v2713
  %v2715 = vpop.f32.mrb[0].mxu0
  %2716 = vdwg.mxu0
  %v2717 = vadd.f32 %v2640, %v2714
  %2719 = vrot.lane.b32.xlu0 %v2626, 32
  %v2720 = vpop.permute.xlu0 %2719
  %v2721 = vsel %vm91, %v2720, 0
  %2723 = vmatprep.subr.mxu0 0.0
  %2724 = vmatpush1.msra.mxu0 %v2631
  %2725 = vmatprep.subr.mxu0 0.0
  %2726 = vmatpush1.msra.mxu0 %v2632
  %2727 = vmatprep.subr.mxu0 0.0
  %2728 = vmatpush1.msra.mxu0 %v2633
  %2729 = vmatprep.subr.mxu0 0.0
  %2730 = vmatpush1.msra.mxu0 %v2634
  %2731 = vmatprep.subr.mxu0 0.0
  %2732 = vmatpush1.msra.mxu0 0.0
  %2733 = vmatprep.subr.mxu0 0.0
  %2734 = vmatpush1.msra.mxu0 0.0
  %2735 = vmatprep.subr.mxu0 0.0
  %2736 = vmatpush1.msra.mxu0 0.0
  %2737 = vmatprep.subr.mxu0 0.0
  %2738 = vmatpush1.msra.mxu0 0.0
  %2739 = vmatprep.subr.mxu0 0.0
  %2740 = vmatpush1.msra.mxu0 0.0
  %2741 = vmatprep.subr.mxu0 0.0
  %2742 = vmatpush1.msra.mxu0 0.0
  %2743 = vmatprep.subr.mxu0 0.0
  %2744 = vmatpush1.msra.mxu0 0.0
  %2745 = vmatprep.subr.mxu0 0.0
  %2746 = vmatpush1.msra.mxu0 0.0
  %2747 = vmatprep.subr.mxu0 0.0
  %2748 = vmatpush1.msra.mxu0 0.0
  %2749 = vmatprep.subr.mxu0 0.0
  %2750 = vmatpush1.msra.mxu0 0.0
  %2751 = vmatprep.subr.mxu0 0.0
  %2752 = vmatpush1.msra.mxu0 0.0
  %2753 = vmatprep.subr.mxu0 0.0
  %2754 = vmatpush1.msra.mxu0 0.0
  %2755 = vmatprep.subr.mxu0 0.0
  %2756 = vmatpush1.msra.mxu0 0.0
  %2757 = vmatprep.subr.mxu0 0.0
  %2758 = vmatpush1.msra.mxu0 0.0
  %2759 = vmatprep.subr.mxu0 0.0
  %2760 = vmatpush1.msra.mxu0 0.0
  %2761 = vmatprep.subr.mxu0 0.0
  %2762 = vmatpush1.msra.mxu0 0.0
  %2763 = vmatprep.subr.mxu0 0.0
  %2764 = vmatpush1.msra.mxu0 0.0
  %2765 = vmatprep.subr.mxu0 0.0
  %2766 = vmatpush1.msra.mxu0 0.0
  %2767 = vmatprep.subr.mxu0 0.0
  %2768 = vmatpush1.msra.mxu0 0.0
  %2769 = vmatprep.subr.mxu0 0.0
  %2770 = vmatpush1.msra.mxu0 0.0
  %2771 = vmatprep.subr.mxu0 0.0
  %2772 = vmatpush1.msra.mxu0 0.0
  %2773 = vmatprep.subr.mxu0 0.0
  %2774 = vmatpush1.msra.mxu0 0.0
  %2775 = vmatprep.subr.mxu0 0.0
  %2776 = vmatpush1.msra.mxu0 0.0
  %2777 = vmatprep.subr.mxu0 0.0
  %2778 = vmatpush1.msra.mxu0 0.0
  %2779 = vmatprep.subr.mxu0 0.0
  %2780 = vmatpush1.msra.mxu0 0.0
  %2781 = vmatprep.subr.mxu0 0.0
  %2782 = vmatpush1.msra.mxu0 0.0
  %2783 = vmatprep.subr.mxu0 0.0
  %2784 = vmatpush1.msra.mxu0 0.0
  %2785 = vmatprep.subr.mxu0 0.0
  %2786 = vmatpush1.msra.mxu0 0.0
  %2787 = vmatprep.mubr.f32.mxu0 0.0
  %2788 = vmatmul.mubr.f32.gmra.mrb[0].mxu0 %v2721
  %v2789 = vpop.f32.mrb[0].mxu0
  %v2790 = vadd.f32 0.0, %v2789
  %v2791 = vpop.f32.mrb[0].mxu0
  %2792 = vdwg.mxu0
  %v2793 = vadd.f32 %v2717, %v2790
  %v2794 = vld [vmem:[%s7] sm:$0xff]
  %v2795 = vld [vmem:[%s10] sm:$0xff]
  %v2796 = vld [vmem:[%s10 + $0x8] sm:$0xff]
  %v2797 = vld [vmem:[%s10 + $0x10] sm:$0xff]
  %v2798 = vld [vmem:[%s10 + $0x18] sm:$0xff]
  %v2799 = vld [vmem:[%s11] sm:$0xf]
  %v2800 = vld [vmem:[%s11 + $0x4] sm:$0xf]
  %v2801 = vld [vmem:[%s11 + $0x8] sm:$0xf]
  %v2802 = vld [vmem:[%s11 + $0xc] sm:$0xf]
  %v2803 = vld [vmem:[%s12] sm:$0x1]
  %v2805 = vlaneseq
  %v2806 = vshrl.u32 %v2805, 7
  %v2807 = vsub.s32 0, %v2806
  %v2808 = vrot.slane %v2803, %v2807
  %v2814 = vunpack.c.l.b16 %v2795
  %v2815 = vunpack.c.h.b16 %v2795
  %v2816 = vunpack.c.l.b16 %v2796
  %v2817 = vunpack.c.h.b16 %v2796
  %v2818 = vunpack.c.l.b16 %v2797
  %v2819 = vunpack.c.h.b16 %v2797
  %v2820 = vunpack.c.l.b16 %v2798
  %v2821 = vunpack.c.h.b16 %v2798
  %v2822 = vpack.c.b16 %v2816, %v2814
  %v2823 = vpack.c.b16 %v2817, %v2815
  %v2824 = vpack.c.b16 %v2820, %v2818
  %v2825 = vpack.c.b16 %v2821, %v2819
  %2830 = vmatprep.subr.bf16.mxu0 %v2823
  %2831 = vmatpush1.bf16.msra.mxu0 %v2822
  %2832 = vmatprep.subr.bf16.mxu0 %v2825
  %2833 = vmatpush1.bf16.msra.mxu0 %v2824
  %2834 = vmatprep.subr.bf16.mxu0 0
  %2835 = vmatpush1.bf16.msra.mxu0 0
  %2836 = vmatprep.subr.bf16.mxu0 0
  %2837 = vmatpush1.bf16.msra.mxu0 0
  %2838 = vmatprep.subr.bf16.mxu0 0
  %2839 = vmatpush1.bf16.msra.mxu0 0
  %2840 = vmatprep.subr.bf16.mxu0 0
  %2841 = vmatpush1.bf16.msra.mxu0 0
  %2842 = vmatprep.subr.bf16.mxu0 0
  %2843 = vmatpush1.bf16.msra.mxu0 0
  %2844 = vmatprep.subr.bf16.mxu0 0
  %2845 = vmatpush1.bf16.msra.mxu0 0
  %2846 = vmatprep.subr.bf16.mxu0 0
  %2847 = vmatpush1.bf16.msra.mxu0 0
  %2848 = vmatprep.subr.bf16.mxu0 0
  %2849 = vmatpush1.bf16.msra.mxu0 0
  %2850 = vmatprep.subr.bf16.mxu0 0
  %2851 = vmatpush1.bf16.msra.mxu0 0
  %2852 = vmatprep.subr.bf16.mxu0 0
  %2853 = vmatpush1.bf16.msra.mxu0 0
  %2854 = vmatprep.subr.bf16.mxu0 0
  %2855 = vmatpush1.bf16.msra.mxu0 0
  %2856 = vmatprep.subr.bf16.mxu0 0
  %2857 = vmatpush1.bf16.msra.mxu0 0
  %2858 = vmatprep.subr.bf16.mxu0 0
  %2859 = vmatpush1.bf16.msra.mxu0 0
  %2860 = vmatprep.subr.bf16.mxu0 0
  %2861 = vmatpush1.bf16.msra.mxu0 0
  %2862 = vmatprep.mubr.bf16.mxu0 0
  %2863 = vmatmul.mubr.bf16.gmra.mrb[0].mxu0 %v93
  %v2864 = vpop.f32.mrb[0].mxu0
  %v2865 = vadd.f32 0.0, %v2864
  %v2866 = vpop.f32.mrb[0].mxu0
  %v2867 = vpop.f32.mrb[0].mxu0
  %v2868 = vpop.f32.mrb[0].mxu0
  %2869 = vdwg.mxu0
  %v2870 = vld [vmem:[%s6] sm:$0x1]
  %v2871 = vld [vmem:[%s6 + $0x8] sm:$0x1]
  %v2872 = vld [vmem:[%s6 + $0x10] sm:$0x1]
  %v2873 = vld [vmem:[%s6 + $0x18] sm:$0x1]
  %v2874 = vld [vmem:[%s6 + $0x20] sm:$0x1]
  %v2875 = vld [vmem:[%s6 + $0x28] sm:$0x1]
  %v2876 = vld [vmem:[%s6 + $0x30] sm:$0x1]
  %v2877 = vld [vmem:[%s6 + $0x38] sm:$0x1]
  %v2886 = vrot.slane %v2871, 7
  %v2887 = vsel %vm152, %v2886, %v2870
  %v2888 = vrot.slane %v2872, 6
  %v2889 = vsel %vm155, %v2888, %v2887
  %v2890 = vrot.slane %v2873, 5
  %v2891 = vsel %vm158, %v2890, %v2889
  %v2892 = vrot.slane %v2874, 4
  %v2893 = vsel %vm161, %v2892, %v2891
  %v2894 = vrot.slane %v2875, 3
  %v2895 = vsel %vm164, %v2894, %v2893
  %v2896 = vrot.slane %v2876, 2
  %v2897 = vsel %vm167, %v2896, %v2895
  %v2898 = vrot.slane %v2877, 1
  %v2899 = vsel %vm170, %v2898, %v2897
  %v2900 = vsel %vm172, %v2899, 0
  %2902 = vmatprep.subr.mxu0 0.0
  %2903 = vmatpush1.msra.mxu0 %v2794
  %2904 = vmatprep.subr.mxu0 0.0
  %2905 = vmatpush1.msra.mxu0 0.0
  %2906 = vmatprep.subr.mxu0 0.0
  %2907 = vmatpush1.msra.mxu0 0.0
  %2908 = vmatprep.subr.mxu0 0.0
  %2909 = vmatpush1.msra.mxu0 0.0
  %2910 = vmatprep.subr.mxu0 0.0
  %2911 = vmatpush1.msra.mxu0 0.0
  %2912 = vmatprep.subr.mxu0 0.0
  %2913 = vmatpush1.msra.mxu0 0.0
  %2914 = vmatprep.subr.mxu0 0.0
  %2915 = vmatpush1.msra.mxu0 0.0
  %2916 = vmatprep.subr.mxu0 0.0
  %2917 = vmatpush1.msra.mxu0 0.0
  %2918 = vmatprep.subr.mxu0 0.0
  %2919 = vmatpush1.msra.mxu0 0.0
  %2920 = vmatprep.subr.mxu0 0.0
  %2921 = vmatpush1.msra.mxu0 0.0
  %2922 = vmatprep.subr.mxu0 0.0
  %2923 = vmatpush1.msra.mxu0 0.0
  %2924 = vmatprep.subr.mxu0 0.0
  %2925 = vmatpush1.msra.mxu0 0.0
  %2926 = vmatprep.subr.mxu0 0.0
  %2927 = vmatpush1.msra.mxu0 0.0
  %2928 = vmatprep.subr.mxu0 0.0
  %2929 = vmatpush1.msra.mxu0 0.0
  %2930 = vmatprep.subr.mxu0 0.0
  %2931 = vmatpush1.msra.mxu0 0.0
  %2932 = vmatprep.subr.mxu0 0.0
  %2933 = vmatpush1.msra.mxu0 0.0
  %2934 = vmatprep.subr.mxu0 0.0
  %2935 = vmatpush1.msra.mxu0 0.0
  %2936 = vmatprep.subr.mxu0 0.0
  %2937 = vmatpush1.msra.mxu0 0.0
  %2938 = vmatprep.subr.mxu0 0.0
  %2939 = vmatpush1.msra.mxu0 0.0
  %2940 = vmatprep.subr.mxu0 0.0
  %2941 = vmatpush1.msra.mxu0 0.0
  %2942 = vmatprep.subr.mxu0 0.0
  %2943 = vmatpush1.msra.mxu0 0.0
  %2944 = vmatprep.subr.mxu0 0.0
  %2945 = vmatpush1.msra.mxu0 0.0
  %2946 = vmatprep.subr.mxu0 0.0
  %2947 = vmatpush1.msra.mxu0 0.0
  %2948 = vmatprep.subr.mxu0 0.0
  %2949 = vmatpush1.msra.mxu0 0.0
  %2950 = vmatprep.subr.mxu0 0.0
  %2951 = vmatpush1.msra.mxu0 0.0
  %2952 = vmatprep.subr.mxu0 0.0
  %2953 = vmatpush1.msra.mxu0 0.0
  %2954 = vmatprep.subr.mxu0 0.0
  %2955 = vmatpush1.msra.mxu0 0.0
  %2956 = vmatprep.subr.mxu0 0.0
  %2957 = vmatpush1.msra.mxu0 0.0
  %2958 = vmatprep.subr.mxu0 0.0
  %2959 = vmatpush1.msra.mxu0 0.0
  %2960 = vmatprep.subr.mxu0 0.0
  %2961 = vmatpush1.msra.mxu0 0.0
  %2962 = vmatprep.subr.mxu0 0.0
  %2963 = vmatpush1.msra.mxu0 0.0
  %2964 = vmatprep.subr.mxu0 0.0
  %2965 = vmatpush1.msra.mxu0 0.0
  %2966 = vmatprep.mubr.f32.mxu0 0.0
  %2967 = vmatmul.mubr.f32.gmra.mrb[0].mxu0 %v2900
  %v2968 = vpop.f32.mrb[0].mxu0
  %v2969 = vadd.f32 %v2793, %v2968
  %v2970 = vpop.f32.mrb[0].mxu0
  %2971 = vdwg.mxu0
  %v2972 = vadd.f32 %v2969, %v2865
  %v2973 = vxor.u32 %v2972, 2147483648
  %v2974 = vmul.f32 %v2973, 1.442695
  %v2975 = vpow.pop %v2974
  %v2976 = vadd.f32 %v2975, 1.0
  %v2977 = vrcp.pop %v2976
  %v2978 = vmul.f32 1.0, %v2977
  %v2979 = vtanh.pop %v2972
  %v2980 = vmul.f32 %v2978, 0.0
  %2982 = vrot.lane.b32.xlu0 %v2979, 64
  %v2983 = vpop.permute.xlu0 %2982
  %v2985 = vmul.f32 %v2978, %v2983
  %2987 = vrot.lane.b32.xlu0 %v2985, 32
  %v2988 = vpop.permute.xlu0 %2987
  %v2990 = vadd.f32 %v2980, %v2988
  %v2991 = vtanh.pop %v2990
  %2993 = vrot.lane.b32.xlu0 %v2991, 64
  %v2994 = vpop.permute.xlu0 %2993
  %v2996 = vmul.f32 %v2978, %v2994
  %v2997 = vpack.c.bf16 %v2996, %v2996
  %2999 = vrot.lane.b32.xlu0 %v2997, 32
  %v3000 = vpop.permute.xlu0 %2999
  %v3002 = vsel %vm91, %v3000, 0
  %3004 = vmatprep.subr.bf16.mxu0 %v2823
  %3005 = vmatpush1.bf16.msra.mxu0 %v2822
  %3006 = vmatprep.subr.bf16.mxu0 %v2825
  %3007 = vmatpush1.bf16.msra.mxu0 %v2824
  %3008 = vmatprep.subr.bf16.mxu0 0
  %3009 = vmatpush1.bf16.msra.mxu0 0
  %3010 = vmatprep.subr.bf16.mxu0 0
  %3011 = vmatpush1.bf16.msra.mxu0 0
  %3012 = vmatprep.subr.bf16.mxu0 0
  %3013 = vmatpush1.bf16.msra.mxu0 0
  %3014 = vmatprep.subr.bf16.mxu0 0
  %3015 = vmatpush1.bf16.msra.mxu0 0
  %3016 = vmatprep.subr.bf16.mxu0 0
  %3017 = vmatpush1.bf16.msra.mxu0 0
  %3018 = vmatprep.subr.bf16.mxu0 0
  %3019 = vmatpush1.bf16.msra.mxu0 0
  %3020 = vmatprep.subr.bf16.mxu0 0
  %3021 = vmatpush1.bf16.msra.mxu0 0
  %3022 = vmatprep.subr.bf16.mxu0 0
  %3023 = vmatpush1.bf16.msra.mxu0 0
  %3024 = vmatprep.subr.bf16.mxu0 0
  %3025 = vmatpush1.bf16.msra.mxu0 0
  %3026 = vmatprep.subr.bf16.mxu0 0
  %3027 = vmatpush1.bf16.msra.mxu0 0
  %3028 = vmatprep.subr.bf16.mxu0 0
  %3029 = vmatpush1.bf16.msra.mxu0 0
  %3030 = vmatprep.subr.bf16.mxu0 0
  %3031 = vmatpush1.bf16.msra.mxu0 0
  %3032 = vmatprep.subr.bf16.mxu0 0
  %3033 = vmatpush1.bf16.msra.mxu0 0
  %3034 = vmatprep.subr.bf16.mxu0 0
  %3035 = vmatpush1.bf16.msra.mxu0 0
  %3036 = vmatprep.mubr.bf16.mxu0 0
  %3037 = vmatmul.mubr.bf16.gmra.mrb[0].mxu0 %v3002
  %v3038 = vpop.f32.mrb[0].mxu0
  %v3039 = vadd.f32 0.0, %v3038
  %v3040 = vpop.f32.mrb[0].mxu0
  %v3041 = vadd.f32 0.0, %v3040
  %v3042 = vpop.f32.mrb[0].mxu0
  %v3043 = vpop.f32.mrb[0].mxu0
  %3044 = vdwg.mxu0
  %v3049 = vunpack.c.l.b16 %v2799
  %v3050 = vunpack.c.l.b16 %v2800
  %v3051 = vunpack.c.l.b16 %v2801
  %v3052 = vunpack.c.l.b16 %v2802
  %v3053 = vpack.c.b16 %v3050, %v3049
  %v3054 = vpack.c.b16 %v3052, %v3051
  %3057 = vmatprep.subr.bf16.mxu0 0
  %3058 = vmatpush1.bf16.msra.mxu0 %v3053
  %3059 = vmatprep.subr.bf16.mxu0 0
  %3060 = vmatpush1.bf16.msra.mxu0 %v3054
  %3061 = vmatprep.subr.bf16.mxu0 0
  %3062 = vmatpush1.bf16.msra.mxu0 0
  %3063 = vmatprep.subr.bf16.mxu0 0
  %3064 = vmatpush1.bf16.msra.mxu0 0
  %3065 = vmatprep.subr.bf16.mxu0 0
  %3066 = vmatpush1.bf16.msra.mxu0 0
  %3067 = vmatprep.subr.bf16.mxu0 0
  %3068 = vmatpush1.bf16.msra.mxu0 0
  %3069 = vmatprep.subr.bf16.mxu0 0
  %3070 = vmatpush1.bf16.msra.mxu0 0
  %3071 = vmatprep.subr.bf16.mxu0 0
  %3072 = vmatpush1.bf16.msra.mxu0 0
  %3073 = vmatprep.subr.bf16.mxu0 0
  %3074 = vmatpush1.bf16.msra.mxu0 0
  %3075 = vmatprep.subr.bf16.mxu0 0
  %3076 = vmatpush1.bf16.msra.mxu0 0
  %3077 = vmatprep.subr.bf16.mxu0 0
  %3078 = vmatpush1.bf16.msra.mxu0 0
  %3079 = vmatprep.subr.bf16.mxu0 0
  %3080 = vmatpush1.bf16.msra.mxu0 0
  %3081 = vmatprep.subr.bf16.mxu0 0
  %3082 = vmatpush1.bf16.msra.mxu0 0
  %3083 = vmatprep.subr.bf16.mxu0 0
  %3084 = vmatpush1.bf16.msra.mxu0 0
  %3085 = vmatprep.subr.bf16.mxu0 0
  %3086 = vmatpush1.bf16.msra.mxu0 0
  %3087 = vmatprep.subr.bf16.mxu0 0
  %3088 = vmatpush1.bf16.msra.mxu0 0
  %3089 = vmatprep.mubr.bf16.mxu0 0
  %3090 = vmatmul.mubr.bf16.gmra.mrb[0].mxu0 %v93
  %v3091 = vpop.f32.mrb[0].mxu0
  %v3092 = vadd.f32 0.0, %v3091
  %v3093 = vpop.f32.mrb[0].mxu0
  %v3094 = vpop.f32.mrb[0].mxu0
  %v3095 = vpop.f32.mrb[0].mxu0
  %3096 = vdwg.mxu0
  %v3097 = vld [vmem:[%s6 + $0x1] sm:$0x1]
  %v3098 = vld [vmem:[%s6 + $0x9] sm:$0x1]
  %v3099 = vld [vmem:[%s6 + $0x11] sm:$0x1]
  %v3100 = vld [vmem:[%s6 + $0x19] sm:$0x1]
  %v3101 = vld [vmem:[%s6 + $0x21] sm:$0x1]
  %v3102 = vld [vmem:[%s6 + $0x29] sm:$0x1]
  %v3103 = vld [vmem:[%s6 + $0x31] sm:$0x1]
  %v3104 = vld [vmem:[%s6 + $0x39] sm:$0x1]
  %v3113 = vrot.slane %v3098, 7
  %v3114 = vsel %vm152, %v3113, %v3097
  %v3115 = vrot.slane %v3099, 6
  %v3116 = vsel %vm155, %v3115, %v3114
  %v3117 = vrot.slane %v3100, 5
  %v3118 = vsel %vm158, %v3117, %v3116
  %v3119 = vrot.slane %v3101, 4
  %v3120 = vsel %vm161, %v3119, %v3118
  %v3121 = vrot.slane %v3102, 3
  %v3122 = vsel %vm164, %v3121, %v3120
  %v3123 = vrot.slane %v3103, 2
  %v3124 = vsel %vm167, %v3123, %v3122
  %v3125 = vrot.slane %v3104, 1
  %v3126 = vsel %vm170, %v3125, %v3124
  %v3127 = vsel %vm172, %v3126, 0
  %3129 = vmatprep.subr.mxu0 0.0
  %3130 = vmatpush1.msra.mxu0 %v2794
  %3131 = vmatprep.subr.mxu0 0.0
  %3132 = vmatpush1.msra.mxu0 0.0
  %3133 = vmatprep.subr.mxu0 0.0
  %3134 = vmatpush1.msra.mxu0 0.0
  %3135 = vmatprep.subr.mxu0 0.0
  %3136 = vmatpush1.msra.mxu0 0.0
  %3137 = vmatprep.subr.mxu0 0.0
  %3138 = vmatpush1.msra.mxu0 0.0
  %3139 = vmatprep.subr.mxu0 0.0
  %3140 = vmatpush1.msra.mxu0 0.0
  %3141 = vmatprep.subr.mxu0 0.0
  %3142 = vmatpush1.msra.mxu0 0.0
  %3143 = vmatprep.subr.mxu0 0.0
  %3144 = vmatpush1.msra.mxu0 0.0
  %3145 = vmatprep.subr.mxu0 0.0
  %3146 = vmatpush1.msra.mxu0 0.0
  %3147 = vmatprep.subr.mxu0 0.0
  %3148 = vmatpush1.msra.mxu0 0.0
  %3149 = vmatprep.subr.mxu0 0.0
  %3150 = vmatpush1.msra.mxu0 0.0
  %3151 = vmatprep.subr.mxu0 0.0
  %3152 = vmatpush1.msra.mxu0 0.0
  %3153 = vmatprep.subr.mxu0 0.0
  %3154 = vmatpush1.msra.mxu0 0.0
  %3155 = vmatprep.subr.mxu0 0.0
  %3156 = vmatpush1.msra.mxu0 0.0
  %3157 = vmatprep.subr.mxu0 0.0
  %3158 = vmatpush1.msra.mxu0 0.0
  %3159 = vmatprep.subr.mxu0 0.0
  %3160 = vmatpush1.msra.mxu0 0.0
  %3161 = vmatprep.subr.mxu0 0.0
  %3162 = vmatpush1.msra.mxu0 0.0
  %3163 = vmatprep.subr.mxu0 0.0
  %3164 = vmatpush1.msra.mxu0 0.0
  %3165 = vmatprep.subr.mxu0 0.0
  %3166 = vmatpush1.msra.mxu0 0.0
  %3167 = vmatprep.subr.mxu0 0.0
  %3168 = vmatpush1.msra.mxu0 0.0
  %3169 = vmatprep.subr.mxu0 0.0
  %3170 = vmatpush1.msra.mxu0 0.0
  %3171 = vmatprep.subr.mxu0 0.0
  %3172 = vmatpush1.msra.mxu0 0.0
  %3173 = vmatprep.subr.mxu0 0.0
  %3174 = vmatpush1.msra.mxu0 0.0
  %3175 = vmatprep.subr.mxu0 0.0
  %3176 = vmatpush1.msra.mxu0 0.0
  %3177 = vmatprep.subr.mxu0 0.0
  %3178 = vmatpush1.msra.mxu0 0.0
  %3179 = vmatprep.subr.mxu0 0.0
  %3180 = vmatpush1.msra.mxu0 0.0
  %3181 = vmatprep.subr.mxu0 0.0
  %3182 = vmatpush1.msra.mxu0 0.0
  %3183 = vmatprep.subr.mxu0 0.0
  %3184 = vmatpush1.msra.mxu0 0.0
  %3185 = vmatprep.subr.mxu0 0.0
  %3186 = vmatpush1.msra.mxu0 0.0
  %3187 = vmatprep.subr.mxu0 0.0
  %3188 = vmatpush1.msra.mxu0 0.0
  %3189 = vmatprep.subr.mxu0 0.0
  %3190 = vmatpush1.msra.mxu0 0.0
  %3191 = vmatprep.subr.mxu0 0.0
  %3192 = vmatpush1.msra.mxu0 0.0
  %3193 = vmatprep.mubr.f32.mxu0 0.0
  %3194 = vmatmul.mubr.f32.gmra.mrb[0].mxu0 %v3127
  %v3195 = vpop.f32.mrb[0].mxu0
  %v3196 = vadd.f32 %v2793, %v3195
  %v3197 = vpop.f32.mrb[0].mxu0
  %3198 = vdwg.mxu0
  %v3199 = vadd.f32 %v3196, %v3039
  %v3200 = vxor.u32 %v3199, 2147483648
  %v3201 = vmul.f32 %v3200, 1.442695
  %v3202 = vpow.pop %v3201
  %v3203 = vadd.f32 %v3202, 1.0
  %v3204 = vrcp.pop %v3203
  %v3205 = vmul.f32 1.0, %v3204
  %v3206 = vtanh.pop %v3199
  %v3207 = vmul.f32 %v3205, %v2990
  %3209 = vrot.lane.b32.xlu0 %v3206, 64
  %v3210 = vpop.permute.xlu0 %3209
  %v3212 = vmul.f32 %v3205, %v3210
  %3214 = vrot.lane.b32.xlu0 %v3212, 32
  %v3215 = vpop.permute.xlu0 %3214
  %v3217 = vadd.f32 %v3207, %v3215
  %v3218 = vtanh.pop %v3217
  %3220 = vrot.lane.b32.xlu0 %v3218, 64
  %v3221 = vpop.permute.xlu0 %3220
  %v3223 = vmul.f32 %v3205, %v3221
  %v3224 = vadd.f32 %v2808, %v3041
  %v3225 = vadd.f32 %v3224, %v3092
  %v3226 = vxor.u32 %v3225, 2147483648
  %v3227 = vmul.f32 %v3226, 1.442695
  %v3228 = vpow.pop %v3227
  %v3229 = vadd.f32 %v3228, 1.0
  %v3230 = vrcp.pop %v3229
  %v3231 = vmul.f32 1.0, %v3230
  %v3232 = vtanh.pop %v3225
  %v3233 = vmul.f32 %v3231, 0.0
  %3235 = vrot.lane.b32.xlu0 %v3232, 64
  %v3236 = vpop.permute.xlu0 %3235
  %v3238 = vmul.f32 %v3231, %v3236
  %3240 = vrot.lane.b32.xlu0 %v3238, 32
  %v3241 = vpop.permute.xlu0 %3240
  %v3243 = vadd.f32 %v3233, %v3241
  %v3244 = vtanh.pop %v3243
  %3246 = vrot.lane.b32.xlu0 %v3244, 64
  %v3247 = vpop.permute.xlu0 %3246
  %v3249 = vmul.f32 %v3231, %v3247
  %v3251 = vcombine.high %v3249, %v3249
  %v3253 = vunpack.c.l.s4 1966171168
  %v3254 = vunpack.c.0.s8 %v3253
  %v3255 = vlaneseq
  %v3256 = vshrl.u32 %v3255, 7
  %v3257 = vsub.s32 %v3254, %v3256
  %v3258 = vrot.slane %v3249, %v3257
  %v3260 = vunpack.c.l.s4 1966171168
  %v3261 = vunpack.c.0.s8 %v3260
  %v3262 = vlaneseq
  %v3263 = vshrl.u32 %v3262, 7
  %v3264 = vsub.s32 %v3261, %v3263
  %v3265 = vrot.slane %v3251, %v3264
  %v3266 = vcombine.high %v3258, %v3258
  %v3267 = vcombine.high %v3265, %v3265
  %v3269 = vunpack.c.l.s4 1966171168
  %v3270 = vunpack.c.0.s8 %v3269
  %v3271 = vlaneseq
  %v3272 = vshrl.u32 %v3271, 7
  %v3273 = vsub.s32 %v3270, %v3272
  %v3274 = vrot.slane %v3258, %v3273
  %v3276 = vunpack.c.l.s4 1966171168
  %v3277 = vunpack.c.0.s8 %v3276
  %v3278 = vlaneseq
  %v3279 = vshrl.u32 %v3278, 7
  %v3280 = vsub.s32 %v3277, %v3279
  %v3281 = vrot.slane %v3265, %v3280
  %v3283 = vunpack.c.l.s4 1966171168
  %v3284 = vunpack.c.0.s8 %v3283
  %v3285 = vlaneseq
  %v3286 = vshrl.u32 %v3285, 7
  %v3287 = vsub.s32 %v3284, %v3286
  %v3288 = vrot.slane %v3266, %v3287
  %v3290 = vunpack.c.l.s4 1966171168
  %v3291 = vunpack.c.0.s8 %v3290
  %v3292 = vlaneseq
  %v3293 = vshrl.u32 %v3292, 7
  %v3294 = vsub.s32 %v3291, %v3293
  %v3295 = vrot.slane %v3267, %v3294
  %v3296 = vcombine.high %v3274, %v3274
  %v3297 = vcombine.high %v3281, %v3281
  %v3298 = vcombine.high %v3288, %v3288
  %v3299 = vcombine.high %v3295, %v3295
  %v3300 = vlaneseq
  %v3301 = vshrl.u32 %v3300, 7
  %v3302 = vsub.s32 0, %v3301
  %v3303 = vrot.slane %v3274, %v3302
  %v3304 = vlaneseq
  %v3305 = vshrl.u32 %v3304, 7
  %v3306 = vsub.s32 0, %v3305
  %v3307 = vrot.slane %v3288, %v3306
  %v3308 = vlaneseq
  %v3309 = vshrl.u32 %v3308, 7
  %v3310 = vsub.s32 0, %v3309
  %v3311 = vrot.slane %v3296, %v3310
  %v3312 = vlaneseq
  %v3313 = vshrl.u32 %v3312, 7
  %v3314 = vsub.s32 0, %v3313
  %v3315 = vrot.slane %v3298, %v3314
  %v3316 = vlaneseq
  %v3317 = vshrl.u32 %v3316, 7
  %v3318 = vsub.s32 0, %v3317
  %v3319 = vrot.slane %v3281, %v3318
  %v3320 = vlaneseq
  %v3321 = vshrl.u32 %v3320, 7
  %v3322 = vsub.s32 0, %v3321
  %v3323 = vrot.slane %v3295, %v3322
  %v3324 = vlaneseq
  %v3325 = vshrl.u32 %v3324, 7
  %v3326 = vsub.s32 0, %v3325
  %v3327 = vrot.slane %v3297, %v3326
  %v3328 = vlaneseq
  %v3329 = vshrl.u32 %v3328, 7
  %v3330 = vsub.s32 0, %v3329
  %v3331 = vrot.slane %v3299, %v3330
  %3332 = vrot.lane.b32.xlu0 %v3303, 32
  %v3333 = vpop.permute.xlu0 %3332
  %3334 = vrot.lane.b32.xlu0 %v3307, 32
  %v3335 = vpop.permute.xlu0 %3334
  %3336 = vrot.lane.b32.xlu0 %v3311, 32
  %v3337 = vpop.permute.xlu0 %3336
  %3338 = vrot.lane.b32.xlu0 %v3315, 32
  %v3339 = vpop.permute.xlu0 %3338
  %3340 = vrot.lane.b32.xlu0 %v3319, 32
  %v3341 = vpop.permute.xlu0 %3340
  %3342 = vrot.lane.b32.xlu0 %v3323, 32
  %v3343 = vpop.permute.xlu0 %3342
  %3344 = vrot.lane.b32.xlu0 %v3327, 32
  %v3345 = vpop.permute.xlu0 %3344
  %3346 = vrot.lane.b32.xlu0 %v3331, 32
  %v3347 = vpop.permute.xlu0 %3346
  %vm3356 = vcmask 253952
  %3357 = vst.msk [vmem:[%s13] sm:$0x1] %vm3356, %v3333
  %3358 = vst.msk [vmem:[%s13 + $0x8] sm:$0x1] %vm3356, %v3335
  %3359 = vst.msk [vmem:[%s13 + $0x10] sm:$0x1] %vm3356, %v3337
  %3360 = vst.msk [vmem:[%s13 + $0x18] sm:$0x1] %vm3356, %v3339
  %3361 = vst.msk [vmem:[%s13 + $0x20] sm:$0x1] %vm3356, %v3341
  %3362 = vst.msk [vmem:[%s13 + $0x28] sm:$0x1] %vm3356, %v3343
  %3363 = vst.msk [vmem:[%s13 + $0x30] sm:$0x1] %vm3356, %v3345
  %3364 = vst.msk [vmem:[%s13 + $0x38] sm:$0x1] %vm3356, %v3347
  %v3365 = vpack.c.bf16 %v3223, %v3223
  %3367 = vrot.lane.b32.xlu0 %v3365, 32
  %v3368 = vpop.permute.xlu0 %3367
  %v3370 = vsel %vm91, %v3368, 0
  %3372 = vmatprep.subr.bf16.mxu0 %v2823
  %3373 = vmatpush1.bf16.msra.mxu0 %v2822
  %3374 = vmatprep.subr.bf16.mxu0 %v2825
  %3375 = vmatpush1.bf16.msra.mxu0 %v2824
  %3376 = vmatprep.subr.bf16.mxu0 0
  %3377 = vmatpush1.bf16.msra.mxu0 0
  %3378 = vmatprep.subr.bf16.mxu0 0
  %3379 = vmatpush1.bf16.msra.mxu0 0
  %3380 = vmatprep.subr.bf16.mxu0 0
  %3381 = vmatpush1.bf16.msra.mxu0 0
  %3382 = vmatprep.subr.bf16.mxu0 0
  %3383 = vmatpush1.bf16.msra.mxu0 0
  %3384 = vmatprep.subr.bf16.mxu0 0
  %3385 = vmatpush1.bf16.msra.mxu0 0
  %3386 = vmatprep.subr.bf16.mxu0 0
  %3387 = vmatpush1.bf16.msra.mxu0 0
  %3388 = vmatprep.subr.bf16.mxu0 0
  %3389 = vmatpush1.bf16.msra.mxu0 0
  %3390 = vmatprep.subr.bf16.mxu0 0
  %3391 = vmatpush1.bf16.msra.mxu0 0
  %3392 = vmatprep.subr.bf16.mxu0 0
  %3393 = vmatpush1.bf16.msra.mxu0 0
  %3394 = vmatprep.subr.bf16.mxu0 0
  %3395 = vmatpush1.bf16.msra.mxu0 0
  %3396 = vmatprep.subr.bf16.mxu0 0
  %3397 = vmatpush1.bf16.msra.mxu0 0
  %3398 = vmatprep.subr.bf16.mxu0 0
  %3399 = vmatpush1.bf16.msra.mxu0 0
  %3400 = vmatprep.subr.bf16.mxu0 0
  %3401 = vmatpush1.bf16.msra.mxu0 0
  %3402 = vmatprep.subr.bf16.mxu0 0
  %3403 = vmatpush1.bf16.msra.mxu0 0
  %3404 = vmatprep.mubr.bf16.mxu0 0
  %3405 = vmatmul.mubr.bf16.gmra.mrb[0].mxu0 %v3370
  %v3406 = vpop.f32.mrb[0].mxu0
  %v3407 = vadd.f32 0.0, %v3406
  %v3408 = vpop.f32.mrb[0].mxu0
  %v3409 = vadd.f32 0.0, %v3408
  %v3410 = vpop.f32.mrb[0].mxu0
  %v3411 = vpop.f32.mrb[0].mxu0
  %3412 = vdwg.mxu0
  %v3413 = vpack.c.bf16 %v3249, %v3249
  %3415 = vrot.lane.b32.xlu0 %v3413, 32
  %v3416 = vpop.permute.xlu0 %3415
  %v3418 = vsel %vm91, %v3416, 0
  %3420 = vmatprep.subr.bf16.mxu0 0
  %3421 = vmatpush1.bf16.msra.mxu0 %v3053
  %3422 = vmatprep.subr.bf16.mxu0 0
  %3423 = vmatpush1.bf16.msra.mxu0 %v3054
  %3424 = vmatprep.subr.bf16.mxu0 0
  %3425 = vmatpush1.bf16.msra.mxu0 0
  %3426 = vmatprep.subr.bf16.mxu0 0
  %3427 = vmatpush1.bf16.msra.mxu0 0
  %3428 = vmatprep.subr.bf16.mxu0 0
  %3429 = vmatpush1.bf16.msra.mxu0 0
  %3430 = vmatprep.subr.bf16.mxu0 0
  %3431 = vmatpush1.bf16.msra.mxu0 0
  %3432 = vmatprep.subr.bf16.mxu0 0
  %3433 = vmatpush1.bf16.msra.mxu0 0
  %3434 = vmatprep.subr.bf16.mxu0 0
  %3435 = vmatpush1.bf16.msra.mxu0 0
  %3436 = vmatprep.subr.bf16.mxu0 0
  %3437 = vmatpush1.bf16.msra.mxu0 0
  %3438 = vmatprep.subr.bf16.mxu0 0
  %3439 = vmatpush1.bf16.msra.mxu0 0
  %3440 = vmatprep.subr.bf16.mxu0 0
  %3441 = vmatpush1.bf16.msra.mxu0 0
  %3442 = vmatprep.subr.bf16.mxu0 0
  %3443 = vmatpush1.bf16.msra.mxu0 0
  %3444 = vmatprep.subr.bf16.mxu0 0
  %3445 = vmatpush1.bf16.msra.mxu0 0
  %3446 = vmatprep.subr.bf16.mxu0 0
  %3447 = vmatpush1.bf16.msra.mxu0 0
  %3448 = vmatprep.subr.bf16.mxu0 0
  %3449 = vmatpush1.bf16.msra.mxu0 0
  %3450 = vmatprep.subr.bf16.mxu0 0
  %3451 = vmatpush1.bf16.msra.mxu0 0
  %3452 = vmatprep.mubr.bf16.mxu0 0
  %3453 = vmatmul.mubr.bf16.gmra.mrb[0].mxu0 %v3418
  %v3454 = vpop.f32.mrb[0].mxu0
  %v3455 = vadd.f32 0.0, %v3454
  %v3456 = vpop.f32.mrb[0].mxu0
  %v3457 = vpop.f32.mrb[0].mxu0
  %v3458 = vpop.f32.mrb[0].mxu0
  %3459 = vdwg.mxu0
  %v3460 = vld [vmem:[%s6 + $0x2] sm:$0x1]
  %v3461 = vld [vmem:[%s6 + $0xa] sm:$0x1]
  %v3462 = vld [vmem:[%s6 + $0x12] sm:$0x1]
  %v3463 = vld [vmem:[%s6 + $0x1a] sm:$0x1]
  %v3464 = vld [vmem:[%s6 + $0x22] sm:$0x1]
  %v3465 = vld [vmem:[%s6 + $0x2a] sm:$0x1]
  %v3466 = vld [vmem:[%s6 + $0x32] sm:$0x1]
  %v3467 = vld [vmem:[%s6 + $0x3a] sm:$0x1]
  %v3476 = vrot.slane %v3461, 7
  %v3477 = vsel %vm152, %v3476, %v3460
  %v3478 = vrot.slane %v3462, 6
  %v3479 = vsel %vm155, %v3478, %v3477
  %v3480 = vrot.slane %v3463, 5
  %v3481 = vsel %vm158, %v3480, %v3479
  %v3482 = vrot.slane %v3464, 4
  %v3483 = vsel %vm161, %v3482, %v3481
  %v3484 = vrot.slane %v3465, 3
  %v3485 = vsel %vm164, %v3484, %v3483
  %v3486 = vrot.slane %v3466, 2
  %v3487 = vsel %vm167, %v3486, %v3485
  %v3488 = vrot.slane %v3467, 1
  %v3489 = vsel %vm170, %v3488, %v3487
  %v3490 = vsel %vm172, %v3489, 0
  %3492 = vmatprep.subr.mxu0 0.0
  %3493 = vmatpush1.msra.mxu0 %v2794
  %3494 = vmatprep.subr.mxu0 0.0
  %3495 = vmatpush1.msra.mxu0 0.0
  %3496 = vmatprep.subr.mxu0 0.0
  %3497 = vmatpush1.msra.mxu0 0.0
  %3498 = vmatprep.subr.mxu0 0.0
  %3499 = vmatpush1.msra.mxu0 0.0
  %3500 = vmatprep.subr.mxu0 0.0
  %3501 = vmatpush1.msra.mxu0 0.0
  %3502 = vmatprep.subr.mxu0 0.0
  %3503 = vmatpush1.msra.mxu0 0.0
  %3504 = vmatprep.subr.mxu0 0.0
  %3505 = vmatpush1.msra.mxu0 0.0
  %3506 = vmatprep.subr.mxu0 0.0
  %3507 = vmatpush1.msra.mxu0 0.0
  %3508 = vmatprep.subr.mxu0 0.0
  %3509 = vmatpush1.msra.mxu0 0.0
  %3510 = vmatprep.subr.mxu0 0.0
  %3511 = vmatpush1.msra.mxu0 0.0
  %3512 = vmatprep.subr.mxu0 0.0
  %3513 = vmatpush1.msra.mxu0 0.0
  %3514 = vmatprep.subr.mxu0 0.0
  %3515 = vmatpush1.msra.mxu0 0.0
  %3516 = vmatprep.subr.mxu0 0.0
  %3517 = vmatpush1.msra.mxu0 0.0
  %3518 = vmatprep.subr.mxu0 0.0
  %3519 = vmatpush1.msra.mxu0 0.0
  %3520 = vmatprep.subr.mxu0 0.0
  %3521 = vmatpush1.msra.mxu0 0.0
  %3522 = vmatprep.subr.mxu0 0.0
  %3523 = vmatpush1.msra.mxu0 0.0
  %3524 = vmatprep.subr.mxu0 0.0
  %3525 = vmatpush1.msra.mxu0 0.0
  %3526 = vmatprep.subr.mxu0 0.0
  %3527 = vmatpush1.msra.mxu0 0.0
  %3528 = vmatprep.subr.mxu0 0.0
  %3529 = vmatpush1.msra.mxu0 0.0
  %3530 = vmatprep.subr.mxu0 0.0
  %3531 = vmatpush1.msra.mxu0 0.0
  %3532 = vmatprep.subr.mxu0 0.0
  %3533 = vmatpush1.msra.mxu0 0.0
  %3534 = vmatprep.subr.mxu0 0.0
  %3535 = vmatpush1.msra.mxu0 0.0
  %3536 = vmatprep.subr.mxu0 0.0
  %3537 = vmatpush1.msra.mxu0 0.0
  %3538 = vmatprep.subr.mxu0 0.0
  %3539 = vmatpush1.msra.mxu0 0.0
  %3540 = vmatprep.subr.mxu0 0.0
  %3541 = vmatpush1.msra.mxu0 0.0
  %3542 = vmatprep.subr.mxu0 0.0
  %3543 = vmatpush1.msra.mxu0 0.0
  %3544 = vmatprep.subr.mxu0 0.0
  %3545 = vmatpush1.msra.mxu0 0.0
  %3546 = vmatprep.subr.mxu0 0.0
  %3547 = vmatpush1.msra.mxu0 0.0
  %3548 = vmatprep.subr.mxu0 0.0
  %3549 = vmatpush1.msra.mxu0 0.0
  %3550 = vmatprep.subr.mxu0 0.0
  %3551 = vmatpush1.msra.mxu0 0.0
  %3552 = vmatprep.subr.mxu0 0.0
  %3553 = vmatpush1.msra.mxu0 0.0
  %3554 = vmatprep.subr.mxu0 0.0
  %3555 = vmatpush1.msra.mxu0 0.0
  %3556 = vmatprep.mubr.f32.mxu0 0.0
  %3557 = vmatmul.mubr.f32.gmra.mrb[0].mxu0 %v3490
  %v3558 = vpop.f32.mrb[0].mxu0
  %v3559 = vadd.f32 %v2793, %v3558
  %v3560 = vpop.f32.mrb[0].mxu0
  %3561 = vdwg.mxu0
  %v3562 = vadd.f32 %v3559, %v3407
  %v3563 = vxor.u32 %v3562, 2147483648
  %v3564 = vmul.f32 %v3563, 1.442695
  %v3565 = vpow.pop %v3564
  %v3566 = vadd.f32 %v3565, 1.0
  %v3567 = vrcp.pop %v3566
  %v3568 = vmul.f32 1.0, %v3567
  %v3569 = vtanh.pop %v3562
  %v3570 = vmul.f32 %v3568, %v3217
  %3572 = vrot.lane.b32.xlu0 %v3569, 64
  %v3573 = vpop.permute.xlu0 %3572
  %v3575 = vmul.f32 %v3568, %v3573
  %3577 = vrot.lane.b32.xlu0 %v3575, 32
  %v3578 = vpop.permute.xlu0 %3577
  %v3580 = vadd.f32 %v3570, %v3578
  %v3581 = vtanh.pop %v3580
  %3583 = vrot.lane.b32.xlu0 %v3581, 64
  %v3584 = vpop.permute.xlu0 %3583
  %v3586 = vmul.f32 %v3568, %v3584
  %v3587 = vadd.f32 %v2808, %v3409
  %v3588 = vadd.f32 %v3587, %v3455
  %v3589 = vxor.u32 %v3588, 2147483648
  %v3590 = vmul.f32 %v3589, 1.442695
  %v3591 = vpow.pop %v3590
  %v3592 = vadd.f32 %v3591, 1.0
  %v3593 = vrcp.pop %v3592
  %v3594 = vmul.f32 1.0, %v3593
  %v3595 = vtanh.pop %v3588
  %v3596 = vmul.f32 %v3594, %v3243
  %3598 = vrot.lane.b32.xlu0 %v3595, 64
  %v3599 = vpop.permute.xlu0 %3598
  %v3601 = vmul.f32 %v3594, %v3599
  %3603 = vrot.lane.b32.xlu0 %v3601, 32
  %v3604 = vpop.permute.xlu0 %3603
  %v3606 = vadd.f32 %v3596, %v3604
  %v3607 = vtanh.pop %v3606
  %3609 = vrot.lane.b32.xlu0 %v3607, 64
  %v3610 = vpop.permute.xlu0 %3609
  %v3612 = vmul.f32 %v3594, %v3610
  %v3614 = vcombine.high %v3612, %v3612
  %v3616 = vunpack.c.l.s4 1966171168
  %v3617 = vunpack.c.0.s8 %v3616
  %v3618 = vlaneseq
  %v3619 = vshrl.u32 %v3618, 7
  %v3620 = vsub.s32 %v3617, %v3619
  %v3621 = vrot.slane %v3612, %v3620
  %v3623 = vunpack.c.l.s4 1966171168
  %v3624 = vunpack.c.0.s8 %v3623
  %v3625 = vlaneseq
  %v3626 = vshrl.u32 %v3625, 7
  %v3627 = vsub.s32 %v3624, %v3626
  %v3628 = vrot.slane %v3614, %v3627
  %v3629 = vcombine.high %v3621, %v3621
  %v3630 = vcombine.high %v3628, %v3628
  %v3632 = vunpack.c.l.s4 1966171168
  %v3633 = vunpack.c.0.s8 %v3632
  %v3634 = vlaneseq
  %v3635 = vshrl.u32 %v3634, 7
  %v3636 = vsub.s32 %v3633, %v3635
  %v3637 = vrot.slane %v3621, %v3636
  %v3639 = vunpack.c.l.s4 1966171168
  %v3640 = vunpack.c.0.s8 %v3639
  %v3641 = vlaneseq
  %v3642 = vshrl.u32 %v3641, 7
  %v3643 = vsub.s32 %v3640, %v3642
  %v3644 = vrot.slane %v3628, %v3643
  %v3646 = vunpack.c.l.s4 1966171168
  %v3647 = vunpack.c.0.s8 %v3646
  %v3648 = vlaneseq
  %v3649 = vshrl.u32 %v3648, 7
  %v3650 = vsub.s32 %v3647, %v3649
  %v3651 = vrot.slane %v3629, %v3650
  %v3653 = vunpack.c.l.s4 1966171168
  %v3654 = vunpack.c.0.s8 %v3653
  %v3655 = vlaneseq
  %v3656 = vshrl.u32 %v3655, 7
  %v3657 = vsub.s32 %v3654, %v3656
  %v3658 = vrot.slane %v3630, %v3657
  %v3659 = vcombine.high %v3637, %v3637
  %v3660 = vcombine.high %v3644, %v3644
  %v3661 = vcombine.high %v3651, %v3651
  %v3662 = vcombine.high %v3658, %v3658
  %v3663 = vlaneseq
  %v3664 = vshrl.u32 %v3663, 7
  %v3665 = vsub.s32 0, %v3664
  %v3666 = vrot.slane %v3637, %v3665
  %v3667 = vlaneseq
  %v3668 = vshrl.u32 %v3667, 7
  %v3669 = vsub.s32 0, %v3668
  %v3670 = vrot.slane %v3651, %v3669
  %v3671 = vlaneseq
  %v3672 = vshrl.u32 %v3671, 7
  %v3673 = vsub.s32 0, %v3672
  %v3674 = vrot.slane %v3659, %v3673
  %v3675 = vlaneseq
  %v3676 = vshrl.u32 %v3675, 7
  %v3677 = vsub.s32 0, %v3676
  %v3678 = vrot.slane %v3661, %v3677
  %v3679 = vlaneseq
  %v3680 = vshrl.u32 %v3679, 7
  %v3681 = vsub.s32 0, %v3680
  %v3682 = vrot.slane %v3644, %v3681
  %v3683 = vlaneseq
  %v3684 = vshrl.u32 %v3683, 7
  %v3685 = vsub.s32 0, %v3684
  %v3686 = vrot.slane %v3658, %v3685
  %v3687 = vlaneseq
  %v3688 = vshrl.u32 %v3687, 7
  %v3689 = vsub.s32 0, %v3688
  %v3690 = vrot.slane %v3660, %v3689
  %v3691 = vlaneseq
  %v3692 = vshrl.u32 %v3691, 7
  %v3693 = vsub.s32 0, %v3692
  %v3694 = vrot.slane %v3662, %v3693
  %3695 = vrot.lane.b32.xlu0 %v3666, 32
  %v3696 = vpop.permute.xlu0 %3695
  %3697 = vrot.lane.b32.xlu0 %v3670, 32
  %v3698 = vpop.permute.xlu0 %3697
  %3699 = vrot.lane.b32.xlu0 %v3674, 32
  %v3700 = vpop.permute.xlu0 %3699
  %3701 = vrot.lane.b32.xlu0 %v3678, 32
  %v3702 = vpop.permute.xlu0 %3701
  %3703 = vrot.lane.b32.xlu0 %v3682, 32
  %v3704 = vpop.permute.xlu0 %3703
  %3705 = vrot.lane.b32.xlu0 %v3686, 32
  %v3706 = vpop.permute.xlu0 %3705
  %3707 = vrot.lane.b32.xlu0 %v3690, 32
  %v3708 = vpop.permute.xlu0 %3707
  %3709 = vrot.lane.b32.xlu0 %v3694, 32
  %v3710 = vpop.permute.xlu0 %3709
  %3719 = vst.msk [vmem:[%s13 + $0x1] sm:$0x1] %vm3356, %v3696
  %3720 = vst.msk [vmem:[%s13 + $0x9] sm:$0x1] %vm3356, %v3698
  %3721 = vst.msk [vmem:[%s13 + $0x11] sm:$0x1] %vm3356, %v3700
  %3722 = vst.msk [vmem:[%s13 + $0x19] sm:$0x1] %vm3356, %v3702
  %3723 = vst.msk [vmem:[%s13 + $0x21] sm:$0x1] %vm3356, %v3704
  %3724 = vst.msk [vmem:[%s13 + $0x29] sm:$0x1] %vm3356, %v3706
  %3725 = vst.msk [vmem:[%s13 + $0x31] sm:$0x1] %vm3356, %v3708
  %3726 = vst.msk [vmem:[%s13 + $0x39] sm:$0x1] %vm3356, %v3710
  %v3727 = vpack.c.bf16 %v3586, %v3586
  %3729 = vrot.lane.b32.xlu0 %v3727, 32
  %v3730 = vpop.permute.xlu0 %3729
  %v3732 = vsel %vm91, %v3730, 0
  %3734 = vmatprep.subr.bf16.mxu0 %v2823
  %3735 = vmatpush1.bf16.msra.mxu0 %v2822
  %3736 = vmatprep.subr.bf16.mxu0 %v2825
  %3737 = vmatpush1.bf16.msra.mxu0 %v2824
  %3738 = vmatprep.subr.bf16.mxu0 0
  %3739 = vmatpush1.bf16.msra.mxu0 0
  %3740 = vmatprep.subr.bf16.mxu0 0
  %3741 = vmatpush1.bf16.msra.mxu0 0
  %3742 = vmatprep.subr.bf16.mxu0 0
  %3743 = vmatpush1.bf16.msra.mxu0 0
  %3744 = vmatprep.subr.bf16.mxu0 0
  %3745 = vmatpush1.bf16.msra.mxu0 0
  %3746 = vmatprep.subr.bf16.mxu0 0
  %3747 = vmatpush1.bf16.msra.mxu0 0
  %3748 = vmatprep.subr.bf16.mxu0 0
  %3749 = vmatpush1.bf16.msra.mxu0 0
  %3750 = vmatprep.subr.bf16.mxu0 0
  %3751 = vmatpush1.bf16.msra.mxu0 0
  %3752 = vmatprep.subr.bf16.mxu0 0
  %3753 = vmatpush1.bf16.msra.mxu0 0
  %3754 = vmatprep.subr.bf16.mxu0 0
  %3755 = vmatpush1.bf16.msra.mxu0 0
  %3756 = vmatprep.subr.bf16.mxu0 0
  %3757 = vmatpush1.bf16.msra.mxu0 0
  %3758 = vmatprep.subr.bf16.mxu0 0
  %3759 = vmatpush1.bf16.msra.mxu0 0
  %3760 = vmatprep.subr.bf16.mxu0 0
  %3761 = vmatpush1.bf16.msra.mxu0 0
  %3762 = vmatprep.subr.bf16.mxu0 0
  %3763 = vmatpush1.bf16.msra.mxu0 0
  %3764 = vmatprep.subr.bf16.mxu0 0
  %3765 = vmatpush1.bf16.msra.mxu0 0
  %3766 = vmatprep.mubr.bf16.mxu0 0
  %3767 = vmatmul.mubr.bf16.gmra.mrb[0].mxu0 %v3732
  %v3768 = vpop.f32.mrb[0].mxu0
  %v3769 = vadd.f32 0.0, %v3768
  %v3770 = vpop.f32.mrb[0].mxu0
  %v3771 = vadd.f32 0.0, %v3770
  %v3772 = vpop.f32.mrb[0].mxu0
  %v3773 = vpop.f32.mrb[0].mxu0
  %3774 = vdwg.mxu0
  %v3775 = vpack.c.bf16 %v3612, %v3612
  %3777 = vrot.lane.b32.xlu0 %v3775, 32
  %v3778 = vpop.permute.xlu0 %3777
  %v3780 = vsel %vm91, %v3778, 0
  %3782 = vmatprep.subr.bf16.mxu0 0
  %3783 = vmatpush1.bf16.msra.mxu0 %v3053
  %3784 = vmatprep.subr.bf16.mxu0 0
  %3785 = vmatpush1.bf16.msra.mxu0 %v3054
  %3786 = vmatprep.subr.bf16.mxu0 0
  %3787 = vmatpush1.bf16.msra.mxu0 0
  %3788 = vmatprep.subr.bf16.mxu0 0
  %3789 = vmatpush1.bf16.msra.mxu0 0
  %3790 = vmatprep.subr.bf16.mxu0 0
  %3791 = vmatpush1.bf16.msra.mxu0 0
  %3792 = vmatprep.subr.bf16.mxu0 0
  %3793 = vmatpush1.bf16.msra.mxu0 0
  %3794 = vmatprep.subr.bf16.mxu0 0
  %3795 = vmatpush1.bf16.msra.mxu0 0
  %3796 = vmatprep.subr.bf16.mxu0 0
  %3797 = vmatpush1.bf16.msra.mxu0 0
  %3798 = vmatprep.subr.bf16.mxu0 0
  %3799 = vmatpush1.bf16.msra.mxu0 0
  %3800 = vmatprep.subr.bf16.mxu0 0
  %3801 = vmatpush1.bf16.msra.mxu0 0
  %3802 = vmatprep.subr.bf16.mxu0 0
  %3803 = vmatpush1.bf16.msra.mxu0 0
  %3804 = vmatprep.subr.bf16.mxu0 0
  %3805 = vmatpush1.bf16.msra.mxu0 0
  %3806 = vmatprep.subr.bf16.mxu0 0
  %3807 = vmatpush1.bf16.msra.mxu0 0
  %3808 = vmatprep.subr.bf16.mxu0 0
  %3809 = vmatpush1.bf16.msra.mxu0 0
  %3810 = vmatprep.subr.bf16.mxu0 0
  %3811 = vmatpush1.bf16.msra.mxu0 0
  %3812 = vmatprep.subr.bf16.mxu0 0
  %3813 = vmatpush1.bf16.msra.mxu0 0
  %3814 = vmatprep.mubr.bf16.mxu0 0
  %3815 = vmatmul.mubr.bf16.gmra.mrb[0].mxu0 %v3780
  %v3816 = vpop.f32.mrb[0].mxu0
  %v3817 = vadd.f32 0.0, %v3816
  %v3818 = vpop.f32.mrb[0].mxu0
  %v3819 = vpop.f32.mrb[0].mxu0
  %v3820 = vpop.f32.mrb[0].mxu0
  %3821 = vdwg.mxu0
  %v3822 = vld [vmem:[%s6 + $0x3] sm:$0x1]
  %v3823 = vld [vmem:[%s6 + $0xb] sm:$0x1]
  %v3824 = vld [vmem:[%s6 + $0x13] sm:$0x1]
  %v3825 = vld [vmem:[%s6 + $0x1b] sm:$0x1]
  %v3826 = vld [vmem:[%s6 + $0x23] sm:$0x1]
  %v3827 = vld [vmem:[%s6 + $0x2b] sm:$0x1]
  %v3828 = vld [vmem:[%s6 + $0x33] sm:$0x1]
  %v3829 = vld [vmem:[%s6 + $0x3b] sm:$0x1]
  %v3838 = vrot.slane %v3823, 7
  %v3839 = vsel %vm152, %v3838, %v3822
  %v3840 = vrot.slane %v3824, 6
  %v3841 = vsel %vm155, %v3840, %v3839
  %v3842 = vrot.slane %v3825, 5
  %v3843 = vsel %vm158, %v3842, %v3841
  %v3844 = vrot.slane %v3826, 4
  %v3845 = vsel %vm161, %v3844, %v3843
  %v3846 = vrot.slane %v3827, 3
  %v3847 = vsel %vm164, %v3846, %v3845
  %v3848 = vrot.slane %v3828, 2
  %v3849 = vsel %vm167, %v3848, %v3847
  %v3850 = vrot.slane %v3829, 1
  %v3851 = vsel %vm170, %v3850, %v3849
  %v3852 = vsel %vm172, %v3851, 0
  %3854 = vmatprep.subr.mxu0 0.0
  %3855 = vmatpush1.msra.mxu0 %v2794
  %3856 = vmatprep.subr.mxu0 0.0
  %3857 = vmatpush1.msra.mxu0 0.0
  %3858 = vmatprep.subr.mxu0 0.0
  %3859 = vmatpush1.msra.mxu0 0.0
  %3860 = vmatprep.subr.mxu0 0.0
  %3861 = vmatpush1.msra.mxu0 0.0
  %3862 = vmatprep.subr.mxu0 0.0
  %3863 = vmatpush1.msra.mxu0 0.0
  %3864 = vmatprep.subr.mxu0 0.0
  %3865 = vmatpush1.msra.mxu0 0.0
  %3866 = vmatprep.subr.mxu0 0.0
  %3867 = vmatpush1.msra.mxu0 0.0
  %3868 = vmatprep.subr.mxu0 0.0
  %3869 = vmatpush1.msra.mxu0 0.0
  %3870 = vmatprep.subr.mxu0 0.0
  %3871 = vmatpush1.msra.mxu0 0.0
  %3872 = vmatprep.subr.mxu0 0.0
  %3873 = vmatpush1.msra.mxu0 0.0
  %3874 = vmatprep.subr.mxu0 0.0
  %3875 = vmatpush1.msra.mxu0 0.0
  %3876 = vmatprep.subr.mxu0 0.0
  %3877 = vmatpush1.msra.mxu0 0.0
  %3878 = vmatprep.subr.mxu0 0.0
  %3879 = vmatpush1.msra.mxu0 0.0
  %3880 = vmatprep.subr.mxu0 0.0
  %3881 = vmatpush1.msra.mxu0 0.0
  %3882 = vmatprep.subr.mxu0 0.0
  %3883 = vmatpush1.msra.mxu0 0.0
  %3884 = vmatprep.subr.mxu0 0.0
  %3885 = vmatpush1.msra.mxu0 0.0
  %3886 = vmatprep.subr.mxu0 0.0
  %3887 = vmatpush1.msra.mxu0 0.0
  %3888 = vmatprep.subr.mxu0 0.0
  %3889 = vmatpush1.msra.mxu0 0.0
  %3890 = vmatprep.subr.mxu0 0.0
  %3891 = vmatpush1.msra.mxu0 0.0
  %3892 = vmatprep.subr.mxu0 0.0
  %3893 = vmatpush1.msra.mxu0 0.0
  %3894 = vmatprep.subr.mxu0 0.0
  %3895 = vmatpush1.msra.mxu0 0.0
  %3896 = vmatprep.subr.mxu0 0.0
  %3897 = vmatpush1.msra.mxu0 0.0
  %3898 = vmatprep.subr.mxu0 0.0
  %3899 = vmatpush1.msra.mxu0 0.0
  %3900 = vmatprep.subr.mxu0 0.0
  %3901 = vmatpush1.msra.mxu0 0.0
  %3902 = vmatprep.subr.mxu0 0.0
  %3903 = vmatpush1.msra.mxu0 0.0
  %3904 = vmatprep.subr.mxu0 0.0
  %3905 = vmatpush1.msra.mxu0 0.0
  %3906 = vmatprep.subr.mxu0 0.0
  %3907 = vmatpush1.msra.mxu0 0.0
  %3908 = vmatprep.subr.mxu0 0.0
  %3909 = vmatpush1.msra.mxu0 0.0
  %3910 = vmatprep.subr.mxu0 0.0
  %3911 = vmatpush1.msra.mxu0 0.0
  %3912 = vmatprep.subr.mxu0 0.0
  %3913 = vmatpush1.msra.mxu0 0.0
  %3914 = vmatprep.subr.mxu0 0.0
  %3915 = vmatpush1.msra.mxu0 0.0
  %3916 = vmatprep.subr.mxu0 0.0
  %3917 = vmatpush1.msra.mxu0 0.0
  %3918 = vmatprep.mubr.f32.mxu0 0.0
  %3919 = vmatmul.mubr.f32.gmra.mrb[0].mxu0 %v3852
  %v3920 = vpop.f32.mrb[0].mxu0
  %v3921 = vadd.f32 %v2793, %v3920
  %v3922 = vpop.f32.mrb[0].mxu0
  %3923 = vdwg.mxu0
  %v3924 = vadd.f32 %v3921, %v3769
  %v3925 = vxor.u32 %v3924, 2147483648
  %v3926 = vmul.f32 %v3925, 1.442695
  %v3927 = vpow.pop %v3926
  %v3928 = vadd.f32 %v3927, 1.0
  %v3929 = vrcp.pop %v3928
  %v3930 = vmul.f32 1.0, %v3929
  %v3931 = vtanh.pop %v3924
  %v3932 = vmul.f32 %v3930, %v3580
  %3934 = vrot.lane.b32.xlu0 %v3931, 64
  %v3935 = vpop.permute.xlu0 %3934
  %v3937 = vmul.f32 %v3930, %v3935
  %3939 = vrot.lane.b32.xlu0 %v3937, 32
  %v3940 = vpop.permute.xlu0 %3939
  %v3942 = vadd.f32 %v3932, %v3940
  %v3943 = vtanh.pop %v3942
  %3945 = vrot.lane.b32.xlu0 %v3943, 64
  %v3946 = vpop.permute.xlu0 %3945
  %v3948 = vmul.f32 %v3930, %v3946
  %v3949 = vadd.f32 %v2808, %v3771
  %v3950 = vadd.f32 %v3949, %v3817
  %v3951 = vxor.u32 %v3950, 2147483648
  %v3952 = vmul.f32 %v3951, 1.442695
  %v3953 = vpow.pop %v3952
  %v3954 = vadd.f32 %v3953, 1.0
  %v3955 = vrcp.pop %v3954
  %v3956 = vmul.f32 1.0, %v3955
  %v3957 = vtanh.pop %v3950
  %v3958 = vmul.f32 %v3956, %v3606
  %3960 = vrot.lane.b32.xlu0 %v3957, 64
  %v3961 = vpop.permute.xlu0 %3960
  %v3963 = vmul.f32 %v3956, %v3961
  %3965 = vrot.lane.b32.xlu0 %v3963, 32
  %v3966 = vpop.permute.xlu0 %3965
  %v3968 = vadd.f32 %v3958, %v3966
  %v3969 = vtanh.pop %v3968
  %3971 = vrot.lane.b32.xlu0 %v3969, 64
  %v3972 = vpop.permute.xlu0 %3971
  %v3974 = vmul.f32 %v3956, %v3972
  %v3976 = vcombine.high %v3974, %v3974
  %v3978 = vunpack.c.l.s4 1966171168
  %v3979 = vunpack.c.0.s8 %v3978
  %v3980 = vlaneseq
  %v3981 = vshrl.u32 %v3980, 7
  %v3982 = vsub.s32 %v3979, %v3981
  %v3983 = vrot.slane %v3974, %v3982
  %v3985 = vunpack.c.l.s4 1966171168
  %v3986 = vunpack.c.0.s8 %v3985
  %v3987 = vlaneseq
  %v3988 = vshrl.u32 %v3987, 7
  %v3989 = vsub.s32 %v3986, %v3988
  %v3990 = vrot.slane %v3976, %v3989
  %v3991 = vcombine.high %v3983, %v3983
  %v3992 = vcombine.high %v3990, %v3990
  %v3994 = vunpack.c.l.s4 1966171168
  %v3995 = vunpack.c.0.s8 %v3994
  %v3996 = vlaneseq
  %v3997 = vshrl.u32 %v3996, 7
  %v3998 = vsub.s32 %v3995, %v3997
  %v3999 = vrot.slane %v3983, %v3998
  %v4001 = vunpack.c.l.s4 1966171168
  %v4002 = vunpack.c.0.s8 %v4001
  %v4003 = vlaneseq
  %v4004 = vshrl.u32 %v4003, 7
  %v4005 = vsub.s32 %v4002, %v4004
  %v4006 = vrot.slane %v3990, %v4005
  %v4008 = vunpack.c.l.s4 1966171168
  %v4009 = vunpack.c.0.s8 %v4008
  %v4010 = vlaneseq
  %v4011 = vshrl.u32 %v4010, 7
  %v4012 = vsub.s32 %v4009, %v4011
  %v4013 = vrot.slane %v3991, %v4012
  %v4015 = vunpack.c.l.s4 1966171168
  %v4016 = vunpack.c.0.s8 %v4015
  %v4017 = vlaneseq
  %v4018 = vshrl.u32 %v4017, 7
  %v4019 = vsub.s32 %v4016, %v4018
  %v4020 = vrot.slane %v3992, %v4019
  %v4021 = vcombine.high %v3999, %v3999
  %v4022 = vcombine.high %v4006, %v4006
  %v4023 = vcombine.high %v4013, %v4013
  %v4024 = vcombine.high %v4020, %v4020
  %v4025 = vlaneseq
  %v4026 = vshrl.u32 %v4025, 7
  %v4027 = vsub.s32 0, %v4026
  %v4028 = vrot.slane %v3999, %v4027
  %v4029 = vlaneseq
  %v4030 = vshrl.u32 %v4029, 7
  %v4031 = vsub.s32 0, %v4030
  %v4032 = vrot.slane %v4013, %v4031
  %v4033 = vlaneseq
  %v4034 = vshrl.u32 %v4033, 7
  %v4035 = vsub.s32 0, %v4034
  %v4036 = vrot.slane %v4021, %v4035
  %v4037 = vlaneseq
  %v4038 = vshrl.u32 %v4037, 7
  %v4039 = vsub.s32 0, %v4038
  %v4040 = vrot.slane %v4023, %v4039
  %v4041 = vlaneseq
  %v4042 = vshrl.u32 %v4041, 7
  %v4043 = vsub.s32 0, %v4042
  %v4044 = vrot.slane %v4006, %v4043
  %v4045 = vlaneseq
  %v4046 = vshrl.u32 %v4045, 7
  %v4047 = vsub.s32 0, %v4046
  %v4048 = vrot.slane %v4020, %v4047
  %v4049 = vlaneseq
  %v4050 = vshrl.u32 %v4049, 7
  %v4051 = vsub.s32 0, %v4050
  %v4052 = vrot.slane %v4022, %v4051
  %v4053 = vlaneseq
  %v4054 = vshrl.u32 %v4053, 7
  %v4055 = vsub.s32 0, %v4054
  %v4056 = vrot.slane %v4024, %v4055
  %4057 = vrot.lane.b32.xlu0 %v4028, 32
  %v4058 = vpop.permute.xlu0 %4057
  %4059 = vrot.lane.b32.xlu0 %v4032, 32
  %v4060 = vpop.permute.xlu0 %4059
  %4061 = vrot.lane.b32.xlu0 %v4036, 32
  %v4062 = vpop.permute.xlu0 %4061
  %4063 = vrot.lane.b32.xlu0 %v4040, 32
  %v4064 = vpop.permute.xlu0 %4063
  %4065 = vrot.lane.b32.xlu0 %v4044, 32
  %v4066 = vpop.permute.xlu0 %4065
  %4067 = vrot.lane.b32.xlu0 %v4048, 32
  %v4068 = vpop.permute.xlu0 %4067
  %4069 = vrot.lane.b32.xlu0 %v4052, 32
  %v4070 = vpop.permute.xlu0 %4069
  %4071 = vrot.lane.b32.xlu0 %v4056, 32
  %v4072 = vpop.permute.xlu0 %4071
  %4081 = vst.msk [vmem:[%s13 + $0x2] sm:$0x1] %vm3356, %v4058
  %4082 = vst.msk [vmem:[%s13 + $0xa] sm:$0x1] %vm3356, %v4060
  %4083 = vst.msk [vmem:[%s13 + $0x12] sm:$0x1] %vm3356, %v4062
  %4084 = vst.msk [vmem:[%s13 + $0x1a] sm:$0x1] %vm3356, %v4064
  %4085 = vst.msk [vmem:[%s13 + $0x22] sm:$0x1] %vm3356, %v4066
  %4086 = vst.msk [vmem:[%s13 + $0x2a] sm:$0x1] %vm3356, %v4068
  %4087 = vst.msk [vmem:[%s13 + $0x32] sm:$0x1] %vm3356, %v4070
  %4088 = vst.msk [vmem:[%s13 + $0x3a] sm:$0x1] %vm3356, %v4072
  %v4089 = vpack.c.bf16 %v3948, %v3948
  %4091 = vrot.lane.b32.xlu0 %v4089, 32
  %v4092 = vpop.permute.xlu0 %4091
  %v4094 = vsel %vm91, %v4092, 0
  %4096 = vmatprep.subr.bf16.mxu0 %v2823
  %4097 = vmatpush1.bf16.msra.mxu0 %v2822
  %4098 = vmatprep.subr.bf16.mxu0 %v2825
  %4099 = vmatpush1.bf16.msra.mxu0 %v2824
  %4100 = vmatprep.subr.bf16.mxu0 0
  %4101 = vmatpush1.bf16.msra.mxu0 0
  %4102 = vmatprep.subr.bf16.mxu0 0
  %4103 = vmatpush1.bf16.msra.mxu0 0
  %4104 = vmatprep.subr.bf16.mxu0 0
  %4105 = vmatpush1.bf16.msra.mxu0 0
  %4106 = vmatprep.subr.bf16.mxu0 0
  %4107 = vmatpush1.bf16.msra.mxu0 0
  %4108 = vmatprep.subr.bf16.mxu0 0
  %4109 = vmatpush1.bf16.msra.mxu0 0
  %4110 = vmatprep.subr.bf16.mxu0 0
  %4111 = vmatpush1.bf16.msra.mxu0 0
  %4112 = vmatprep.subr.bf16.mxu0 0
  %4113 = vmatpush1.bf16.msra.mxu0 0
  %4114 = vmatprep.subr.bf16.mxu0 0
  %4115 = vmatpush1.bf16.msra.mxu0 0
  %4116 = vmatprep.subr.bf16.mxu0 0
  %4117 = vmatpush1.bf16.msra.mxu0 0
  %4118 = vmatprep.subr.bf16.mxu0 0
  %4119 = vmatpush1.bf16.msra.mxu0 0
  %4120 = vmatprep.subr.bf16.mxu0 0
  %4121 = vmatpush1.bf16.msra.mxu0 0
  %4122 = vmatprep.subr.bf16.mxu0 0
  %4123 = vmatpush1.bf16.msra.mxu0 0
  %4124 = vmatprep.subr.bf16.mxu0 0
  %4125 = vmatpush1.bf16.msra.mxu0 0
  %4126 = vmatprep.subr.bf16.mxu0 0
  %4127 = vmatpush1.bf16.msra.mxu0 0
  %4128 = vmatprep.mubr.bf16.mxu0 0
  %4129 = vmatmul.mubr.bf16.gmra.mrb[0].mxu0 %v4094
  %v4130 = vpop.f32.mrb[0].mxu0
  %v4131 = vadd.f32 0.0, %v4130
  %v4132 = vpop.f32.mrb[0].mxu0
  %v4133 = vadd.f32 0.0, %v4132
  %v4134 = vpop.f32.mrb[0].mxu0
  %v4135 = vpop.f32.mrb[0].mxu0
  %4136 = vdwg.mxu0
  %v4137 = vpack.c.bf16 %v3974, %v3974
  %4139 = vrot.lane.b32.xlu0 %v4137, 32
  %v4140 = vpop.permute.xlu0 %4139
  %v4142 = vsel %vm91, %v4140, 0
  %4144 = vmatprep.subr.bf16.mxu0 0
  %4145 = vmatpush1.bf16.msra.mxu0 %v3053
  %4146 = vmatprep.subr.bf16.mxu0 0
  %4147 = vmatpush1.bf16.msra.mxu0 %v3054
  %4148 = vmatprep.subr.bf16.mxu0 0
  %4149 = vmatpush1.bf16.msra.mxu0 0
  %4150 = vmatprep.subr.bf16.mxu0 0
  %4151 = vmatpush1.bf16.msra.mxu0 0
  %4152 = vmatprep.subr.bf16.mxu0 0
  %4153 = vmatpush1.bf16.msra.mxu0 0
  %4154 = vmatprep.subr.bf16.mxu0 0
  %4155 = vmatpush1.bf16.msra.mxu0 0
  %4156 = vmatprep.subr.bf16.mxu0 0
  %4157 = vmatpush1.bf16.msra.mxu0 0
  %4158 = vmatprep.subr.bf16.mxu0 0
  %4159 = vmatpush1.bf16.msra.mxu0 0
  %4160 = vmatprep.subr.bf16.mxu0 0
  %4161 = vmatpush1.bf16.msra.mxu0 0
  %4162 = vmatprep.subr.bf16.mxu0 0
  %4163 = vmatpush1.bf16.msra.mxu0 0
  %4164 = vmatprep.subr.bf16.mxu0 0
  %4165 = vmatpush1.bf16.msra.mxu0 0
  %4166 = vmatprep.subr.bf16.mxu0 0
  %4167 = vmatpush1.bf16.msra.mxu0 0
  %4168 = vmatprep.subr.bf16.mxu0 0
  %4169 = vmatpush1.bf16.msra.mxu0 0
  %4170 = vmatprep.subr.bf16.mxu0 0
  %4171 = vmatpush1.bf16.msra.mxu0 0
  %4172 = vmatprep.subr.bf16.mxu0 0
  %4173 = vmatpush1.bf16.msra.mxu0 0
  %4174 = vmatprep.subr.bf16.mxu0 0
  %4175 = vmatpush1.bf16.msra.mxu0 0
  %4176 = vmatprep.mubr.bf16.mxu0 0
  %4177 = vmatmul.mubr.bf16.gmra.mrb[0].mxu0 %v4142
  %v4178 = vpop.f32.mrb[0].mxu0
  %v4179 = vadd.f32 0.0, %v4178
  %v4180 = vpop.f32.mrb[0].mxu0
  %v4181 = vpop.f32.mrb[0].mxu0
  %v4182 = vpop.f32.mrb[0].mxu0
  %4183 = vdwg.mxu0
  %v4184 = vld [vmem:[%s6 + $0x4] sm:$0x1]
  %v4185 = vld [vmem:[%s6 + $0xc] sm:$0x1]
  %v4186 = vld [vmem:[%s6 + $0x14] sm:$0x1]
  %v4187 = vld [vmem:[%s6 + $0x1c] sm:$0x1]
  %v4188 = vld [vmem:[%s6 + $0x24] sm:$0x1]
  %v4189 = vld [vmem:[%s6 + $0x2c] sm:$0x1]
  %v4190 = vld [vmem:[%s6 + $0x34] sm:$0x1]
  %v4191 = vld [vmem:[%s6 + $0x3c] sm:$0x1]
  %v4200 = vrot.slane %v4185, 7
  %v4201 = vsel %vm152, %v4200, %v4184
  %v4202 = vrot.slane %v4186, 6
  %v4203 = vsel %vm155, %v4202, %v4201
  %v4204 = vrot.slane %v4187, 5
  %v4205 = vsel %vm158, %v4204, %v4203
  %v4206 = vrot.slane %v4188, 4
  %v4207 = vsel %vm161, %v4206, %v4205
  %v4208 = vrot.slane %v4189, 3
  %v4209 = vsel %vm164, %v4208, %v4207
  %v4210 = vrot.slane %v4190, 2
  %v4211 = vsel %vm167, %v4210, %v4209
  %v4212 = vrot.slane %v4191, 1
  %v4213 = vsel %vm170, %v4212, %v4211
  %v4214 = vsel %vm172, %v4213, 0
  %4216 = vmatprep.subr.mxu0 0.0
  %4217 = vmatpush1.msra.mxu0 %v2794
  %4218 = vmatprep.subr.mxu0 0.0
  %4219 = vmatpush1.msra.mxu0 0.0
  %4220 = vmatprep.subr.mxu0 0.0
  %4221 = vmatpush1.msra.mxu0 0.0
  %4222 = vmatprep.subr.mxu0 0.0
  %4223 = vmatpush1.msra.mxu0 0.0
  %4224 = vmatprep.subr.mxu0 0.0
  %4225 = vmatpush1.msra.mxu0 0.0
  %4226 = vmatprep.subr.mxu0 0.0
  %4227 = vmatpush1.msra.mxu0 0.0
  %4228 = vmatprep.subr.mxu0 0.0
  %4229 = vmatpush1.msra.mxu0 0.0
  %4230 = vmatprep.subr.mxu0 0.0
  %4231 = vmatpush1.msra.mxu0 0.0
  %4232 = vmatprep.subr.mxu0 0.0
  %4233 = vmatpush1.msra.mxu0 0.0
  %4234 = vmatprep.subr.mxu0 0.0
  %4235 = vmatpush1.msra.mxu0 0.0
  %4236 = vmatprep.subr.mxu0 0.0
  %4237 = vmatpush1.msra.mxu0 0.0
  %4238 = vmatprep.subr.mxu0 0.0
  %4239 = vmatpush1.msra.mxu0 0.0
  %4240 = vmatprep.subr.mxu0 0.0
  %4241 = vmatpush1.msra.mxu0 0.0
  %4242 = vmatprep.subr.mxu0 0.0
  %4243 = vmatpush1.msra.mxu0 0.0
  %4244 = vmatprep.subr.mxu0 0.0
  %4245 = vmatpush1.msra.mxu0 0.0
  %4246 = vmatprep.subr.mxu0 0.0
  %4247 = vmatpush1.msra.mxu0 0.0
  %4248 = vmatprep.subr.mxu0 0.0
  %4249 = vmatpush1.msra.mxu0 0.0
  %4250 = vmatprep.subr.mxu0 0.0
  %4251 = vmatpush1.msra.mxu0 0.0
  %4252 = vmatprep.subr.mxu0 0.0
  %4253 = vmatpush1.msra.mxu0 0.0
  %4254 = vmatprep.subr.mxu0 0.0
  %4255 = vmatpush1.msra.mxu0 0.0
  %4256 = vmatprep.subr.mxu0 0.0
  %4257 = vmatpush1.msra.mxu0 0.0
  %4258 = vmatprep.subr.mxu0 0.0
  %4259 = vmatpush1.msra.mxu0 0.0
  %4260 = vmatprep.subr.mxu0 0.0
  %4261 = vmatpush1.msra.mxu0 0.0
  %4262 = vmatprep.subr.mxu0 0.0
  %4263 = vmatpush1.msra.mxu0 0.0
  %4264 = vmatprep.subr.mxu0 0.0
  %4265 = vmatpush1.msra.mxu0 0.0
  %4266 = vmatprep.subr.mxu0 0.0
  %4267 = vmatpush1.msra.mxu0 0.0
  %4268 = vmatprep.subr.mxu0 0.0
  %4269 = vmatpush1.msra.mxu0 0.0
  %4270 = vmatprep.subr.mxu0 0.0
  %4271 = vmatpush1.msra.mxu0 0.0
  %4272 = vmatprep.subr.mxu0 0.0
  %4273 = vmatpush1.msra.mxu0 0.0
  %4274 = vmatprep.subr.mxu0 0.0
  %4275 = vmatpush1.msra.mxu0 0.0
  %4276 = vmatprep.subr.mxu0 0.0
  %4277 = vmatpush1.msra.mxu0 0.0
  %4278 = vmatprep.subr.mxu0 0.0
  %4279 = vmatpush1.msra.mxu0 0.0
  %4280 = vmatprep.mubr.f32.mxu0 0.0
  %4281 = vmatmul.mubr.f32.gmra.mrb[0].mxu0 %v4214
  %v4282 = vpop.f32.mrb[0].mxu0
  %v4283 = vadd.f32 %v2793, %v4282
  %v4284 = vpop.f32.mrb[0].mxu0
  %4285 = vdwg.mxu0
  %v4286 = vadd.f32 %v4283, %v4131
  %v4287 = vxor.u32 %v4286, 2147483648
  %v4288 = vmul.f32 %v4287, 1.442695
  %v4289 = vpow.pop %v4288
  %v4290 = vadd.f32 %v4289, 1.0
  %v4291 = vrcp.pop %v4290
  %v4292 = vmul.f32 1.0, %v4291
  %v4293 = vtanh.pop %v4286
  %v4294 = vmul.f32 %v4292, %v3942
  %4296 = vrot.lane.b32.xlu0 %v4293, 64
  %v4297 = vpop.permute.xlu0 %4296
  %v4299 = vmul.f32 %v4292, %v4297
  %4301 = vrot.lane.b32.xlu0 %v4299, 32
  %v4302 = vpop.permute.xlu0 %4301
  %v4304 = vadd.f32 %v4294, %v4302
  %v4305 = vtanh.pop %v4304
  %4307 = vrot.lane.b32.xlu0 %v4305, 64
  %v4308 = vpop.permute.xlu0 %4307
  %v4310 = vmul.f32 %v4292, %v4308
  %v4311 = vadd.f32 %v2808, %v4133
  %v4312 = vadd.f32 %v4311, %v4179
  %v4313 = vxor.u32 %v4312, 2147483648
  %v4314 = vmul.f32 %v4313, 1.442695
  %v4315 = vpow.pop %v4314
  %v4316 = vadd.f32 %v4315, 1.0
  %v4317 = vrcp.pop %v4316
  %v4318 = vmul.f32 1.0, %v4317
  %v4319 = vtanh.pop %v4312
  %v4320 = vmul.f32 %v4318, %v3968
  %4322 = vrot.lane.b32.xlu0 %v4319, 64
  %v4323 = vpop.permute.xlu0 %4322
  %v4325 = vmul.f32 %v4318, %v4323
  %4327 = vrot.lane.b32.xlu0 %v4325, 32
  %v4328 = vpop.permute.xlu0 %4327
  %v4330 = vadd.f32 %v4320, %v4328
  %v4331 = vtanh.pop %v4330
  %4333 = vrot.lane.b32.xlu0 %v4331, 64
  %v4334 = vpop.permute.xlu0 %4333
  %v4336 = vmul.f32 %v4318, %v4334
  %v4338 = vcombine.high %v4336, %v4336
  %v4340 = vunpack.c.l.s4 1966171168
  %v4341 = vunpack.c.0.s8 %v4340
  %v4342 = vlaneseq
  %v4343 = vshrl.u32 %v4342, 7
  %v4344 = vsub.s32 %v4341, %v4343
  %v4345 = vrot.slane %v4336, %v4344
  %v4347 = vunpack.c.l.s4 1966171168
  %v4348 = vunpack.c.0.s8 %v4347
  %v4349 = vlaneseq
  %v4350 = vshrl.u32 %v4349, 7
  %v4351 = vsub.s32 %v4348, %v4350
  %v4352 = vrot.slane %v4338, %v4351
  %v4353 = vcombine.high %v4345, %v4345
  %v4354 = vcombine.high %v4352, %v4352
  %v4356 = vunpack.c.l.s4 1966171168
  %v4357 = vunpack.c.0.s8 %v4356
  %v4358 = vlaneseq
  %v4359 = vshrl.u32 %v4358, 7
  %v4360 = vsub.s32 %v4357, %v4359
  %v4361 = vrot.slane %v4345, %v4360
  %v4363 = vunpack.c.l.s4 1966171168
  %v4364 = vunpack.c.0.s8 %v4363
  %v4365 = vlaneseq
  %v4366 = vshrl.u32 %v4365, 7
  %v4367 = vsub.s32 %v4364, %v4366
  %v4368 = vrot.slane %v4352, %v4367
  %v4370 = vunpack.c.l.s4 1966171168
  %v4371 = vunpack.c.0.s8 %v4370
  %v4372 = vlaneseq
  %v4373 = vshrl.u32 %v4372, 7
  %v4374 = vsub.s32 %v4371, %v4373
  %v4375 = vrot.slane %v4353, %v4374
  %v4377 = vunpack.c.l.s4 1966171168
  %v4378 = vunpack.c.0.s8 %v4377
  %v4379 = vlaneseq
  %v4380 = vshrl.u32 %v4379, 7
  %v4381 = vsub.s32 %v4378, %v4380
  %v4382 = vrot.slane %v4354, %v4381
  %v4383 = vcombine.high %v4361, %v4361
  %v4384 = vcombine.high %v4368, %v4368
  %v4385 = vcombine.high %v4375, %v4375
  %v4386 = vcombine.high %v4382, %v4382
  %v4387 = vlaneseq
  %v4388 = vshrl.u32 %v4387, 7
  %v4389 = vsub.s32 0, %v4388
  %v4390 = vrot.slane %v4361, %v4389
  %v4391 = vlaneseq
  %v4392 = vshrl.u32 %v4391, 7
  %v4393 = vsub.s32 0, %v4392
  %v4394 = vrot.slane %v4375, %v4393
  %v4395 = vlaneseq
  %v4396 = vshrl.u32 %v4395, 7
  %v4397 = vsub.s32 0, %v4396
  %v4398 = vrot.slane %v4383, %v4397
  %v4399 = vlaneseq
  %v4400 = vshrl.u32 %v4399, 7
  %v4401 = vsub.s32 0, %v4400
  %v4402 = vrot.slane %v4385, %v4401
  %v4403 = vlaneseq
  %v4404 = vshrl.u32 %v4403, 7
  %v4405 = vsub.s32 0, %v4404
  %v4406 = vrot.slane %v4368, %v4405
  %v4407 = vlaneseq
  %v4408 = vshrl.u32 %v4407, 7
  %v4409 = vsub.s32 0, %v4408
  %v4410 = vrot.slane %v4382, %v4409
  %v4411 = vlaneseq
  %v4412 = vshrl.u32 %v4411, 7
  %v4413 = vsub.s32 0, %v4412
  %v4414 = vrot.slane %v4384, %v4413
  %v4415 = vlaneseq
  %v4416 = vshrl.u32 %v4415, 7
  %v4417 = vsub.s32 0, %v4416
  %v4418 = vrot.slane %v4386, %v4417
  %4419 = vrot.lane.b32.xlu0 %v4390, 32
  %v4420 = vpop.permute.xlu0 %4419
  %4421 = vrot.lane.b32.xlu0 %v4394, 32
  %v4422 = vpop.permute.xlu0 %4421
  %4423 = vrot.lane.b32.xlu0 %v4398, 32
  %v4424 = vpop.permute.xlu0 %4423
  %4425 = vrot.lane.b32.xlu0 %v4402, 32
  %v4426 = vpop.permute.xlu0 %4425
  %4427 = vrot.lane.b32.xlu0 %v4406, 32
  %v4428 = vpop.permute.xlu0 %4427
  %4429 = vrot.lane.b32.xlu0 %v4410, 32
  %v4430 = vpop.permute.xlu0 %4429
  %4431 = vrot.lane.b32.xlu0 %v4414, 32
  %v4432 = vpop.permute.xlu0 %4431
  %4433 = vrot.lane.b32.xlu0 %v4418, 32
  %v4434 = vpop.permute.xlu0 %4433
  %4443 = vst.msk [vmem:[%s13 + $0x3] sm:$0x1] %vm3356, %v4420
  %4444 = vst.msk [vmem:[%s13 + $0xb] sm:$0x1] %vm3356, %v4422
  %4445 = vst.msk [vmem:[%s13 + $0x13] sm:$0x1] %vm3356, %v4424
  %4446 = vst.msk [vmem:[%s13 + $0x1b] sm:$0x1] %vm3356, %v4426
  %4447 = vst.msk [vmem:[%s13 + $0x23] sm:$0x1] %vm3356, %v4428
  %4448 = vst.msk [vmem:[%s13 + $0x2b] sm:$0x1] %vm3356, %v4430
  %4449 = vst.msk [vmem:[%s13 + $0x33] sm:$0x1] %vm3356, %v4432
  %4450 = vst.msk [vmem:[%s13 + $0x3b] sm:$0x1] %vm3356, %v4434
  %v4451 = vpack.c.bf16 %v4310, %v4310
  %4453 = vrot.lane.b32.xlu0 %v4451, 32
  %v4454 = vpop.permute.xlu0 %4453
  %v4456 = vsel %vm91, %v4454, 0
  %4458 = vmatprep.subr.bf16.mxu0 %v2823
  %4459 = vmatpush1.bf16.msra.mxu0 %v2822
  %4460 = vmatprep.subr.bf16.mxu0 %v2825
  %4461 = vmatpush1.bf16.msra.mxu0 %v2824
  %4462 = vmatprep.subr.bf16.mxu0 0
  %4463 = vmatpush1.bf16.msra.mxu0 0
  %4464 = vmatprep.subr.bf16.mxu0 0
  %4465 = vmatpush1.bf16.msra.mxu0 0
  %4466 = vmatprep.subr.bf16.mxu0 0
  %4467 = vmatpush1.bf16.msra.mxu0 0
  %4468 = vmatprep.subr.bf16.mxu0 0
  %4469 = vmatpush1.bf16.msra.mxu0 0
  %4470 = vmatprep.subr.bf16.mxu0 0
  %4471 = vmatpush1.bf16.msra.mxu0 0
  %4472 = vmatprep.subr.bf16.mxu0 0
  %4473 = vmatpush1.bf16.msra.mxu0 0
  %4474 = vmatprep.subr.bf16.mxu0 0
  %4475 = vmatpush1.bf16.msra.mxu0 0
  %4476 = vmatprep.subr.bf16.mxu0 0
  %4477 = vmatpush1.bf16.msra.mxu0 0
  %4478 = vmatprep.subr.bf16.mxu0 0
  %4479 = vmatpush1.bf16.msra.mxu0 0
  %4480 = vmatprep.subr.bf16.mxu0 0
  %4481 = vmatpush1.bf16.msra.mxu0 0
  %4482 = vmatprep.subr.bf16.mxu0 0
  %4483 = vmatpush1.bf16.msra.mxu0 0
  %4484 = vmatprep.subr.bf16.mxu0 0
  %4485 = vmatpush1.bf16.msra.mxu0 0
  %4486 = vmatprep.subr.bf16.mxu0 0
  %4487 = vmatpush1.bf16.msra.mxu0 0
  %4488 = vmatprep.subr.bf16.mxu0 0
  %4489 = vmatpush1.bf16.msra.mxu0 0
  %4490 = vmatprep.mubr.bf16.mxu0 0
  %4491 = vmatmul.mubr.bf16.gmra.mrb[0].mxu0 %v4456
  %v4492 = vpop.f32.mrb[0].mxu0
  %v4493 = vadd.f32 0.0, %v4492
  %v4494 = vpop.f32.mrb[0].mxu0
  %v4495 = vadd.f32 0.0, %v4494
  %v4496 = vpop.f32.mrb[0].mxu0
  %v4497 = vpop.f32.mrb[0].mxu0
  %4498 = vdwg.mxu0
  %v4499 = vpack.c.bf16 %v4336, %v4336
  %4501 = vrot.lane.b32.xlu0 %v4499, 32
  %v4502 = vpop.permute.xlu0 %4501
  %v4504 = vsel %vm91, %v4502, 0
  %4506 = vmatprep.subr.bf16.mxu0 0
  %4507 = vmatpush1.bf16.msra.mxu0 %v3053
  %4508 = vmatprep.subr.bf16.mxu0 0
  %4509 = vmatpush1.bf16.msra.mxu0 %v3054
  %4510 = vmatprep.subr.bf16.mxu0 0
  %4511 = vmatpush1.bf16.msra.mxu0 0
  %4512 = vmatprep.subr.bf16.mxu0 0
  %4513 = vmatpush1.bf16.msra.mxu0 0
  %4514 = vmatprep.subr.bf16.mxu0 0
  %4515 = vmatpush1.bf16.msra.mxu0 0
  %4516 = vmatprep.subr.bf16.mxu0 0
  %4517 = vmatpush1.bf16.msra.mxu0 0
  %4518 = vmatprep.subr.bf16.mxu0 0
  %4519 = vmatpush1.bf16.msra.mxu0 0
  %4520 = vmatprep.subr.bf16.mxu0 0
  %4521 = vmatpush1.bf16.msra.mxu0 0
  %4522 = vmatprep.subr.bf16.mxu0 0
  %4523 = vmatpush1.bf16.msra.mxu0 0
  %4524 = vmatprep.subr.bf16.mxu0 0
  %4525 = vmatpush1.bf16.msra.mxu0 0
  %4526 = vmatprep.subr.bf16.mxu0 0
  %4527 = vmatpush1.bf16.msra.mxu0 0
  %4528 = vmatprep.subr.bf16.mxu0 0
  %4529 = vmatpush1.bf16.msra.mxu0 0
  %4530 = vmatprep.subr.bf16.mxu0 0
  %4531 = vmatpush1.bf16.msra.mxu0 0
  %4532 = vmatprep.subr.bf16.mxu0 0
  %4533 = vmatpush1.bf16.msra.mxu0 0
  %4534 = vmatprep.subr.bf16.mxu0 0
  %4535 = vmatpush1.bf16.msra.mxu0 0
  %4536 = vmatprep.subr.bf16.mxu0 0
  %4537 = vmatpush1.bf16.msra.mxu0 0
  %4538 = vmatprep.mubr.bf16.mxu0 0
  %4539 = vmatmul.mubr.bf16.gmra.mrb[0].mxu0 %v4504
  %v4540 = vpop.f32.mrb[0].mxu0
  %v4541 = vadd.f32 0.0, %v4540
  %v4542 = vpop.f32.mrb[0].mxu0
  %v4543 = vpop.f32.mrb[0].mxu0
  %v4544 = vpop.f32.mrb[0].mxu0
  %4545 = vdwg.mxu0
  %v4546 = vld [vmem:[%s6 + $0x5] sm:$0x1]
  %v4547 = vld [vmem:[%s6 + $0xd] sm:$0x1]
  %v4548 = vld [vmem:[%s6 + $0x15] sm:$0x1]
  %v4549 = vld [vmem:[%s6 + $0x1d] sm:$0x1]
  %v4550 = vld [vmem:[%s6 + $0x25] sm:$0x1]
  %v4551 = vld [vmem:[%s6 + $0x2d] sm:$0x1]
  %v4552 = vld [vmem:[%s6 + $0x35] sm:$0x1]
  %v4553 = vld [vmem:[%s6 + $0x3d] sm:$0x1]
  %v4562 = vrot.slane %v4547, 7
  %v4563 = vsel %vm152, %v4562, %v4546
  %v4564 = vrot.slane %v4548, 6
  %v4565 = vsel %vm155, %v4564, %v4563
  %v4566 = vrot.slane %v4549, 5
  %v4567 = vsel %vm158, %v4566, %v4565
  %v4568 = vrot.slane %v4550, 4
  %v4569 = vsel %vm161, %v4568, %v4567
  %v4570 = vrot.slane %v4551, 3
  %v4571 = vsel %vm164, %v4570, %v4569
  %v4572 = vrot.slane %v4552, 2
  %v4573 = vsel %vm167, %v4572, %v4571
  %v4574 = vrot.slane %v4553, 1
  %v4575 = vsel %vm170, %v4574, %v4573
  %v4576 = vsel %vm172, %v4575, 0
  %4578 = vmatprep.subr.mxu0 0.0
  %4579 = vmatpush1.msra.mxu0 %v2794
  %4580 = vmatprep.subr.mxu0 0.0
  %4581 = vmatpush1.msra.mxu0 0.0
  %4582 = vmatprep.subr.mxu0 0.0
  %4583 = vmatpush1.msra.mxu0 0.0
  %4584 = vmatprep.subr.mxu0 0.0
  %4585 = vmatpush1.msra.mxu0 0.0
  %4586 = vmatprep.subr.mxu0 0.0
  %4587 = vmatpush1.msra.mxu0 0.0
  %4588 = vmatprep.subr.mxu0 0.0
  %4589 = vmatpush1.msra.mxu0 0.0
  %4590 = vmatprep.subr.mxu0 0.0
  %4591 = vmatpush1.msra.mxu0 0.0
  %4592 = vmatprep.subr.mxu0 0.0
  %4593 = vmatpush1.msra.mxu0 0.0
  %4594 = vmatprep.subr.mxu0 0.0
  %4595 = vmatpush1.msra.mxu0 0.0
  %4596 = vmatprep.subr.mxu0 0.0
  %4597 = vmatpush1.msra.mxu0 0.0
  %4598 = vmatprep.subr.mxu0 0.0
  %4599 = vmatpush1.msra.mxu0 0.0
  %4600 = vmatprep.subr.mxu0 0.0
  %4601 = vmatpush1.msra.mxu0 0.0
  %4602 = vmatprep.subr.mxu0 0.0
  %4603 = vmatpush1.msra.mxu0 0.0
  %4604 = vmatprep.subr.mxu0 0.0
  %4605 = vmatpush1.msra.mxu0 0.0
  %4606 = vmatprep.subr.mxu0 0.0
  %4607 = vmatpush1.msra.mxu0 0.0
  %4608 = vmatprep.subr.mxu0 0.0
  %4609 = vmatpush1.msra.mxu0 0.0
  %4610 = vmatprep.subr.mxu0 0.0
  %4611 = vmatpush1.msra.mxu0 0.0
  %4612 = vmatprep.subr.mxu0 0.0
  %4613 = vmatpush1.msra.mxu0 0.0
  %4614 = vmatprep.subr.mxu0 0.0
  %4615 = vmatpush1.msra.mxu0 0.0
  %4616 = vmatprep.subr.mxu0 0.0
  %4617 = vmatpush1.msra.mxu0 0.0
  %4618 = vmatprep.subr.mxu0 0.0
  %4619 = vmatpush1.msra.mxu0 0.0
  %4620 = vmatprep.subr.mxu0 0.0
  %4621 = vmatpush1.msra.mxu0 0.0
  %4622 = vmatprep.subr.mxu0 0.0
  %4623 = vmatpush1.msra.mxu0 0.0
  %4624 = vmatprep.subr.mxu0 0.0
  %4625 = vmatpush1.msra.mxu0 0.0
  %4626 = vmatprep.subr.mxu0 0.0
  %4627 = vmatpush1.msra.mxu0 0.0
  %4628 = vmatprep.subr.mxu0 0.0
  %4629 = vmatpush1.msra.mxu0 0.0
  %4630 = vmatprep.subr.mxu0 0.0
  %4631 = vmatpush1.msra.mxu0 0.0
  %4632 = vmatprep.subr.mxu0 0.0
  %4633 = vmatpush1.msra.mxu0 0.0
  %4634 = vmatprep.subr.mxu0 0.0
  %4635 = vmatpush1.msra.mxu0 0.0
  %4636 = vmatprep.subr.mxu0 0.0
  %4637 = vmatpush1.msra.mxu0 0.0
  %4638 = vmatprep.subr.mxu0 0.0
  %4639 = vmatpush1.msra.mxu0 0.0
  %4640 = vmatprep.subr.mxu0 0.0
  %4641 = vmatpush1.msra.mxu0 0.0
  %4642 = vmatprep.mubr.f32.mxu0 0.0
  %4643 = vmatmul.mubr.f32.gmra.mrb[0].mxu0 %v4576
  %v4644 = vpop.f32.mrb[0].mxu0
  %v4645 = vadd.f32 %v2793, %v4644
  %v4646 = vpop.f32.mrb[0].mxu0
  %4647 = vdwg.mxu0
  %v4648 = vadd.f32 %v4645, %v4493
  %v4649 = vxor.u32 %v4648, 2147483648
  %v4650 = vmul.f32 %v4649, 1.442695
  %v4651 = vpow.pop %v4650
  %v4652 = vadd.f32 %v4651, 1.0
  %v4653 = vrcp.pop %v4652
  %v4654 = vmul.f32 1.0, %v4653
  %v4655 = vtanh.pop %v4648
  %v4656 = vmul.f32 %v4654, %v4304
  %4658 = vrot.lane.b32.xlu0 %v4655, 64
  %v4659 = vpop.permute.xlu0 %4658
  %v4661 = vmul.f32 %v4654, %v4659
  %4663 = vrot.lane.b32.xlu0 %v4661, 32
  %v4664 = vpop.permute.xlu0 %4663
  %v4666 = vadd.f32 %v4656, %v4664
  %v4667 = vtanh.pop %v4666
  %4669 = vrot.lane.b32.xlu0 %v4667, 64
  %v4670 = vpop.permute.xlu0 %4669
  %v4672 = vmul.f32 %v4654, %v4670
  %v4673 = vadd.f32 %v2808, %v4495
  %v4674 = vadd.f32 %v4673, %v4541
  %v4675 = vxor.u32 %v4674, 2147483648
  %v4676 = vmul.f32 %v4675, 1.442695
  %v4677 = vpow.pop %v4676
  %v4678 = vadd.f32 %v4677, 1.0
  %v4679 = vrcp.pop %v4678
  %v4680 = vmul.f32 1.0, %v4679
  %v4681 = vtanh.pop %v4674
  %v4682 = vmul.f32 %v4680, %v4330
  %4684 = vrot.lane.b32.xlu0 %v4681, 64
  %v4685 = vpop.permute.xlu0 %4684
  %v4687 = vmul.f32 %v4680, %v4685
  %4689 = vrot.lane.b32.xlu0 %v4687, 32
  %v4690 = vpop.permute.xlu0 %4689
  %v4692 = vadd.f32 %v4682, %v4690
  %v4693 = vtanh.pop %v4692
  %4695 = vrot.lane.b32.xlu0 %v4693, 64
  %v4696 = vpop.permute.xlu0 %4695
  %v4698 = vmul.f32 %v4680, %v4696
  %v4700 = vcombine.high %v4698, %v4698
  %v4702 = vunpack.c.l.s4 1966171168
  %v4703 = vunpack.c.0.s8 %v4702
  %v4704 = vlaneseq
  %v4705 = vshrl.u32 %v4704, 7
  %v4706 = vsub.s32 %v4703, %v4705
  %v4707 = vrot.slane %v4698, %v4706
  %v4709 = vunpack.c.l.s4 1966171168
  %v4710 = vunpack.c.0.s8 %v4709
  %v4711 = vlaneseq
  %v4712 = vshrl.u32 %v4711, 7
  %v4713 = vsub.s32 %v4710, %v4712
  %v4714 = vrot.slane %v4700, %v4713
  %v4715 = vcombine.high %v4707, %v4707
  %v4716 = vcombine.high %v4714, %v4714
  %v4718 = vunpack.c.l.s4 1966171168
  %v4719 = vunpack.c.0.s8 %v4718
  %v4720 = vlaneseq
  %v4721 = vshrl.u32 %v4720, 7
  %v4722 = vsub.s32 %v4719, %v4721
  %v4723 = vrot.slane %v4707, %v4722
  %v4725 = vunpack.c.l.s4 1966171168
  %v4726 = vunpack.c.0.s8 %v4725
  %v4727 = vlaneseq
  %v4728 = vshrl.u32 %v4727, 7
  %v4729 = vsub.s32 %v4726, %v4728
  %v4730 = vrot.slane %v4714, %v4729
  %v4732 = vunpack.c.l.s4 1966171168
  %v4733 = vunpack.c.0.s8 %v4732
  %v4734 = vlaneseq
  %v4735 = vshrl.u32 %v4734, 7
  %v4736 = vsub.s32 %v4733, %v4735
  %v4737 = vrot.slane %v4715, %v4736
  %v4739 = vunpack.c.l.s4 1966171168
  %v4740 = vunpack.c.0.s8 %v4739
  %v4741 = vlaneseq
  %v4742 = vshrl.u32 %v4741, 7
  %v4743 = vsub.s32 %v4740, %v4742
  %v4744 = vrot.slane %v4716, %v4743
  %v4745 = vcombine.high %v4723, %v4723
  %v4746 = vcombine.high %v4730, %v4730
  %v4747 = vcombine.high %v4737, %v4737
  %v4748 = vcombine.high %v4744, %v4744
  %v4749 = vlaneseq
  %v4750 = vshrl.u32 %v4749, 7
  %v4751 = vsub.s32 0, %v4750
  %v4752 = vrot.slane %v4723, %v4751
  %v4753 = vlaneseq
  %v4754 = vshrl.u32 %v4753, 7
  %v4755 = vsub.s32 0, %v4754
  %v4756 = vrot.slane %v4737, %v4755
  %v4757 = vlaneseq
  %v4758 = vshrl.u32 %v4757, 7
  %v4759 = vsub.s32 0, %v4758
  %v4760 = vrot.slane %v4745, %v4759
  %v4761 = vlaneseq
  %v4762 = vshrl.u32 %v4761, 7
  %v4763 = vsub.s32 0, %v4762
  %v4764 = vrot.slane %v4747, %v4763
  %v4765 = vlaneseq
  %v4766 = vshrl.u32 %v4765, 7
  %v4767 = vsub.s32 0, %v4766
  %v4768 = vrot.slane %v4730, %v4767
  %v4769 = vlaneseq
  %v4770 = vshrl.u32 %v4769, 7
  %v4771 = vsub.s32 0, %v4770
  %v4772 = vrot.slane %v4744, %v4771
  %v4773 = vlaneseq
  %v4774 = vshrl.u32 %v4773, 7
  %v4775 = vsub.s32 0, %v4774
  %v4776 = vrot.slane %v4746, %v4775
  %v4777 = vlaneseq
  %v4778 = vshrl.u32 %v4777, 7
  %v4779 = vsub.s32 0, %v4778
  %v4780 = vrot.slane %v4748, %v4779
  %4781 = vrot.lane.b32.xlu0 %v4752, 32
  %v4782 = vpop.permute.xlu0 %4781
  %4783 = vrot.lane.b32.xlu0 %v4756, 32
  %v4784 = vpop.permute.xlu0 %4783
  %4785 = vrot.lane.b32.xlu0 %v4760, 32
  %v4786 = vpop.permute.xlu0 %4785
  %4787 = vrot.lane.b32.xlu0 %v4764, 32
  %v4788 = vpop.permute.xlu0 %4787
  %4789 = vrot.lane.b32.xlu0 %v4768, 32
  %v4790 = vpop.permute.xlu0 %4789
  %4791 = vrot.lane.b32.xlu0 %v4772, 32
  %v4792 = vpop.permute.xlu0 %4791
  %4793 = vrot.lane.b32.xlu0 %v4776, 32
  %v4794 = vpop.permute.xlu0 %4793
  %4795 = vrot.lane.b32.xlu0 %v4780, 32
  %v4796 = vpop.permute.xlu0 %4795
  %4805 = vst.msk [vmem:[%s13 + $0x4] sm:$0x1] %vm3356, %v4782
  %4806 = vst.msk [vmem:[%s13 + $0xc] sm:$0x1] %vm3356, %v4784
  %4807 = vst.msk [vmem:[%s13 + $0x14] sm:$0x1] %vm3356, %v4786
  %4808 = vst.msk [vmem:[%s13 + $0x1c] sm:$0x1] %vm3356, %v4788
  %4809 = vst.msk [vmem:[%s13 + $0x24] sm:$0x1] %vm3356, %v4790
  %4810 = vst.msk [vmem:[%s13 + $0x2c] sm:$0x1] %vm3356, %v4792
  %4811 = vst.msk [vmem:[%s13 + $0x34] sm:$0x1] %vm3356, %v4794
  %4812 = vst.msk [vmem:[%s13 + $0x3c] sm:$0x1] %vm3356, %v4796
  %v4813 = vpack.c.bf16 %v4672, %v4672
  %4815 = vrot.lane.b32.xlu0 %v4813, 32
  %v4816 = vpop.permute.xlu0 %4815
  %v4818 = vsel %vm91, %v4816, 0
  %4820 = vmatprep.subr.bf16.mxu0 %v2823
  %4821 = vmatpush1.bf16.msra.mxu0 %v2822
  %4822 = vmatprep.subr.bf16.mxu0 %v2825
  %4823 = vmatpush1.bf16.msra.mxu0 %v2824
  %4824 = vmatprep.subr.bf16.mxu0 0
  %4825 = vmatpush1.bf16.msra.mxu0 0
  %4826 = vmatprep.subr.bf16.mxu0 0
  %4827 = vmatpush1.bf16.msra.mxu0 0
  %4828 = vmatprep.subr.bf16.mxu0 0
  %4829 = vmatpush1.bf16.msra.mxu0 0
  %4830 = vmatprep.subr.bf16.mxu0 0
  %4831 = vmatpush1.bf16.msra.mxu0 0
  %4832 = vmatprep.subr.bf16.mxu0 0
  %4833 = vmatpush1.bf16.msra.mxu0 0
  %4834 = vmatprep.subr.bf16.mxu0 0
  %4835 = vmatpush1.bf16.msra.mxu0 0
  %4836 = vmatprep.subr.bf16.mxu0 0
  %4837 = vmatpush1.bf16.msra.mxu0 0
  %4838 = vmatprep.subr.bf16.mxu0 0
  %4839 = vmatpush1.bf16.msra.mxu0 0
  %4840 = vmatprep.subr.bf16.mxu0 0
  %4841 = vmatpush1.bf16.msra.mxu0 0
  %4842 = vmatprep.subr.bf16.mxu0 0
  %4843 = vmatpush1.bf16.msra.mxu0 0
  %4844 = vmatprep.subr.bf16.mxu0 0
  %4845 = vmatpush1.bf16.msra.mxu0 0
  %4846 = vmatprep.subr.bf16.mxu0 0
  %4847 = vmatpush1.bf16.msra.mxu0 0
  %4848 = vmatprep.subr.bf16.mxu0 0
  %4849 = vmatpush1.bf16.msra.mxu0 0
  %4850 = vmatprep.subr.bf16.mxu0 0
  %4851 = vmatpush1.bf16.msra.mxu0 0
  %4852 = vmatprep.mubr.bf16.mxu0 0
  %4853 = vmatmul.mubr.bf16.gmra.mrb[0].mxu0 %v4818
  %v4854 = vpop.f32.mrb[0].mxu0
  %v4855 = vadd.f32 0.0, %v4854
  %v4856 = vpop.f32.mrb[0].mxu0
  %v4857 = vadd.f32 0.0, %v4856
  %v4858 = vpop.f32.mrb[0].mxu0
  %v4859 = vpop.f32.mrb[0].mxu0
  %4860 = vdwg.mxu0
  %v4861 = vpack.c.bf16 %v4698, %v4698
  %4863 = vrot.lane.b32.xlu0 %v4861, 32
  %v4864 = vpop.permute.xlu0 %4863
  %v4866 = vsel %vm91, %v4864, 0
  %4868 = vmatprep.subr.bf16.mxu0 0
  %4869 = vmatpush1.bf16.msra.mxu0 %v3053
  %4870 = vmatprep.subr.bf16.mxu0 0
  %4871 = vmatpush1.bf16.msra.mxu0 %v3054
  %4872 = vmatprep.subr.bf16.mxu0 0
  %4873 = vmatpush1.bf16.msra.mxu0 0
  %4874 = vmatprep.subr.bf16.mxu0 0
  %4875 = vmatpush1.bf16.msra.mxu0 0
  %4876 = vmatprep.subr.bf16.mxu0 0
  %4877 = vmatpush1.bf16.msra.mxu0 0
  %4878 = vmatprep.subr.bf16.mxu0 0
  %4879 = vmatpush1.bf16.msra.mxu0 0
  %4880 = vmatprep.subr.bf16.mxu0 0
  %4881 = vmatpush1.bf16.msra.mxu0 0
  %4882 = vmatprep.subr.bf16.mxu0 0
  %4883 = vmatpush1.bf16.msra.mxu0 0
  %4884 = vmatprep.subr.bf16.mxu0 0
  %4885 = vmatpush1.bf16.msra.mxu0 0
  %4886 = vmatprep.subr.bf16.mxu0 0
  %4887 = vmatpush1.bf16.msra.mxu0 0
  %4888 = vmatprep.subr.bf16.mxu0 0
  %4889 = vmatpush1.bf16.msra.mxu0 0
  %4890 = vmatprep.subr.bf16.mxu0 0
  %4891 = vmatpush1.bf16.msra.mxu0 0
  %4892 = vmatprep.subr.bf16.mxu0 0
  %4893 = vmatpush1.bf16.msra.mxu0 0
  %4894 = vmatprep.subr.bf16.mxu0 0
  %4895 = vmatpush1.bf16.msra.mxu0 0
  %4896 = vmatprep.subr.bf16.mxu0 0
  %4897 = vmatpush1.bf16.msra.mxu0 0
  %4898 = vmatprep.subr.bf16.mxu0 0
  %4899 = vmatpush1.bf16.msra.mxu0 0
  %4900 = vmatprep.mubr.bf16.mxu0 0
  %4901 = vmatmul.mubr.bf16.gmra.mrb[0].mxu0 %v4866
  %v4902 = vpop.f32.mrb[0].mxu0
  %v4903 = vadd.f32 0.0, %v4902
  %v4904 = vpop.f32.mrb[0].mxu0
  %v4905 = vpop.f32.mrb[0].mxu0
  %v4906 = vpop.f32.mrb[0].mxu0
  %4907 = vdwg.mxu0
  %v4908 = vld [vmem:[%s6 + $0x6] sm:$0x1]
  %v4909 = vld [vmem:[%s6 + $0xe] sm:$0x1]
  %v4910 = vld [vmem:[%s6 + $0x16] sm:$0x1]
  %v4911 = vld [vmem:[%s6 + $0x1e] sm:$0x1]
  %v4912 = vld [vmem:[%s6 + $0x26] sm:$0x1]
  %v4913 = vld [vmem:[%s6 + $0x2e] sm:$0x1]
  %v4914 = vld [vmem:[%s6 + $0x36] sm:$0x1]
  %v4915 = vld [vmem:[%s6 + $0x3e] sm:$0x1]
  %v4924 = vrot.slane %v4909, 7
  %v4925 = vsel %vm152, %v4924, %v4908
  %v4926 = vrot.slane %v4910, 6
  %v4927 = vsel %vm155, %v4926, %v4925
  %v4928 = vrot.slane %v4911, 5
  %v4929 = vsel %vm158, %v4928, %v4927
  %v4930 = vrot.slane %v4912, 4
  %v4931 = vsel %vm161, %v4930, %v4929
  %v4932 = vrot.slane %v4913, 3
  %v4933 = vsel %vm164, %v4932, %v4931
  %v4934 = vrot.slane %v4914, 2
  %v4935 = vsel %vm167, %v4934, %v4933
  %v4936 = vrot.slane %v4915, 1
  %v4937 = vsel %vm170, %v4936, %v4935
  %v4938 = vsel %vm172, %v4937, 0
  %4940 = vmatprep.subr.mxu0 0.0
  %4941 = vmatpush1.msra.mxu0 %v2794
  %4942 = vmatprep.subr.mxu0 0.0
  %4943 = vmatpush1.msra.mxu0 0.0
  %4944 = vmatprep.subr.mxu0 0.0
  %4945 = vmatpush1.msra.mxu0 0.0
  %4946 = vmatprep.subr.mxu0 0.0
  %4947 = vmatpush1.msra.mxu0 0.0
  %4948 = vmatprep.subr.mxu0 0.0
  %4949 = vmatpush1.msra.mxu0 0.0
  %4950 = vmatprep.subr.mxu0 0.0
  %4951 = vmatpush1.msra.mxu0 0.0
  %4952 = vmatprep.subr.mxu0 0.0
  %4953 = vmatpush1.msra.mxu0 0.0
  %4954 = vmatprep.subr.mxu0 0.0
  %4955 = vmatpush1.msra.mxu0 0.0
  %4956 = vmatprep.subr.mxu0 0.0
  %4957 = vmatpush1.msra.mxu0 0.0
  %4958 = vmatprep.subr.mxu0 0.0
  %4959 = vmatpush1.msra.mxu0 0.0
  %4960 = vmatprep.subr.mxu0 0.0
  %4961 = vmatpush1.msra.mxu0 0.0
  %4962 = vmatprep.subr.mxu0 0.0
  %4963 = vmatpush1.msra.mxu0 0.0
  %4964 = vmatprep.subr.mxu0 0.0
  %4965 = vmatpush1.msra.mxu0 0.0
  %4966 = vmatprep.subr.mxu0 0.0
  %4967 = vmatpush1.msra.mxu0 0.0
  %4968 = vmatprep.subr.mxu0 0.0
  %4969 = vmatpush1.msra.mxu0 0.0
  %4970 = vmatprep.subr.mxu0 0.0
  %4971 = vmatpush1.msra.mxu0 0.0
  %4972 = vmatprep.subr.mxu0 0.0
  %4973 = vmatpush1.msra.mxu0 0.0
  %4974 = vmatprep.subr.mxu0 0.0
  %4975 = vmatpush1.msra.mxu0 0.0
  %4976 = vmatprep.subr.mxu0 0.0
  %4977 = vmatpush1.msra.mxu0 0.0
  %4978 = vmatprep.subr.mxu0 0.0
  %4979 = vmatpush1.msra.mxu0 0.0
  %4980 = vmatprep.subr.mxu0 0.0
  %4981 = vmatpush1.msra.mxu0 0.0
  %4982 = vmatprep.subr.mxu0 0.0
  %4983 = vmatpush1.msra.mxu0 0.0
  %4984 = vmatprep.subr.mxu0 0.0
  %4985 = vmatpush1.msra.mxu0 0.0
  %4986 = vmatprep.subr.mxu0 0.0
  %4987 = vmatpush1.msra.mxu0 0.0
  %4988 = vmatprep.subr.mxu0 0.0
  %4989 = vmatpush1.msra.mxu0 0.0
  %4990 = vmatprep.subr.mxu0 0.0
  %4991 = vmatpush1.msra.mxu0 0.0
  %4992 = vmatprep.subr.mxu0 0.0
  %4993 = vmatpush1.msra.mxu0 0.0
  %4994 = vmatprep.subr.mxu0 0.0
  %4995 = vmatpush1.msra.mxu0 0.0
  %4996 = vmatprep.subr.mxu0 0.0
  %4997 = vmatpush1.msra.mxu0 0.0
  %4998 = vmatprep.subr.mxu0 0.0
  %4999 = vmatpush1.msra.mxu0 0.0
  %5000 = vmatprep.subr.mxu0 0.0
  %5001 = vmatpush1.msra.mxu0 0.0
  %5002 = vmatprep.subr.mxu0 0.0
  %5003 = vmatpush1.msra.mxu0 0.0
  %5004 = vmatprep.mubr.f32.mxu0 0.0
  %5005 = vmatmul.mubr.f32.gmra.mrb[0].mxu0 %v4938
  %v5006 = vpop.f32.mrb[0].mxu0
  %v5007 = vadd.f32 %v2793, %v5006
  %v5008 = vpop.f32.mrb[0].mxu0
  %5009 = vdwg.mxu0
  %v5010 = vadd.f32 %v5007, %v4855
  %v5011 = vxor.u32 %v5010, 2147483648
  %v5012 = vmul.f32 %v5011, 1.442695
  %v5013 = vpow.pop %v5012
  %v5014 = vadd.f32 %v5013, 1.0
  %v5015 = vrcp.pop %v5014
  %v5016 = vmul.f32 1.0, %v5015
  %v5017 = vtanh.pop %v5010
  %v5018 = vmul.f32 %v5016, %v4666
  %5020 = vrot.lane.b32.xlu0 %v5017, 64
  %v5021 = vpop.permute.xlu0 %5020
  %v5023 = vmul.f32 %v5016, %v5021
  %5025 = vrot.lane.b32.xlu0 %v5023, 32
  %v5026 = vpop.permute.xlu0 %5025
  %v5028 = vadd.f32 %v5018, %v5026
  %v5029 = vtanh.pop %v5028
  %5031 = vrot.lane.b32.xlu0 %v5029, 64
  %v5032 = vpop.permute.xlu0 %5031
  %v5034 = vmul.f32 %v5016, %v5032
  %v5035 = vadd.f32 %v2808, %v4857
  %v5036 = vadd.f32 %v5035, %v4903
  %v5037 = vxor.u32 %v5036, 2147483648
  %v5038 = vmul.f32 %v5037, 1.442695
  %v5039 = vpow.pop %v5038
  %v5040 = vadd.f32 %v5039, 1.0
  %v5041 = vrcp.pop %v5040
  %v5042 = vmul.f32 1.0, %v5041
  %v5043 = vtanh.pop %v5036
  %v5044 = vmul.f32 %v5042, %v4692
  %5046 = vrot.lane.b32.xlu0 %v5043, 64
  %v5047 = vpop.permute.xlu0 %5046
  %v5049 = vmul.f32 %v5042, %v5047
  %5051 = vrot.lane.b32.xlu0 %v5049, 32
  %v5052 = vpop.permute.xlu0 %5051
  %v5054 = vadd.f32 %v5044, %v5052
  %v5055 = vtanh.pop %v5054
  %5057 = vrot.lane.b32.xlu0 %v5055, 64
  %v5058 = vpop.permute.xlu0 %5057
  %v5060 = vmul.f32 %v5042, %v5058
  %v5062 = vcombine.high %v5060, %v5060
  %v5064 = vunpack.c.l.s4 1966171168
  %v5065 = vunpack.c.0.s8 %v5064
  %v5066 = vlaneseq
  %v5067 = vshrl.u32 %v5066, 7
  %v5068 = vsub.s32 %v5065, %v5067
  %v5069 = vrot.slane %v5060, %v5068
  %v5071 = vunpack.c.l.s4 1966171168
  %v5072 = vunpack.c.0.s8 %v5071
  %v5073 = vlaneseq
  %v5074 = vshrl.u32 %v5073, 7
  %v5075 = vsub.s32 %v5072, %v5074
  %v5076 = vrot.slane %v5062, %v5075
  %v5077 = vcombine.high %v5069, %v5069
  %v5078 = vcombine.high %v5076, %v5076
  %v5080 = vunpack.c.l.s4 1966171168
  %v5081 = vunpack.c.0.s8 %v5080
  %v5082 = vlaneseq
  %v5083 = vshrl.u32 %v5082, 7
  %v5084 = vsub.s32 %v5081, %v5083
  %v5085 = vrot.slane %v5069, %v5084
  %v5087 = vunpack.c.l.s4 1966171168
  %v5088 = vunpack.c.0.s8 %v5087
  %v5089 = vlaneseq
  %v5090 = vshrl.u32 %v5089, 7
  %v5091 = vsub.s32 %v5088, %v5090
  %v5092 = vrot.slane %v5076, %v5091
  %v5094 = vunpack.c.l.s4 1966171168
  %v5095 = vunpack.c.0.s8 %v5094
  %v5096 = vlaneseq
  %v5097 = vshrl.u32 %v5096, 7
  %v5098 = vsub.s32 %v5095, %v5097
  %v5099 = vrot.slane %v5077, %v5098
  %v5101 = vunpack.c.l.s4 1966171168
  %v5102 = vunpack.c.0.s8 %v5101
  %v5103 = vlaneseq
  %v5104 = vshrl.u32 %v5103, 7
  %v5105 = vsub.s32 %v5102, %v5104
  %v5106 = vrot.slane %v5078, %v5105
  %v5107 = vcombine.high %v5085, %v5085
  %v5108 = vcombine.high %v5092, %v5092
  %v5109 = vcombine.high %v5099, %v5099
  %v5110 = vcombine.high %v5106, %v5106
  %v5111 = vlaneseq
  %v5112 = vshrl.u32 %v5111, 7
  %v5113 = vsub.s32 0, %v5112
  %v5114 = vrot.slane %v5085, %v5113
  %v5115 = vlaneseq
  %v5116 = vshrl.u32 %v5115, 7
  %v5117 = vsub.s32 0, %v5116
  %v5118 = vrot.slane %v5099, %v5117
  %v5119 = vlaneseq
  %v5120 = vshrl.u32 %v5119, 7
  %v5121 = vsub.s32 0, %v5120
  %v5122 = vrot.slane %v5107, %v5121
  %v5123 = vlaneseq
  %v5124 = vshrl.u32 %v5123, 7
  %v5125 = vsub.s32 0, %v5124
  %v5126 = vrot.slane %v5109, %v5125
  %v5127 = vlaneseq
  %v5128 = vshrl.u32 %v5127, 7
  %v5129 = vsub.s32 0, %v5128
  %v5130 = vrot.slane %v5092, %v5129
  %v5131 = vlaneseq
  %v5132 = vshrl.u32 %v5131, 7
  %v5133 = vsub.s32 0, %v5132
  %v5134 = vrot.slane %v5106, %v5133
  %v5135 = vlaneseq
  %v5136 = vshrl.u32 %v5135, 7
  %v5137 = vsub.s32 0, %v5136
  %v5138 = vrot.slane %v5108, %v5137
  %v5139 = vlaneseq
  %v5140 = vshrl.u32 %v5139, 7
  %v5141 = vsub.s32 0, %v5140
  %v5142 = vrot.slane %v5110, %v5141
  %5143 = vrot.lane.b32.xlu0 %v5114, 32
  %v5144 = vpop.permute.xlu0 %5143
  %5145 = vrot.lane.b32.xlu0 %v5118, 32
  %v5146 = vpop.permute.xlu0 %5145
  %5147 = vrot.lane.b32.xlu0 %v5122, 32
  %v5148 = vpop.permute.xlu0 %5147
  %5149 = vrot.lane.b32.xlu0 %v5126, 32
  %v5150 = vpop.permute.xlu0 %5149
  %5151 = vrot.lane.b32.xlu0 %v5130, 32
  %v5152 = vpop.permute.xlu0 %5151
  %5153 = vrot.lane.b32.xlu0 %v5134, 32
  %v5154 = vpop.permute.xlu0 %5153
  %5155 = vrot.lane.b32.xlu0 %v5138, 32
  %v5156 = vpop.permute.xlu0 %5155
  %5157 = vrot.lane.b32.xlu0 %v5142, 32
  %v5158 = vpop.permute.xlu0 %5157
  %5167 = vst.msk [vmem:[%s13 + $0x5] sm:$0x1] %vm3356, %v5144
  %5168 = vst.msk [vmem:[%s13 + $0xd] sm:$0x1] %vm3356, %v5146
  %5169 = vst.msk [vmem:[%s13 + $0x15] sm:$0x1] %vm3356, %v5148
  %5170 = vst.msk [vmem:[%s13 + $0x1d] sm:$0x1] %vm3356, %v5150
  %5171 = vst.msk [vmem:[%s13 + $0x25] sm:$0x1] %vm3356, %v5152
  %5172 = vst.msk [vmem:[%s13 + $0x2d] sm:$0x1] %vm3356, %v5154
  %5173 = vst.msk [vmem:[%s13 + $0x35] sm:$0x1] %vm3356, %v5156
  %5174 = vst.msk [vmem:[%s13 + $0x3d] sm:$0x1] %vm3356, %v5158
  %v5175 = vpack.c.bf16 %v5034, %v5034
  %5177 = vrot.lane.b32.xlu0 %v5175, 32
  %v5178 = vpop.permute.xlu0 %5177
  %v5180 = vsel %vm91, %v5178, 0
  %5182 = vmatprep.subr.bf16.mxu0 %v2823
  %5183 = vmatpush1.bf16.msra.mxu0 %v2822
  %5184 = vmatprep.subr.bf16.mxu0 %v2825
  %5185 = vmatpush1.bf16.msra.mxu0 %v2824
  %5186 = vmatprep.subr.bf16.mxu0 0
  %5187 = vmatpush1.bf16.msra.mxu0 0
  %5188 = vmatprep.subr.bf16.mxu0 0
  %5189 = vmatpush1.bf16.msra.mxu0 0
  %5190 = vmatprep.subr.bf16.mxu0 0
  %5191 = vmatpush1.bf16.msra.mxu0 0
  %5192 = vmatprep.subr.bf16.mxu0 0
  %5193 = vmatpush1.bf16.msra.mxu0 0
  %5194 = vmatprep.subr.bf16.mxu0 0
  %5195 = vmatpush1.bf16.msra.mxu0 0
  %5196 = vmatprep.subr.bf16.mxu0 0
  %5197 = vmatpush1.bf16.msra.mxu0 0
  %5198 = vmatprep.subr.bf16.mxu0 0
  %5199 = vmatpush1.bf16.msra.mxu0 0
  %5200 = vmatprep.subr.bf16.mxu0 0
  %5201 = vmatpush1.bf16.msra.mxu0 0
  %5202 = vmatprep.subr.bf16.mxu0 0
  %5203 = vmatpush1.bf16.msra.mxu0 0
  %5204 = vmatprep.subr.bf16.mxu0 0
  %5205 = vmatpush1.bf16.msra.mxu0 0
  %5206 = vmatprep.subr.bf16.mxu0 0
  %5207 = vmatpush1.bf16.msra.mxu0 0
  %5208 = vmatprep.subr.bf16.mxu0 0
  %5209 = vmatpush1.bf16.msra.mxu0 0
  %5210 = vmatprep.subr.bf16.mxu0 0
  %5211 = vmatpush1.bf16.msra.mxu0 0
  %5212 = vmatprep.subr.bf16.mxu0 0
  %5213 = vmatpush1.bf16.msra.mxu0 0
  %5214 = vmatprep.mubr.bf16.mxu0 0
  %5215 = vmatmul.mubr.bf16.gmra.mrb[0].mxu0 %v5180
  %v5216 = vpop.f32.mrb[0].mxu0
  %v5217 = vadd.f32 0.0, %v5216
  %v5218 = vpop.f32.mrb[0].mxu0
  %v5219 = vadd.f32 0.0, %v5218
  %v5220 = vpop.f32.mrb[0].mxu0
  %v5221 = vpop.f32.mrb[0].mxu0
  %5222 = vdwg.mxu0
  %v5223 = vpack.c.bf16 %v5060, %v5060
  %5225 = vrot.lane.b32.xlu0 %v5223, 32
  %v5226 = vpop.permute.xlu0 %5225
  %v5228 = vsel %vm91, %v5226, 0
  %5230 = vmatprep.subr.bf16.mxu0 0
  %5231 = vmatpush1.bf16.msra.mxu0 %v3053
  %5232 = vmatprep.subr.bf16.mxu0 0
  %5233 = vmatpush1.bf16.msra.mxu0 %v3054
  %5234 = vmatprep.subr.bf16.mxu0 0
  %5235 = vmatpush1.bf16.msra.mxu0 0
  %5236 = vmatprep.subr.bf16.mxu0 0
  %5237 = vmatpush1.bf16.msra.mxu0 0
  %5238 = vmatprep.subr.bf16.mxu0 0
  %5239 = vmatpush1.bf16.msra.mxu0 0
  %5240 = vmatprep.subr.bf16.mxu0 0
  %5241 = vmatpush1.bf16.msra.mxu0 0
  %5242 = vmatprep.subr.bf16.mxu0 0
  %5243 = vmatpush1.bf16.msra.mxu0 0
  %5244 = vmatprep.subr.bf16.mxu0 0
  %5245 = vmatpush1.bf16.msra.mxu0 0
  %5246 = vmatprep.subr.bf16.mxu0 0
  %5247 = vmatpush1.bf16.msra.mxu0 0
  %5248 = vmatprep.subr.bf16.mxu0 0
  %5249 = vmatpush1.bf16.msra.mxu0 0
  %5250 = vmatprep.subr.bf16.mxu0 0
  %5251 = vmatpush1.bf16.msra.mxu0 0
  %5252 = vmatprep.subr.bf16.mxu0 0
  %5253 = vmatpush1.bf16.msra.mxu0 0
  %5254 = vmatprep.subr.bf16.mxu0 0
  %5255 = vmatpush1.bf16.msra.mxu0 0
  %5256 = vmatprep.subr.bf16.mxu0 0
  %5257 = vmatpush1.bf16.msra.mxu0 0
  %5258 = vmatprep.subr.bf16.mxu0 0
  %5259 = vmatpush1.bf16.msra.mxu0 0
  %5260 = vmatprep.subr.bf16.mxu0 0
  %5261 = vmatpush1.bf16.msra.mxu0 0
  %5262 = vmatprep.mubr.bf16.mxu0 0
  %5263 = vmatmul.mubr.bf16.gmra.mrb[0].mxu0 %v5228
  %v5264 = vpop.f32.mrb[0].mxu0
  %v5265 = vadd.f32 0.0, %v5264
  %v5266 = vpop.f32.mrb[0].mxu0
  %v5267 = vpop.f32.mrb[0].mxu0
  %v5268 = vpop.f32.mrb[0].mxu0
  %5269 = vdwg.mxu0
  %v5270 = vld [vmem:[%s6 + $0x7] sm:$0x1]
  %v5271 = vld [vmem:[%s6 + $0xf] sm:$0x1]
  %v5272 = vld [vmem:[%s6 + $0x17] sm:$0x1]
  %v5273 = vld [vmem:[%s6 + $0x1f] sm:$0x1]
  %v5274 = vld [vmem:[%s6 + $0x27] sm:$0x1]
  %v5275 = vld [vmem:[%s6 + $0x2f] sm:$0x1]
  %v5276 = vld [vmem:[%s6 + $0x37] sm:$0x1]
  %v5277 = vld [vmem:[%s6 + $0x3f] sm:$0x1]
  %v5286 = vrot.slane %v5271, 7
  %v5287 = vsel %vm152, %v5286, %v5270
  %v5288 = vrot.slane %v5272, 6
  %v5289 = vsel %vm155, %v5288, %v5287
  %v5290 = vrot.slane %v5273, 5
  %v5291 = vsel %vm158, %v5290, %v5289
  %v5292 = vrot.slane %v5274, 4
  %v5293 = vsel %vm161, %v5292, %v5291
  %v5294 = vrot.slane %v5275, 3
  %v5295 = vsel %vm164, %v5294, %v5293
  %v5296 = vrot.slane %v5276, 2
  %v5297 = vsel %vm167, %v5296, %v5295
  %v5298 = vrot.slane %v5277, 1
  %v5299 = vsel %vm170, %v5298, %v5297
  %v5300 = vsel %vm172, %v5299, 0
  %5302 = vmatprep.subr.mxu0 0.0
  %5303 = vmatpush1.msra.mxu0 %v2794
  %5304 = vmatprep.subr.mxu0 0.0
  %5305 = vmatpush1.msra.mxu0 0.0
  %5306 = vmatprep.subr.mxu0 0.0
  %5307 = vmatpush1.msra.mxu0 0.0
  %5308 = vmatprep.subr.mxu0 0.0
  %5309 = vmatpush1.msra.mxu0 0.0
  %5310 = vmatprep.subr.mxu0 0.0
  %5311 = vmatpush1.msra.mxu0 0.0
  %5312 = vmatprep.subr.mxu0 0.0
  %5313 = vmatpush1.msra.mxu0 0.0
  %5314 = vmatprep.subr.mxu0 0.0
  %5315 = vmatpush1.msra.mxu0 0.0
  %5316 = vmatprep.subr.mxu0 0.0
  %5317 = vmatpush1.msra.mxu0 0.0
  %5318 = vmatprep.subr.mxu0 0.0
  %5319 = vmatpush1.msra.mxu0 0.0
  %5320 = vmatprep.subr.mxu0 0.0
  %5321 = vmatpush1.msra.mxu0 0.0
  %5322 = vmatprep.subr.mxu0 0.0
  %5323 = vmatpush1.msra.mxu0 0.0
  %5324 = vmatprep.subr.mxu0 0.0
  %5325 = vmatpush1.msra.mxu0 0.0
  %5326 = vmatprep.subr.mxu0 0.0
  %5327 = vmatpush1.msra.mxu0 0.0
  %5328 = vmatprep.subr.mxu0 0.0
  %5329 = vmatpush1.msra.mxu0 0.0
  %5330 = vmatprep.subr.mxu0 0.0
  %5331 = vmatpush1.msra.mxu0 0.0
  %5332 = vmatprep.subr.mxu0 0.0
  %5333 = vmatpush1.msra.mxu0 0.0
  %5334 = vmatprep.subr.mxu0 0.0
  %5335 = vmatpush1.msra.mxu0 0.0
  %5336 = vmatprep.subr.mxu0 0.0
  %5337 = vmatpush1.msra.mxu0 0.0
  %5338 = vmatprep.subr.mxu0 0.0
  %5339 = vmatpush1.msra.mxu0 0.0
  %5340 = vmatprep.subr.mxu0 0.0
  %5341 = vmatpush1.msra.mxu0 0.0
  %5342 = vmatprep.subr.mxu0 0.0
  %5343 = vmatpush1.msra.mxu0 0.0
  %5344 = vmatprep.subr.mxu0 0.0
  %5345 = vmatpush1.msra.mxu0 0.0
  %5346 = vmatprep.subr.mxu0 0.0
  %5347 = vmatpush1.msra.mxu0 0.0
  %5348 = vmatprep.subr.mxu0 0.0
  %5349 = vmatpush1.msra.mxu0 0.0
  %5350 = vmatprep.subr.mxu0 0.0
  %5351 = vmatpush1.msra.mxu0 0.0
  %5352 = vmatprep.subr.mxu0 0.0
  %5353 = vmatpush1.msra.mxu0 0.0
  %5354 = vmatprep.subr.mxu0 0.0
  %5355 = vmatpush1.msra.mxu0 0.0
  %5356 = vmatprep.subr.mxu0 0.0
  %5357 = vmatpush1.msra.mxu0 0.0
  %5358 = vmatprep.subr.mxu0 0.0
  %5359 = vmatpush1.msra.mxu0 0.0
  %5360 = vmatprep.subr.mxu0 0.0
  %5361 = vmatpush1.msra.mxu0 0.0
  %5362 = vmatprep.subr.mxu0 0.0
  %5363 = vmatpush1.msra.mxu0 0.0
  %5364 = vmatprep.subr.mxu0 0.0
  %5365 = vmatpush1.msra.mxu0 0.0
  %5366 = vmatprep.mubr.f32.mxu0 0.0
  %5367 = vmatmul.mubr.f32.gmra.mrb[0].mxu0 %v5300
  %v5368 = vpop.f32.mrb[0].mxu0
  %v5369 = vadd.f32 %v2793, %v5368
  %v5370 = vpop.f32.mrb[0].mxu0
  %5371 = vdwg.mxu0
  %v5372 = vadd.f32 %v5369, %v5217
  %v5373 = vxor.u32 %v5372, 2147483648
  %v5374 = vmul.f32 %v5373, 1.442695
  %v5375 = vpow.pop %v5374
  %v5376 = vadd.f32 %v5375, 1.0
  %v5377 = vrcp.pop %v5376
  %v5378 = vmul.f32 1.0, %v5377
  %v5379 = vtanh.pop %v5372
  %v5380 = vmul.f32 %v5378, %v5028
  %5382 = vrot.lane.b32.xlu0 %v5379, 64
  %v5383 = vpop.permute.xlu0 %5382
  %v5385 = vmul.f32 %v5378, %v5383
  %5387 = vrot.lane.b32.xlu0 %v5385, 32
  %v5388 = vpop.permute.xlu0 %5387
  %v5390 = vadd.f32 %v5380, %v5388
  %v5391 = vtanh.pop %v5390
  %5393 = vrot.lane.b32.xlu0 %v5391, 64
  %v5394 = vpop.permute.xlu0 %5393
  %v5396 = vmul.f32 %v5378, %v5394
  %v5397 = vadd.f32 %v2808, %v5219
  %v5398 = vadd.f32 %v5397, %v5265
  %v5399 = vxor.u32 %v5398, 2147483648
  %v5400 = vmul.f32 %v5399, 1.442695
  %v5401 = vpow.pop %v5400
  %v5402 = vadd.f32 %v5401, 1.0
  %v5403 = vrcp.pop %v5402
  %v5404 = vmul.f32 1.0, %v5403
  %v5405 = vtanh.pop %v5398
  %v5406 = vmul.f32 %v5404, %v5054
  %5408 = vrot.lane.b32.xlu0 %v5405, 64
  %v5409 = vpop.permute.xlu0 %5408
  %v5411 = vmul.f32 %v5404, %v5409
  %5413 = vrot.lane.b32.xlu0 %v5411, 32
  %v5414 = vpop.permute.xlu0 %5413
  %v5416 = vadd.f32 %v5406, %v5414
  %v5417 = vtanh.pop %v5416
  %5419 = vrot.lane.b32.xlu0 %v5417, 64
  %v5420 = vpop.permute.xlu0 %5419
  %v5422 = vmul.f32 %v5404, %v5420
  %v5424 = vcombine.high %v5422, %v5422
  %v5426 = vunpack.c.l.s4 1966171168
  %v5427 = vunpack.c.0.s8 %v5426
  %v5428 = vlaneseq
  %v5429 = vshrl.u32 %v5428, 7
  %v5430 = vsub.s32 %v5427, %v5429
  %v5431 = vrot.slane %v5422, %v5430
  %v5433 = vunpack.c.l.s4 1966171168
  %v5434 = vunpack.c.0.s8 %v5433
  %v5435 = vlaneseq
  %v5436 = vshrl.u32 %v5435, 7
  %v5437 = vsub.s32 %v5434, %v5436
  %v5438 = vrot.slane %v5424, %v5437
  %v5439 = vcombine.high %v5431, %v5431
  %v5440 = vcombine.high %v5438, %v5438
  %v5442 = vunpack.c.l.s4 1966171168
  %v5443 = vunpack.c.0.s8 %v5442
  %v5444 = vlaneseq
  %v5445 = vshrl.u32 %v5444, 7
  %v5446 = vsub.s32 %v5443, %v5445
  %v5447 = vrot.slane %v5431, %v5446
  %v5449 = vunpack.c.l.s4 1966171168
  %v5450 = vunpack.c.0.s8 %v5449
  %v5451 = vlaneseq
  %v5452 = vshrl.u32 %v5451, 7
  %v5453 = vsub.s32 %v5450, %v5452
  %v5454 = vrot.slane %v5438, %v5453
  %v5456 = vunpack.c.l.s4 1966171168
  %v5457 = vunpack.c.0.s8 %v5456
  %v5458 = vlaneseq
  %v5459 = vshrl.u32 %v5458, 7
  %v5460 = vsub.s32 %v5457, %v5459
  %v5461 = vrot.slane %v5439, %v5460
  %v5463 = vunpack.c.l.s4 1966171168
  %v5464 = vunpack.c.0.s8 %v5463
  %v5465 = vlaneseq
  %v5466 = vshrl.u32 %v5465, 7
  %v5467 = vsub.s32 %v5464, %v5466
  %v5468 = vrot.slane %v5440, %v5467
  %v5469 = vcombine.high %v5447, %v5447
  %v5470 = vcombine.high %v5454, %v5454
  %v5471 = vcombine.high %v5461, %v5461
  %v5472 = vcombine.high %v5468, %v5468
  %v5473 = vlaneseq
  %v5474 = vshrl.u32 %v5473, 7
  %v5475 = vsub.s32 0, %v5474
  %v5476 = vrot.slane %v5447, %v5475
  %v5477 = vlaneseq
  %v5478 = vshrl.u32 %v5477, 7
  %v5479 = vsub.s32 0, %v5478
  %v5480 = vrot.slane %v5461, %v5479
  %v5481 = vlaneseq
  %v5482 = vshrl.u32 %v5481, 7
  %v5483 = vsub.s32 0, %v5482
  %v5484 = vrot.slane %v5469, %v5483
  %v5485 = vlaneseq
  %v5486 = vshrl.u32 %v5485, 7
  %v5487 = vsub.s32 0, %v5486
  %v5488 = vrot.slane %v5471, %v5487
  %v5489 = vlaneseq
  %v5490 = vshrl.u32 %v5489, 7
  %v5491 = vsub.s32 0, %v5490
  %v5492 = vrot.slane %v5454, %v5491
  %v5493 = vlaneseq
  %v5494 = vshrl.u32 %v5493, 7
  %v5495 = vsub.s32 0, %v5494
  %v5496 = vrot.slane %v5468, %v5495
  %v5497 = vlaneseq
  %v5498 = vshrl.u32 %v5497, 7
  %v5499 = vsub.s32 0, %v5498
  %v5500 = vrot.slane %v5470, %v5499
  %v5501 = vlaneseq
  %v5502 = vshrl.u32 %v5501, 7
  %v5503 = vsub.s32 0, %v5502
  %v5504 = vrot.slane %v5472, %v5503
  %5505 = vrot.lane.b32.xlu0 %v5476, 32
  %v5506 = vpop.permute.xlu0 %5505
  %5507 = vrot.lane.b32.xlu0 %v5480, 32
  %v5508 = vpop.permute.xlu0 %5507
  %5509 = vrot.lane.b32.xlu0 %v5484, 32
  %v5510 = vpop.permute.xlu0 %5509
  %5511 = vrot.lane.b32.xlu0 %v5488, 32
  %v5512 = vpop.permute.xlu0 %5511
  %5513 = vrot.lane.b32.xlu0 %v5492, 32
  %v5514 = vpop.permute.xlu0 %5513
  %5515 = vrot.lane.b32.xlu0 %v5496, 32
  %v5516 = vpop.permute.xlu0 %5515
  %5517 = vrot.lane.b32.xlu0 %v5500, 32
  %v5518 = vpop.permute.xlu0 %5517
  %5519 = vrot.lane.b32.xlu0 %v5504, 32
  %v5520 = vpop.permute.xlu0 %5519
  %5529 = vst.msk [vmem:[%s13 + $0x6] sm:$0x1] %vm3356, %v5506
  %5530 = vst.msk [vmem:[%s13 + $0xe] sm:$0x1] %vm3356, %v5508
  %5531 = vst.msk [vmem:[%s13 + $0x16] sm:$0x1] %vm3356, %v5510
  %5532 = vst.msk [vmem:[%s13 + $0x1e] sm:$0x1] %vm3356, %v5512
  %5533 = vst.msk [vmem:[%s13 + $0x26] sm:$0x1] %vm3356, %v5514
  %5534 = vst.msk [vmem:[%s13 + $0x2e] sm:$0x1] %vm3356, %v5516
  %5535 = vst.msk [vmem:[%s13 + $0x36] sm:$0x1] %vm3356, %v5518
  %5536 = vst.msk [vmem:[%s13 + $0x3e] sm:$0x1] %vm3356, %v5520
  %v5537 = vpack.c.bf16 %v5396, %v5396
  %5539 = vrot.lane.b32.xlu0 %v5537, 32
  %v5540 = vpop.permute.xlu0 %5539
  %v5542 = vsel %vm91, %v5540, 0
  %5544 = vmatprep.subr.bf16.mxu0 %v2823
  %5545 = vmatpush1.bf16.msra.mxu0 %v2822
  %5546 = vmatprep.subr.bf16.mxu0 %v2825
  %5547 = vmatpush1.bf16.msra.mxu0 %v2824
  %5548 = vmatprep.subr.bf16.mxu0 0
  %5549 = vmatpush1.bf16.msra.mxu0 0
  %5550 = vmatprep.subr.bf16.mxu0 0
  %5551 = vmatpush1.bf16.msra.mxu0 0
  %5552 = vmatprep.subr.bf16.mxu0 0
  %5553 = vmatpush1.bf16.msra.mxu0 0
  %5554 = vmatprep.subr.bf16.mxu0 0
  %5555 = vmatpush1.bf16.msra.mxu0 0
  %5556 = vmatprep.subr.bf16.mxu0 0
  %5557 = vmatpush1.bf16.msra.mxu0 0
  %5558 = vmatprep.subr.bf16.mxu0 0
  %5559 = vmatpush1.bf16.msra.mxu0 0
  %5560 = vmatprep.subr.bf16.mxu0 0
  %5561 = vmatpush1.bf16.msra.mxu0 0
  %5562 = vmatprep.subr.bf16.mxu0 0
  %5563 = vmatpush1.bf16.msra.mxu0 0
  %5564 = vmatprep.subr.bf16.mxu0 0
  %5565 = vmatpush1.bf16.msra.mxu0 0
  %5566 = vmatprep.subr.bf16.mxu0 0
  %5567 = vmatpush1.bf16.msra.mxu0 0
  %5568 = vmatprep.subr.bf16.mxu0 0
  %5569 = vmatpush1.bf16.msra.mxu0 0
  %5570 = vmatprep.subr.bf16.mxu0 0
  %5571 = vmatpush1.bf16.msra.mxu0 0
  %5572 = vmatprep.subr.bf16.mxu0 0
  %5573 = vmatpush1.bf16.msra.mxu0 0
  %5574 = vmatprep.subr.bf16.mxu0 0
  %5575 = vmatpush1.bf16.msra.mxu0 0
  %5576 = vmatprep.mubr.bf16.mxu0 0
  %5577 = vmatmul.mubr.bf16.gmra.mrb[0].mxu0 %v5542
  %v5578 = vpop.f32.mrb[0].mxu0
  %v5579 = vpop.f32.mrb[0].mxu0
  %v5580 = vadd.f32 0.0, %v5579
  %v5581 = vpop.f32.mrb[0].mxu0
  %v5582 = vpop.f32.mrb[0].mxu0
  %5583 = vdwg.mxu0
  %v5584 = vpack.c.bf16 %v5422, %v5422
  %5586 = vrot.lane.b32.xlu0 %v5584, 32
  %v5587 = vpop.permute.xlu0 %5586
  %v5589 = vsel %vm91, %v5587, 0
  %5591 = vmatprep.subr.bf16.mxu0 0
  %5592 = vmatpush1.bf16.msra.mxu0 %v3053
  %5593 = vmatprep.subr.bf16.mxu0 0
  %5594 = vmatpush1.bf16.msra.mxu0 %v3054
  %5595 = vmatprep.subr.bf16.mxu0 0
  %5596 = vmatpush1.bf16.msra.mxu0 0
  %5597 = vmatprep.subr.bf16.mxu0 0
  %5598 = vmatpush1.bf16.msra.mxu0 0
  %5599 = vmatprep.subr.bf16.mxu0 0
  %5600 = vmatpush1.bf16.msra.mxu0 0
  %5601 = vmatprep.subr.bf16.mxu0 0
  %5602 = vmatpush1.bf16.msra.mxu0 0
  %5603 = vmatprep.subr.bf16.mxu0 0
  %5604 = vmatpush1.bf16.msra.mxu0 0
  %5605 = vmatprep.subr.bf16.mxu0 0
  %5606 = vmatpush1.bf16.msra.mxu0 0
  %5607 = vmatprep.subr.bf16.mxu0 0
  %5608 = vmatpush1.bf16.msra.mxu0 0
  %5609 = vmatprep.subr.bf16.mxu0 0
  %5610 = vmatpush1.bf16.msra.mxu0 0
  %5611 = vmatprep.subr.bf16.mxu0 0
  %5612 = vmatpush1.bf16.msra.mxu0 0
  %5613 = vmatprep.subr.bf16.mxu0 0
  %5614 = vmatpush1.bf16.msra.mxu0 0
  %5615 = vmatprep.subr.bf16.mxu0 0
  %5616 = vmatpush1.bf16.msra.mxu0 0
  %5617 = vmatprep.subr.bf16.mxu0 0
  %5618 = vmatpush1.bf16.msra.mxu0 0
  %5619 = vmatprep.subr.bf16.mxu0 0
  %5620 = vmatpush1.bf16.msra.mxu0 0
  %5621 = vmatprep.subr.bf16.mxu0 0
  %5622 = vmatpush1.bf16.msra.mxu0 0
  %5623 = vmatprep.mubr.bf16.mxu0 0
  %5624 = vmatmul.mubr.bf16.gmra.mrb[0].mxu0 %v5589
  %v5625 = vpop.f32.mrb[0].mxu0
  %v5626 = vadd.f32 0.0, %v5625
  %v5627 = vpop.f32.mrb[0].mxu0
  %v5628 = vpop.f32.mrb[0].mxu0
  %v5629 = vpop.f32.mrb[0].mxu0
  %5630 = vdwg.mxu0
  %v5631 = vadd.f32 %v2808, %v5580
  %v5632 = vadd.f32 %v5631, %v5626
  %v5633 = vxor.u32 %v5632, 2147483648
  %v5634 = vmul.f32 %v5633, 1.442695
  %v5635 = vpow.pop %v5634
  %v5636 = vadd.f32 %v5635, 1.0
  %v5637 = vrcp.pop %v5636
  %v5638 = vmul.f32 1.0, %v5637
  %v5639 = vtanh.pop %v5632
  %v5640 = vmul.f32 %v5638, %v5416
  %5642 = vrot.lane.b32.xlu0 %v5639, 64
  %v5643 = vpop.permute.xlu0 %5642
  %v5645 = vmul.f32 %v5638, %v5643
  %5647 = vrot.lane.b32.xlu0 %v5645, 32
  %v5648 = vpop.permute.xlu0 %5647
  %v5650 = vadd.f32 %v5640, %v5648
  %v5651 = vtanh.pop %v5650
  %5653 = vrot.lane.b32.xlu0 %v5651, 64
  %v5654 = vpop.permute.xlu0 %5653
  %v5656 = vmul.f32 %v5638, %v5654
  %v5658 = vcombine.high %v5656, %v5656
  %v5660 = vunpack.c.l.s4 1966171168
  %v5661 = vunpack.c.0.s8 %v5660
  %v5662 = vlaneseq
  %v5663 = vshrl.u32 %v5662, 7
  %v5664 = vsub.s32 %v5661, %v5663
  %v5665 = vrot.slane %v5656, %v5664
  %v5667 = vunpack.c.l.s4 1966171168
  %v5668 = vunpack.c.0.s8 %v5667
  %v5669 = vlaneseq
  %v5670 = vshrl.u32 %v5669, 7
  %v5671 = vsub.s32 %v5668, %v5670
  %v5672 = vrot.slane %v5658, %v5671
  %v5673 = vcombine.high %v5665, %v5665
  %v5674 = vcombine.high %v5672, %v5672
  %v5676 = vunpack.c.l.s4 1966171168
  %v5677 = vunpack.c.0.s8 %v5676
  %v5678 = vlaneseq
  %v5679 = vshrl.u32 %v5678, 7
  %v5680 = vsub.s32 %v5677, %v5679
  %v5681 = vrot.slane %v5665, %v5680
  %v5683 = vunpack.c.l.s4 1966171168
  %v5684 = vunpack.c.0.s8 %v5683
  %v5685 = vlaneseq
  %v5686 = vshrl.u32 %v5685, 7
  %v5687 = vsub.s32 %v5684, %v5686
  %v5688 = vrot.slane %v5672, %v5687
  %v5690 = vunpack.c.l.s4 1966171168
  %v5691 = vunpack.c.0.s8 %v5690
  %v5692 = vlaneseq
  %v5693 = vshrl.u32 %v5692, 7
  %v5694 = vsub.s32 %v5691, %v5693
  %v5695 = vrot.slane %v5673, %v5694
  %v5697 = vunpack.c.l.s4 1966171168
  %v5698 = vunpack.c.0.s8 %v5697
  %v5699 = vlaneseq
  %v5700 = vshrl.u32 %v5699, 7
  %v5701 = vsub.s32 %v5698, %v5700
  %v5702 = vrot.slane %v5674, %v5701
  %v5703 = vcombine.high %v5681, %v5681
  %v5704 = vcombine.high %v5688, %v5688
  %v5705 = vcombine.high %v5695, %v5695
  %v5706 = vcombine.high %v5702, %v5702
  %v5707 = vlaneseq
  %v5708 = vshrl.u32 %v5707, 7
  %v5709 = vsub.s32 0, %v5708
  %v5710 = vrot.slane %v5681, %v5709
  %v5711 = vlaneseq
  %v5712 = vshrl.u32 %v5711, 7
  %v5713 = vsub.s32 0, %v5712
  %v5714 = vrot.slane %v5695, %v5713
  %v5715 = vlaneseq
  %v5716 = vshrl.u32 %v5715, 7
  %v5717 = vsub.s32 0, %v5716
  %v5718 = vrot.slane %v5703, %v5717
  %v5719 = vlaneseq
  %v5720 = vshrl.u32 %v5719, 7
  %v5721 = vsub.s32 0, %v5720
  %v5722 = vrot.slane %v5705, %v5721
  %v5723 = vlaneseq
  %v5724 = vshrl.u32 %v5723, 7
  %v5725 = vsub.s32 0, %v5724
  %v5726 = vrot.slane %v5688, %v5725
  %v5727 = vlaneseq
  %v5728 = vshrl.u32 %v5727, 7
  %v5729 = vsub.s32 0, %v5728
  %v5730 = vrot.slane %v5702, %v5729
  %v5731 = vlaneseq
  %v5732 = vshrl.u32 %v5731, 7
  %v5733 = vsub.s32 0, %v5732
  %v5734 = vrot.slane %v5704, %v5733
  %v5735 = vlaneseq
  %v5736 = vshrl.u32 %v5735, 7
  %v5737 = vsub.s32 0, %v5736
  %v5738 = vrot.slane %v5706, %v5737
  %5739 = vrot.lane.b32.xlu0 %v5710, 32
  %v5740 = vpop.permute.xlu0 %5739
  %5741 = vrot.lane.b32.xlu0 %v5714, 32
  %v5742 = vpop.permute.xlu0 %5741
  %5743 = vrot.lane.b32.xlu0 %v5718, 32
  %v5744 = vpop.permute.xlu0 %5743
  %5745 = vrot.lane.b32.xlu0 %v5722, 32
  %v5746 = vpop.permute.xlu0 %5745
  %5747 = vrot.lane.b32.xlu0 %v5726, 32
  %v5748 = vpop.permute.xlu0 %5747
  %5749 = vrot.lane.b32.xlu0 %v5730, 32
  %v5750 = vpop.permute.xlu0 %5749
  %5751 = vrot.lane.b32.xlu0 %v5734, 32
  %v5752 = vpop.permute.xlu0 %5751
  %5753 = vrot.lane.b32.xlu0 %v5738, 32
  %v5754 = vpop.permute.xlu0 %5753
  %5763 = vst.msk [vmem:[%s13 + $0x7] sm:$0x1] %vm3356, %v5740
  %5764 = vst.msk [vmem:[%s13 + $0xf] sm:$0x1] %vm3356, %v5742
  %5765 = vst.msk [vmem:[%s13 + $0x17] sm:$0x1] %vm3356, %v5744
  %5766 = vst.msk [vmem:[%s13 + $0x1f] sm:$0x1] %vm3356, %v5746
  %5767 = vst.msk [vmem:[%s13 + $0x27] sm:$0x1] %vm3356, %v5748
  %5768 = vst.msk [vmem:[%s13 + $0x2f] sm:$0x1] %vm3356, %v5750
  %5769 = vst.msk [vmem:[%s13 + $0x37] sm:$0x1] %vm3356, %v5752
  %5770 = vst.msk [vmem:[%s13 + $0x3f] sm:$0x1] %vm3356, %v5754
  %5772 = vrot.lane.b32.xlu0 %v5396, 32
  %v5773 = vpop.permute.xlu0 %5772
  %5775 = vst.msk [vmem:[%s14] sm:$0xff] %vm91, %v5773
  %5777 = vrot.lane.b32.xlu0 %v5390, 96
  %v5778 = vpop.permute.xlu0 %5777
  %5780 = vst.msk [vmem:[%s15] sm:$0xff] %vm91, %v5778
  %5781 = vrot.lane.b32.xlu0 %v5656, 32
  %v5782 = vpop.permute.xlu0 %5781
  %s5784 = scalar_lea.vmem %s14, 8
  %5785 = vst.msk [vmem:[%s5784] sm:$0xff] %vm91, %v5782
  %5787 = vrot.lane.b32.xlu0 %v5650, 96
  %v5788 = vpop.permute.xlu0 %5787
  %s5790 = scalar_lea.vmem %s15, 8
  %5791 = vst.msk [vmem:[%s5790] sm:$0xff] %vm91, %v5788
  // Predicated region
  $region54: #{lstm_site_embedding_forward.1} parent=0 // pred_check
    _
  $region55: #{lstm_site_embedding_forward.1} parent=0 // pred_check_branch
    %5793 = sbr.rel (0) target = $region57
  $region56: #{lstm_site_embedding_forward.1} parent=0 // pred_region
    _
  $region57: #{lstm_site_embedding_forward.1} parent=0 // pred_fallthru
    _
  // Predicated region
  $region58: #{lstm_site_embedding_forward.1} parent=0 // pred_check
    _
  $region59: #{lstm_site_embedding_forward.1} parent=0 // pred_check_branch
    %5795 = sbr.rel (0) target = $region61
  $region60: #{lstm_site_embedding_forward.1} parent=0 // pred_region
    _
  $region61: #{lstm_site_embedding_forward.1} parent=0 // pred_fallthru
    _
  // Predicated region
  $region62: #{lstm_site_embedding_forward.1} parent=0 // pred_check
    _
  $region63: #{lstm_site_embedding_forward.1} parent=0 // pred_check_branch
    %5797 = sbr.rel (0) target = $region65
  $region64: #{lstm_site_embedding_forward.1} parent=0 // pred_region
    _
  $region65: #{lstm_site_embedding_forward.1} parent=0 // pred_fallthru
    _
  // Predicated region
  $region66: #{lstm_site_embedding_forward.1} parent=0 // pred_check
    _
  $region67: #{lstm_site_embedding_forward.1} parent=0 // pred_check_branch
    %5799 = sbr.rel (0) target = $region69
  $region68: #{lstm_site_embedding_forward.1} parent=0 // pred_region
    _
  $region69: #{lstm_site_embedding_forward.1} parent=0 // pred_fallthru
    _
  // Predicated region
  $region70: #{lstm_site_embedding_forward.1} parent=0 // pred_check
    _
  $region71: #{lstm_site_embedding_forward.1} parent=0 // pred_check_branch
    %5801 = sbr.rel (0) target = $region73
  $region72: #{lstm_site_embedding_forward.1} parent=0 // pred_region
    _
  $region73: #{lstm_site_embedding_forward.1} parent=0 // pred_fallthru
    _
  // Predicated region
  $region74: #{lstm_site_embedding_forward.1} parent=0 // pred_check
    _
  $region75: #{lstm_site_embedding_forward.1} parent=0 // pred_check_branch
    %5803 = sbr.rel (0) target = $region77
  $region76: #{lstm_site_embedding_forward.1} parent=0 // pred_region
    _
  $region77: #{lstm_site_embedding_forward.1} parent=0 // pred_fallthru
    _

</llo_original>
